<compile_context>
chip_gen: v7x
topology: tpu7x:2x2x1
jax: 0.10.0
libtpu: 0.0.40
codegen_flags: <defaults>
</compile_context>

<pallas_src>
import functools

import jax
import jax.numpy as jnp
from jax.experimental import pallas as pl
from jax.experimental.pallas import tpu as pltpu


def _bn_relu(x, gamma, beta, eps):
    """Training-mode BatchNorm (biased variance, torch-style) + ReLU over all
    elements of `x` (one channel's whole batch), gamma/beta are SMEM scalars."""
    m = x.shape[0] * x.shape[1]
    mean = jnp.sum(x) * (1.0 / m)
    d = x - mean
    var = jnp.sum(d * d) * (1.0 / m)
    return jnp.maximum(d * jax.lax.rsqrt(var + eps) * gamma + beta, 0.0)


def _fused_oct_bn_relu_kernel(
        hph_ref,   # (2, 2, Cih, HL, WL*N)  raw hf, phase-split, (b, n) in lanes
        lfr_ref,   # (Cil, HL, WL*N)        raw lf, (x, n) in lanes
        whh_ref,   # (Coh*Cih*9,) SMEM      3x3 HtoH weights (PyTorch OIHW, flat)
        wll_ref,   # (Col*Cil*9,) SMEM      3x3 LtoL weights
        whl_ref,   # (Col*Coh,)   SMEM      1x1 HtoL weights
        wlh_ref,   # (Coh*Col,)   SMEM      1x1 LtoH weights
        gh_ref, bh_ref, gl_ref, bl_ref,     # BN affine params (SMEM)
        xh_ref,    # out (Coh, HL, 4*WL*N)  high branch, phase-major lanes
        xl_ref,    # out (Col, HL, WL*N)    low branch
        hp_ref,    # scratch VMEM (2, 2, Cih, HL+1, (WL+1)*N) padded hf phases
        lp_ref,    # scratch VMEM (Cil, HL+2, (WL+2)*N)       padded lf planes
        *, n, eps):
    f32 = jnp.float32
    cih = hph_ref.shape[2]
    hl = hph_ref.shape[3]
    wn = hph_ref.shape[4]          # = WL * N  (batch interleaved in lanes)
    cil = lfr_ref.shape[0]
    coh = xh_ref.shape[0]
    col = xl_ref.shape[0]

    # ---------------- in-kernel zero padding (no jnp.pad in the wrapper) ----
    hp_ref[...] = jnp.zeros(hp_ref.shape, f32)
    lp_ref[...] = jnp.zeros(lp_ref.shape, f32)
    # Padded phase (pu, pv) of hf_pad equals raw phase (1-pu, 1-pv) shifted by
    # (1-pu, 1-pv); everything outside that interior stays zero.
    for pu in range(2):
        for pv in range(2):
            r0 = 1 - pu
            c0 = (1 - pv) * n
            for ci in range(cih):
                hp_ref[pu, pv, ci, r0:r0 + hl, c0:c0 + wn] = \
                    hph_ref[1 - pu, 1 - pv, ci]
    for ci in range(cil):
        lp_ref[ci, 1:1 + hl, n:n + wn] = lfr_ref[ci]

    # ---------------- LtoL: direct 3x3 conv (per-tap ref slices, VPU MACs) --
    oll = []
    for co in range(col):
        acc = jnp.zeros((hl, wn), f32)
        for ci in range(cil):
            base = (co * cil + ci) * 9
            for kh in range(3):
                for kw in range(3):
                    acc = acc + wll_ref[base + kh * 3 + kw] * \
                        lp_ref[ci, kh:kh + hl, kw * n:kw * n + wn]
        oll.append(acc)

    # ---------------- LtoH: 1x1 conv at low resolution ----------------------
    # (the nearest 2x upsample is handled below by adding the same low-res
    #  plane to all four high-frequency output phases -- exact, no relayout)
    mix_lh = []
    for co in range(coh):
        m = jnp.zeros((hl, wn), f32)
        for cl in range(col):
            m = m + wlh_ref[co * col + cl] * oll[cl]
        mix_lh.append(m)

    # ---------------- HtoH conv (per phase) + upsample-add + BN + ReLU ------
    pooled = []
    for co in range(coh):
        phases = []
        for dh in range(2):
            for dw in range(2):
                acc = jnp.zeros((hl, wn), f32)
                for ci in range(cih):
                    base = (co * cih + ci) * 9
                    for kh in range(3):
                        for kw in range(3):
                            u, v = dh + kh, dw + kw
                            acc = acc + whh_ref[base + kh * 3 + kw] * \
                                hp_ref[u % 2, v % 2, ci,
                                       u // 2:u // 2 + hl,
                                       (v // 2) * n:(v // 2) * n + wn]
                phases.append(acc)
        # 2x2 average pool of oHtoH == mean of its four output phases.
        pooled.append(0.25 * (phases[0] + phases[1] + phases[2] + phases[3]))
        # x_h = relu(bn_h(oHtoH + upsample2(conv1x1_lh(oLtoL))))
        row = jnp.concatenate([ph + mix_lh[co] for ph in phases], axis=-1)
        xh_ref[co] = _bn_relu(row, gh_ref[co], bh_ref[co], eps)

    # ---------------- HtoL: 1x1 conv on pooled oHtoH + BN + ReLU ------------
    for co in range(col):
        m = jnp.zeros((hl, wn), f32)
        for ch in range(coh):
            m = m + whl_ref[co * coh + ch] * pooled[ch]
        xl_ref[co] = _bn_relu(oll[co] + m, gl_ref[co], bl_ref[co], eps)


def oct_bn_relu_forward(hf, lf, params, eps=1e-5):
    """Fused OctConv2d(3x3, stride 1, pad 1, 0<alpha<1) + BN(train) + ReLU.

    NOTE: conv biases are dropped inside the kernel; this is exact only
    because BatchNorm uses batch statistics (training mode)."""
    n, cih, h, w = hf.shape
    _, cil, hl, wl = lf.shape
    coh = params["w_hh"].shape[0]
    col = params["w_ll"].shape[0]
    assert h == 2 * hl and w == 2 * wl
    assert coh > 0 and col > 0 and cih > 0 and cil > 0, \
        "fused path requires all four OctConv branches (0 < alpha < 1)"

    f32 = jnp.float32
    hf = hf.astype(f32)
    lf = lf.astype(f32)

    # Pure layout plumbing (one small XLA copy per input): split hf into its
    # four 2x2 phases and fold batch into the lane axis (b-major, n-minor) so
    # that every in-kernel access is a contiguous slice.
    hph = hf.reshape(n, cih, hl, 2, wl, 2).transpose(3, 5, 1, 2, 4, 0)
    hph = hph.reshape(2, 2, cih, hl, wl * n)
    lfr = lf.transpose(1, 2, 3, 0).reshape(cil, hl, wl * n)

    smem = pl.BlockSpec(memory_space=pltpu.MemorySpace.SMEM)

    def vmem_block(shape):
        return pl.BlockSpec(shape, lambda i, _s=shape: (0,) * len(_s))

    xh_flat, xl_flat = pl.pallas_call(
        functools.partial(_fused_oct_bn_relu_kernel, n=n, eps=eps),
        grid=(1,),
        in_specs=[
            vmem_block((2, 2, cih, hl, wl * n)),
            vmem_block((cil, hl, wl * n)),
            smem, smem, smem, smem, smem, smem, smem, smem,
        ],
        out_specs=[
            vmem_block((coh, hl, 4 * wl * n)),
            vmem_block((col, hl, wl * n)),
        ],
        out_shape=[
            jax.ShapeDtypeStruct((coh, hl, 4 * wl * n), f32),
            jax.ShapeDtypeStruct((col, hl, wl * n), f32),
        ],
        scratch_shapes=[
            pltpu.VMEM((2, 2, cih, hl + 1, (wl + 1) * n), f32),
            pltpu.VMEM((cil, hl + 2, (wl + 2) * n), f32),
        ],
        compiler_params=pltpu.CompilerParams(
            dimension_semantics=("arbitrary",)),
    )(hph, lfr,
      params["w_hh"].reshape(-1).astype(f32),
      params["w_ll"].reshape(-1).astype(f32),
      params["w_hl"].reshape(-1).astype(f32),
      params["w_lh"].reshape(-1).astype(f32),
      params["gamma_h"].astype(f32), params["beta_h"].astype(f32),
      params["gamma_l"].astype(f32), params["beta_l"].astype(f32))

    # Undo the phase / batch-interleave layout (XLA reshape + transpose).
    x_h = xh_flat.reshape(coh, hl, 2, 2, wl, n).transpose(5, 0, 1, 2, 4, 3)
    x_h = x_h.reshape(n, coh, h, w)
    x_l = xl_flat.reshape(col, hl, wl, n).transpose(3, 0, 1, 2)
    return x_h, x_l


# ---------------------------------------------------------------------------
# Parameters (PyTorch Conv2d layouts) and a pure-XLA reference for validation.
# ---------------------------------------------------------------------------
def init_params(key, cih, cil, coh, col, k=3):
    ks = jax.random.split(key, 12)
    nrm = lambda kk, shape: 0.1 * jax.random.normal(kk, shape, jnp.float32)
    return {
        "w_hh": nrm(ks[0], (coh, cih, k, k)), "b_hh": nrm(ks[1], (coh,)),
        "w_hl": nrm(ks[2], (col, coh, 1, 1)), "b_hl": nrm(ks[3], (col,)),
        "w_lh": nrm(ks[4], (coh, col, 1, 1)), "b_lh": nrm(ks[5], (coh,)),
        "w_ll": nrm(ks[6], (col, cil, k, k)), "b_ll": nrm(ks[7], (col,)),
        "gamma_h": 1.0 + nrm(ks[8], (coh,)), "beta_h": nrm(ks[9], (coh,)),
        "gamma_l": 1.0 + nrm(ks[10], (col,)), "beta_l": nrm(ks[11], (col,)),
    }


def reference_forward(hf, lf, params, eps=1e-5):
    """Pure-XLA replica of the PyTorch forward (conv biases included; they are
    mathematically cancelled by the training-mode BN mean subtraction)."""
    dn = ("NCHW", "OIHW", "NCHW")
    prec = jax.lax.Precision.HIGHEST

    def conv(x, wk, bk, pad):
        y = jax.lax.conv_general_dilated(
            x, params[wk], window_strides=(1, 1),
            padding=[(pad, pad), (pad, pad)], dimension_numbers=dn,
            precision=prec)
        return y + params[bk][None, :, None, None]

    def pool(x):
        b, c, hh, ww = x.shape
        return x.reshape(b, c, hh // 2, 2, ww // 2, 2).mean(axis=(3, 5))

    def up(x):
        return jnp.repeat(jnp.repeat(x, 2, axis=2), 2, axis=3)

    def bn_relu(x, g, b):
        mean = x.mean(axis=(0, 2, 3), keepdims=True)
        var = ((x - mean) ** 2).mean(axis=(0, 2, 3), keepdims=True)
        y = (x - mean) * jax.lax.rsqrt(var + eps)
        y = y * g[None, :, None, None] + b[None, :, None, None]
        return jnp.maximum(y, 0.0)

    ohh = conv(hf, "w_hh", "b_hh", 1)           # HtoH
    oll = conv(lf, "w_ll", "b_ll", 1)           # LtoL
    ohl = conv(pool(ohh), "w_hl", "b_hl", 0)    # HtoL on avgpool(oHtoH)
    olh = up(conv(oll, "w_lh", "b_lh", 0))      # LtoH on oLtoL, upsampled
    return (bn_relu(ohh + olh, params["gamma_h"], params["beta_h"]),
            bn_relu(oll + ohl, params["gamma_l"], params["beta_l"]))


# ---------------------------------------------------------------------------
if __name__ == "__main__":
    key = jax.random.PRNGKey(0)
    k_hf, k_lf, k_p = jax.random.split(key, 3)

    N = 2
    in_channels, out_channels = 4, 8
    in_alpha = out_alpha = 0.5
    H = W = 16

    cil = int(in_alpha * in_channels)
    cih = in_channels - cil
    col = int(out_alpha * out_channels)
    coh = out_channels - col

    # OctConv input is a tuple (hf, lf); lf lives at half spatial resolution.
    hf = jax.random.normal(k_hf, (N, cih, H, W), jnp.float32)
    lf = jax.random.normal(k_lf, (N, cil, H // 2, W // 2), jnp.float32)
    params = init_params(k_p, cih, cil, coh, col, k=3)

    fwd = jax.jit(oct_bn_relu_forward)
    x_h, x_l = fwd(hf, lf, params)
    jax.block_until_ready((x_h, x_l))

    assert x_h.shape == (N, coh, H, W), x_h.shape
    assert x_l.shape == (N, col, H // 2, W // 2), x_l.shape
    assert bool(jnp.all(x_h >= 0)) and bool(jnp.all(x_l >= 0))   # ReLU

    ref_h, ref_l = reference_forward(hf, lf, params)
    err_h = float(jnp.max(jnp.abs(x_h - ref_h)))
    err_l = float(jnp.max(jnp.abs(x_l - ref_l)))
    # Everything in the kernel is exact f32 VPU math; only summation-order
    # differences remain.
    assert err_h < 1e-3 and err_l < 1e-3, (err_h, err_l)

    print("KERNEL_OK")
</pallas_src>

<mosaic_0001>
module attributes {stable_mosaic.version = 11 : i64} {
  func.func @_fused_oct_bn_relu_kernel(%arg0: i32, %arg1: memref<2x2x2x8x16xf32, #tpu.memory_space<vmem>>, %arg2: memref<2x8x16xf32, #tpu.memory_space<vmem>>, %arg3: memref<72xf32, #tpu.memory_space<smem>>, %arg4: memref<72xf32, #tpu.memory_space<smem>>, %arg5: memref<16xf32, #tpu.memory_space<smem>>, %arg6: memref<16xf32, #tpu.memory_space<smem>>, %arg7: memref<4xf32, #tpu.memory_space<smem>>, %arg8: memref<4xf32, #tpu.memory_space<smem>>, %arg9: memref<4xf32, #tpu.memory_space<smem>>, %arg10: memref<4xf32, #tpu.memory_space<smem>>, %arg11: memref<4x8x64xf32, #tpu.memory_space<vmem>>, %arg12: memref<4x8x16xf32, #tpu.memory_space<vmem>>, %arg13: memref<2x2x2x9x18xf32, #tpu.memory_space<vmem>>, %arg14: memref<2x10x20xf32, #tpu.memory_space<vmem>>) attributes {dimension_semantics = [#tpu.dimension_semantics<arbitrary>], iteration_bounds = array<i64: 1>, scalar_prefetch = 0 : i64, scratch_operands = 2 : i64, tpu.core_type = #tpu.core_type<tc>, window_params = [{pipeline_mode = #tpu.pipeline_mode<synchronous>, transform_indices = @transform_0, window_bounds = array<i64: 2, 2, 2, 8, 16>}, {pipeline_mode = #tpu.pipeline_mode<synchronous>, transform_indices = @transform_1, window_bounds = array<i64: 2, 8, 16>}, {transform_indices = @transform_2, window_bounds = array<i64: 72>}, {transform_indices = @transform_3, window_bounds = array<i64: 72>}, {transform_indices = @transform_4, window_bounds = array<i64: 16>}, {transform_indices = @transform_5, window_bounds = array<i64: 16>}, {transform_indices = @transform_6, window_bounds = array<i64: 4>}, {transform_indices = @transform_7, window_bounds = array<i64: 4>}, {transform_indices = @transform_8, window_bounds = array<i64: 4>}, {transform_indices = @transform_9, window_bounds = array<i64: 4>}, {pipeline_mode = #tpu.pipeline_mode<synchronous>, transform_indices = @transform_10, window_bounds = array<i64: 4, 8, 64>}, {pipeline_mode = #tpu.pipeline_mode<synchronous>, transform_indices = @transform_11, window_bounds = array<i64: 4, 8, 16>}]} {
    %cst = arith.constant 0.000000e+00 : f32
    %0 = vector.broadcast %cst : f32 to vector<2x2x2x9x18xf32>
    %c0 = arith.constant 0 : index
    %c0_0 = arith.constant 0 : index
    %c0_1 = arith.constant 0 : index
    %c0_2 = arith.constant 0 : index
    %c0_3 = arith.constant 0 : index
    %1 = vector.load %arg13[%c0, %c0_0, %c0_1, %c0_2, %c0_3] : memref<2x2x2x9x18xf32, #tpu.memory_space<vmem>>, vector<2x2x2x9x18xf32>
    tpu.vector_store %arg13[%c0, %c0_0, %c0_1, %c0_2, %c0_3], %0 {strides = array<i32>} : memref<2x2x2x9x18xf32, #tpu.memory_space<vmem>>, vector<2x2x2x9x18xf32>,
    %cst_4 = arith.constant 0.000000e+00 : f32
    %2 = vector.broadcast %cst_4 : f32 to vector<2x10x20xf32>
    %c0_5 = arith.constant 0 : index
    %c0_6 = arith.constant 0 : index
    %c0_7 = arith.constant 0 : index
    %3 = vector.load %arg14[%c0_5, %c0_6, %c0_7] : memref<2x10x20xf32, #tpu.memory_space<vmem>>, vector<2x10x20xf32>
    tpu.vector_store %arg14[%c0_5, %c0_6, %c0_7], %2 {strides = array<i32>} : memref<2x10x20xf32, #tpu.memory_space<vmem>>, vector<2x10x20xf32>,
    %c1 = arith.constant 1 : index
    %c1_8 = arith.constant 1 : index
    %c0_9 = arith.constant 0 : index
    %c0_10 = arith.constant 0 : index
    %c0_11 = arith.constant 0 : index
    %4 = vector.load %arg1[%c1, %c1_8, %c0_9, %c0_10, %c0_11] : memref<2x2x2x8x16xf32, #tpu.memory_space<vmem>>, vector<1x1x1x8x16xf32>
    %5 = vector.shape_cast %4 : vector<1x1x1x8x16xf32> to vector<8x16xf32>
    %c0_12 = arith.constant 0 : index
    %c0_13 = arith.constant 0 : index
    %c0_14 = arith.constant 0 : index
    %c1_15 = arith.constant 1 : index
    %c2 = arith.constant 2 : index
    %6 = vector.load %arg13[%c0_12, %c0_13, %c0_14, %c1_15, %c2] : memref<2x2x2x9x18xf32, #tpu.memory_space<vmem>>, vector<1x1x1x8x16xf32>
    %7 = vector.shape_cast %6 : vector<1x1x1x8x16xf32> to vector<8x16xf32>
    %8 = vector.shape_cast %5 : vector<8x16xf32> to vector<1x1x1x8x16xf32>
    tpu.vector_store %arg13[%c0_12, %c0_13, %c0_14, %c1_15, %c2], %8 {strides = array<i32>} : memref<2x2x2x9x18xf32, #tpu.memory_space<vmem>>, vector<1x1x1x8x16xf32>,
    %c1_16 = arith.constant 1 : index
    %c1_17 = arith.constant 1 : index
    %c1_18 = arith.constant 1 : index
    %c0_19 = arith.constant 0 : index
    %c0_20 = arith.constant 0 : index
    %9 = vector.load %arg1[%c1_16, %c1_17, %c1_18, %c0_19, %c0_20] : memref<2x2x2x8x16xf32, #tpu.memory_space<vmem>>, vector<1x1x1x8x16xf32>
    %10 = vector.shape_cast %9 : vector<1x1x1x8x16xf32> to vector<8x16xf32>
    %c0_21 = arith.constant 0 : index
    %c0_22 = arith.constant 0 : index
    %c1_23 = arith.constant 1 : index
    %c1_24 = arith.constant 1 : index
    %c2_25 = arith.constant 2 : index
    %11 = vector.load %arg13[%c0_21, %c0_22, %c1_23, %c1_24, %c2_25] : memref<2x2x2x9x18xf32, #tpu.memory_space<vmem>>, vector<1x1x1x8x16xf32>
    %12 = vector.shape_cast %11 : vector<1x1x1x8x16xf32> to vector<8x16xf32>
    %13 = vector.shape_cast %10 : vector<8x16xf32> to vector<1x1x1x8x16xf32>
    tpu.vector_store %arg13[%c0_21, %c0_22, %c1_23, %c1_24, %c2_25], %13 {strides = array<i32>} : memref<2x2x2x9x18xf32, #tpu.memory_space<vmem>>, vector<1x1x1x8x16xf32>,
    %c1_26 = arith.constant 1 : index
    %c0_27 = arith.constant 0 : index
    %c0_28 = arith.constant 0 : index
    %c0_29 = arith.constant 0 : index
    %c0_30 = arith.constant 0 : index
    %14 = vector.load %arg1[%c1_26, %c0_27, %c0_28, %c0_29, %c0_30] : memref<2x2x2x8x16xf32, #tpu.memory_space<vmem>>, vector<1x1x1x8x16xf32>
    %15 = vector.shape_cast %14 : vector<1x1x1x8x16xf32> to vector<8x16xf32>
    %c0_31 = arith.constant 0 : index
    %c1_32 = arith.constant 1 : index
    %c0_33 = arith.constant 0 : index
    %c1_34 = arith.constant 1 : index
    %c0_35 = arith.constant 0 : index
    %16 = vector.load %arg13[%c0_31, %c1_32, %c0_33, %c1_34, %c0_35] : memref<2x2x2x9x18xf32, #tpu.memory_space<vmem>>, vector<1x1x1x8x16xf32>
    %17 = vector.shape_cast %16 : vector<1x1x1x8x16xf32> to vector<8x16xf32>
    %18 = vector.shape_cast %15 : vector<8x16xf32> to vector<1x1x1x8x16xf32>
    tpu.vector_store %arg13[%c0_31, %c1_32, %c0_33, %c1_34, %c0_35], %18 {strides = array<i32>} : memref<2x2x2x9x18xf32, #tpu.memory_space<vmem>>, vector<1x1x1x8x16xf32>,
    %c1_36 = arith.constant 1 : index
    %c0_37 = arith.constant 0 : index
    %c1_38 = arith.constant 1 : index
    %c0_39 = arith.constant 0 : index
    %c0_40 = arith.constant 0 : index
    %19 = vector.load %arg1[%c1_36, %c0_37, %c1_38, %c0_39, %c0_40] : memref<2x2x2x8x16xf32, #tpu.memory_space<vmem>>, vector<1x1x1x8x16xf32>
    %20 = vector.shape_cast %19 : vector<1x1x1x8x16xf32> to vector<8x16xf32>
    %c0_41 = arith.constant 0 : index
    %c1_42 = arith.constant 1 : index
    %c1_43 = arith.constant 1 : index
    %c1_44 = arith.constant 1 : index
    %c0_45 = arith.constant 0 : index
    %21 = vector.load %arg13[%c0_41, %c1_42, %c1_43, %c1_44, %c0_45] : memref<2x2x2x9x18xf32, #tpu.memory_space<vmem>>, vector<1x1x1x8x16xf32>
    %22 = vector.shape_cast %21 : vector<1x1x1x8x16xf32> to vector<8x16xf32>
    %23 = vector.shape_cast %20 : vector<8x16xf32> to vector<1x1x1x8x16xf32>
    tpu.vector_store %arg13[%c0_41, %c1_42, %c1_43, %c1_44, %c0_45], %23 {strides = array<i32>} : memref<2x2x2x9x18xf32, #tpu.memory_space<vmem>>, vector<1x1x1x8x16xf32>,
    %c0_46 = arith.constant 0 : index
    %c1_47 = arith.constant 1 : index
    %c0_48 = arith.constant 0 : index
    %c0_49 = arith.constant 0 : index
    %c0_50 = arith.constant 0 : index
    %24 = vector.load %arg1[%c0_46, %c1_47, %c0_48, %c0_49, %c0_50] : memref<2x2x2x8x16xf32, #tpu.memory_space<vmem>>, vector<1x1x1x8x16xf32>
    %25 = vector.shape_cast %24 : vector<1x1x1x8x16xf32> to vector<8x16xf32>
    %c1_51 = arith.constant 1 : index
    %c0_52 = arith.constant 0 : index
    %c0_53 = arith.constant 0 : index
    %c0_54 = arith.constant 0 : index
    %c2_55 = arith.constant 2 : index
    %26 = vector.load %arg13[%c1_51, %c0_52, %c0_53, %c0_54, %c2_55] : memref<2x2x2x9x18xf32, #tpu.memory_space<vmem>>, vector<1x1x1x8x16xf32>
    %27 = vector.shape_cast %26 : vector<1x1x1x8x16xf32> to vector<8x16xf32>
    %28 = vector.shape_cast %25 : vector<8x16xf32> to vector<1x1x1x8x16xf32>
    tpu.vector_store %arg13[%c1_51, %c0_52, %c0_53, %c0_54, %c2_55], %28 {strides = array<i32>} : memref<2x2x2x9x18xf32, #tpu.memory_space<vmem>>, vector<1x1x1x8x16xf32>,
    %c0_56 = arith.constant 0 : index
    %c1_57 = arith.constant 1 : index
    %c1_58 = arith.constant 1 : index
    %c0_59 = arith.constant 0 : index
    %c0_60 = arith.constant 0 : index
    %29 = vector.load %arg1[%c0_56, %c1_57, %c1_58, %c0_59, %c0_60] : memref<2x2x2x8x16xf32, #tpu.memory_space<vmem>>, vector<1x1x1x8x16xf32>
    %30 = vector.shape_cast %29 : vector<1x1x1x8x16xf32> to vector<8x16xf32>
    %c1_61 = arith.constant 1 : index
    %c0_62 = arith.constant 0 : index
    %c1_63 = arith.constant 1 : index
    %c0_64 = arith.constant 0 : index
    %c2_65 = arith.constant 2 : index
    %31 = vector.load %arg13[%c1_61, %c0_62, %c1_63, %c0_64, %c2_65] : memref<2x2x2x9x18xf32, #tpu.memory_space<vmem>>, vector<1x1x1x8x16xf32>
    %32 = vector.shape_cast %31 : vector<1x1x1x8x16xf32> to vector<8x16xf32>
    %33 = vector.shape_cast %30 : vector<8x16xf32> to vector<1x1x1x8x16xf32>
    tpu.vector_store %arg13[%c1_61, %c0_62, %c1_63, %c0_64, %c2_65], %33 {strides = array<i32>} : memref<2x2x2x9x18xf32, #tpu.memory_space<vmem>>, vector<1x1x1x8x16xf32>,
    %c0_66 = arith.constant 0 : index
    %c0_67 = arith.constant 0 : index
    %c0_68 = arith.constant 0 : index
    %c0_69 = arith.constant 0 : index
    %c0_70 = arith.constant 0 : index
    %34 = vector.load %arg1[%c0_66, %c0_67, %c0_68, %c0_69, %c0_70] : memref<2x2x2x8x16xf32, #tpu.memory_space<vmem>>, vector<1x1x1x8x16xf32>
    %35 = vector.shape_cast %34 : vector<1x1x1x8x16xf32> to vector<8x16xf32>
    %c1_71 = arith.constant 1 : index
    %c1_72 = arith.constant 1 : index
    %c0_73 = arith.constant 0 : index
    %c0_74 = arith.constant 0 : index
    %c0_75 = arith.constant 0 : index
    %36 = vector.load %arg13[%c1_71, %c1_72, %c0_73, %c0_74, %c0_75] : memref<2x2x2x9x18xf32, #tpu.memory_space<vmem>>, vector<1x1x1x8x16xf32>
    %37 = vector.shape_cast %36 : vector<1x1x1x8x16xf32> to vector<8x16xf32>
    %38 = vector.shape_cast %35 : vector<8x16xf32> to vector<1x1x1x8x16xf32>
    tpu.vector_store %arg13[%c1_71, %c1_72, %c0_73, %c0_74, %c0_75], %38 {strides = array<i32>} : memref<2x2x2x9x18xf32, #tpu.memory_space<vmem>>, vector<1x1x1x8x16xf32>,
    %c0_76 = arith.constant 0 : index
    %c0_77 = arith.constant 0 : index
    %c1_78 = arith.constant 1 : index
    %c0_79 = arith.constant 0 : index
    %c0_80 = arith.constant 0 : index
    %39 = vector.load %arg1[%c0_76, %c0_77, %c1_78, %c0_79, %c0_80] : memref<2x2x2x8x16xf32, #tpu.memory_space<vmem>>, vector<1x1x1x8x16xf32>
    %40 = vector.shape_cast %39 : vector<1x1x1x8x16xf32> to vector<8x16xf32>
    %c1_81 = arith.constant 1 : index
    %c1_82 = arith.constant 1 : index
    %c1_83 = arith.constant 1 : index
    %c0_84 = arith.constant 0 : index
    %c0_85 = arith.constant 0 : index
    %41 = vector.load %arg13[%c1_81, %c1_82, %c1_83, %c0_84, %c0_85] : memref<2x2x2x9x18xf32, #tpu.memory_space<vmem>>, vector<1x1x1x8x16xf32>
    %42 = vector.shape_cast %41 : vector<1x1x1x8x16xf32> to vector<8x16xf32>
    %43 = vector.shape_cast %40 : vector<8x16xf32> to vector<1x1x1x8x16xf32>
    tpu.vector_store %arg13[%c1_81, %c1_82, %c1_83, %c0_84, %c0_85], %43 {strides = array<i32>} : memref<2x2x2x9x18xf32, #tpu.memory_space<vmem>>, vector<1x1x1x8x16xf32>,
    %c0_86 = arith.constant 0 : index
    %c0_87 = arith.constant 0 : index
    %c0_88 = arith.constant 0 : index
    %44 = vector.load %arg2[%c0_86, %c0_87, %c0_88] : memref<2x8x16xf32, #tpu.memory_space<vmem>>, vector<1x8x16xf32>
    %45 = vector.shape_cast %44 : vector<1x8x16xf32> to vector<8x16xf32>
    %c0_89 = arith.constant 0 : index
    %c1_90 = arith.constant 1 : index
    %c2_91 = arith.constant 2 : index
    %46 = vector.load %arg14[%c0_89, %c1_90, %c2_91] : memref<2x10x20xf32, #tpu.memory_space<vmem>>, vector<1x8x16xf32>
    %47 = vector.shape_cast %46 : vector<1x8x16xf32> to vector<8x16xf32>
    %48 = vector.shape_cast %45 : vector<8x16xf32> to vector<1x8x16xf32>
    tpu.vector_store %arg14[%c0_89, %c1_90, %c2_91], %48 {strides = array<i32>} : memref<2x10x20xf32, #tpu.memory_space<vmem>>, vector<1x8x16xf32>,
    %c1_92 = arith.constant 1 : index
    %c0_93 = arith.constant 0 : index
    %c0_94 = arith.constant 0 : index
    %49 = vector.load %arg2[%c1_92, %c0_93, %c0_94] : memref<2x8x16xf32, #tpu.memory_space<vmem>>, vector<1x8x16xf32>
    %50 = vector.shape_cast %49 : vector<1x8x16xf32> to vector<8x16xf32>
    %c1_95 = arith.constant 1 : index
    %c1_96 = arith.constant 1 : index
    %c2_97 = arith.constant 2 : index
    %51 = vector.load %arg14[%c1_95, %c1_96, %c2_97] : memref<2x10x20xf32, #tpu.memory_space<vmem>>, vector<1x8x16xf32>
    %52 = vector.shape_cast %51 : vector<1x8x16xf32> to vector<8x16xf32>
    %53 = vector.shape_cast %50 : vector<8x16xf32> to vector<1x8x16xf32>
    tpu.vector_store %arg14[%c1_95, %c1_96, %c2_97], %53 {strides = array<i32>} : memref<2x10x20xf32, #tpu.memory_space<vmem>>, vector<1x8x16xf32>,
    %cst_98 = arith.constant 0.000000e+00 : f32
    %54 = vector.broadcast %cst_98 : f32 to vector<8x16xf32>
    %c0_99 = arith.constant 0 : index
    %55 = memref.load %arg4[%c0_99] : memref<72xf32, #tpu.memory_space<smem>>
    %c0_100 = arith.constant 0 : index
    %c0_101 = arith.constant 0 : index
    %c0_102 = arith.constant 0 : index
    %56 = vector.load %arg14[%c0_100, %c0_101, %c0_102] : memref<2x10x20xf32, #tpu.memory_space<vmem>>, vector<1x8x16xf32>
    %57 = vector.shape_cast %56 : vector<1x8x16xf32> to vector<8x16xf32>
    %58 = vector.broadcast %55 : f32 to vector<8x16xf32>
    %59 = arith.mulf %58, %57 : vector<8x16xf32>
    %60 = arith.addf %54, %59 : vector<8x16xf32>
    %c1_103 = arith.constant 1 : index
    %61 = memref.load %arg4[%c1_103] : memref<72xf32, #tpu.memory_space<smem>>
    %c0_104 = arith.constant 0 : index
    %c0_105 = arith.constant 0 : index
    %c2_106 = arith.constant 2 : index
    %62 = vector.load %arg14[%c0_104, %c0_105, %c2_106] : memref<2x10x20xf32, #tpu.memory_space<vmem>>, vector<1x8x16xf32>
    %63 = vector.shape_cast %62 : vector<1x8x16xf32> to vector<8x16xf32>
    %64 = vector.broadcast %61 : f32 to vector<8x16xf32>
    %65 = arith.mulf %64, %63 : vector<8x16xf32>
    %66 = arith.addf %60, %65 : vector<8x16xf32>
    %c2_107 = arith.constant 2 : index
    %67 = memref.load %arg4[%c2_107] : memref<72xf32, #tpu.memory_space<smem>>
    %c0_108 = arith.constant 0 : index
    %c0_109 = arith.constant 0 : index
    %c4 = arith.constant 4 : index
    %68 = vector.load %arg14[%c0_108, %c0_109, %c4] : memref<2x10x20xf32, #tpu.memory_space<vmem>>, vector<1x8x16xf32>
    %69 = vector.shape_cast %68 : vector<1x8x16xf32> to vector<8x16xf32>
    %70 = vector.broadcast %67 : f32 to vector<8x16xf32>
    %71 = arith.mulf %70, %69 : vector<8x16xf32>
    %72 = arith.addf %66, %71 : vector<8x16xf32>
    %c3 = arith.constant 3 : index
    %73 = memref.load %arg4[%c3] : memref<72xf32, #tpu.memory_space<smem>>
    %c0_110 = arith.constant 0 : index
    %c1_111 = arith.constant 1 : index
    %c0_112 = arith.constant 0 : index
    %74 = vector.load %arg14[%c0_110, %c1_111, %c0_112] : memref<2x10x20xf32, #tpu.memory_space<vmem>>, vector<1x8x16xf32>
    %75 = vector.shape_cast %74 : vector<1x8x16xf32> to vector<8x16xf32>
    %76 = vector.broadcast %73 : f32 to vector<8x16xf32>
    %77 = arith.mulf %76, %75 : vector<8x16xf32>
    %78 = arith.addf %72, %77 : vector<8x16xf32>
    %c4_113 = arith.constant 4 : index
    %79 = memref.load %arg4[%c4_113] : memref<72xf32, #tpu.memory_space<smem>>
    %c0_114 = arith.constant 0 : index
    %c1_115 = arith.constant 1 : index
    %c2_116 = arith.constant 2 : index
    %80 = vector.load %arg14[%c0_114, %c1_115, %c2_116] : memref<2x10x20xf32, #tpu.memory_space<vmem>>, vector<1x8x16xf32>
    %81 = vector.shape_cast %80 : vector<1x8x16xf32> to vector<8x16xf32>
    %82 = vector.broadcast %79 : f32 to vector<8x16xf32>
    %83 = arith.mulf %82, %81 : vector<8x16xf32>
    %84 = arith.addf %78, %83 : vector<8x16xf32>
    %c5 = arith.constant 5 : index
    %85 = memref.load %arg4[%c5] : memref<72xf32, #tpu.memory_space<smem>>
    %c0_117 = arith.constant 0 : index
    %c1_118 = arith.constant 1 : index
    %c4_119 = arith.constant 4 : index
    %86 = vector.load %arg14[%c0_117, %c1_118, %c4_119] : memref<2x10x20xf32, #tpu.memory_space<vmem>>, vector<1x8x16xf32>
    %87 = vector.shape_cast %86 : vector<1x8x16xf32> to vector<8x16xf32>
    %88 = vector.broadcast %85 : f32 to vector<8x16xf32>
    %89 = arith.mulf %88, %87 : vector<8x16xf32>
    %90 = arith.addf %84, %89 : vector<8x16xf32>
    %c6 = arith.constant 6 : index
    %91 = memref.load %arg4[%c6] : memref<72xf32, #tpu.memory_space<smem>>
    %c0_120 = arith.constant 0 : index
    %c2_121 = arith.constant 2 : index
    %c0_122 = arith.constant 0 : index
    %92 = vector.load %arg14[%c0_120, %c2_121, %c0_122] : memref<2x10x20xf32, #tpu.memory_space<vmem>>, vector<1x8x16xf32>
    %93 = vector.shape_cast %92 : vector<1x8x16xf32> to vector<8x16xf32>
    %94 = vector.broadcast %91 : f32 to vector<8x16xf32>
    %95 = arith.mulf %94, %93 : vector<8x16xf32>
    %96 = arith.addf %90, %95 : vector<8x16xf32>
    %c7 = arith.constant 7 : index
    %97 = memref.load %arg4[%c7] : memref<72xf32, #tpu.memory_space<smem>>
    %c0_123 = arith.constant 0 : index
    %c2_124 = arith.constant 2 : index
    %c2_125 = arith.constant 2 : index
    %98 = vector.load %arg14[%c0_123, %c2_124, %c2_125] : memref<2x10x20xf32, #tpu.memory_space<vmem>>, vector<1x8x16xf32>
    %99 = vector.shape_cast %98 : vector<1x8x16xf32> to vector<8x16xf32>
    %100 = vector.broadcast %97 : f32 to vector<8x16xf32>
    %101 = arith.mulf %100, %99 : vector<8x16xf32>
    %102 = arith.addf %96, %101 : vector<8x16xf32>
    %c8 = arith.constant 8 : index
    %103 = memref.load %arg4[%c8] : memref<72xf32, #tpu.memory_space<smem>>
    %c0_126 = arith.constant 0 : index
    %c2_127 = arith.constant 2 : index
    %c4_128 = arith.constant 4 : index
    %104 = vector.load %arg14[%c0_126, %c2_127, %c4_128] : memref<2x10x20xf32, #tpu.memory_space<vmem>>, vector<1x8x16xf32>
    %105 = vector.shape_cast %104 : vector<1x8x16xf32> to vector<8x16xf32>
    %106 = vector.broadcast %103 : f32 to vector<8x16xf32>
    %107 = arith.mulf %106, %105 : vector<8x16xf32>
    %108 = arith.addf %102, %107 : vector<8x16xf32>
    %c9 = arith.constant 9 : index
    %109 = memref.load %arg4[%c9] : memref<72xf32, #tpu.memory_space<smem>>
    %c1_129 = arith.constant 1 : index
    %c0_130 = arith.constant 0 : index
    %c0_131 = arith.constant 0 : index
    %110 = vector.load %arg14[%c1_129, %c0_130, %c0_131] : memref<2x10x20xf32, #tpu.memory_space<vmem>>, vector<1x8x16xf32>
    %111 = vector.shape_cast %110 : vector<1x8x16xf32> to vector<8x16xf32>
    %112 = vector.broadcast %109 : f32 to vector<8x16xf32>
    %113 = arith.mulf %112, %111 : vector<8x16xf32>
    %114 = arith.addf %108, %113 : vector<8x16xf32>
    %c10 = arith.constant 10 : index
    %115 = memref.load %arg4[%c10] : memref<72xf32, #tpu.memory_space<smem>>
    %c1_132 = arith.constant 1 : index
    %c0_133 = arith.constant 0 : index
    %c2_134 = arith.constant 2 : index
    %116 = vector.load %arg14[%c1_132, %c0_133, %c2_134] : memref<2x10x20xf32, #tpu.memory_space<vmem>>, vector<1x8x16xf32>
    %117 = vector.shape_cast %116 : vector<1x8x16xf32> to vector<8x16xf32>
    %118 = vector.broadcast %115 : f32 to vector<8x16xf32>
    %119 = arith.mulf %118, %117 : vector<8x16xf32>
    %120 = arith.addf %114, %119 : vector<8x16xf32>
    %c11 = arith.constant 11 : index
    %121 = memref.load %arg4[%c11] : memref<72xf32, #tpu.memory_space<smem>>
    %c1_135 = arith.constant 1 : index
    %c0_136 = arith.constant 0 : index
    %c4_137 = arith.constant 4 : index
    %122 = vector.load %arg14[%c1_135, %c0_136, %c4_137] : memref<2x10x20xf32, #tpu.memory_space<vmem>>, vector<1x8x16xf32>
    %123 = vector.shape_cast %122 : vector<1x8x16xf32> to vector<8x16xf32>
    %124 = vector.broadcast %121 : f32 to vector<8x16xf32>
    %125 = arith.mulf %124, %123 : vector<8x16xf32>
    %126 = arith.addf %120, %125 : vector<8x16xf32>
    %c12 = arith.constant 12 : index
    %127 = memref.load %arg4[%c12] : memref<72xf32, #tpu.memory_space<smem>>
    %c1_138 = arith.constant 1 : index
    %c1_139 = arith.constant 1 : index
    %c0_140 = arith.constant 0 : index
    %128 = vector.load %arg14[%c1_138, %c1_139, %c0_140] : memref<2x10x20xf32, #tpu.memory_space<vmem>>, vector<1x8x16xf32>
    %129 = vector.shape_cast %128 : vector<1x8x16xf32> to vector<8x16xf32>
    %130 = vector.broadcast %127 : f32 to vector<8x16xf32>
    %131 = arith.mulf %130, %129 : vector<8x16xf32>
    %132 = arith.addf %126, %131 : vector<8x16xf32>
    %c13 = arith.constant 13 : index
    %133 = memref.load %arg4[%c13] : memref<72xf32, #tpu.memory_space<smem>>
    %c1_141 = arith.constant 1 : index
    %c1_142 = arith.constant 1 : index
    %c2_143 = arith.constant 2 : index
    %134 = vector.load %arg14[%c1_141, %c1_142, %c2_143] : memref<2x10x20xf32, #tpu.memory_space<vmem>>, vector<1x8x16xf32>
    %135 = vector.shape_cast %134 : vector<1x8x16xf32> to vector<8x16xf32>
    %136 = vector.broadcast %133 : f32 to vector<8x16xf32>
    %137 = arith.mulf %136, %135 : vector<8x16xf32>
    %138 = arith.addf %132, %137 : vector<8x16xf32>
    %c14 = arith.constant 14 : index
    %139 = memref.load %arg4[%c14] : memref<72xf32, #tpu.memory_space<smem>>
    %c1_144 = arith.constant 1 : index
    %c1_145 = arith.constant 1 : index
    %c4_146 = arith.constant 4 : index
    %140 = vector.load %arg14[%c1_144, %c1_145, %c4_146] : memref<2x10x20xf32, #tpu.memory_space<vmem>>, vector<1x8x16xf32>
    %141 = vector.shape_cast %140 : vector<1x8x16xf32> to vector<8x16xf32>
    %142 = vector.broadcast %139 : f32 to vector<8x16xf32>
    %143 = arith.mulf %142, %141 : vector<8x16xf32>
    %144 = arith.addf %138, %143 : vector<8x16xf32>
    %c15 = arith.constant 15 : index
    %145 = memref.load %arg4[%c15] : memref<72xf32, #tpu.memory_space<smem>>
    %c1_147 = arith.constant 1 : index
    %c2_148 = arith.constant 2 : index
    %c0_149 = arith.constant 0 : index
    %146 = vector.load %arg14[%c1_147, %c2_148, %c0_149] : memref<2x10x20xf32, #tpu.memory_space<vmem>>, vector<1x8x16xf32>
    %147 = vector.shape_cast %146 : vector<1x8x16xf32> to vector<8x16xf32>
    %148 = vector.broadcast %145 : f32 to vector<8x16xf32>
    %149 = arith.mulf %148, %147 : vector<8x16xf32>
    %150 = arith.addf %144, %149 : vector<8x16xf32>
    %c16 = arith.constant 16 : index
    %151 = memref.load %arg4[%c16] : memref<72xf32, #tpu.memory_space<smem>>
    %c1_150 = arith.constant 1 : index
    %c2_151 = arith.constant 2 : index
    %c2_152 = arith.constant 2 : index
    %152 = vector.load %arg14[%c1_150, %c2_151, %c2_152] : memref<2x10x20xf32, #tpu.memory_space<vmem>>, vector<1x8x16xf32>
    %153 = vector.shape_cast %152 : vector<1x8x16xf32> to vector<8x16xf32>
    %154 = vector.broadcast %151 : f32 to vector<8x16xf32>
    %155 = arith.mulf %154, %153 : vector<8x16xf32>
    %156 = arith.addf %150, %155 : vector<8x16xf32>
    %c17 = arith.constant 17 : index
    %157 = memref.load %arg4[%c17] : memref<72xf32, #tpu.memory_space<smem>>
    %c1_153 = arith.constant 1 : index
    %c2_154 = arith.constant 2 : index
    %c4_155 = arith.constant 4 : index
    %158 = vector.load %arg14[%c1_153, %c2_154, %c4_155] : memref<2x10x20xf32, #tpu.memory_space<vmem>>, vector<1x8x16xf32>
    %159 = vector.shape_cast %158 : vector<1x8x16xf32> to vector<8x16xf32>
    %160 = vector.broadcast %157 : f32 to vector<8x16xf32>
    %161 = arith.mulf %160, %159 : vector<8x16xf32>
    %162 = arith.addf %156, %161 : vector<8x16xf32>
    %cst_156 = arith.constant 0.000000e+00 : f32
    %163 = vector.broadcast %cst_156 : f32 to vector<8x16xf32>
    %c18 = arith.constant 18 : index
    %164 = memref.load %arg4[%c18] : memref<72xf32, #tpu.memory_space<smem>>
    %c0_157 = arith.constant 0 : index
    %c0_158 = arith.constant 0 : index
    %c0_159 = arith.constant 0 : index
    %165 = vector.load %arg14[%c0_157, %c0_158, %c0_159] : memref<2x10x20xf32, #tpu.memory_space<vmem>>, vector<1x8x16xf32>
    %166 = vector.shape_cast %165 : vector<1x8x16xf32> to vector<8x16xf32>
    %167 = vector.broadcast %164 : f32 to vector<8x16xf32>
    %168 = arith.mulf %167, %166 : vector<8x16xf32>
    %169 = arith.addf %163, %168 : vector<8x16xf32>
    %c19 = arith.constant 19 : index
    %170 = memref.load %arg4[%c19] : memref<72xf32, #tpu.memory_space<smem>>
    %c0_160 = arith.constant 0 : index
    %c0_161 = arith.constant 0 : index
    %c2_162 = arith.constant 2 : index
    %171 = vector.load %arg14[%c0_160, %c0_161, %c2_162] : memref<2x10x20xf32, #tpu.memory_space<vmem>>, vector<1x8x16xf32>
    %172 = vector.shape_cast %171 : vector<1x8x16xf32> to vector<8x16xf32>
    %173 = vector.broadcast %170 : f32 to vector<8x16xf32>
    %174 = arith.mulf %173, %172 : vector<8x16xf32>
    %175 = arith.addf %169, %174 : vector<8x16xf32>
    %c20 = arith.constant 20 : index
    %176 = memref.load %arg4[%c20] : memref<72xf32, #tpu.memory_space<smem>>
    %c0_163 = arith.constant 0 : index
    %c0_164 = arith.constant 0 : index
    %c4_165 = arith.constant 4 : index
    %177 = vector.load %arg14[%c0_163, %c0_164, %c4_165] : memref<2x10x20xf32, #tpu.memory_space<vmem>>, vector<1x8x16xf32>
    %178 = vector.shape_cast %177 : vector<1x8x16xf32> to vector<8x16xf32>
    %179 = vector.broadcast %176 : f32 to vector<8x16xf32>
    %180 = arith.mulf %179, %178 : vector<8x16xf32>
    %181 = arith.addf %175, %180 : vector<8x16xf32>
    %c21 = arith.constant 21 : index
    %182 = memref.load %arg4[%c21] : memref<72xf32, #tpu.memory_space<smem>>
    %c0_166 = arith.constant 0 : index
    %c1_167 = arith.constant 1 : index
    %c0_168 = arith.constant 0 : index
    %183 = vector.load %arg14[%c0_166, %c1_167, %c0_168] : memref<2x10x20xf32, #tpu.memory_space<vmem>>, vector<1x8x16xf32>
    %184 = vector.shape_cast %183 : vector<1x8x16xf32> to vector<8x16xf32>
    %185 = vector.broadcast %182 : f32 to vector<8x16xf32>
    %186 = arith.mulf %185, %184 : vector<8x16xf32>
    %187 = arith.addf %181, %186 : vector<8x16xf32>
    %c22 = arith.constant 22 : index
    %188 = memref.load %arg4[%c22] : memref<72xf32, #tpu.memory_space<smem>>
    %c0_169 = arith.constant 0 : index
    %c1_170 = arith.constant 1 : index
    %c2_171 = arith.constant 2 : index
    %189 = vector.load %arg14[%c0_169, %c1_170, %c2_171] : memref<2x10x20xf32, #tpu.memory_space<vmem>>, vector<1x8x16xf32>
    %190 = vector.shape_cast %189 : vector<1x8x16xf32> to vector<8x16xf32>
    %191 = vector.broadcast %188 : f32 to vector<8x16xf32>
    %192 = arith.mulf %191, %190 : vector<8x16xf32>
    %193 = arith.addf %187, %192 : vector<8x16xf32>
    %c23 = arith.constant 23 : index
    %194 = memref.load %arg4[%c23] : memref<72xf32, #tpu.memory_space<smem>>
    %c0_172 = arith.constant 0 : index
    %c1_173 = arith.constant 1 : index
    %c4_174 = arith.constant 4 : index
    %195 = vector.load %arg14[%c0_172, %c1_173, %c4_174] : memref<2x10x20xf32, #tpu.memory_space<vmem>>, vector<1x8x16xf32>
    %196 = vector.shape_cast %195 : vector<1x8x16xf32> to vector<8x16xf32>
    %197 = vector.broadcast %194 : f32 to vector<8x16xf32>
    %198 = arith.mulf %197, %196 : vector<8x16xf32>
    %199 = arith.addf %193, %198 : vector<8x16xf32>
    %c24 = arith.constant 24 : index
    %200 = memref.load %arg4[%c24] : memref<72xf32, #tpu.memory_space<smem>>
    %c0_175 = arith.constant 0 : index
    %c2_176 = arith.constant 2 : index
    %c0_177 = arith.constant 0 : index
    %201 = vector.load %arg14[%c0_175, %c2_176, %c0_177] : memref<2x10x20xf32, #tpu.memory_space<vmem>>, vector<1x8x16xf32>
    %202 = vector.shape_cast %201 : vector<1x8x16xf32> to vector<8x16xf32>
    %203 = vector.broadcast %200 : f32 to vector<8x16xf32>
    %204 = arith.mulf %203, %202 : vector<8x16xf32>
    %205 = arith.addf %199, %204 : vector<8x16xf32>
    %c25 = arith.constant 25 : index
    %206 = memref.load %arg4[%c25] : memref<72xf32, #tpu.memory_space<smem>>
    %c0_178 = arith.constant 0 : index
    %c2_179 = arith.constant 2 : index
    %c2_180 = arith.constant 2 : index
    %207 = vector.load %arg14[%c0_178, %c2_179, %c2_180] : memref<2x10x20xf32, #tpu.memory_space<vmem>>, vector<1x8x16xf32>
    %208 = vector.shape_cast %207 : vector<1x8x16xf32> to vector<8x16xf32>
    %209 = vector.broadcast %206 : f32 to vector<8x16xf32>
    %210 = arith.mulf %209, %208 : vector<8x16xf32>
    %211 = arith.addf %205, %210 : vector<8x16xf32>
    %c26 = arith.constant 26 : index
    %212 = memref.load %arg4[%c26] : memref<72xf32, #tpu.memory_space<smem>>
    %c0_181 = arith.constant 0 : index
    %c2_182 = arith.constant 2 : index
    %c4_183 = arith.constant 4 : index
    %213 = vector.load %arg14[%c0_181, %c2_182, %c4_183] : memref<2x10x20xf32, #tpu.memory_space<vmem>>, vector<1x8x16xf32>
    %214 = vector.shape_cast %213 : vector<1x8x16xf32> to vector<8x16xf32>
    %215 = vector.broadcast %212 : f32 to vector<8x16xf32>
    %216 = arith.mulf %215, %214 : vector<8x16xf32>
    %217 = arith.addf %211, %216 : vector<8x16xf32>
    %c27 = arith.constant 27 : index
    %218 = memref.load %arg4[%c27] : memref<72xf32, #tpu.memory_space<smem>>
    %c1_184 = arith.constant 1 : index
    %c0_185 = arith.constant 0 : index
    %c0_186 = arith.constant 0 : index
    %219 = vector.load %arg14[%c1_184, %c0_185, %c0_186] : memref<2x10x20xf32, #tpu.memory_space<vmem>>, vector<1x8x16xf32>
    %220 = vector.shape_cast %219 : vector<1x8x16xf32> to vector<8x16xf32>
    %221 = vector.broadcast %218 : f32 to vector<8x16xf32>
    %222 = arith.mulf %221, %220 : vector<8x16xf32>
    %223 = arith.addf %217, %222 : vector<8x16xf32>
    %c28 = arith.constant 28 : index
    %224 = memref.load %arg4[%c28] : memref<72xf32, #tpu.memory_space<smem>>
    %c1_187 = arith.constant 1 : index
    %c0_188 = arith.constant 0 : index
    %c2_189 = arith.constant 2 : index
    %225 = vector.load %arg14[%c1_187, %c0_188, %c2_189] : memref<2x10x20xf32, #tpu.memory_space<vmem>>, vector<1x8x16xf32>
    %226 = vector.shape_cast %225 : vector<1x8x16xf32> to vector<8x16xf32>
    %227 = vector.broadcast %224 : f32 to vector<8x16xf32>
    %228 = arith.mulf %227, %226 : vector<8x16xf32>
    %229 = arith.addf %223, %228 : vector<8x16xf32>
    %c29 = arith.constant 29 : index
    %230 = memref.load %arg4[%c29] : memref<72xf32, #tpu.memory_space<smem>>
    %c1_190 = arith.constant 1 : index
    %c0_191 = arith.constant 0 : index
    %c4_192 = arith.constant 4 : index
    %231 = vector.load %arg14[%c1_190, %c0_191, %c4_192] : memref<2x10x20xf32, #tpu.memory_space<vmem>>, vector<1x8x16xf32>
    %232 = vector.shape_cast %231 : vector<1x8x16xf32> to vector<8x16xf32>
    %233 = vector.broadcast %230 : f32 to vector<8x16xf32>
    %234 = arith.mulf %233, %232 : vector<8x16xf32>
    %235 = arith.addf %229, %234 : vector<8x16xf32>
    %c30 = arith.constant 30 : index
    %236 = memref.load %arg4[%c30] : memref<72xf32, #tpu.memory_space<smem>>
    %c1_193 = arith.constant 1 : index
    %c1_194 = arith.constant 1 : index
    %c0_195 = arith.constant 0 : index
    %237 = vector.load %arg14[%c1_193, %c1_194, %c0_195] : memref<2x10x20xf32, #tpu.memory_space<vmem>>, vector<1x8x16xf32>
    %238 = vector.shape_cast %237 : vector<1x8x16xf32> to vector<8x16xf32>
    %239 = vector.broadcast %236 : f32 to vector<8x16xf32>
    %240 = arith.mulf %239, %238 : vector<8x16xf32>
    %241 = arith.addf %235, %240 : vector<8x16xf32>
    %c31 = arith.constant 31 : index
    %242 = memref.load %arg4[%c31] : memref<72xf32, #tpu.memory_space<smem>>
    %c1_196 = arith.constant 1 : index
    %c1_197 = arith.constant 1 : index
    %c2_198 = arith.constant 2 : index
    %243 = vector.load %arg14[%c1_196, %c1_197, %c2_198] : memref<2x10x20xf32, #tpu.memory_space<vmem>>, vector<1x8x16xf32>
    %244 = vector.shape_cast %243 : vector<1x8x16xf32> to vector<8x16xf32>
    %245 = vector.broadcast %242 : f32 to vector<8x16xf32>
    %246 = arith.mulf %245, %244 : vector<8x16xf32>
    %247 = arith.addf %241, %246 : vector<8x16xf32>
    %c32 = arith.constant 32 : index
    %248 = memref.load %arg4[%c32] : memref<72xf32, #tpu.memory_space<smem>>
    %c1_199 = arith.constant 1 : index
    %c1_200 = arith.constant 1 : index
    %c4_201 = arith.constant 4 : index
    %249 = vector.load %arg14[%c1_199, %c1_200, %c4_201] : memref<2x10x20xf32, #tpu.memory_space<vmem>>, vector<1x8x16xf32>
    %250 = vector.shape_cast %249 : vector<1x8x16xf32> to vector<8x16xf32>
    %251 = vector.broadcast %248 : f32 to vector<8x16xf32>
    %252 = arith.mulf %251, %250 : vector<8x16xf32>
    %253 = arith.addf %247, %252 : vector<8x16xf32>
    %c33 = arith.constant 33 : index
    %254 = memref.load %arg4[%c33] : memref<72xf32, #tpu.memory_space<smem>>
    %c1_202 = arith.constant 1 : index
    %c2_203 = arith.constant 2 : index
    %c0_204 = arith.constant 0 : index
    %255 = vector.load %arg14[%c1_202, %c2_203, %c0_204] : memref<2x10x20xf32, #tpu.memory_space<vmem>>, vector<1x8x16xf32>
    %256 = vector.shape_cast %255 : vector<1x8x16xf32> to vector<8x16xf32>
    %257 = vector.broadcast %254 : f32 to vector<8x16xf32>
    %258 = arith.mulf %257, %256 : vector<8x16xf32>
    %259 = arith.addf %253, %258 : vector<8x16xf32>
    %c34 = arith.constant 34 : index
    %260 = memref.load %arg4[%c34] : memref<72xf32, #tpu.memory_space<smem>>
    %c1_205 = arith.constant 1 : index
    %c2_206 = arith.constant 2 : index
    %c2_207 = arith.constant 2 : index
    %261 = vector.load %arg14[%c1_205, %c2_206, %c2_207] : memref<2x10x20xf32, #tpu.memory_space<vmem>>, vector<1x8x16xf32>
    %262 = vector.shape_cast %261 : vector<1x8x16xf32> to vector<8x16xf32>
    %263 = vector.broadcast %260 : f32 to vector<8x16xf32>
    %264 = arith.mulf %263, %262 : vector<8x16xf32>
    %265 = arith.addf %259, %264 : vector<8x16xf32>
    %c35 = arith.constant 35 : index
    %266 = memref.load %arg4[%c35] : memref<72xf32, #tpu.memory_space<smem>>
    %c1_208 = arith.constant 1 : index
    %c2_209 = arith.constant 2 : index
    %c4_210 = arith.constant 4 : index
    %267 = vector.load %arg14[%c1_208, %c2_209, %c4_210] : memref<2x10x20xf32, #tpu.memory_space<vmem>>, vector<1x8x16xf32>
    %268 = vector.shape_cast %267 : vector<1x8x16xf32> to vector<8x16xf32>
    %269 = vector.broadcast %266 : f32 to vector<8x16xf32>
    %270 = arith.mulf %269, %268 : vector<8x16xf32>
    %271 = arith.addf %265, %270 : vector<8x16xf32>
    %cst_211 = arith.constant 0.000000e+00 : f32
    %272 = vector.broadcast %cst_211 : f32 to vector<8x16xf32>
    %c36 = arith.constant 36 : index
    %273 = memref.load %arg4[%c36] : memref<72xf32, #tpu.memory_space<smem>>
    %c0_212 = arith.constant 0 : index
    %c0_213 = arith.constant 0 : index
    %c0_214 = arith.constant 0 : index
    %274 = vector.load %arg14[%c0_212, %c0_213, %c0_214] : memref<2x10x20xf32, #tpu.memory_space<vmem>>, vector<1x8x16xf32>
    %275 = vector.shape_cast %274 : vector<1x8x16xf32> to vector<8x16xf32>
    %276 = vector.broadcast %273 : f32 to vector<8x16xf32>
    %277 = arith.mulf %276, %275 : vector<8x16xf32>
    %278 = arith.addf %272, %277 : vector<8x16xf32>
    %c37 = arith.constant 37 : index
    %279 = memref.load %arg4[%c37] : memref<72xf32, #tpu.memory_space<smem>>
    %c0_215 = arith.constant 0 : index
    %c0_216 = arith.constant 0 : index
    %c2_217 = arith.constant 2 : index
    %280 = vector.load %arg14[%c0_215, %c0_216, %c2_217] : memref<2x10x20xf32, #tpu.memory_space<vmem>>, vector<1x8x16xf32>
    %281 = vector.shape_cast %280 : vector<1x8x16xf32> to vector<8x16xf32>
    %282 = vector.broadcast %279 : f32 to vector<8x16xf32>
    %283 = arith.mulf %282, %281 : vector<8x16xf32>
    %284 = arith.addf %278, %283 : vector<8x16xf32>
    %c38 = arith.constant 38 : index
    %285 = memref.load %arg4[%c38] : memref<72xf32, #tpu.memory_space<smem>>
    %c0_218 = arith.constant 0 : index
    %c0_219 = arith.constant 0 : index
    %c4_220 = arith.constant 4 : index
    %286 = vector.load %arg14[%c0_218, %c0_219, %c4_220] : memref<2x10x20xf32, #tpu.memory_space<vmem>>, vector<1x8x16xf32>
    %287 = vector.shape_cast %286 : vector<1x8x16xf32> to vector<8x16xf32>
    %288 = vector.broadcast %285 : f32 to vector<8x16xf32>
    %289 = arith.mulf %288, %287 : vector<8x16xf32>
    %290 = arith.addf %284, %289 : vector<8x16xf32>
    %c39 = arith.constant 39 : index
    %291 = memref.load %arg4[%c39] : memref<72xf32, #tpu.memory_space<smem>>
    %c0_221 = arith.constant 0 : index
    %c1_222 = arith.constant 1 : index
    %c0_223 = arith.constant 0 : index
    %292 = vector.load %arg14[%c0_221, %c1_222, %c0_223] : memref<2x10x20xf32, #tpu.memory_space<vmem>>, vector<1x8x16xf32>
    %293 = vector.shape_cast %292 : vector<1x8x16xf32> to vector<8x16xf32>
    %294 = vector.broadcast %291 : f32 to vector<8x16xf32>
    %295 = arith.mulf %294, %293 : vector<8x16xf32>
    %296 = arith.addf %290, %295 : vector<8x16xf32>
    %c40 = arith.constant 40 : index
    %297 = memref.load %arg4[%c40] : memref<72xf32, #tpu.memory_space<smem>>
    %c0_224 = arith.constant 0 : index
    %c1_225 = arith.constant 1 : index
    %c2_226 = arith.constant 2 : index
    %298 = vector.load %arg14[%c0_224, %c1_225, %c2_226] : memref<2x10x20xf32, #tpu.memory_space<vmem>>, vector<1x8x16xf32>
    %299 = vector.shape_cast %298 : vector<1x8x16xf32> to vector<8x16xf32>
    %300 = vector.broadcast %297 : f32 to vector<8x16xf32>
    %301 = arith.mulf %300, %299 : vector<8x16xf32>
    %302 = arith.addf %296, %301 : vector<8x16xf32>
    %c41 = arith.constant 41 : index
    %303 = memref.load %arg4[%c41] : memref<72xf32, #tpu.memory_space<smem>>
    %c0_227 = arith.constant 0 : index
    %c1_228 = arith.constant 1 : index
    %c4_229 = arith.constant 4 : index
    %304 = vector.load %arg14[%c0_227, %c1_228, %c4_229] : memref<2x10x20xf32, #tpu.memory_space<vmem>>, vector<1x8x16xf32>
    %305 = vector.shape_cast %304 : vector<1x8x16xf32> to vector<8x16xf32>
    %306 = vector.broadcast %303 : f32 to vector<8x16xf32>
    %307 = arith.mulf %306, %305 : vector<8x16xf32>
    %308 = arith.addf %302, %307 : vector<8x16xf32>
    %c42 = arith.constant 42 : index
    %309 = memref.load %arg4[%c42] : memref<72xf32, #tpu.memory_space<smem>>
    %c0_230 = arith.constant 0 : index
    %c2_231 = arith.constant 2 : index
    %c0_232 = arith.constant 0 : index
    %310 = vector.load %arg14[%c0_230, %c2_231, %c0_232] : memref<2x10x20xf32, #tpu.memory_space<vmem>>, vector<1x8x16xf32>
    %311 = vector.shape_cast %310 : vector<1x8x16xf32> to vector<8x16xf32>
    %312 = vector.broadcast %309 : f32 to vector<8x16xf32>
    %313 = arith.mulf %312, %311 : vector<8x16xf32>
    %314 = arith.addf %308, %313 : vector<8x16xf32>
    %c43 = arith.constant 43 : index
    %315 = memref.load %arg4[%c43] : memref<72xf32, #tpu.memory_space<smem>>
    %c0_233 = arith.constant 0 : index
    %c2_234 = arith.constant 2 : index
    %c2_235 = arith.constant 2 : index
    %316 = vector.load %arg14[%c0_233, %c2_234, %c2_235] : memref<2x10x20xf32, #tpu.memory_space<vmem>>, vector<1x8x16xf32>
    %317 = vector.shape_cast %316 : vector<1x8x16xf32> to vector<8x16xf32>
    %318 = vector.broadcast %315 : f32 to vector<8x16xf32>
    %319 = arith.mulf %318, %317 : vector<8x16xf32>
    %320 = arith.addf %314, %319 : vector<8x16xf32>
    %c44 = arith.constant 44 : index
    %321 = memref.load %arg4[%c44] : memref<72xf32, #tpu.memory_space<smem>>
    %c0_236 = arith.constant 0 : index
    %c2_237 = arith.constant 2 : index
    %c4_238 = arith.constant 4 : index
    %322 = vector.load %arg14[%c0_236, %c2_237, %c4_238] : memref<2x10x20xf32, #tpu.memory_space<vmem>>, vector<1x8x16xf32>
    %323 = vector.shape_cast %322 : vector<1x8x16xf32> to vector<8x16xf32>
    %324 = vector.broadcast %321 : f32 to vector<8x16xf32>
    %325 = arith.mulf %324, %323 : vector<8x16xf32>
    %326 = arith.addf %320, %325 : vector<8x16xf32>
    %c45 = arith.constant 45 : index
    %327 = memref.load %arg4[%c45] : memref<72xf32, #tpu.memory_space<smem>>
    %c1_239 = arith.constant 1 : index
    %c0_240 = arith.constant 0 : index
    %c0_241 = arith.constant 0 : index
    %328 = vector.load %arg14[%c1_239, %c0_240, %c0_241] : memref<2x10x20xf32, #tpu.memory_space<vmem>>, vector<1x8x16xf32>
    %329 = vector.shape_cast %328 : vector<1x8x16xf32> to vector<8x16xf32>
    %330 = vector.broadcast %327 : f32 to vector<8x16xf32>
    %331 = arith.mulf %330, %329 : vector<8x16xf32>
    %332 = arith.addf %326, %331 : vector<8x16xf32>
    %c46 = arith.constant 46 : index
    %333 = memref.load %arg4[%c46] : memref<72xf32, #tpu.memory_space<smem>>
    %c1_242 = arith.constant 1 : index
    %c0_243 = arith.constant 0 : index
    %c2_244 = arith.constant 2 : index
    %334 = vector.load %arg14[%c1_242, %c0_243, %c2_244] : memref<2x10x20xf32, #tpu.memory_space<vmem>>, vector<1x8x16xf32>
    %335 = vector.shape_cast %334 : vector<1x8x16xf32> to vector<8x16xf32>
    %336 = vector.broadcast %333 : f32 to vector<8x16xf32>
    %337 = arith.mulf %336, %335 : vector<8x16xf32>
    %338 = arith.addf %332, %337 : vector<8x16xf32>
    %c47 = arith.constant 47 : index
    %339 = memref.load %arg4[%c47] : memref<72xf32, #tpu.memory_space<smem>>
    %c1_245 = arith.constant 1 : index
    %c0_246 = arith.constant 0 : index
    %c4_247 = arith.constant 4 : index
    %340 = vector.load %arg14[%c1_245, %c0_246, %c4_247] : memref<2x10x20xf32, #tpu.memory_space<vmem>>, vector<1x8x16xf32>
    %341 = vector.shape_cast %340 : vector<1x8x16xf32> to vector<8x16xf32>
    %342 = vector.broadcast %339 : f32 to vector<8x16xf32>
    %343 = arith.mulf %342, %341 : vector<8x16xf32>
    %344 = arith.addf %338, %343 : vector<8x16xf32>
    %c48 = arith.constant 48 : index
    %345 = memref.load %arg4[%c48] : memref<72xf32, #tpu.memory_space<smem>>
    %c1_248 = arith.constant 1 : index
    %c1_249 = arith.constant 1 : index
    %c0_250 = arith.constant 0 : index
    %346 = vector.load %arg14[%c1_248, %c1_249, %c0_250] : memref<2x10x20xf32, #tpu.memory_space<vmem>>, vector<1x8x16xf32>
    %347 = vector.shape_cast %346 : vector<1x8x16xf32> to vector<8x16xf32>
    %348 = vector.broadcast %345 : f32 to vector<8x16xf32>
    %349 = arith.mulf %348, %347 : vector<8x16xf32>
    %350 = arith.addf %344, %349 : vector<8x16xf32>
    %c49 = arith.constant 49 : index
    %351 = memref.load %arg4[%c49] : memref<72xf32, #tpu.memory_space<smem>>
    %c1_251 = arith.constant 1 : index
    %c1_252 = arith.constant 1 : index
    %c2_253 = arith.constant 2 : index
    %352 = vector.load %arg14[%c1_251, %c1_252, %c2_253] : memref<2x10x20xf32, #tpu.memory_space<vmem>>, vector<1x8x16xf32>
    %353 = vector.shape_cast %352 : vector<1x8x16xf32> to vector<8x16xf32>
    %354 = vector.broadcast %351 : f32 to vector<8x16xf32>
    %355 = arith.mulf %354, %353 : vector<8x16xf32>
    %356 = arith.addf %350, %355 : vector<8x16xf32>
    %c50 = arith.constant 50 : index
    %357 = memref.load %arg4[%c50] : memref<72xf32, #tpu.memory_space<smem>>
    %c1_254 = arith.constant 1 : index
    %c1_255 = arith.constant 1 : index
    %c4_256 = arith.constant 4 : index
    %358 = vector.load %arg14[%c1_254, %c1_255, %c4_256] : memref<2x10x20xf32, #tpu.memory_space<vmem>>, vector<1x8x16xf32>
    %359 = vector.shape_cast %358 : vector<1x8x16xf32> to vector<8x16xf32>
    %360 = vector.broadcast %357 : f32 to vector<8x16xf32>
    %361 = arith.mulf %360, %359 : vector<8x16xf32>
    %362 = arith.addf %356, %361 : vector<8x16xf32>
    %c51 = arith.constant 51 : index
    %363 = memref.load %arg4[%c51] : memref<72xf32, #tpu.memory_space<smem>>
    %c1_257 = arith.constant 1 : index
    %c2_258 = arith.constant 2 : index
    %c0_259 = arith.constant 0 : index
    %364 = vector.load %arg14[%c1_257, %c2_258, %c0_259] : memref<2x10x20xf32, #tpu.memory_space<vmem>>, vector<1x8x16xf32>
    %365 = vector.shape_cast %364 : vector<1x8x16xf32> to vector<8x16xf32>
    %366 = vector.broadcast %363 : f32 to vector<8x16xf32>
    %367 = arith.mulf %366, %365 : vector<8x16xf32>
    %368 = arith.addf %362, %367 : vector<8x16xf32>
    %c52 = arith.constant 52 : index
    %369 = memref.load %arg4[%c52] : memref<72xf32, #tpu.memory_space<smem>>
    %c1_260 = arith.constant 1 : index
    %c2_261 = arith.constant 2 : index
    %c2_262 = arith.constant 2 : index
    %370 = vector.load %arg14[%c1_260, %c2_261, %c2_262] : memref<2x10x20xf32, #tpu.memory_space<vmem>>, vector<1x8x16xf32>
    %371 = vector.shape_cast %370 : vector<1x8x16xf32> to vector<8x16xf32>
    %372 = vector.broadcast %369 : f32 to vector<8x16xf32>
    %373 = arith.mulf %372, %371 : vector<8x16xf32>
    %374 = arith.addf %368, %373 : vector<8x16xf32>
    %c53 = arith.constant 53 : index
    %375 = memref.load %arg4[%c53] : memref<72xf32, #tpu.memory_space<smem>>
    %c1_263 = arith.constant 1 : index
    %c2_264 = arith.constant 2 : index
    %c4_265 = arith.constant 4 : index
    %376 = vector.load %arg14[%c1_263, %c2_264, %c4_265] : memref<2x10x20xf32, #tpu.memory_space<vmem>>, vector<1x8x16xf32>
    %377 = vector.shape_cast %376 : vector<1x8x16xf32> to vector<8x16xf32>
    %378 = vector.broadcast %375 : f32 to vector<8x16xf32>
    %379 = arith.mulf %378, %377 : vector<8x16xf32>
    %380 = arith.addf %374, %379 : vector<8x16xf32>
    %cst_266 = arith.constant 0.000000e+00 : f32
    %381 = vector.broadcast %cst_266 : f32 to vector<8x16xf32>
    %c54 = arith.constant 54 : index
    %382 = memref.load %arg4[%c54] : memref<72xf32, #tpu.memory_space<smem>>
    %c0_267 = arith.constant 0 : index
    %c0_268 = arith.constant 0 : index
    %c0_269 = arith.constant 0 : index
    %383 = vector.load %arg14[%c0_267, %c0_268, %c0_269] : memref<2x10x20xf32, #tpu.memory_space<vmem>>, vector<1x8x16xf32>
    %384 = vector.shape_cast %383 : vector<1x8x16xf32> to vector<8x16xf32>
    %385 = vector.broadcast %382 : f32 to vector<8x16xf32>
    %386 = arith.mulf %385, %384 : vector<8x16xf32>
    %387 = arith.addf %381, %386 : vector<8x16xf32>
    %c55 = arith.constant 55 : index
    %388 = memref.load %arg4[%c55] : memref<72xf32, #tpu.memory_space<smem>>
    %c0_270 = arith.constant 0 : index
    %c0_271 = arith.constant 0 : index
    %c2_272 = arith.constant 2 : index
    %389 = vector.load %arg14[%c0_270, %c0_271, %c2_272] : memref<2x10x20xf32, #tpu.memory_space<vmem>>, vector<1x8x16xf32>
    %390 = vector.shape_cast %389 : vector<1x8x16xf32> to vector<8x16xf32>
    %391 = vector.broadcast %388 : f32 to vector<8x16xf32>
    %392 = arith.mulf %391, %390 : vector<8x16xf32>
    %393 = arith.addf %387, %392 : vector<8x16xf32>
    %c56 = arith.constant 56 : index
    %394 = memref.load %arg4[%c56] : memref<72xf32, #tpu.memory_space<smem>>
    %c0_273 = arith.constant 0 : index
    %c0_274 = arith.constant 0 : index
    %c4_275 = arith.constant 4 : index
    %395 = vector.load %arg14[%c0_273, %c0_274, %c4_275] : memref<2x10x20xf32, #tpu.memory_space<vmem>>, vector<1x8x16xf32>
    %396 = vector.shape_cast %395 : vector<1x8x16xf32> to vector<8x16xf32>
    %397 = vector.broadcast %394 : f32 to vector<8x16xf32>
    %398 = arith.mulf %397, %396 : vector<8x16xf32>
    %399 = arith.addf %393, %398 : vector<8x16xf32>
    %c57 = arith.constant 57 : index
    %400 = memref.load %arg4[%c57] : memref<72xf32, #tpu.memory_space<smem>>
    %c0_276 = arith.constant 0 : index
    %c1_277 = arith.constant 1 : index
    %c0_278 = arith.constant 0 : index
    %401 = vector.load %arg14[%c0_276, %c1_277, %c0_278] : memref<2x10x20xf32, #tpu.memory_space<vmem>>, vector<1x8x16xf32>
    %402 = vector.shape_cast %401 : vector<1x8x16xf32> to vector<8x16xf32>
    %403 = vector.broadcast %400 : f32 to vector<8x16xf32>
    %404 = arith.mulf %403, %402 : vector<8x16xf32>
    %405 = arith.addf %399, %404 : vector<8x16xf32>
    %c58 = arith.constant 58 : index
    %406 = memref.load %arg4[%c58] : memref<72xf32, #tpu.memory_space<smem>>
    %c0_279 = arith.constant 0 : index
    %c1_280 = arith.constant 1 : index
    %c2_281 = arith.constant 2 : index
    %407 = vector.load %arg14[%c0_279, %c1_280, %c2_281] : memref<2x10x20xf32, #tpu.memory_space<vmem>>, vector<1x8x16xf32>
    %408 = vector.shape_cast %407 : vector<1x8x16xf32> to vector<8x16xf32>
    %409 = vector.broadcast %406 : f32 to vector<8x16xf32>
    %410 = arith.mulf %409, %408 : vector<8x16xf32>
    %411 = arith.addf %405, %410 : vector<8x16xf32>
    %c59 = arith.constant 59 : index
    %412 = memref.load %arg4[%c59] : memref<72xf32, #tpu.memory_space<smem>>
    %c0_282 = arith.constant 0 : index
    %c1_283 = arith.constant 1 : index
    %c4_284 = arith.constant 4 : index
    %413 = vector.load %arg14[%c0_282, %c1_283, %c4_284] : memref<2x10x20xf32, #tpu.memory_space<vmem>>, vector<1x8x16xf32>
    %414 = vector.shape_cast %413 : vector<1x8x16xf32> to vector<8x16xf32>
    %415 = vector.broadcast %412 : f32 to vector<8x16xf32>
    %416 = arith.mulf %415, %414 : vector<8x16xf32>
    %417 = arith.addf %411, %416 : vector<8x16xf32>
    %c60 = arith.constant 60 : index
    %418 = memref.load %arg4[%c60] : memref<72xf32, #tpu.memory_space<smem>>
    %c0_285 = arith.constant 0 : index
    %c2_286 = arith.constant 2 : index
    %c0_287 = arith.constant 0 : index
    %419 = vector.load %arg14[%c0_285, %c2_286, %c0_287] : memref<2x10x20xf32, #tpu.memory_space<vmem>>, vector<1x8x16xf32>
    %420 = vector.shape_cast %419 : vector<1x8x16xf32> to vector<8x16xf32>
    %421 = vector.broadcast %418 : f32 to vector<8x16xf32>
    %422 = arith.mulf %421, %420 : vector<8x16xf32>
    %423 = arith.addf %417, %422 : vector<8x16xf32>
    %c61 = arith.constant 61 : index
    %424 = memref.load %arg4[%c61] : memref<72xf32, #tpu.memory_space<smem>>
    %c0_288 = arith.constant 0 : index
    %c2_289 = arith.constant 2 : index
    %c2_290 = arith.constant 2 : index
    %425 = vector.load %arg14[%c0_288, %c2_289, %c2_290] : memref<2x10x20xf32, #tpu.memory_space<vmem>>, vector<1x8x16xf32>
    %426 = vector.shape_cast %425 : vector<1x8x16xf32> to vector<8x16xf32>
    %427 = vector.broadcast %424 : f32 to vector<8x16xf32>
    %428 = arith.mulf %427, %426 : vector<8x16xf32>
    %429 = arith.addf %423, %428 : vector<8x16xf32>
    %c62 = arith.constant 62 : index
    %430 = memref.load %arg4[%c62] : memref<72xf32, #tpu.memory_space<smem>>
    %c0_291 = arith.constant 0 : index
    %c2_292 = arith.constant 2 : index
    %c4_293 = arith.constant 4 : index
    %431 = vector.load %arg14[%c0_291, %c2_292, %c4_293] : memref<2x10x20xf32, #tpu.memory_space<vmem>>, vector<1x8x16xf32>
    %432 = vector.shape_cast %431 : vector<1x8x16xf32> to vector<8x16xf32>
    %433 = vector.broadcast %430 : f32 to vector<8x16xf32>
    %434 = arith.mulf %433, %432 : vector<8x16xf32>
    %435 = arith.addf %429, %434 : vector<8x16xf32>
    %c63 = arith.constant 63 : index
    %436 = memref.load %arg4[%c63] : memref<72xf32, #tpu.memory_space<smem>>
    %c1_294 = arith.constant 1 : index
    %c0_295 = arith.constant 0 : index
    %c0_296 = arith.constant 0 : index
    %437 = vector.load %arg14[%c1_294, %c0_295, %c0_296] : memref<2x10x20xf32, #tpu.memory_space<vmem>>, vector<1x8x16xf32>
    %438 = vector.shape_cast %437 : vector<1x8x16xf32> to vector<8x16xf32>
    %439 = vector.broadcast %436 : f32 to vector<8x16xf32>
    %440 = arith.mulf %439, %438 : vector<8x16xf32>
    %441 = arith.addf %435, %440 : vector<8x16xf32>
    %c64 = arith.constant 64 : index
    %442 = memref.load %arg4[%c64] : memref<72xf32, #tpu.memory_space<smem>>
    %c1_297 = arith.constant 1 : index
    %c0_298 = arith.constant 0 : index
    %c2_299 = arith.constant 2 : index
    %443 = vector.load %arg14[%c1_297, %c0_298, %c2_299] : memref<2x10x20xf32, #tpu.memory_space<vmem>>, vector<1x8x16xf32>
    %444 = vector.shape_cast %443 : vector<1x8x16xf32> to vector<8x16xf32>
    %445 = vector.broadcast %442 : f32 to vector<8x16xf32>
    %446 = arith.mulf %445, %444 : vector<8x16xf32>
    %447 = arith.addf %441, %446 : vector<8x16xf32>
    %c65 = arith.constant 65 : index
    %448 = memref.load %arg4[%c65] : memref<72xf32, #tpu.memory_space<smem>>
    %c1_300 = arith.constant 1 : index
    %c0_301 = arith.constant 0 : index
    %c4_302 = arith.constant 4 : index
    %449 = vector.load %arg14[%c1_300, %c0_301, %c4_302] : memref<2x10x20xf32, #tpu.memory_space<vmem>>, vector<1x8x16xf32>
    %450 = vector.shape_cast %449 : vector<1x8x16xf32> to vector<8x16xf32>
    %451 = vector.broadcast %448 : f32 to vector<8x16xf32>
    %452 = arith.mulf %451, %450 : vector<8x16xf32>
    %453 = arith.addf %447, %452 : vector<8x16xf32>
    %c66 = arith.constant 66 : index
    %454 = memref.load %arg4[%c66] : memref<72xf32, #tpu.memory_space<smem>>
    %c1_303 = arith.constant 1 : index
    %c1_304 = arith.constant 1 : index
    %c0_305 = arith.constant 0 : index
    %455 = vector.load %arg14[%c1_303, %c1_304, %c0_305] : memref<2x10x20xf32, #tpu.memory_space<vmem>>, vector<1x8x16xf32>
    %456 = vector.shape_cast %455 : vector<1x8x16xf32> to vector<8x16xf32>
    %457 = vector.broadcast %454 : f32 to vector<8x16xf32>
    %458 = arith.mulf %457, %456 : vector<8x16xf32>
    %459 = arith.addf %453, %458 : vector<8x16xf32>
    %c67 = arith.constant 67 : index
    %460 = memref.load %arg4[%c67] : memref<72xf32, #tpu.memory_space<smem>>
    %c1_306 = arith.constant 1 : index
    %c1_307 = arith.constant 1 : index
    %c2_308 = arith.constant 2 : index
    %461 = vector.load %arg14[%c1_306, %c1_307, %c2_308] : memref<2x10x20xf32, #tpu.memory_space<vmem>>, vector<1x8x16xf32>
    %462 = vector.shape_cast %461 : vector<1x8x16xf32> to vector<8x16xf32>
    %463 = vector.broadcast %460 : f32 to vector<8x16xf32>
    %464 = arith.mulf %463, %462 : vector<8x16xf32>
    %465 = arith.addf %459, %464 : vector<8x16xf32>
    %c68 = arith.constant 68 : index
    %466 = memref.load %arg4[%c68] : memref<72xf32, #tpu.memory_space<smem>>
    %c1_309 = arith.constant 1 : index
    %c1_310 = arith.constant 1 : index
    %c4_311 = arith.constant 4 : index
    %467 = vector.load %arg14[%c1_309, %c1_310, %c4_311] : memref<2x10x20xf32, #tpu.memory_space<vmem>>, vector<1x8x16xf32>
    %468 = vector.shape_cast %467 : vector<1x8x16xf32> to vector<8x16xf32>
    %469 = vector.broadcast %466 : f32 to vector<8x16xf32>
    %470 = arith.mulf %469, %468 : vector<8x16xf32>
    %471 = arith.addf %465, %470 : vector<8x16xf32>
    %c69 = arith.constant 69 : index
    %472 = memref.load %arg4[%c69] : memref<72xf32, #tpu.memory_space<smem>>
    %c1_312 = arith.constant 1 : index
    %c2_313 = arith.constant 2 : index
    %c0_314 = arith.constant 0 : index
    %473 = vector.load %arg14[%c1_312, %c2_313, %c0_314] : memref<2x10x20xf32, #tpu.memory_space<vmem>>, vector<1x8x16xf32>
    %474 = vector.shape_cast %473 : vector<1x8x16xf32> to vector<8x16xf32>
    %475 = vector.broadcast %472 : f32 to vector<8x16xf32>
    %476 = arith.mulf %475, %474 : vector<8x16xf32>
    %477 = arith.addf %471, %476 : vector<8x16xf32>
    %c70 = arith.constant 70 : index
    %478 = memref.load %arg4[%c70] : memref<72xf32, #tpu.memory_space<smem>>
    %c1_315 = arith.constant 1 : index
    %c2_316 = arith.constant 2 : index
    %c2_317 = arith.constant 2 : index
    %479 = vector.load %arg14[%c1_315, %c2_316, %c2_317] : memref<2x10x20xf32, #tpu.memory_space<vmem>>, vector<1x8x16xf32>
    %480 = vector.shape_cast %479 : vector<1x8x16xf32> to vector<8x16xf32>
    %481 = vector.broadcast %478 : f32 to vector<8x16xf32>
    %482 = arith.mulf %481, %480 : vector<8x16xf32>
    %483 = arith.addf %477, %482 : vector<8x16xf32>
    %c71 = arith.constant 71 : index
    %484 = memref.load %arg4[%c71] : memref<72xf32, #tpu.memory_space<smem>>
    %c1_318 = arith.constant 1 : index
    %c2_319 = arith.constant 2 : index
    %c4_320 = arith.constant 4 : index
    %485 = vector.load %arg14[%c1_318, %c2_319, %c4_320] : memref<2x10x20xf32, #tpu.memory_space<vmem>>, vector<1x8x16xf32>
    %486 = vector.shape_cast %485 : vector<1x8x16xf32> to vector<8x16xf32>
    %487 = vector.broadcast %484 : f32 to vector<8x16xf32>
    %488 = arith.mulf %487, %486 : vector<8x16xf32>
    %489 = arith.addf %483, %488 : vector<8x16xf32>
    %cst_321 = arith.constant 0.000000e+00 : f32
    %490 = vector.broadcast %cst_321 : f32 to vector<8x16xf32>
    %c0_322 = arith.constant 0 : index
    %491 = memref.load %arg6[%c0_322] : memref<16xf32, #tpu.memory_space<smem>>
    %492 = vector.broadcast %491 : f32 to vector<8x16xf32>
    %493 = arith.mulf %492, %162 : vector<8x16xf32>
    %494 = arith.addf %490, %493 : vector<8x16xf32>
    %c1_323 = arith.constant 1 : index
    %495 = memref.load %arg6[%c1_323] : memref<16xf32, #tpu.memory_space<smem>>
    %496 = vector.broadcast %495 : f32 to vector<8x16xf32>
    %497 = arith.mulf %496, %271 : vector<8x16xf32>
    %498 = arith.addf %494, %497 : vector<8x16xf32>
    %c2_324 = arith.constant 2 : index
    %499 = memref.load %arg6[%c2_324] : memref<16xf32, #tpu.memory_space<smem>>
    %500 = vector.broadcast %499 : f32 to vector<8x16xf32>
    %501 = arith.mulf %500, %380 : vector<8x16xf32>
    %502 = arith.addf %498, %501 : vector<8x16xf32>
    %c3_325 = arith.constant 3 : index
    %503 = memref.load %arg6[%c3_325] : memref<16xf32, #tpu.memory_space<smem>>
    %504 = vector.broadcast %503 : f32 to vector<8x16xf32>
    %505 = arith.mulf %504, %489 : vector<8x16xf32>
    %506 = arith.addf %502, %505 : vector<8x16xf32>
    %cst_326 = arith.constant 0.000000e+00 : f32
    %507 = vector.broadcast %cst_326 : f32 to vector<8x16xf32>
    %c4_327 = arith.constant 4 : index
    %508 = memref.load %arg6[%c4_327] : memref<16xf32, #tpu.memory_space<smem>>
    %509 = vector.broadcast %508 : f32 to vector<8x16xf32>
    %510 = arith.mulf %509, %162 : vector<8x16xf32>
    %511 = arith.addf %507, %510 : vector<8x16xf32>
    %c5_328 = arith.constant 5 : index
    %512 = memref.load %arg6[%c5_328] : memref<16xf32, #tpu.memory_space<smem>>
    %513 = vector.broadcast %512 : f32 to vector<8x16xf32>
    %514 = arith.mulf %513, %271 : vector<8x16xf32>
    %515 = arith.addf %511, %514 : vector<8x16xf32>
    %c6_329 = arith.constant 6 : index
    %516 = memref.load %arg6[%c6_329] : memref<16xf32, #tpu.memory_space<smem>>
    %517 = vector.broadcast %516 : f32 to vector<8x16xf32>
    %518 = arith.mulf %517, %380 : vector<8x16xf32>
    %519 = arith.addf %515, %518 : vector<8x16xf32>
    %c7_330 = arith.constant 7 : index
    %520 = memref.load %arg6[%c7_330] : memref<16xf32, #tpu.memory_space<smem>>
    %521 = vector.broadcast %520 : f32 to vector<8x16xf32>
    %522 = arith.mulf %521, %489 : vector<8x16xf32>
    %523 = arith.addf %519, %522 : vector<8x16xf32>
    %cst_331 = arith.constant 0.000000e+00 : f32
    %524 = vector.broadcast %cst_331 : f32 to vector<8x16xf32>
    %c8_332 = arith.constant 8 : index
    %525 = memref.load %arg6[%c8_332] : memref<16xf32, #tpu.memory_space<smem>>
    %526 = vector.broadcast %525 : f32 to vector<8x16xf32>
    %527 = arith.mulf %526, %162 : vector<8x16xf32>
    %528 = arith.addf %524, %527 : vector<8x16xf32>
    %c9_333 = arith.constant 9 : index
    %529 = memref.load %arg6[%c9_333] : memref<16xf32, #tpu.memory_space<smem>>
    %530 = vector.broadcast %529 : f32 to vector<8x16xf32>
    %531 = arith.mulf %530, %271 : vector<8x16xf32>
    %532 = arith.addf %528, %531 : vector<8x16xf32>
    %c10_334 = arith.constant 10 : index
    %533 = memref.load %arg6[%c10_334] : memref<16xf32, #tpu.memory_space<smem>>
    %534 = vector.broadcast %533 : f32 to vector<8x16xf32>
    %535 = arith.mulf %534, %380 : vector<8x16xf32>
    %536 = arith.addf %532, %535 : vector<8x16xf32>
    %c11_335 = arith.constant 11 : index
    %537 = memref.load %arg6[%c11_335] : memref<16xf32, #tpu.memory_space<smem>>
    %538 = vector.broadcast %537 : f32 to vector<8x16xf32>
    %539 = arith.mulf %538, %489 : vector<8x16xf32>
    %540 = arith.addf %536, %539 : vector<8x16xf32>
    %cst_336 = arith.constant 0.000000e+00 : f32
    %541 = vector.broadcast %cst_336 : f32 to vector<8x16xf32>
    %c12_337 = arith.constant 12 : index
    %542 = memref.load %arg6[%c12_337] : memref<16xf32, #tpu.memory_space<smem>>
    %543 = vector.broadcast %542 : f32 to vector<8x16xf32>
    %544 = arith.mulf %543, %162 : vector<8x16xf32>
    %545 = arith.addf %541, %544 : vector<8x16xf32>
    %c13_338 = arith.constant 13 : index
    %546 = memref.load %arg6[%c13_338] : memref<16xf32, #tpu.memory_space<smem>>
    %547 = vector.broadcast %546 : f32 to vector<8x16xf32>
    %548 = arith.mulf %547, %271 : vector<8x16xf32>
    %549 = arith.addf %545, %548 : vector<8x16xf32>
    %c14_339 = arith.constant 14 : index
    %550 = memref.load %arg6[%c14_339] : memref<16xf32, #tpu.memory_space<smem>>
    %551 = vector.broadcast %550 : f32 to vector<8x16xf32>
    %552 = arith.mulf %551, %380 : vector<8x16xf32>
    %553 = arith.addf %549, %552 : vector<8x16xf32>
    %c15_340 = arith.constant 15 : index
    %554 = memref.load %arg6[%c15_340] : memref<16xf32, #tpu.memory_space<smem>>
    %555 = vector.broadcast %554 : f32 to vector<8x16xf32>
    %556 = arith.mulf %555, %489 : vector<8x16xf32>
    %557 = arith.addf %553, %556 : vector<8x16xf32>
    %cst_341 = arith.constant 0.000000e+00 : f32
    %558 = vector.broadcast %cst_341 : f32 to vector<8x16xf32>
    %c0_342 = arith.constant 0 : index
    %559 = memref.load %arg3[%c0_342] : memref<72xf32, #tpu.memory_space<smem>>
    %c0_343 = arith.constant 0 : index
    %c0_344 = arith.constant 0 : index
    %c0_345 = arith.constant 0 : index
    %c0_346 = arith.constant 0 : index
    %c0_347 = arith.constant 0 : index
    %560 = vector.load %arg13[%c0_343, %c0_344, %c0_345, %c0_346, %c0_347] : memref<2x2x2x9x18xf32, #tpu.memory_space<vmem>>, vector<1x1x1x8x16xf32>
    %561 = vector.shape_cast %560 : vector<1x1x1x8x16xf32> to vector<8x16xf32>
    %562 = vector.broadcast %559 : f32 to vector<8x16xf32>
    %563 = arith.mulf %562, %561 : vector<8x16xf32>
    %564 = arith.addf %558, %563 : vector<8x16xf32>
    %c1_348 = arith.constant 1 : index
    %565 = memref.load %arg3[%c1_348] : memref<72xf32, #tpu.memory_space<smem>>
    %c0_349 = arith.constant 0 : index
    %c1_350 = arith.constant 1 : index
    %c0_351 = arith.constant 0 : index
    %c0_352 = arith.constant 0 : index
    %c0_353 = arith.constant 0 : index
    %566 = vector.load %arg13[%c0_349, %c1_350, %c0_351, %c0_352, %c0_353] : memref<2x2x2x9x18xf32, #tpu.memory_space<vmem>>, vector<1x1x1x8x16xf32>
    %567 = vector.shape_cast %566 : vector<1x1x1x8x16xf32> to vector<8x16xf32>
    %568 = vector.broadcast %565 : f32 to vector<8x16xf32>
    %569 = arith.mulf %568, %567 : vector<8x16xf32>
    %570 = arith.addf %564, %569 : vector<8x16xf32>
    %c2_354 = arith.constant 2 : index
    %571 = memref.load %arg3[%c2_354] : memref<72xf32, #tpu.memory_space<smem>>
    %c0_355 = arith.constant 0 : index
    %c0_356 = arith.constant 0 : index
    %c0_357 = arith.constant 0 : index
    %c0_358 = arith.constant 0 : index
    %c2_359 = arith.constant 2 : index
    %572 = vector.load %arg13[%c0_355, %c0_356, %c0_357, %c0_358, %c2_359] : memref<2x2x2x9x18xf32, #tpu.memory_space<vmem>>, vector<1x1x1x8x16xf32>
    %573 = vector.shape_cast %572 : vector<1x1x1x8x16xf32> to vector<8x16xf32>
    %574 = vector.broadcast %571 : f32 to vector<8x16xf32>
    %575 = arith.mulf %574, %573 : vector<8x16xf32>
    %576 = arith.addf %570, %575 : vector<8x16xf32>
    %c3_360 = arith.constant 3 : index
    %577 = memref.load %arg3[%c3_360] : memref<72xf32, #tpu.memory_space<smem>>
    %c1_361 = arith.constant 1 : index
    %c0_362 = arith.constant 0 : index
    %c0_363 = arith.constant 0 : index
    %c0_364 = arith.constant 0 : index
    %c0_365 = arith.constant 0 : index
    %578 = vector.load %arg13[%c1_361, %c0_362, %c0_363, %c0_364, %c0_365] : memref<2x2x2x9x18xf32, #tpu.memory_space<vmem>>, vector<1x1x1x8x16xf32>
    %579 = vector.shape_cast %578 : vector<1x1x1x8x16xf32> to vector<8x16xf32>
    %580 = vector.broadcast %577 : f32 to vector<8x16xf32>
    %581 = arith.mulf %580, %579 : vector<8x16xf32>
    %582 = arith.addf %576, %581 : vector<8x16xf32>
    %c4_366 = arith.constant 4 : index
    %583 = memref.load %arg3[%c4_366] : memref<72xf32, #tpu.memory_space<smem>>
    %c1_367 = arith.constant 1 : index
    %c1_368 = arith.constant 1 : index
    %c0_369 = arith.constant 0 : index
    %c0_370 = arith.constant 0 : index
    %c0_371 = arith.constant 0 : index
    %584 = vector.load %arg13[%c1_367, %c1_368, %c0_369, %c0_370, %c0_371] : memref<2x2x2x9x18xf32, #tpu.memory_space<vmem>>, vector<1x1x1x8x16xf32>
    %585 = vector.shape_cast %584 : vector<1x1x1x8x16xf32> to vector<8x16xf32>
    %586 = vector.broadcast %583 : f32 to vector<8x16xf32>
    %587 = arith.mulf %586, %585 : vector<8x16xf32>
    %588 = arith.addf %582, %587 : vector<8x16xf32>
    %c5_372 = arith.constant 5 : index
    %589 = memref.load %arg3[%c5_372] : memref<72xf32, #tpu.memory_space<smem>>
    %c1_373 = arith.constant 1 : index
    %c0_374 = arith.constant 0 : index
    %c0_375 = arith.constant 0 : index
    %c0_376 = arith.constant 0 : index
    %c2_377 = arith.constant 2 : index
    %590 = vector.load %arg13[%c1_373, %c0_374, %c0_375, %c0_376, %c2_377] : memref<2x2x2x9x18xf32, #tpu.memory_space<vmem>>, vector<1x1x1x8x16xf32>
    %591 = vector.shape_cast %590 : vector<1x1x1x8x16xf32> to vector<8x16xf32>
    %592 = vector.broadcast %589 : f32 to vector<8x16xf32>
    %593 = arith.mulf %592, %591 : vector<8x16xf32>
    %594 = arith.addf %588, %593 : vector<8x16xf32>
    %c6_378 = arith.constant 6 : index
    %595 = memref.load %arg3[%c6_378] : memref<72xf32, #tpu.memory_space<smem>>
    %c0_379 = arith.constant 0 : index
    %c0_380 = arith.constant 0 : index
    %c0_381 = arith.constant 0 : index
    %c1_382 = arith.constant 1 : index
    %c0_383 = arith.constant 0 : index
    %596 = vector.load %arg13[%c0_379, %c0_380, %c0_381, %c1_382, %c0_383] : memref<2x2x2x9x18xf32, #tpu.memory_space<vmem>>, vector<1x1x1x8x16xf32>
    %597 = vector.shape_cast %596 : vector<1x1x1x8x16xf32> to vector<8x16xf32>
    %598 = vector.broadcast %595 : f32 to vector<8x16xf32>
    %599 = arith.mulf %598, %597 : vector<8x16xf32>
    %600 = arith.addf %594, %599 : vector<8x16xf32>
    %c7_384 = arith.constant 7 : index
    %601 = memref.load %arg3[%c7_384] : memref<72xf32, #tpu.memory_space<smem>>
    %c0_385 = arith.constant 0 : index
    %c1_386 = arith.constant 1 : index
    %c0_387 = arith.constant 0 : index
    %c1_388 = arith.constant 1 : index
    %c0_389 = arith.constant 0 : index
    %602 = vector.load %arg13[%c0_385, %c1_386, %c0_387, %c1_388, %c0_389] : memref<2x2x2x9x18xf32, #tpu.memory_space<vmem>>, vector<1x1x1x8x16xf32>
    %603 = vector.shape_cast %602 : vector<1x1x1x8x16xf32> to vector<8x16xf32>
    %604 = vector.broadcast %601 : f32 to vector<8x16xf32>
    %605 = arith.mulf %604, %603 : vector<8x16xf32>
    %606 = arith.addf %600, %605 : vector<8x16xf32>
    %c8_390 = arith.constant 8 : index
    %607 = memref.load %arg3[%c8_390] : memref<72xf32, #tpu.memory_space<smem>>
    %c0_391 = arith.constant 0 : index
    %c0_392 = arith.constant 0 : index
    %c0_393 = arith.constant 0 : index
    %c1_394 = arith.constant 1 : index
    %c2_395 = arith.constant 2 : index
    %608 = vector.load %arg13[%c0_391, %c0_392, %c0_393, %c1_394, %c2_395] : memref<2x2x2x9x18xf32, #tpu.memory_space<vmem>>, vector<1x1x1x8x16xf32>
    %609 = vector.shape_cast %608 : vector<1x1x1x8x16xf32> to vector<8x16xf32>
    %610 = vector.broadcast %607 : f32 to vector<8x16xf32>
    %611 = arith.mulf %610, %609 : vector<8x16xf32>
    %612 = arith.addf %606, %611 : vector<8x16xf32>
    %c9_396 = arith.constant 9 : index
    %613 = memref.load %arg3[%c9_396] : memref<72xf32, #tpu.memory_space<smem>>
    %c0_397 = arith.constant 0 : index
    %c0_398 = arith.constant 0 : index
    %c1_399 = arith.constant 1 : index
    %c0_400 = arith.constant 0 : index
    %c0_401 = arith.constant 0 : index
    %614 = vector.load %arg13[%c0_397, %c0_398, %c1_399, %c0_400, %c0_401] : memref<2x2x2x9x18xf32, #tpu.memory_space<vmem>>, vector<1x1x1x8x16xf32>
    %615 = vector.shape_cast %614 : vector<1x1x1x8x16xf32> to vector<8x16xf32>
    %616 = vector.broadcast %613 : f32 to vector<8x16xf32>
    %617 = arith.mulf %616, %615 : vector<8x16xf32>
    %618 = arith.addf %612, %617 : vector<8x16xf32>
    %c10_402 = arith.constant 10 : index
    %619 = memref.load %arg3[%c10_402] : memref<72xf32, #tpu.memory_space<smem>>
    %c0_403 = arith.constant 0 : index
    %c1_404 = arith.constant 1 : index
    %c1_405 = arith.constant 1 : index
    %c0_406 = arith.constant 0 : index
    %c0_407 = arith.constant 0 : index
    %620 = vector.load %arg13[%c0_403, %c1_404, %c1_405, %c0_406, %c0_407] : memref<2x2x2x9x18xf32, #tpu.memory_space<vmem>>, vector<1x1x1x8x16xf32>
    %621 = vector.shape_cast %620 : vector<1x1x1x8x16xf32> to vector<8x16xf32>
    %622 = vector.broadcast %619 : f32 to vector<8x16xf32>
    %623 = arith.mulf %622, %621 : vector<8x16xf32>
    %624 = arith.addf %618, %623 : vector<8x16xf32>
    %c11_408 = arith.constant 11 : index
    %625 = memref.load %arg3[%c11_408] : memref<72xf32, #tpu.memory_space<smem>>
    %c0_409 = arith.constant 0 : index
    %c0_410 = arith.constant 0 : index
    %c1_411 = arith.constant 1 : index
    %c0_412 = arith.constant 0 : index
    %c2_413 = arith.constant 2 : index
    %626 = vector.load %arg13[%c0_409, %c0_410, %c1_411, %c0_412, %c2_413] : memref<2x2x2x9x18xf32, #tpu.memory_space<vmem>>, vector<1x1x1x8x16xf32>
    %627 = vector.shape_cast %626 : vector<1x1x1x8x16xf32> to vector<8x16xf32>
    %628 = vector.broadcast %625 : f32 to vector<8x16xf32>
    %629 = arith.mulf %628, %627 : vector<8x16xf32>
    %630 = arith.addf %624, %629 : vector<8x16xf32>
    %c12_414 = arith.constant 12 : index
    %631 = memref.load %arg3[%c12_414] : memref<72xf32, #tpu.memory_space<smem>>
    %c1_415 = arith.constant 1 : index
    %c0_416 = arith.constant 0 : index
    %c1_417 = arith.constant 1 : index
    %c0_418 = arith.constant 0 : index
    %c0_419 = arith.constant 0 : index
    %632 = vector.load %arg13[%c1_415, %c0_416, %c1_417, %c0_418, %c0_419] : memref<2x2x2x9x18xf32, #tpu.memory_space<vmem>>, vector<1x1x1x8x16xf32>
    %633 = vector.shape_cast %632 : vector<1x1x1x8x16xf32> to vector<8x16xf32>
    %634 = vector.broadcast %631 : f32 to vector<8x16xf32>
    %635 = arith.mulf %634, %633 : vector<8x16xf32>
    %636 = arith.addf %630, %635 : vector<8x16xf32>
    %c13_420 = arith.constant 13 : index
    %637 = memref.load %arg3[%c13_420] : memref<72xf32, #tpu.memory_space<smem>>
    %c1_421 = arith.constant 1 : index
    %c1_422 = arith.constant 1 : index
    %c1_423 = arith.constant 1 : index
    %c0_424 = arith.constant 0 : index
    %c0_425 = arith.constant 0 : index
    %638 = vector.load %arg13[%c1_421, %c1_422, %c1_423, %c0_424, %c0_425] : memref<2x2x2x9x18xf32, #tpu.memory_space<vmem>>, vector<1x1x1x8x16xf32>
    %639 = vector.shape_cast %638 : vector<1x1x1x8x16xf32> to vector<8x16xf32>
    %640 = vector.broadcast %637 : f32 to vector<8x16xf32>
    %641 = arith.mulf %640, %639 : vector<8x16xf32>
    %642 = arith.addf %636, %641 : vector<8x16xf32>
    %c14_426 = arith.constant 14 : index
    %643 = memref.load %arg3[%c14_426] : memref<72xf32, #tpu.memory_space<smem>>
    %c1_427 = arith.constant 1 : index
    %c0_428 = arith.constant 0 : index
    %c1_429 = arith.constant 1 : index
    %c0_430 = arith.constant 0 : index
    %c2_431 = arith.constant 2 : index
    %644 = vector.load %arg13[%c1_427, %c0_428, %c1_429, %c0_430, %c2_431] : memref<2x2x2x9x18xf32, #tpu.memory_space<vmem>>, vector<1x1x1x8x16xf32>
    %645 = vector.shape_cast %644 : vector<1x1x1x8x16xf32> to vector<8x16xf32>
    %646 = vector.broadcast %643 : f32 to vector<8x16xf32>
    %647 = arith.mulf %646, %645 : vector<8x16xf32>
    %648 = arith.addf %642, %647 : vector<8x16xf32>
    %c15_432 = arith.constant 15 : index
    %649 = memref.load %arg3[%c15_432] : memref<72xf32, #tpu.memory_space<smem>>
    %c0_433 = arith.constant 0 : index
    %c0_434 = arith.constant 0 : index
    %c1_435 = arith.constant 1 : index
    %c1_436 = arith.constant 1 : index
    %c0_437 = arith.constant 0 : index
    %650 = vector.load %arg13[%c0_433, %c0_434, %c1_435, %c1_436, %c0_437] : memref<2x2x2x9x18xf32, #tpu.memory_space<vmem>>, vector<1x1x1x8x16xf32>
    %651 = vector.shape_cast %650 : vector<1x1x1x8x16xf32> to vector<8x16xf32>
    %652 = vector.broadcast %649 : f32 to vector<8x16xf32>
    %653 = arith.mulf %652, %651 : vector<8x16xf32>
    %654 = arith.addf %648, %653 : vector<8x16xf32>
    %c16_438 = arith.constant 16 : index
    %655 = memref.load %arg3[%c16_438] : memref<72xf32, #tpu.memory_space<smem>>
    %c0_439 = arith.constant 0 : index
    %c1_440 = arith.constant 1 : index
    %c1_441 = arith.constant 1 : index
    %c1_442 = arith.constant 1 : index
    %c0_443 = arith.constant 0 : index
    %656 = vector.load %arg13[%c0_439, %c1_440, %c1_441, %c1_442, %c0_443] : memref<2x2x2x9x18xf32, #tpu.memory_space<vmem>>, vector<1x1x1x8x16xf32>
    %657 = vector.shape_cast %656 : vector<1x1x1x8x16xf32> to vector<8x16xf32>
    %658 = vector.broadcast %655 : f32 to vector<8x16xf32>
    %659 = arith.mulf %658, %657 : vector<8x16xf32>
    %660 = arith.addf %654, %659 : vector<8x16xf32>
    %c17_444 = arith.constant 17 : index
    %661 = memref.load %arg3[%c17_444] : memref<72xf32, #tpu.memory_space<smem>>
    %c0_445 = arith.constant 0 : index
    %c0_446 = arith.constant 0 : index
    %c1_447 = arith.constant 1 : index
    %c1_448 = arith.constant 1 : index
    %c2_449 = arith.constant 2 : index
    %662 = vector.load %arg13[%c0_445, %c0_446, %c1_447, %c1_448, %c2_449] : memref<2x2x2x9x18xf32, #tpu.memory_space<vmem>>, vector<1x1x1x8x16xf32>
    %663 = vector.shape_cast %662 : vector<1x1x1x8x16xf32> to vector<8x16xf32>
    %664 = vector.broadcast %661 : f32 to vector<8x16xf32>
    %665 = arith.mulf %664, %663 : vector<8x16xf32>
    %666 = arith.addf %660, %665 : vector<8x16xf32>
    %cst_450 = arith.constant 0.000000e+00 : f32
    %667 = vector.broadcast %cst_450 : f32 to vector<8x16xf32>
    %c0_451 = arith.constant 0 : index
    %668 = memref.load %arg3[%c0_451] : memref<72xf32, #tpu.memory_space<smem>>
    %c0_452 = arith.constant 0 : index
    %c1_453 = arith.constant 1 : index
    %c0_454 = arith.constant 0 : index
    %c0_455 = arith.constant 0 : index
    %c0_456 = arith.constant 0 : index
    %669 = vector.load %arg13[%c0_452, %c1_453, %c0_454, %c0_455, %c0_456] : memref<2x2x2x9x18xf32, #tpu.memory_space<vmem>>, vector<1x1x1x8x16xf32>
    %670 = vector.shape_cast %669 : vector<1x1x1x8x16xf32> to vector<8x16xf32>
    %671 = vector.broadcast %668 : f32 to vector<8x16xf32>
    %672 = arith.mulf %671, %670 : vector<8x16xf32>
    %673 = arith.addf %667, %672 : vector<8x16xf32>
    %c1_457 = arith.constant 1 : index
    %674 = memref.load %arg3[%c1_457] : memref<72xf32, #tpu.memory_space<smem>>
    %c0_458 = arith.constant 0 : index
    %c0_459 = arith.constant 0 : index
    %c0_460 = arith.constant 0 : index
    %c0_461 = arith.constant 0 : index
    %c2_462 = arith.constant 2 : index
    %675 = vector.load %arg13[%c0_458, %c0_459, %c0_460, %c0_461, %c2_462] : memref<2x2x2x9x18xf32, #tpu.memory_space<vmem>>, vector<1x1x1x8x16xf32>
    %676 = vector.shape_cast %675 : vector<1x1x1x8x16xf32> to vector<8x16xf32>
    %677 = vector.broadcast %674 : f32 to vector<8x16xf32>
    %678 = arith.mulf %677, %676 : vector<8x16xf32>
    %679 = arith.addf %673, %678 : vector<8x16xf32>
    %c2_463 = arith.constant 2 : index
    %680 = memref.load %arg3[%c2_463] : memref<72xf32, #tpu.memory_space<smem>>
    %c0_464 = arith.constant 0 : index
    %c1_465 = arith.constant 1 : index
    %c0_466 = arith.constant 0 : index
    %c0_467 = arith.constant 0 : index
    %c2_468 = arith.constant 2 : index
    %681 = vector.load %arg13[%c0_464, %c1_465, %c0_466, %c0_467, %c2_468] : memref<2x2x2x9x18xf32, #tpu.memory_space<vmem>>, vector<1x1x1x8x16xf32>
    %682 = vector.shape_cast %681 : vector<1x1x1x8x16xf32> to vector<8x16xf32>
    %683 = vector.broadcast %680 : f32 to vector<8x16xf32>
    %684 = arith.mulf %683, %682 : vector<8x16xf32>
    %685 = arith.addf %679, %684 : vector<8x16xf32>
    %c3_469 = arith.constant 3 : index
    %686 = memref.load %arg3[%c3_469] : memref<72xf32, #tpu.memory_space<smem>>
    %c1_470 = arith.constant 1 : index
    %c1_471 = arith.constant 1 : index
    %c0_472 = arith.constant 0 : index
    %c0_473 = arith.constant 0 : index
    %c0_474 = arith.constant 0 : index
    %687 = vector.load %arg13[%c1_470, %c1_471, %c0_472, %c0_473, %c0_474] : memref<2x2x2x9x18xf32, #tpu.memory_space<vmem>>, vector<1x1x1x8x16xf32>
    %688 = vector.shape_cast %687 : vector<1x1x1x8x16xf32> to vector<8x16xf32>
    %689 = vector.broadcast %686 : f32 to vector<8x16xf32>
    %690 = arith.mulf %689, %688 : vector<8x16xf32>
    %691 = arith.addf %685, %690 : vector<8x16xf32>
    %c4_475 = arith.constant 4 : index
    %692 = memref.load %arg3[%c4_475] : memref<72xf32, #tpu.memory_space<smem>>
    %c1_476 = arith.constant 1 : index
    %c0_477 = arith.constant 0 : index
    %c0_478 = arith.constant 0 : index
    %c0_479 = arith.constant 0 : index
    %c2_480 = arith.constant 2 : index
    %693 = vector.load %arg13[%c1_476, %c0_477, %c0_478, %c0_479, %c2_480] : memref<2x2x2x9x18xf32, #tpu.memory_space<vmem>>, vector<1x1x1x8x16xf32>
    %694 = vector.shape_cast %693 : vector<1x1x1x8x16xf32> to vector<8x16xf32>
    %695 = vector.broadcast %692 : f32 to vector<8x16xf32>
    %696 = arith.mulf %695, %694 : vector<8x16xf32>
    %697 = arith.addf %691, %696 : vector<8x16xf32>
    %c5_481 = arith.constant 5 : index
    %698 = memref.load %arg3[%c5_481] : memref<72xf32, #tpu.memory_space<smem>>
    %c1_482 = arith.constant 1 : index
    %c1_483 = arith.constant 1 : index
    %c0_484 = arith.constant 0 : index
    %c0_485 = arith.constant 0 : index
    %c2_486 = arith.constant 2 : index
    %699 = vector.load %arg13[%c1_482, %c1_483, %c0_484, %c0_485, %c2_486] : memref<2x2x2x9x18xf32, #tpu.memory_space<vmem>>, vector<1x1x1x8x16xf32>
    %700 = vector.shape_cast %699 : vector<1x1x1x8x16xf32> to vector<8x16xf32>
    %701 = vector.broadcast %698 : f32 to vector<8x16xf32>
    %702 = arith.mulf %701, %700 : vector<8x16xf32>
    %703 = arith.addf %697, %702 : vector<8x16xf32>
    %c6_487 = arith.constant 6 : index
    %704 = memref.load %arg3[%c6_487] : memref<72xf32, #tpu.memory_space<smem>>
    %c0_488 = arith.constant 0 : index
    %c1_489 = arith.constant 1 : index
    %c0_490 = arith.constant 0 : index
    %c1_491 = arith.constant 1 : index
    %c0_492 = arith.constant 0 : index
    %705 = vector.load %arg13[%c0_488, %c1_489, %c0_490, %c1_491, %c0_492] : memref<2x2x2x9x18xf32, #tpu.memory_space<vmem>>, vector<1x1x1x8x16xf32>
    %706 = vector.shape_cast %705 : vector<1x1x1x8x16xf32> to vector<8x16xf32>
    %707 = vector.broadcast %704 : f32 to vector<8x16xf32>
    %708 = arith.mulf %707, %706 : vector<8x16xf32>
    %709 = arith.addf %703, %708 : vector<8x16xf32>
    %c7_493 = arith.constant 7 : index
    %710 = memref.load %arg3[%c7_493] : memref<72xf32, #tpu.memory_space<smem>>
    %c0_494 = arith.constant 0 : index
    %c0_495 = arith.constant 0 : index
    %c0_496 = arith.constant 0 : index
    %c1_497 = arith.constant 1 : index
    %c2_498 = arith.constant 2 : index
    %711 = vector.load %arg13[%c0_494, %c0_495, %c0_496, %c1_497, %c2_498] : memref<2x2x2x9x18xf32, #tpu.memory_space<vmem>>, vector<1x1x1x8x16xf32>
    %712 = vector.shape_cast %711 : vector<1x1x1x8x16xf32> to vector<8x16xf32>
    %713 = vector.broadcast %710 : f32 to vector<8x16xf32>
    %714 = arith.mulf %713, %712 : vector<8x16xf32>
    %715 = arith.addf %709, %714 : vector<8x16xf32>
    %c8_499 = arith.constant 8 : index
    %716 = memref.load %arg3[%c8_499] : memref<72xf32, #tpu.memory_space<smem>>
    %c0_500 = arith.constant 0 : index
    %c1_501 = arith.constant 1 : index
    %c0_502 = arith.constant 0 : index
    %c1_503 = arith.constant 1 : index
    %c2_504 = arith.constant 2 : index
    %717 = vector.load %arg13[%c0_500, %c1_501, %c0_502, %c1_503, %c2_504] : memref<2x2x2x9x18xf32, #tpu.memory_space<vmem>>, vector<1x1x1x8x16xf32>
    %718 = vector.shape_cast %717 : vector<1x1x1x8x16xf32> to vector<8x16xf32>
    %719 = vector.broadcast %716 : f32 to vector<8x16xf32>
    %720 = arith.mulf %719, %718 : vector<8x16xf32>
    %721 = arith.addf %715, %720 : vector<8x16xf32>
    %c9_505 = arith.constant 9 : index
    %722 = memref.load %arg3[%c9_505] : memref<72xf32, #tpu.memory_space<smem>>
    %c0_506 = arith.constant 0 : index
    %c1_507 = arith.constant 1 : index
    %c1_508 = arith.constant 1 : index
    %c0_509 = arith.constant 0 : index
    %c0_510 = arith.constant 0 : index
    %723 = vector.load %arg13[%c0_506, %c1_507, %c1_508, %c0_509, %c0_510] : memref<2x2x2x9x18xf32, #tpu.memory_space<vmem>>, vector<1x1x1x8x16xf32>
    %724 = vector.shape_cast %723 : vector<1x1x1x8x16xf32> to vector<8x16xf32>
    %725 = vector.broadcast %722 : f32 to vector<8x16xf32>
    %726 = arith.mulf %725, %724 : vector<8x16xf32>
    %727 = arith.addf %721, %726 : vector<8x16xf32>
    %c10_511 = arith.constant 10 : index
    %728 = memref.load %arg3[%c10_511] : memref<72xf32, #tpu.memory_space<smem>>
    %c0_512 = arith.constant 0 : index
    %c0_513 = arith.constant 0 : index
    %c1_514 = arith.constant 1 : index
    %c0_515 = arith.constant 0 : index
    %c2_516 = arith.constant 2 : index
    %729 = vector.load %arg13[%c0_512, %c0_513, %c1_514, %c0_515, %c2_516] : memref<2x2x2x9x18xf32, #tpu.memory_space<vmem>>, vector<1x1x1x8x16xf32>
    %730 = vector.shape_cast %729 : vector<1x1x1x8x16xf32> to vector<8x16xf32>
    %731 = vector.broadcast %728 : f32 to vector<8x16xf32>
    %732 = arith.mulf %731, %730 : vector<8x16xf32>
    %733 = arith.addf %727, %732 : vector<8x16xf32>
    %c11_517 = arith.constant 11 : index
    %734 = memref.load %arg3[%c11_517] : memref<72xf32, #tpu.memory_space<smem>>
    %c0_518 = arith.constant 0 : index
    %c1_519 = arith.constant 1 : index
    %c1_520 = arith.constant 1 : index
    %c0_521 = arith.constant 0 : index
    %c2_522 = arith.constant 2 : index
    %735 = vector.load %arg13[%c0_518, %c1_519, %c1_520, %c0_521, %c2_522] : memref<2x2x2x9x18xf32, #tpu.memory_space<vmem>>, vector<1x1x1x8x16xf32>
    %736 = vector.shape_cast %735 : vector<1x1x1x8x16xf32> to vector<8x16xf32>
    %737 = vector.broadcast %734 : f32 to vector<8x16xf32>
    %738 = arith.mulf %737, %736 : vector<8x16xf32>
    %739 = arith.addf %733, %738 : vector<8x16xf32>
    %c12_523 = arith.constant 12 : index
    %740 = memref.load %arg3[%c12_523] : memref<72xf32, #tpu.memory_space<smem>>
    %c1_524 = arith.constant 1 : index
    %c1_525 = arith.constant 1 : index
    %c1_526 = arith.constant 1 : index
    %c0_527 = arith.constant 0 : index
    %c0_528 = arith.constant 0 : index
    %741 = vector.load %arg13[%c1_524, %c1_525, %c1_526, %c0_527, %c0_528] : memref<2x2x2x9x18xf32, #tpu.memory_space<vmem>>, vector<1x1x1x8x16xf32>
    %742 = vector.shape_cast %741 : vector<1x1x1x8x16xf32> to vector<8x16xf32>
    %743 = vector.broadcast %740 : f32 to vector<8x16xf32>
    %744 = arith.mulf %743, %742 : vector<8x16xf32>
    %745 = arith.addf %739, %744 : vector<8x16xf32>
    %c13_529 = arith.constant 13 : index
    %746 = memref.load %arg3[%c13_529] : memref<72xf32, #tpu.memory_space<smem>>
    %c1_530 = arith.constant 1 : index
    %c0_531 = arith.constant 0 : index
    %c1_532 = arith.constant 1 : index
    %c0_533 = arith.constant 0 : index
    %c2_534 = arith.constant 2 : index
    %747 = vector.load %arg13[%c1_530, %c0_531, %c1_532, %c0_533, %c2_534] : memref<2x2x2x9x18xf32, #tpu.memory_space<vmem>>, vector<1x1x1x8x16xf32>
    %748 = vector.shape_cast %747 : vector<1x1x1x8x16xf32> to vector<8x16xf32>
    %749 = vector.broadcast %746 : f32 to vector<8x16xf32>
    %750 = arith.mulf %749, %748 : vector<8x16xf32>
    %751 = arith.addf %745, %750 : vector<8x16xf32>
    %c14_535 = arith.constant 14 : index
    %752 = memref.load %arg3[%c14_535] : memref<72xf32, #tpu.memory_space<smem>>
    %c1_536 = arith.constant 1 : index
    %c1_537 = arith.constant 1 : index
    %c1_538 = arith.constant 1 : index
    %c0_539 = arith.constant 0 : index
    %c2_540 = arith.constant 2 : index
    %753 = vector.load %arg13[%c1_536, %c1_537, %c1_538, %c0_539, %c2_540] : memref<2x2x2x9x18xf32, #tpu.memory_space<vmem>>, vector<1x1x1x8x16xf32>
    %754 = vector.shape_cast %753 : vector<1x1x1x8x16xf32> to vector<8x16xf32>
    %755 = vector.broadcast %752 : f32 to vector<8x16xf32>
    %756 = arith.mulf %755, %754 : vector<8x16xf32>
    %757 = arith.addf %751, %756 : vector<8x16xf32>
    %c15_541 = arith.constant 15 : index
    %758 = memref.load %arg3[%c15_541] : memref<72xf32, #tpu.memory_space<smem>>
    %c0_542 = arith.constant 0 : index
    %c1_543 = arith.constant 1 : index
    %c1_544 = arith.constant 1 : index
    %c1_545 = arith.constant 1 : index
    %c0_546 = arith.constant 0 : index
    %759 = vector.load %arg13[%c0_542, %c1_543, %c1_544, %c1_545, %c0_546] : memref<2x2x2x9x18xf32, #tpu.memory_space<vmem>>, vector<1x1x1x8x16xf32>
    %760 = vector.shape_cast %759 : vector<1x1x1x8x16xf32> to vector<8x16xf32>
    %761 = vector.broadcast %758 : f32 to vector<8x16xf32>
    %762 = arith.mulf %761, %760 : vector<8x16xf32>
    %763 = arith.addf %757, %762 : vector<8x16xf32>
    %c16_547 = arith.constant 16 : index
    %764 = memref.load %arg3[%c16_547] : memref<72xf32, #tpu.memory_space<smem>>
    %c0_548 = arith.constant 0 : index
    %c0_549 = arith.constant 0 : index
    %c1_550 = arith.constant 1 : index
    %c1_551 = arith.constant 1 : index
    %c2_552 = arith.constant 2 : index
    %765 = vector.load %arg13[%c0_548, %c0_549, %c1_550, %c1_551, %c2_552] : memref<2x2x2x9x18xf32, #tpu.memory_space<vmem>>, vector<1x1x1x8x16xf32>
    %766 = vector.shape_cast %765 : vector<1x1x1x8x16xf32> to vector<8x16xf32>
    %767 = vector.broadcast %764 : f32 to vector<8x16xf32>
    %768 = arith.mulf %767, %766 : vector<8x16xf32>
    %769 = arith.addf %763, %768 : vector<8x16xf32>
    %c17_553 = arith.constant 17 : index
    %770 = memref.load %arg3[%c17_553] : memref<72xf32, #tpu.memory_space<smem>>
    %c0_554 = arith.constant 0 : index
    %c1_555 = arith.constant 1 : index
    %c1_556 = arith.constant 1 : index
    %c1_557 = arith.constant 1 : index
    %c2_558 = arith.constant 2 : index
    %771 = vector.load %arg13[%c0_554, %c1_555, %c1_556, %c1_557, %c2_558] : memref<2x2x2x9x18xf32, #tpu.memory_space<vmem>>, vector<1x1x1x8x16xf32>
    %772 = vector.shape_cast %771 : vector<1x1x1x8x16xf32> to vector<8x16xf32>
    %773 = vector.broadcast %770 : f32 to vector<8x16xf32>
    %774 = arith.mulf %773, %772 : vector<8x16xf32>
    %775 = arith.addf %769, %774 : vector<8x16xf32>
    %cst_559 = arith.constant 0.000000e+00 : f32
    %776 = vector.broadcast %cst_559 : f32 to vector<8x16xf32>
    %c0_560 = arith.constant 0 : index
    %777 = memref.load %arg3[%c0_560] : memref<72xf32, #tpu.memory_space<smem>>
    %c1_561 = arith.constant 1 : index
    %c0_562 = arith.constant 0 : index
    %c0_563 = arith.constant 0 : index
    %c0_564 = arith.constant 0 : index
    %c0_565 = arith.constant 0 : index
    %778 = vector.load %arg13[%c1_561, %c0_562, %c0_563, %c0_564, %c0_565] : memref<2x2x2x9x18xf32, #tpu.memory_space<vmem>>, vector<1x1x1x8x16xf32>
    %779 = vector.shape_cast %778 : vector<1x1x1x8x16xf32> to vector<8x16xf32>
    %780 = vector.broadcast %777 : f32 to vector<8x16xf32>
    %781 = arith.mulf %780, %779 : vector<8x16xf32>
    %782 = arith.addf %776, %781 : vector<8x16xf32>
    %c1_566 = arith.constant 1 : index
    %783 = memref.load %arg3[%c1_566] : memref<72xf32, #tpu.memory_space<smem>>
    %c1_567 = arith.constant 1 : index
    %c1_568 = arith.constant 1 : index
    %c0_569 = arith.constant 0 : index
    %c0_570 = arith.constant 0 : index
    %c0_571 = arith.constant 0 : index
    %784 = vector.load %arg13[%c1_567, %c1_568, %c0_569, %c0_570, %c0_571] : memref<2x2x2x9x18xf32, #tpu.memory_space<vmem>>, vector<1x1x1x8x16xf32>
    %785 = vector.shape_cast %784 : vector<1x1x1x8x16xf32> to vector<8x16xf32>
    %786 = vector.broadcast %783 : f32 to vector<8x16xf32>
    %787 = arith.mulf %786, %785 : vector<8x16xf32>
    %788 = arith.addf %782, %787 : vector<8x16xf32>
    %c2_572 = arith.constant 2 : index
    %789 = memref.load %arg3[%c2_572] : memref<72xf32, #tpu.memory_space<smem>>
    %c1_573 = arith.constant 1 : index
    %c0_574 = arith.constant 0 : index
    %c0_575 = arith.constant 0 : index
    %c0_576 = arith.constant 0 : index
    %c2_577 = arith.constant 2 : index
    %790 = vector.load %arg13[%c1_573, %c0_574, %c0_575, %c0_576, %c2_577] : memref<2x2x2x9x18xf32, #tpu.memory_space<vmem>>, vector<1x1x1x8x16xf32>
    %791 = vector.shape_cast %790 : vector<1x1x1x8x16xf32> to vector<8x16xf32>
    %792 = vector.broadcast %789 : f32 to vector<8x16xf32>
    %793 = arith.mulf %792, %791 : vector<8x16xf32>
    %794 = arith.addf %788, %793 : vector<8x16xf32>
    %c3_578 = arith.constant 3 : index
    %795 = memref.load %arg3[%c3_578] : memref<72xf32, #tpu.memory_space<smem>>
    %c0_579 = arith.constant 0 : index
    %c0_580 = arith.constant 0 : index
    %c0_581 = arith.constant 0 : index
    %c1_582 = arith.constant 1 : index
    %c0_583 = arith.constant 0 : index
    %796 = vector.load %arg13[%c0_579, %c0_580, %c0_581, %c1_582, %c0_583] : memref<2x2x2x9x18xf32, #tpu.memory_space<vmem>>, vector<1x1x1x8x16xf32>
    %797 = vector.shape_cast %796 : vector<1x1x1x8x16xf32> to vector<8x16xf32>
    %798 = vector.broadcast %795 : f32 to vector<8x16xf32>
    %799 = arith.mulf %798, %797 : vector<8x16xf32>
    %800 = arith.addf %794, %799 : vector<8x16xf32>
    %c4_584 = arith.constant 4 : index
    %801 = memref.load %arg3[%c4_584] : memref<72xf32, #tpu.memory_space<smem>>
    %c0_585 = arith.constant 0 : index
    %c1_586 = arith.constant 1 : index
    %c0_587 = arith.constant 0 : index
    %c1_588 = arith.constant 1 : index
    %c0_589 = arith.constant 0 : index
    %802 = vector.load %arg13[%c0_585, %c1_586, %c0_587, %c1_588, %c0_589] : memref<2x2x2x9x18xf32, #tpu.memory_space<vmem>>, vector<1x1x1x8x16xf32>
    %803 = vector.shape_cast %802 : vector<1x1x1x8x16xf32> to vector<8x16xf32>
    %804 = vector.broadcast %801 : f32 to vector<8x16xf32>
    %805 = arith.mulf %804, %803 : vector<8x16xf32>
    %806 = arith.addf %800, %805 : vector<8x16xf32>
    %c5_590 = arith.constant 5 : index
    %807 = memref.load %arg3[%c5_590] : memref<72xf32, #tpu.memory_space<smem>>
    %c0_591 = arith.constant 0 : index
    %c0_592 = arith.constant 0 : index
    %c0_593 = arith.constant 0 : index
    %c1_594 = arith.constant 1 : index
    %c2_595 = arith.constant 2 : index
    %808 = vector.load %arg13[%c0_591, %c0_592, %c0_593, %c1_594, %c2_595] : memref<2x2x2x9x18xf32, #tpu.memory_space<vmem>>, vector<1x1x1x8x16xf32>
    %809 = vector.shape_cast %808 : vector<1x1x1x8x16xf32> to vector<8x16xf32>
    %810 = vector.broadcast %807 : f32 to vector<8x16xf32>
    %811 = arith.mulf %810, %809 : vector<8x16xf32>
    %812 = arith.addf %806, %811 : vector<8x16xf32>
    %c6_596 = arith.constant 6 : index
    %813 = memref.load %arg3[%c6_596] : memref<72xf32, #tpu.memory_space<smem>>
    %c1_597 = arith.constant 1 : index
    %c0_598 = arith.constant 0 : index
    %c0_599 = arith.constant 0 : index
    %c1_600 = arith.constant 1 : index
    %c0_601 = arith.constant 0 : index
    %814 = vector.load %arg13[%c1_597, %c0_598, %c0_599, %c1_600, %c0_601] : memref<2x2x2x9x18xf32, #tpu.memory_space<vmem>>, vector<1x1x1x8x16xf32>
    %815 = vector.shape_cast %814 : vector<1x1x1x8x16xf32> to vector<8x16xf32>
    %816 = vector.broadcast %813 : f32 to vector<8x16xf32>
    %817 = arith.mulf %816, %815 : vector<8x16xf32>
    %818 = arith.addf %812, %817 : vector<8x16xf32>
    %c7_602 = arith.constant 7 : index
    %819 = memref.load %arg3[%c7_602] : memref<72xf32, #tpu.memory_space<smem>>
    %c1_603 = arith.constant 1 : index
    %c1_604 = arith.constant 1 : index
    %c0_605 = arith.constant 0 : index
    %c1_606 = arith.constant 1 : index
    %c0_607 = arith.constant 0 : index
    %820 = vector.load %arg13[%c1_603, %c1_604, %c0_605, %c1_606, %c0_607] : memref<2x2x2x9x18xf32, #tpu.memory_space<vmem>>, vector<1x1x1x8x16xf32>
    %821 = vector.shape_cast %820 : vector<1x1x1x8x16xf32> to vector<8x16xf32>
    %822 = vector.broadcast %819 : f32 to vector<8x16xf32>
    %823 = arith.mulf %822, %821 : vector<8x16xf32>
    %824 = arith.addf %818, %823 : vector<8x16xf32>
    %c8_608 = arith.constant 8 : index
    %825 = memref.load %arg3[%c8_608] : memref<72xf32, #tpu.memory_space<smem>>
    %c1_609 = arith.constant 1 : index
    %c0_610 = arith.constant 0 : index
    %c0_611 = arith.constant 0 : index
    %c1_612 = arith.constant 1 : index
    %c2_613 = arith.constant 2 : index
    %826 = vector.load %arg13[%c1_609, %c0_610, %c0_611, %c1_612, %c2_613] : memref<2x2x2x9x18xf32, #tpu.memory_space<vmem>>, vector<1x1x1x8x16xf32>
    %827 = vector.shape_cast %826 : vector<1x1x1x8x16xf32> to vector<8x16xf32>
    %828 = vector.broadcast %825 : f32 to vector<8x16xf32>
    %829 = arith.mulf %828, %827 : vector<8x16xf32>
    %830 = arith.addf %824, %829 : vector<8x16xf32>
    %c9_614 = arith.constant 9 : index
    %831 = memref.load %arg3[%c9_614] : memref<72xf32, #tpu.memory_space<smem>>
    %c1_615 = arith.constant 1 : index
    %c0_616 = arith.constant 0 : index
    %c1_617 = arith.constant 1 : index
    %c0_618 = arith.constant 0 : index
    %c0_619 = arith.constant 0 : index
    %832 = vector.load %arg13[%c1_615, %c0_616, %c1_617, %c0_618, %c0_619] : memref<2x2x2x9x18xf32, #tpu.memory_space<vmem>>, vector<1x1x1x8x16xf32>
    %833 = vector.shape_cast %832 : vector<1x1x1x8x16xf32> to vector<8x16xf32>
    %834 = vector.broadcast %831 : f32 to vector<8x16xf32>
    %835 = arith.mulf %834, %833 : vector<8x16xf32>
    %836 = arith.addf %830, %835 : vector<8x16xf32>
    %c10_620 = arith.constant 10 : index
    %837 = memref.load %arg3[%c10_620] : memref<72xf32, #tpu.memory_space<smem>>
    %c1_621 = arith.constant 1 : index
    %c1_622 = arith.constant 1 : index
    %c1_623 = arith.constant 1 : index
    %c0_624 = arith.constant 0 : index
    %c0_625 = arith.constant 0 : index
    %838 = vector.load %arg13[%c1_621, %c1_622, %c1_623, %c0_624, %c0_625] : memref<2x2x2x9x18xf32, #tpu.memory_space<vmem>>, vector<1x1x1x8x16xf32>
    %839 = vector.shape_cast %838 : vector<1x1x1x8x16xf32> to vector<8x16xf32>
    %840 = vector.broadcast %837 : f32 to vector<8x16xf32>
    %841 = arith.mulf %840, %839 : vector<8x16xf32>
    %842 = arith.addf %836, %841 : vector<8x16xf32>
    %c11_626 = arith.constant 11 : index
    %843 = memref.load %arg3[%c11_626] : memref<72xf32, #tpu.memory_space<smem>>
    %c1_627 = arith.constant 1 : index
    %c0_628 = arith.constant 0 : index
    %c1_629 = arith.constant 1 : index
    %c0_630 = arith.constant 0 : index
    %c2_631 = arith.constant 2 : index
    %844 = vector.load %arg13[%c1_627, %c0_628, %c1_629, %c0_630, %c2_631] : memref<2x2x2x9x18xf32, #tpu.memory_space<vmem>>, vector<1x1x1x8x16xf32>
    %845 = vector.shape_cast %844 : vector<1x1x1x8x16xf32> to vector<8x16xf32>
    %846 = vector.broadcast %843 : f32 to vector<8x16xf32>
    %847 = arith.mulf %846, %845 : vector<8x16xf32>
    %848 = arith.addf %842, %847 : vector<8x16xf32>
    %c12_632 = arith.constant 12 : index
    %849 = memref.load %arg3[%c12_632] : memref<72xf32, #tpu.memory_space<smem>>
    %c0_633 = arith.constant 0 : index
    %c0_634 = arith.constant 0 : index
    %c1_635 = arith.constant 1 : index
    %c1_636 = arith.constant 1 : index
    %c0_637 = arith.constant 0 : index
    %850 = vector.load %arg13[%c0_633, %c0_634, %c1_635, %c1_636, %c0_637] : memref<2x2x2x9x18xf32, #tpu.memory_space<vmem>>, vector<1x1x1x8x16xf32>
    %851 = vector.shape_cast %850 : vector<1x1x1x8x16xf32> to vector<8x16xf32>
    %852 = vector.broadcast %849 : f32 to vector<8x16xf32>
    %853 = arith.mulf %852, %851 : vector<8x16xf32>
    %854 = arith.addf %848, %853 : vector<8x16xf32>
    %c13_638 = arith.constant 13 : index
    %855 = memref.load %arg3[%c13_638] : memref<72xf32, #tpu.memory_space<smem>>
    %c0_639 = arith.constant 0 : index
    %c1_640 = arith.constant 1 : index
    %c1_641 = arith.constant 1 : index
    %c1_642 = arith.constant 1 : index
    %c0_643 = arith.constant 0 : index
    %856 = vector.load %arg13[%c0_639, %c1_640, %c1_641, %c1_642, %c0_643] : memref<2x2x2x9x18xf32, #tpu.memory_space<vmem>>, vector<1x1x1x8x16xf32>
    %857 = vector.shape_cast %856 : vector<1x1x1x8x16xf32> to vector<8x16xf32>
    %858 = vector.broadcast %855 : f32 to vector<8x16xf32>
    %859 = arith.mulf %858, %857 : vector<8x16xf32>
    %860 = arith.addf %854, %859 : vector<8x16xf32>
    %c14_644 = arith.constant 14 : index
    %861 = memref.load %arg3[%c14_644] : memref<72xf32, #tpu.memory_space<smem>>
    %c0_645 = arith.constant 0 : index
    %c0_646 = arith.constant 0 : index
    %c1_647 = arith.constant 1 : index
    %c1_648 = arith.constant 1 : index
    %c2_649 = arith.constant 2 : index
    %862 = vector.load %arg13[%c0_645, %c0_646, %c1_647, %c1_648, %c2_649] : memref<2x2x2x9x18xf32, #tpu.memory_space<vmem>>, vector<1x1x1x8x16xf32>
    %863 = vector.shape_cast %862 : vector<1x1x1x8x16xf32> to vector<8x16xf32>
    %864 = vector.broadcast %861 : f32 to vector<8x16xf32>
    %865 = arith.mulf %864, %863 : vector<8x16xf32>
    %866 = arith.addf %860, %865 : vector<8x16xf32>
    %c15_650 = arith.constant 15 : index
    %867 = memref.load %arg3[%c15_650] : memref<72xf32, #tpu.memory_space<smem>>
    %c1_651 = arith.constant 1 : index
    %c0_652 = arith.constant 0 : index
    %c1_653 = arith.constant 1 : index
    %c1_654 = arith.constant 1 : index
    %c0_655 = arith.constant 0 : index
    %868 = vector.load %arg13[%c1_651, %c0_652, %c1_653, %c1_654, %c0_655] : memref<2x2x2x9x18xf32, #tpu.memory_space<vmem>>, vector<1x1x1x8x16xf32>
    %869 = vector.shape_cast %868 : vector<1x1x1x8x16xf32> to vector<8x16xf32>
    %870 = vector.broadcast %867 : f32 to vector<8x16xf32>
    %871 = arith.mulf %870, %869 : vector<8x16xf32>
    %872 = arith.addf %866, %871 : vector<8x16xf32>
    %c16_656 = arith.constant 16 : index
    %873 = memref.load %arg3[%c16_656] : memref<72xf32, #tpu.memory_space<smem>>
    %c1_657 = arith.constant 1 : index
    %c1_658 = arith.constant 1 : index
    %c1_659 = arith.constant 1 : index
    %c1_660 = arith.constant 1 : index
    %c0_661 = arith.constant 0 : index
    %874 = vector.load %arg13[%c1_657, %c1_658, %c1_659, %c1_660, %c0_661] : memref<2x2x2x9x18xf32, #tpu.memory_space<vmem>>, vector<1x1x1x8x16xf32>
    %875 = vector.shape_cast %874 : vector<1x1x1x8x16xf32> to vector<8x16xf32>
    %876 = vector.broadcast %873 : f32 to vector<8x16xf32>
    %877 = arith.mulf %876, %875 : vector<8x16xf32>
    %878 = arith.addf %872, %877 : vector<8x16xf32>
    %c17_662 = arith.constant 17 : index
    %879 = memref.load %arg3[%c17_662] : memref<72xf32, #tpu.memory_space<smem>>
    %c1_663 = arith.constant 1 : index
    %c0_664 = arith.constant 0 : index
    %c1_665 = arith.constant 1 : index
    %c1_666 = arith.constant 1 : index
    %c2_667 = arith.constant 2 : index
    %880 = vector.load %arg13[%c1_663, %c0_664, %c1_665, %c1_666, %c2_667] : memref<2x2x2x9x18xf32, #tpu.memory_space<vmem>>, vector<1x1x1x8x16xf32>
    %881 = vector.shape_cast %880 : vector<1x1x1x8x16xf32> to vector<8x16xf32>
    %882 = vector.broadcast %879 : f32 to vector<8x16xf32>
    %883 = arith.mulf %882, %881 : vector<8x16xf32>
    %884 = arith.addf %878, %883 : vector<8x16xf32>
    %cst_668 = arith.constant 0.000000e+00 : f32
    %885 = vector.broadcast %cst_668 : f32 to vector<8x16xf32>
    %c0_669 = arith.constant 0 : index
    %886 = memref.load %arg3[%c0_669] : memref<72xf32, #tpu.memory_space<smem>>
    %c1_670 = arith.constant 1 : index
    %c1_671 = arith.constant 1 : index
    %c0_672 = arith.constant 0 : index
    %c0_673 = arith.constant 0 : index
    %c0_674 = arith.constant 0 : index
    %887 = vector.load %arg13[%c1_670, %c1_671, %c0_672, %c0_673, %c0_674] : memref<2x2x2x9x18xf32, #tpu.memory_space<vmem>>, vector<1x1x1x8x16xf32>
    %888 = vector.shape_cast %887 : vector<1x1x1x8x16xf32> to vector<8x16xf32>
    %889 = vector.broadcast %886 : f32 to vector<8x16xf32>
    %890 = arith.mulf %889, %888 : vector<8x16xf32>
    %891 = arith.addf %885, %890 : vector<8x16xf32>
    %c1_675 = arith.constant 1 : index
    %892 = memref.load %arg3[%c1_675] : memref<72xf32, #tpu.memory_space<smem>>
    %c1_676 = arith.constant 1 : index
    %c0_677 = arith.constant 0 : index
    %c0_678 = arith.constant 0 : index
    %c0_679 = arith.constant 0 : index
    %c2_680 = arith.constant 2 : index
    %893 = vector.load %arg13[%c1_676, %c0_677, %c0_678, %c0_679, %c2_680] : memref<2x2x2x9x18xf32, #tpu.memory_space<vmem>>, vector<1x1x1x8x16xf32>
    %894 = vector.shape_cast %893 : vector<1x1x1x8x16xf32> to vector<8x16xf32>
    %895 = vector.broadcast %892 : f32 to vector<8x16xf32>
    %896 = arith.mulf %895, %894 : vector<8x16xf32>
    %897 = arith.addf %891, %896 : vector<8x16xf32>
    %c2_681 = arith.constant 2 : index
    %898 = memref.load %arg3[%c2_681] : memref<72xf32, #tpu.memory_space<smem>>
    %c1_682 = arith.constant 1 : index
    %c1_683 = arith.constant 1 : index
    %c0_684 = arith.constant 0 : index
    %c0_685 = arith.constant 0 : index
    %c2_686 = arith.constant 2 : index
    %899 = vector.load %arg13[%c1_682, %c1_683, %c0_684, %c0_685, %c2_686] : memref<2x2x2x9x18xf32, #tpu.memory_space<vmem>>, vector<1x1x1x8x16xf32>
    %900 = vector.shape_cast %899 : vector<1x1x1x8x16xf32> to vector<8x16xf32>
    %901 = vector.broadcast %898 : f32 to vector<8x16xf32>
    %902 = arith.mulf %901, %900 : vector<8x16xf32>
    %903 = arith.addf %897, %902 : vector<8x16xf32>
    %c3_687 = arith.constant 3 : index
    %904 = memref.load %arg3[%c3_687] : memref<72xf32, #tpu.memory_space<smem>>
    %c0_688 = arith.constant 0 : index
    %c1_689 = arith.constant 1 : index
    %c0_690 = arith.constant 0 : index
    %c1_691 = arith.constant 1 : index
    %c0_692 = arith.constant 0 : index
    %905 = vector.load %arg13[%c0_688, %c1_689, %c0_690, %c1_691, %c0_692] : memref<2x2x2x9x18xf32, #tpu.memory_space<vmem>>, vector<1x1x1x8x16xf32>
    %906 = vector.shape_cast %905 : vector<1x1x1x8x16xf32> to vector<8x16xf32>
    %907 = vector.broadcast %904 : f32 to vector<8x16xf32>
    %908 = arith.mulf %907, %906 : vector<8x16xf32>
    %909 = arith.addf %903, %908 : vector<8x16xf32>
    %c4_693 = arith.constant 4 : index
    %910 = memref.load %arg3[%c4_693] : memref<72xf32, #tpu.memory_space<smem>>
    %c0_694 = arith.constant 0 : index
    %c0_695 = arith.constant 0 : index
    %c0_696 = arith.constant 0 : index
    %c1_697 = arith.constant 1 : index
    %c2_698 = arith.constant 2 : index
    %911 = vector.load %arg13[%c0_694, %c0_695, %c0_696, %c1_697, %c2_698] : memref<2x2x2x9x18xf32, #tpu.memory_space<vmem>>, vector<1x1x1x8x16xf32>
    %912 = vector.shape_cast %911 : vector<1x1x1x8x16xf32> to vector<8x16xf32>
    %913 = vector.broadcast %910 : f32 to vector<8x16xf32>
    %914 = arith.mulf %913, %912 : vector<8x16xf32>
    %915 = arith.addf %909, %914 : vector<8x16xf32>
    %c5_699 = arith.constant 5 : index
    %916 = memref.load %arg3[%c5_699] : memref<72xf32, #tpu.memory_space<smem>>
    %c0_700 = arith.constant 0 : index
    %c1_701 = arith.constant 1 : index
    %c0_702 = arith.constant 0 : index
    %c1_703 = arith.constant 1 : index
    %c2_704 = arith.constant 2 : index
    %917 = vector.load %arg13[%c0_700, %c1_701, %c0_702, %c1_703, %c2_704] : memref<2x2x2x9x18xf32, #tpu.memory_space<vmem>>, vector<1x1x1x8x16xf32>
    %918 = vector.shape_cast %917 : vector<1x1x1x8x16xf32> to vector<8x16xf32>
    %919 = vector.broadcast %916 : f32 to vector<8x16xf32>
    %920 = arith.mulf %919, %918 : vector<8x16xf32>
    %921 = arith.addf %915, %920 : vector<8x16xf32>
    %c6_705 = arith.constant 6 : index
    %922 = memref.load %arg3[%c6_705] : memref<72xf32, #tpu.memory_space<smem>>
    %c1_706 = arith.constant 1 : index
    %c1_707 = arith.constant 1 : index
    %c0_708 = arith.constant 0 : index
    %c1_709 = arith.constant 1 : index
    %c0_710 = arith.constant 0 : index
    %923 = vector.load %arg13[%c1_706, %c1_707, %c0_708, %c1_709, %c0_710] : memref<2x2x2x9x18xf32, #tpu.memory_space<vmem>>, vector<1x1x1x8x16xf32>
    %924 = vector.shape_cast %923 : vector<1x1x1x8x16xf32> to vector<8x16xf32>
    %925 = vector.broadcast %922 : f32 to vector<8x16xf32>
    %926 = arith.mulf %925, %924 : vector<8x16xf32>
    %927 = arith.addf %921, %926 : vector<8x16xf32>
    %c7_711 = arith.constant 7 : index
    %928 = memref.load %arg3[%c7_711] : memref<72xf32, #tpu.memory_space<smem>>
    %c1_712 = arith.constant 1 : index
    %c0_713 = arith.constant 0 : index
    %c0_714 = arith.constant 0 : index
    %c1_715 = arith.constant 1 : index
    %c2_716 = arith.constant 2 : index
    %929 = vector.load %arg13[%c1_712, %c0_713, %c0_714, %c1_715, %c2_716] : memref<2x2x2x9x18xf32, #tpu.memory_space<vmem>>, vector<1x1x1x8x16xf32>
    %930 = vector.shape_cast %929 : vector<1x1x1x8x16xf32> to vector<8x16xf32>
    %931 = vector.broadcast %928 : f32 to vector<8x16xf32>
    %932 = arith.mulf %931, %930 : vector<8x16xf32>
    %933 = arith.addf %927, %932 : vector<8x16xf32>
    %c8_717 = arith.constant 8 : index
    %934 = memref.load %arg3[%c8_717] : memref<72xf32, #tpu.memory_space<smem>>
    %c1_718 = arith.constant 1 : index
    %c1_719 = arith.constant 1 : index
    %c0_720 = arith.constant 0 : index
    %c1_721 = arith.constant 1 : index
    %c2_722 = arith.constant 2 : index
    %935 = vector.load %arg13[%c1_718, %c1_719, %c0_720, %c1_721, %c2_722] : memref<2x2x2x9x18xf32, #tpu.memory_space<vmem>>, vector<1x1x1x8x16xf32>
    %936 = vector.shape_cast %935 : vector<1x1x1x8x16xf32> to vector<8x16xf32>
    %937 = vector.broadcast %934 : f32 to vector<8x16xf32>
    %938 = arith.mulf %937, %936 : vector<8x16xf32>
    %939 = arith.addf %933, %938 : vector<8x16xf32>
    %c9_723 = arith.constant 9 : index
    %940 = memref.load %arg3[%c9_723] : memref<72xf32, #tpu.memory_space<smem>>
    %c1_724 = arith.constant 1 : index
    %c1_725 = arith.constant 1 : index
    %c1_726 = arith.constant 1 : index
    %c0_727 = arith.constant 0 : index
    %c0_728 = arith.constant 0 : index
    %941 = vector.load %arg13[%c1_724, %c1_725, %c1_726, %c0_727, %c0_728] : memref<2x2x2x9x18xf32, #tpu.memory_space<vmem>>, vector<1x1x1x8x16xf32>
    %942 = vector.shape_cast %941 : vector<1x1x1x8x16xf32> to vector<8x16xf32>
    %943 = vector.broadcast %940 : f32 to vector<8x16xf32>
    %944 = arith.mulf %943, %942 : vector<8x16xf32>
    %945 = arith.addf %939, %944 : vector<8x16xf32>
    %c10_729 = arith.constant 10 : index
    %946 = memref.load %arg3[%c10_729] : memref<72xf32, #tpu.memory_space<smem>>
    %c1_730 = arith.constant 1 : index
    %c0_731 = arith.constant 0 : index
    %c1_732 = arith.constant 1 : index
    %c0_733 = arith.constant 0 : index
    %c2_734 = arith.constant 2 : index
    %947 = vector.load %arg13[%c1_730, %c0_731, %c1_732, %c0_733, %c2_734] : memref<2x2x2x9x18xf32, #tpu.memory_space<vmem>>, vector<1x1x1x8x16xf32>
    %948 = vector.shape_cast %947 : vector<1x1x1x8x16xf32> to vector<8x16xf32>
    %949 = vector.broadcast %946 : f32 to vector<8x16xf32>
    %950 = arith.mulf %949, %948 : vector<8x16xf32>
    %951 = arith.addf %945, %950 : vector<8x16xf32>
    %c11_735 = arith.constant 11 : index
    %952 = memref.load %arg3[%c11_735] : memref<72xf32, #tpu.memory_space<smem>>
    %c1_736 = arith.constant 1 : index
    %c1_737 = arith.constant 1 : index
    %c1_738 = arith.constant 1 : index
    %c0_739 = arith.constant 0 : index
    %c2_740 = arith.constant 2 : index
    %953 = vector.load %arg13[%c1_736, %c1_737, %c1_738, %c0_739, %c2_740] : memref<2x2x2x9x18xf32, #tpu.memory_space<vmem>>, vector<1x1x1x8x16xf32>
    %954 = vector.shape_cast %953 : vector<1x1x1x8x16xf32> to vector<8x16xf32>
    %955 = vector.broadcast %952 : f32 to vector<8x16xf32>
    %956 = arith.mulf %955, %954 : vector<8x16xf32>
    %957 = arith.addf %951, %956 : vector<8x16xf32>
    %c12_741 = arith.constant 12 : index
    %958 = memref.load %arg3[%c12_741] : memref<72xf32, #tpu.memory_space<smem>>
    %c0_742 = arith.constant 0 : index
    %c1_743 = arith.constant 1 : index
    %c1_744 = arith.constant 1 : index
    %c1_745 = arith.constant 1 : index
    %c0_746 = arith.constant 0 : index
    %959 = vector.load %arg13[%c0_742, %c1_743, %c1_744, %c1_745, %c0_746] : memref<2x2x2x9x18xf32, #tpu.memory_space<vmem>>, vector<1x1x1x8x16xf32>
    %960 = vector.shape_cast %959 : vector<1x1x1x8x16xf32> to vector<8x16xf32>
    %961 = vector.broadcast %958 : f32 to vector<8x16xf32>
    %962 = arith.mulf %961, %960 : vector<8x16xf32>
    %963 = arith.addf %957, %962 : vector<8x16xf32>
    %c13_747 = arith.constant 13 : index
    %964 = memref.load %arg3[%c13_747] : memref<72xf32, #tpu.memory_space<smem>>
    %c0_748 = arith.constant 0 : index
    %c0_749 = arith.constant 0 : index
    %c1_750 = arith.constant 1 : index
    %c1_751 = arith.constant 1 : index
    %c2_752 = arith.constant 2 : index
    %965 = vector.load %arg13[%c0_748, %c0_749, %c1_750, %c1_751, %c2_752] : memref<2x2x2x9x18xf32, #tpu.memory_space<vmem>>, vector<1x1x1x8x16xf32>
    %966 = vector.shape_cast %965 : vector<1x1x1x8x16xf32> to vector<8x16xf32>
    %967 = vector.broadcast %964 : f32 to vector<8x16xf32>
    %968 = arith.mulf %967, %966 : vector<8x16xf32>
    %969 = arith.addf %963, %968 : vector<8x16xf32>
    %c14_753 = arith.constant 14 : index
    %970 = memref.load %arg3[%c14_753] : memref<72xf32, #tpu.memory_space<smem>>
    %c0_754 = arith.constant 0 : index
    %c1_755 = arith.constant 1 : index
    %c1_756 = arith.constant 1 : index
    %c1_757 = arith.constant 1 : index
    %c2_758 = arith.constant 2 : index
    %971 = vector.load %arg13[%c0_754, %c1_755, %c1_756, %c1_757, %c2_758] : memref<2x2x2x9x18xf32, #tpu.memory_space<vmem>>, vector<1x1x1x8x16xf32>
    %972 = vector.shape_cast %971 : vector<1x1x1x8x16xf32> to vector<8x16xf32>
    %973 = vector.broadcast %970 : f32 to vector<8x16xf32>
    %974 = arith.mulf %973, %972 : vector<8x16xf32>
    %975 = arith.addf %969, %974 : vector<8x16xf32>
    %c15_759 = arith.constant 15 : index
    %976 = memref.load %arg3[%c15_759] : memref<72xf32, #tpu.memory_space<smem>>
    %c1_760 = arith.constant 1 : index
    %c1_761 = arith.constant 1 : index
    %c1_762 = arith.constant 1 : index
    %c1_763 = arith.constant 1 : index
    %c0_764 = arith.constant 0 : index
    %977 = vector.load %arg13[%c1_760, %c1_761, %c1_762, %c1_763, %c0_764] : memref<2x2x2x9x18xf32, #tpu.memory_space<vmem>>, vector<1x1x1x8x16xf32>
    %978 = vector.shape_cast %977 : vector<1x1x1x8x16xf32> to vector<8x16xf32>
    %979 = vector.broadcast %976 : f32 to vector<8x16xf32>
    %980 = arith.mulf %979, %978 : vector<8x16xf32>
    %981 = arith.addf %975, %980 : vector<8x16xf32>
    %c16_765 = arith.constant 16 : index
    %982 = memref.load %arg3[%c16_765] : memref<72xf32, #tpu.memory_space<smem>>
    %c1_766 = arith.constant 1 : index
    %c0_767 = arith.constant 0 : index
    %c1_768 = arith.constant 1 : index
    %c1_769 = arith.constant 1 : index
    %c2_770 = arith.constant 2 : index
    %983 = vector.load %arg13[%c1_766, %c0_767, %c1_768, %c1_769, %c2_770] : memref<2x2x2x9x18xf32, #tpu.memory_space<vmem>>, vector<1x1x1x8x16xf32>
    %984 = vector.shape_cast %983 : vector<1x1x1x8x16xf32> to vector<8x16xf32>
    %985 = vector.broadcast %982 : f32 to vector<8x16xf32>
    %986 = arith.mulf %985, %984 : vector<8x16xf32>
    %987 = arith.addf %981, %986 : vector<8x16xf32>
    %c17_771 = arith.constant 17 : index
    %988 = memref.load %arg3[%c17_771] : memref<72xf32, #tpu.memory_space<smem>>
    %c1_772 = arith.constant 1 : index
    %c1_773 = arith.constant 1 : index
    %c1_774 = arith.constant 1 : index
    %c1_775 = arith.constant 1 : index
    %c2_776 = arith.constant 2 : index
    %989 = vector.load %arg13[%c1_772, %c1_773, %c1_774, %c1_775, %c2_776] : memref<2x2x2x9x18xf32, #tpu.memory_space<vmem>>, vector<1x1x1x8x16xf32>
    %990 = vector.shape_cast %989 : vector<1x1x1x8x16xf32> to vector<8x16xf32>
    %991 = vector.broadcast %988 : f32 to vector<8x16xf32>
    %992 = arith.mulf %991, %990 : vector<8x16xf32>
    %993 = arith.addf %987, %992 : vector<8x16xf32>
    %994 = arith.addf %666, %775 : vector<8x16xf32>
    %995 = arith.addf %994, %884 : vector<8x16xf32>
    %996 = arith.addf %995, %993 : vector<8x16xf32>
    %cst_777 = arith.constant 2.500000e-01 : f32
    %997 = vector.broadcast %cst_777 : f32 to vector<8x16xf32>
    %998 = arith.mulf %997, %996 : vector<8x16xf32>
    %999 = arith.addf %666, %506 : vector<8x16xf32>
    %1000 = arith.addf %775, %506 : vector<8x16xf32>
    %1001 = arith.addf %884, %506 : vector<8x16xf32>
    %1002 = arith.addf %993, %506 : vector<8x16xf32>
    %1003 = tpu.concatenate %999, %1000, %1001, %1002 in 1 : vector<8x16xf32>, vector<8x16xf32>, vector<8x16xf32>, vector<8x16xf32> -> vector<8x64xf32>
    %c0_778 = arith.constant 0 : index
    %1004 = memref.load %arg7[%c0_778] : memref<4xf32, #tpu.memory_space<smem>>
    %c0_779 = arith.constant 0 : index
    %1005 = memref.load %arg8[%c0_779] : memref<4xf32, #tpu.memory_space<smem>>
    %1006 = vector.shape_cast %1003 : vector<8x64xf32> to vector<1x8x64xf32>
    %cst_780 = arith.constant dense<0.000000e+00> : vector<1xf32>
    %1007 = vector.multi_reduction <add>, %1006, %cst_780 [1, 2] : vector<1x8x64xf32> to vector<1xf32>
    %1008 = vector.shape_cast %1007 : vector<1xf32> to vector<1x1x1xf32>
    %1009 = vector.extract %1008[0, 0, 0] : f32 from vector<1x1x1xf32>
    %cst_781 = arith.constant 0.001953125 : f32
    %1010 = arith.mulf %1009, %cst_781 : f32
    %1011 = vector.broadcast %1010 : f32 to vector<8x64xf32>
    %1012 = arith.subf %1003, %1011 : vector<8x64xf32>
    %1013 = arith.mulf %1012, %1012 : vector<8x64xf32>
    %1014 = vector.shape_cast %1013 : vector<8x64xf32> to vector<1x8x64xf32>
    %cst_782 = arith.constant dense<0.000000e+00> : vector<1xf32>
    %1015 = vector.multi_reduction <add>, %1014, %cst_782 [1, 2] : vector<1x8x64xf32> to vector<1xf32>
    %1016 = vector.shape_cast %1015 : vector<1xf32> to vector<1x1x1xf32>
    %1017 = vector.extract %1016[0, 0, 0] : f32 from vector<1x1x1xf32>
    %cst_783 = arith.constant 0.001953125 : f32
    %1018 = arith.mulf %1017, %cst_783 : f32
    %cst_784 = arith.constant 9.99999974E-6 : f32
    %1019 = arith.addf %1018, %cst_784 : f32
    %1020 = math.rsqrt %1019 : f32
    %1021 = vector.broadcast %1020 : f32 to vector<8x64xf32>
    %1022 = arith.mulf %1012, %1021 : vector<8x64xf32>
    %1023 = vector.broadcast %1004 : f32 to vector<8x64xf32>
    %1024 = arith.mulf %1022, %1023 : vector<8x64xf32>
    %1025 = vector.broadcast %1005 : f32 to vector<8x64xf32>
    %1026 = arith.addf %1024, %1025 : vector<8x64xf32>
    %cst_785 = arith.constant 0.000000e+00 : f32
    %1027 = vector.broadcast %cst_785 : f32 to vector<8x64xf32>
    %1028 = arith.maximumf %1026, %1027 : vector<8x64xf32>
    %c0_786 = arith.constant 0 : index
    %c0_787 = arith.constant 0 : index
    %c0_788 = arith.constant 0 : index
    %1029 = vector.load %arg11[%c0_786, %c0_787, %c0_788] : memref<4x8x64xf32, #tpu.memory_space<vmem>>, vector<1x8x64xf32>
    %1030 = vector.shape_cast %1029 : vector<1x8x64xf32> to vector<8x64xf32>
    %1031 = vector.shape_cast %1028 : vector<8x64xf32> to vector<1x8x64xf32>
    tpu.vector_store %arg11[%c0_786, %c0_787, %c0_788], %1031 {strides = array<i32>} : memref<4x8x64xf32, #tpu.memory_space<vmem>>, vector<1x8x64xf32>,
    %cst_789 = arith.constant 0.000000e+00 : f32
    %1032 = vector.broadcast %cst_789 : f32 to vector<8x16xf32>
    %c18_790 = arith.constant 18 : index
    %1033 = memref.load %arg3[%c18_790] : memref<72xf32, #tpu.memory_space<smem>>
    %c0_791 = arith.constant 0 : index
    %c0_792 = arith.constant 0 : index
    %c0_793 = arith.constant 0 : index
    %c0_794 = arith.constant 0 : index
    %c0_795 = arith.constant 0 : index
    %1034 = vector.load %arg13[%c0_791, %c0_792, %c0_793, %c0_794, %c0_795] : memref<2x2x2x9x18xf32, #tpu.memory_space<vmem>>, vector<1x1x1x8x16xf32>
    %1035 = vector.shape_cast %1034 : vector<1x1x1x8x16xf32> to vector<8x16xf32>
    %1036 = vector.broadcast %1033 : f32 to vector<8x16xf32>
    %1037 = arith.mulf %1036, %1035 : vector<8x16xf32>
    %1038 = arith.addf %1032, %1037 : vector<8x16xf32>
    %c19_796 = arith.constant 19 : index
    %1039 = memref.load %arg3[%c19_796] : memref<72xf32, #tpu.memory_space<smem>>
    %c0_797 = arith.constant 0 : index
    %c1_798 = arith.constant 1 : index
    %c0_799 = arith.constant 0 : index
    %c0_800 = arith.constant 0 : index
    %c0_801 = arith.constant 0 : index
    %1040 = vector.load %arg13[%c0_797, %c1_798, %c0_799, %c0_800, %c0_801] : memref<2x2x2x9x18xf32, #tpu.memory_space<vmem>>, vector<1x1x1x8x16xf32>
    %1041 = vector.shape_cast %1040 : vector<1x1x1x8x16xf32> to vector<8x16xf32>
    %1042 = vector.broadcast %1039 : f32 to vector<8x16xf32>
    %1043 = arith.mulf %1042, %1041 : vector<8x16xf32>
    %1044 = arith.addf %1038, %1043 : vector<8x16xf32>
    %c20_802 = arith.constant 20 : index
    %1045 = memref.load %arg3[%c20_802] : memref<72xf32, #tpu.memory_space<smem>>
    %c0_803 = arith.constant 0 : index
    %c0_804 = arith.constant 0 : index
    %c0_805 = arith.constant 0 : index
    %c0_806 = arith.constant 0 : index
    %c2_807 = arith.constant 2 : index
    %1046 = vector.load %arg13[%c0_803, %c0_804, %c0_805, %c0_806, %c2_807] : memref<2x2x2x9x18xf32, #tpu.memory_space<vmem>>, vector<1x1x1x8x16xf32>
    %1047 = vector.shape_cast %1046 : vector<1x1x1x8x16xf32> to vector<8x16xf32>
    %1048 = vector.broadcast %1045 : f32 to vector<8x16xf32>
    %1049 = arith.mulf %1048, %1047 : vector<8x16xf32>
    %1050 = arith.addf %1044, %1049 : vector<8x16xf32>
    %c21_808 = arith.constant 21 : index
    %1051 = memref.load %arg3[%c21_808] : memref<72xf32, #tpu.memory_space<smem>>
    %c1_809 = arith.constant 1 : index
    %c0_810 = arith.constant 0 : index
    %c0_811 = arith.constant 0 : index
    %c0_812 = arith.constant 0 : index
    %c0_813 = arith.constant 0 : index
    %1052 = vector.load %arg13[%c1_809, %c0_810, %c0_811, %c0_812, %c0_813] : memref<2x2x2x9x18xf32, #tpu.memory_space<vmem>>, vector<1x1x1x8x16xf32>
    %1053 = vector.shape_cast %1052 : vector<1x1x1x8x16xf32> to vector<8x16xf32>
    %1054 = vector.broadcast %1051 : f32 to vector<8x16xf32>
    %1055 = arith.mulf %1054, %1053 : vector<8x16xf32>
    %1056 = arith.addf %1050, %1055 : vector<8x16xf32>
    %c22_814 = arith.constant 22 : index
    %1057 = memref.load %arg3[%c22_814] : memref<72xf32, #tpu.memory_space<smem>>
    %c1_815 = arith.constant 1 : index
    %c1_816 = arith.constant 1 : index
    %c0_817 = arith.constant 0 : index
    %c0_818 = arith.constant 0 : index
    %c0_819 = arith.constant 0 : index
    %1058 = vector.load %arg13[%c1_815, %c1_816, %c0_817, %c0_818, %c0_819] : memref<2x2x2x9x18xf32, #tpu.memory_space<vmem>>, vector<1x1x1x8x16xf32>
    %1059 = vector.shape_cast %1058 : vector<1x1x1x8x16xf32> to vector<8x16xf32>
    %1060 = vector.broadcast %1057 : f32 to vector<8x16xf32>
    %1061 = arith.mulf %1060, %1059 : vector<8x16xf32>
    %1062 = arith.addf %1056, %1061 : vector<8x16xf32>
    %c23_820 = arith.constant 23 : index
    %1063 = memref.load %arg3[%c23_820] : memref<72xf32, #tpu.memory_space<smem>>
    %c1_821 = arith.constant 1 : index
    %c0_822 = arith.constant 0 : index
    %c0_823 = arith.constant 0 : index
    %c0_824 = arith.constant 0 : index
    %c2_825 = arith.constant 2 : index
    %1064 = vector.load %arg13[%c1_821, %c0_822, %c0_823, %c0_824, %c2_825] : memref<2x2x2x9x18xf32, #tpu.memory_space<vmem>>, vector<1x1x1x8x16xf32>
    %1065 = vector.shape_cast %1064 : vector<1x1x1x8x16xf32> to vector<8x16xf32>
    %1066 = vector.broadcast %1063 : f32 to vector<8x16xf32>
    %1067 = arith.mulf %1066, %1065 : vector<8x16xf32>
    %1068 = arith.addf %1062, %1067 : vector<8x16xf32>
    %c24_826 = arith.constant 24 : index
    %1069 = memref.load %arg3[%c24_826] : memref<72xf32, #tpu.memory_space<smem>>
    %c0_827 = arith.constant 0 : index
    %c0_828 = arith.constant 0 : index
    %c0_829 = arith.constant 0 : index
    %c1_830 = arith.constant 1 : index
    %c0_831 = arith.constant 0 : index
    %1070 = vector.load %arg13[%c0_827, %c0_828, %c0_829, %c1_830, %c0_831] : memref<2x2x2x9x18xf32, #tpu.memory_space<vmem>>, vector<1x1x1x8x16xf32>
    %1071 = vector.shape_cast %1070 : vector<1x1x1x8x16xf32> to vector<8x16xf32>
    %1072 = vector.broadcast %1069 : f32 to vector<8x16xf32>
    %1073 = arith.mulf %1072, %1071 : vector<8x16xf32>
    %1074 = arith.addf %1068, %1073 : vector<8x16xf32>
    %c25_832 = arith.constant 25 : index
    %1075 = memref.load %arg3[%c25_832] : memref<72xf32, #tpu.memory_space<smem>>
    %c0_833 = arith.constant 0 : index
    %c1_834 = arith.constant 1 : index
    %c0_835 = arith.constant 0 : index
    %c1_836 = arith.constant 1 : index
    %c0_837 = arith.constant 0 : index
    %1076 = vector.load %arg13[%c0_833, %c1_834, %c0_835, %c1_836, %c0_837] : memref<2x2x2x9x18xf32, #tpu.memory_space<vmem>>, vector<1x1x1x8x16xf32>
    %1077 = vector.shape_cast %1076 : vector<1x1x1x8x16xf32> to vector<8x16xf32>
    %1078 = vector.broadcast %1075 : f32 to vector<8x16xf32>
    %1079 = arith.mulf %1078, %1077 : vector<8x16xf32>
    %1080 = arith.addf %1074, %1079 : vector<8x16xf32>
    %c26_838 = arith.constant 26 : index
    %1081 = memref.load %arg3[%c26_838] : memref<72xf32, #tpu.memory_space<smem>>
    %c0_839 = arith.constant 0 : index
    %c0_840 = arith.constant 0 : index
    %c0_841 = arith.constant 0 : index
    %c1_842 = arith.constant 1 : index
    %c2_843 = arith.constant 2 : index
    %1082 = vector.load %arg13[%c0_839, %c0_840, %c0_841, %c1_842, %c2_843] : memref<2x2x2x9x18xf32, #tpu.memory_space<vmem>>, vector<1x1x1x8x16xf32>
    %1083 = vector.shape_cast %1082 : vector<1x1x1x8x16xf32> to vector<8x16xf32>
    %1084 = vector.broadcast %1081 : f32 to vector<8x16xf32>
    %1085 = arith.mulf %1084, %1083 : vector<8x16xf32>
    %1086 = arith.addf %1080, %1085 : vector<8x16xf32>
    %c27_844 = arith.constant 27 : index
    %1087 = memref.load %arg3[%c27_844] : memref<72xf32, #tpu.memory_space<smem>>
    %c0_845 = arith.constant 0 : index
    %c0_846 = arith.constant 0 : index
    %c1_847 = arith.constant 1 : index
    %c0_848 = arith.constant 0 : index
    %c0_849 = arith.constant 0 : index
    %1088 = vector.load %arg13[%c0_845, %c0_846, %c1_847, %c0_848, %c0_849] : memref<2x2x2x9x18xf32, #tpu.memory_space<vmem>>, vector<1x1x1x8x16xf32>
    %1089 = vector.shape_cast %1088 : vector<1x1x1x8x16xf32> to vector<8x16xf32>
    %1090 = vector.broadcast %1087 : f32 to vector<8x16xf32>
    %1091 = arith.mulf %1090, %1089 : vector<8x16xf32>
    %1092 = arith.addf %1086, %1091 : vector<8x16xf32>
    %c28_850 = arith.constant 28 : index
    %1093 = memref.load %arg3[%c28_850] : memref<72xf32, #tpu.memory_space<smem>>
    %c0_851 = arith.constant 0 : index
    %c1_852 = arith.constant 1 : index
    %c1_853 = arith.constant 1 : index
    %c0_854 = arith.constant 0 : index
    %c0_855 = arith.constant 0 : index
    %1094 = vector.load %arg13[%c0_851, %c1_852, %c1_853, %c0_854, %c0_855] : memref<2x2x2x9x18xf32, #tpu.memory_space<vmem>>, vector<1x1x1x8x16xf32>
    %1095 = vector.shape_cast %1094 : vector<1x1x1x8x16xf32> to vector<8x16xf32>
    %1096 = vector.broadcast %1093 : f32 to vector<8x16xf32>
    %1097 = arith.mulf %1096, %1095 : vector<8x16xf32>
    %1098 = arith.addf %1092, %1097 : vector<8x16xf32>
    %c29_856 = arith.constant 29 : index
    %1099 = memref.load %arg3[%c29_856] : memref<72xf32, #tpu.memory_space<smem>>
    %c0_857 = arith.constant 0 : index
    %c0_858 = arith.constant 0 : index
    %c1_859 = arith.constant 1 : index
    %c0_860 = arith.constant 0 : index
    %c2_861 = arith.constant 2 : index
    %1100 = vector.load %arg13[%c0_857, %c0_858, %c1_859, %c0_860, %c2_861] : memref<2x2x2x9x18xf32, #tpu.memory_space<vmem>>, vector<1x1x1x8x16xf32>
    %1101 = vector.shape_cast %1100 : vector<1x1x1x8x16xf32> to vector<8x16xf32>
    %1102 = vector.broadcast %1099 : f32 to vector<8x16xf32>
    %1103 = arith.mulf %1102, %1101 : vector<8x16xf32>
    %1104 = arith.addf %1098, %1103 : vector<8x16xf32>
    %c30_862 = arith.constant 30 : index
    %1105 = memref.load %arg3[%c30_862] : memref<72xf32, #tpu.memory_space<smem>>
    %c1_863 = arith.constant 1 : index
    %c0_864 = arith.constant 0 : index
    %c1_865 = arith.constant 1 : index
    %c0_866 = arith.constant 0 : index
    %c0_867 = arith.constant 0 : index
    %1106 = vector.load %arg13[%c1_863, %c0_864, %c1_865, %c0_866, %c0_867] : memref<2x2x2x9x18xf32, #tpu.memory_space<vmem>>, vector<1x1x1x8x16xf32>
    %1107 = vector.shape_cast %1106 : vector<1x1x1x8x16xf32> to vector<8x16xf32>
    %1108 = vector.broadcast %1105 : f32 to vector<8x16xf32>
    %1109 = arith.mulf %1108, %1107 : vector<8x16xf32>
    %1110 = arith.addf %1104, %1109 : vector<8x16xf32>
    %c31_868 = arith.constant 31 : index
    %1111 = memref.load %arg3[%c31_868] : memref<72xf32, #tpu.memory_space<smem>>
    %c1_869 = arith.constant 1 : index
    %c1_870 = arith.constant 1 : index
    %c1_871 = arith.constant 1 : index
    %c0_872 = arith.constant 0 : index
    %c0_873 = arith.constant 0 : index
    %1112 = vector.load %arg13[%c1_869, %c1_870, %c1_871, %c0_872, %c0_873] : memref<2x2x2x9x18xf32, #tpu.memory_space<vmem>>, vector<1x1x1x8x16xf32>
    %1113 = vector.shape_cast %1112 : vector<1x1x1x8x16xf32> to vector<8x16xf32>
    %1114 = vector.broadcast %1111 : f32 to vector<8x16xf32>
    %1115 = arith.mulf %1114, %1113 : vector<8x16xf32>
    %1116 = arith.addf %1110, %1115 : vector<8x16xf32>
    %c32_874 = arith.constant 32 : index
    %1117 = memref.load %arg3[%c32_874] : memref<72xf32, #tpu.memory_space<smem>>
    %c1_875 = arith.constant 1 : index
    %c0_876 = arith.constant 0 : index
    %c1_877 = arith.constant 1 : index
    %c0_878 = arith.constant 0 : index
    %c2_879 = arith.constant 2 : index
    %1118 = vector.load %arg13[%c1_875, %c0_876, %c1_877, %c0_878, %c2_879] : memref<2x2x2x9x18xf32, #tpu.memory_space<vmem>>, vector<1x1x1x8x16xf32>
    %1119 = vector.shape_cast %1118 : vector<1x1x1x8x16xf32> to vector<8x16xf32>
    %1120 = vector.broadcast %1117 : f32 to vector<8x16xf32>
    %1121 = arith.mulf %1120, %1119 : vector<8x16xf32>
    %1122 = arith.addf %1116, %1121 : vector<8x16xf32>
    %c33_880 = arith.constant 33 : index
    %1123 = memref.load %arg3[%c33_880] : memref<72xf32, #tpu.memory_space<smem>>
    %c0_881 = arith.constant 0 : index
    %c0_882 = arith.constant 0 : index
    %c1_883 = arith.constant 1 : index
    %c1_884 = arith.constant 1 : index
    %c0_885 = arith.constant 0 : index
    %1124 = vector.load %arg13[%c0_881, %c0_882, %c1_883, %c1_884, %c0_885] : memref<2x2x2x9x18xf32, #tpu.memory_space<vmem>>, vector<1x1x1x8x16xf32>
    %1125 = vector.shape_cast %1124 : vector<1x1x1x8x16xf32> to vector<8x16xf32>
    %1126 = vector.broadcast %1123 : f32 to vector<8x16xf32>
    %1127 = arith.mulf %1126, %1125 : vector<8x16xf32>
    %1128 = arith.addf %1122, %1127 : vector<8x16xf32>
    %c34_886 = arith.constant 34 : index
    %1129 = memref.load %arg3[%c34_886] : memref<72xf32, #tpu.memory_space<smem>>
    %c0_887 = arith.constant 0 : index
    %c1_888 = arith.constant 1 : index
    %c1_889 = arith.constant 1 : index
    %c1_890 = arith.constant 1 : index
    %c0_891 = arith.constant 0 : index
    %1130 = vector.load %arg13[%c0_887, %c1_888, %c1_889, %c1_890, %c0_891] : memref<2x2x2x9x18xf32, #tpu.memory_space<vmem>>, vector<1x1x1x8x16xf32>
    %1131 = vector.shape_cast %1130 : vector<1x1x1x8x16xf32> to vector<8x16xf32>
    %1132 = vector.broadcast %1129 : f32 to vector<8x16xf32>
    %1133 = arith.mulf %1132, %1131 : vector<8x16xf32>
    %1134 = arith.addf %1128, %1133 : vector<8x16xf32>
    %c35_892 = arith.constant 35 : index
    %1135 = memref.load %arg3[%c35_892] : memref<72xf32, #tpu.memory_space<smem>>
    %c0_893 = arith.constant 0 : index
    %c0_894 = arith.constant 0 : index
    %c1_895 = arith.constant 1 : index
    %c1_896 = arith.constant 1 : index
    %c2_897 = arith.constant 2 : index
    %1136 = vector.load %arg13[%c0_893, %c0_894, %c1_895, %c1_896, %c2_897] : memref<2x2x2x9x18xf32, #tpu.memory_space<vmem>>, vector<1x1x1x8x16xf32>
    %1137 = vector.shape_cast %1136 : vector<1x1x1x8x16xf32> to vector<8x16xf32>
    %1138 = vector.broadcast %1135 : f32 to vector<8x16xf32>
    %1139 = arith.mulf %1138, %1137 : vector<8x16xf32>
    %1140 = arith.addf %1134, %1139 : vector<8x16xf32>
    %cst_898 = arith.constant 0.000000e+00 : f32
    %1141 = vector.broadcast %cst_898 : f32 to vector<8x16xf32>
    %c18_899 = arith.constant 18 : index
    %1142 = memref.load %arg3[%c18_899] : memref<72xf32, #tpu.memory_space<smem>>
    %c0_900 = arith.constant 0 : index
    %c1_901 = arith.constant 1 : index
    %c0_902 = arith.constant 0 : index
    %c0_903 = arith.constant 0 : index
    %c0_904 = arith.constant 0 : index
    %1143 = vector.load %arg13[%c0_900, %c1_901, %c0_902, %c0_903, %c0_904] : memref<2x2x2x9x18xf32, #tpu.memory_space<vmem>>, vector<1x1x1x8x16xf32>
    %1144 = vector.shape_cast %1143 : vector<1x1x1x8x16xf32> to vector<8x16xf32>
    %1145 = vector.broadcast %1142 : f32 to vector<8x16xf32>
    %1146 = arith.mulf %1145, %1144 : vector<8x16xf32>
    %1147 = arith.addf %1141, %1146 : vector<8x16xf32>
    %c19_905 = arith.constant 19 : index
    %1148 = memref.load %arg3[%c19_905] : memref<72xf32, #tpu.memory_space<smem>>
    %c0_906 = arith.constant 0 : index
    %c0_907 = arith.constant 0 : index
    %c0_908 = arith.constant 0 : index
    %c0_909 = arith.constant 0 : index
    %c2_910 = arith.constant 2 : index
    %1149 = vector.load %arg13[%c0_906, %c0_907, %c0_908, %c0_909, %c2_910] : memref<2x2x2x9x18xf32, #tpu.memory_space<vmem>>, vector<1x1x1x8x16xf32>
    %1150 = vector.shape_cast %1149 : vector<1x1x1x8x16xf32> to vector<8x16xf32>
    %1151 = vector.broadcast %1148 : f32 to vector<8x16xf32>
    %1152 = arith.mulf %1151, %1150 : vector<8x16xf32>
    %1153 = arith.addf %1147, %1152 : vector<8x16xf32>
    %c20_911 = arith.constant 20 : index
    %1154 = memref.load %arg3[%c20_911] : memref<72xf32, #tpu.memory_space<smem>>
    %c0_912 = arith.constant 0 : index
    %c1_913 = arith.constant 1 : index
    %c0_914 = arith.constant 0 : index
    %c0_915 = arith.constant 0 : index
    %c2_916 = arith.constant 2 : index
    %1155 = vector.load %arg13[%c0_912, %c1_913, %c0_914, %c0_915, %c2_916] : memref<2x2x2x9x18xf32, #tpu.memory_space<vmem>>, vector<1x1x1x8x16xf32>
    %1156 = vector.shape_cast %1155 : vector<1x1x1x8x16xf32> to vector<8x16xf32>
    %1157 = vector.broadcast %1154 : f32 to vector<8x16xf32>
    %1158 = arith.mulf %1157, %1156 : vector<8x16xf32>
    %1159 = arith.addf %1153, %1158 : vector<8x16xf32>
    %c21_917 = arith.constant 21 : index
    %1160 = memref.load %arg3[%c21_917] : memref<72xf32, #tpu.memory_space<smem>>
    %c1_918 = arith.constant 1 : index
    %c1_919 = arith.constant 1 : index
    %c0_920 = arith.constant 0 : index
    %c0_921 = arith.constant 0 : index
    %c0_922 = arith.constant 0 : index
    %1161 = vector.load %arg13[%c1_918, %c1_919, %c0_920, %c0_921, %c0_922] : memref<2x2x2x9x18xf32, #tpu.memory_space<vmem>>, vector<1x1x1x8x16xf32>
    %1162 = vector.shape_cast %1161 : vector<1x1x1x8x16xf32> to vector<8x16xf32>
    %1163 = vector.broadcast %1160 : f32 to vector<8x16xf32>
    %1164 = arith.mulf %1163, %1162 : vector<8x16xf32>
    %1165 = arith.addf %1159, %1164 : vector<8x16xf32>
    %c22_923 = arith.constant 22 : index
    %1166 = memref.load %arg3[%c22_923] : memref<72xf32, #tpu.memory_space<smem>>
    %c1_924 = arith.constant 1 : index
    %c0_925 = arith.constant 0 : index
    %c0_926 = arith.constant 0 : index
    %c0_927 = arith.constant 0 : index
    %c2_928 = arith.constant 2 : index
    %1167 = vector.load %arg13[%c1_924, %c0_925, %c0_926, %c0_927, %c2_928] : memref<2x2x2x9x18xf32, #tpu.memory_space<vmem>>, vector<1x1x1x8x16xf32>
    %1168 = vector.shape_cast %1167 : vector<1x1x1x8x16xf32> to vector<8x16xf32>
    %1169 = vector.broadcast %1166 : f32 to vector<8x16xf32>
    %1170 = arith.mulf %1169, %1168 : vector<8x16xf32>
    %1171 = arith.addf %1165, %1170 : vector<8x16xf32>
    %c23_929 = arith.constant 23 : index
    %1172 = memref.load %arg3[%c23_929] : memref<72xf32, #tpu.memory_space<smem>>
    %c1_930 = arith.constant 1 : index
    %c1_931 = arith.constant 1 : index
    %c0_932 = arith.constant 0 : index
    %c0_933 = arith.constant 0 : index
    %c2_934 = arith.constant 2 : index
    %1173 = vector.load %arg13[%c1_930, %c1_931, %c0_932, %c0_933, %c2_934] : memref<2x2x2x9x18xf32, #tpu.memory_space<vmem>>, vector<1x1x1x8x16xf32>
    %1174 = vector.shape_cast %1173 : vector<1x1x1x8x16xf32> to vector<8x16xf32>
    %1175 = vector.broadcast %1172 : f32 to vector<8x16xf32>
    %1176 = arith.mulf %1175, %1174 : vector<8x16xf32>
    %1177 = arith.addf %1171, %1176 : vector<8x16xf32>
    %c24_935 = arith.constant 24 : index
    %1178 = memref.load %arg3[%c24_935] : memref<72xf32, #tpu.memory_space<smem>>
    %c0_936 = arith.constant 0 : index
    %c1_937 = arith.constant 1 : index
    %c0_938 = arith.constant 0 : index
    %c1_939 = arith.constant 1 : index
    %c0_940 = arith.constant 0 : index
    %1179 = vector.load %arg13[%c0_936, %c1_937, %c0_938, %c1_939, %c0_940] : memref<2x2x2x9x18xf32, #tpu.memory_space<vmem>>, vector<1x1x1x8x16xf32>
    %1180 = vector.shape_cast %1179 : vector<1x1x1x8x16xf32> to vector<8x16xf32>
    %1181 = vector.broadcast %1178 : f32 to vector<8x16xf32>
    %1182 = arith.mulf %1181, %1180 : vector<8x16xf32>
    %1183 = arith.addf %1177, %1182 : vector<8x16xf32>
    %c25_941 = arith.constant 25 : index
    %1184 = memref.load %arg3[%c25_941] : memref<72xf32, #tpu.memory_space<smem>>
    %c0_942 = arith.constant 0 : index
    %c0_943 = arith.constant 0 : index
    %c0_944 = arith.constant 0 : index
    %c1_945 = arith.constant 1 : index
    %c2_946 = arith.constant 2 : index
    %1185 = vector.load %arg13[%c0_942, %c0_943, %c0_944, %c1_945, %c2_946] : memref<2x2x2x9x18xf32, #tpu.memory_space<vmem>>, vector<1x1x1x8x16xf32>
    %1186 = vector.shape_cast %1185 : vector<1x1x1x8x16xf32> to vector<8x16xf32>
    %1187 = vector.broadcast %1184 : f32 to vector<8x16xf32>
    %1188 = arith.mulf %1187, %1186 : vector<8x16xf32>
    %1189 = arith.addf %1183, %1188 : vector<8x16xf32>
    %c26_947 = arith.constant 26 : index
    %1190 = memref.load %arg3[%c26_947] : memref<72xf32, #tpu.memory_space<smem>>
    %c0_948 = arith.constant 0 : index
    %c1_949 = arith.constant 1 : index
    %c0_950 = arith.constant 0 : index
    %c1_951 = arith.constant 1 : index
    %c2_952 = arith.constant 2 : index
    %1191 = vector.load %arg13[%c0_948, %c1_949, %c0_950, %c1_951, %c2_952] : memref<2x2x2x9x18xf32, #tpu.memory_space<vmem>>, vector<1x1x1x8x16xf32>
    %1192 = vector.shape_cast %1191 : vector<1x1x1x8x16xf32> to vector<8x16xf32>
    %1193 = vector.broadcast %1190 : f32 to vector<8x16xf32>
    %1194 = arith.mulf %1193, %1192 : vector<8x16xf32>
    %1195 = arith.addf %1189, %1194 : vector<8x16xf32>
    %c27_953 = arith.constant 27 : index
    %1196 = memref.load %arg3[%c27_953] : memref<72xf32, #tpu.memory_space<smem>>
    %c0_954 = arith.constant 0 : index
    %c1_955 = arith.constant 1 : index
    %c1_956 = arith.constant 1 : index
    %c0_957 = arith.constant 0 : index
    %c0_958 = arith.constant 0 : index
    %1197 = vector.load %arg13[%c0_954, %c1_955, %c1_956, %c0_957, %c0_958] : memref<2x2x2x9x18xf32, #tpu.memory_space<vmem>>, vector<1x1x1x8x16xf32>
    %1198 = vector.shape_cast %1197 : vector<1x1x1x8x16xf32> to vector<8x16xf32>
    %1199 = vector.broadcast %1196 : f32 to vector<8x16xf32>
    %1200 = arith.mulf %1199, %1198 : vector<8x16xf32>
    %1201 = arith.addf %1195, %1200 : vector<8x16xf32>
    %c28_959 = arith.constant 28 : index
    %1202 = memref.load %arg3[%c28_959] : memref<72xf32, #tpu.memory_space<smem>>
    %c0_960 = arith.constant 0 : index
    %c0_961 = arith.constant 0 : index
    %c1_962 = arith.constant 1 : index
    %c0_963 = arith.constant 0 : index
    %c2_964 = arith.constant 2 : index
    %1203 = vector.load %arg13[%c0_960, %c0_961, %c1_962, %c0_963, %c2_964] : memref<2x2x2x9x18xf32, #tpu.memory_space<vmem>>, vector<1x1x1x8x16xf32>
    %1204 = vector.shape_cast %1203 : vector<1x1x1x8x16xf32> to vector<8x16xf32>
    %1205 = vector.broadcast %1202 : f32 to vector<8x16xf32>
    %1206 = arith.mulf %1205, %1204 : vector<8x16xf32>
    %1207 = arith.addf %1201, %1206 : vector<8x16xf32>
    %c29_965 = arith.constant 29 : index
    %1208 = memref.load %arg3[%c29_965] : memref<72xf32, #tpu.memory_space<smem>>
    %c0_966 = arith.constant 0 : index
    %c1_967 = arith.constant 1 : index
    %c1_968 = arith.constant 1 : index
    %c0_969 = arith.constant 0 : index
    %c2_970 = arith.constant 2 : index
    %1209 = vector.load %arg13[%c0_966, %c1_967, %c1_968, %c0_969, %c2_970] : memref<2x2x2x9x18xf32, #tpu.memory_space<vmem>>, vector<1x1x1x8x16xf32>
    %1210 = vector.shape_cast %1209 : vector<1x1x1x8x16xf32> to vector<8x16xf32>
    %1211 = vector.broadcast %1208 : f32 to vector<8x16xf32>
    %1212 = arith.mulf %1211, %1210 : vector<8x16xf32>
    %1213 = arith.addf %1207, %1212 : vector<8x16xf32>
    %c30_971 = arith.constant 30 : index
    %1214 = memref.load %arg3[%c30_971] : memref<72xf32, #tpu.memory_space<smem>>
    %c1_972 = arith.constant 1 : index
    %c1_973 = arith.constant 1 : index
    %c1_974 = arith.constant 1 : index
    %c0_975 = arith.constant 0 : index
    %c0_976 = arith.constant 0 : index
    %1215 = vector.load %arg13[%c1_972, %c1_973, %c1_974, %c0_975, %c0_976] : memref<2x2x2x9x18xf32, #tpu.memory_space<vmem>>, vector<1x1x1x8x16xf32>
    %1216 = vector.shape_cast %1215 : vector<1x1x1x8x16xf32> to vector<8x16xf32>
    %1217 = vector.broadcast %1214 : f32 to vector<8x16xf32>
    %1218 = arith.mulf %1217, %1216 : vector<8x16xf32>
    %1219 = arith.addf %1213, %1218 : vector<8x16xf32>
    %c31_977 = arith.constant 31 : index
    %1220 = memref.load %arg3[%c31_977] : memref<72xf32, #tpu.memory_space<smem>>
    %c1_978 = arith.constant 1 : index
    %c0_979 = arith.constant 0 : index
    %c1_980 = arith.constant 1 : index
    %c0_981 = arith.constant 0 : index
    %c2_982 = arith.constant 2 : index
    %1221 = vector.load %arg13[%c1_978, %c0_979, %c1_980, %c0_981, %c2_982] : memref<2x2x2x9x18xf32, #tpu.memory_space<vmem>>, vector<1x1x1x8x16xf32>
    %1222 = vector.shape_cast %1221 : vector<1x1x1x8x16xf32> to vector<8x16xf32>
    %1223 = vector.broadcast %1220 : f32 to vector<8x16xf32>
    %1224 = arith.mulf %1223, %1222 : vector<8x16xf32>
    %1225 = arith.addf %1219, %1224 : vector<8x16xf32>
    %c32_983 = arith.constant 32 : index
    %1226 = memref.load %arg3[%c32_983] : memref<72xf32, #tpu.memory_space<smem>>
    %c1_984 = arith.constant 1 : index
    %c1_985 = arith.constant 1 : index
    %c1_986 = arith.constant 1 : index
    %c0_987 = arith.constant 0 : index
    %c2_988 = arith.constant 2 : index
    %1227 = vector.load %arg13[%c1_984, %c1_985, %c1_986, %c0_987, %c2_988] : memref<2x2x2x9x18xf32, #tpu.memory_space<vmem>>, vector<1x1x1x8x16xf32>
    %1228 = vector.shape_cast %1227 : vector<1x1x1x8x16xf32> to vector<8x16xf32>
    %1229 = vector.broadcast %1226 : f32 to vector<8x16xf32>
    %1230 = arith.mulf %1229, %1228 : vector<8x16xf32>
    %1231 = arith.addf %1225, %1230 : vector<8x16xf32>
    %c33_989 = arith.constant 33 : index
    %1232 = memref.load %arg3[%c33_989] : memref<72xf32, #tpu.memory_space<smem>>
    %c0_990 = arith.constant 0 : index
    %c1_991 = arith.constant 1 : index
    %c1_992 = arith.constant 1 : index
    %c1_993 = arith.constant 1 : index
    %c0_994 = arith.constant 0 : index
    %1233 = vector.load %arg13[%c0_990, %c1_991, %c1_992, %c1_993, %c0_994] : memref<2x2x2x9x18xf32, #tpu.memory_space<vmem>>, vector<1x1x1x8x16xf32>
    %1234 = vector.shape_cast %1233 : vector<1x1x1x8x16xf32> to vector<8x16xf32>
    %1235 = vector.broadcast %1232 : f32 to vector<8x16xf32>
    %1236 = arith.mulf %1235, %1234 : vector<8x16xf32>
    %1237 = arith.addf %1231, %1236 : vector<8x16xf32>
    %c34_995 = arith.constant 34 : index
    %1238 = memref.load %arg3[%c34_995] : memref<72xf32, #tpu.memory_space<smem>>
    %c0_996 = arith.constant 0 : index
    %c0_997 = arith.constant 0 : index
    %c1_998 = arith.constant 1 : index
    %c1_999 = arith.constant 1 : index
    %c2_1000 = arith.constant 2 : index
    %1239 = vector.load %arg13[%c0_996, %c0_997, %c1_998, %c1_999, %c2_1000] : memref<2x2x2x9x18xf32, #tpu.memory_space<vmem>>, vector<1x1x1x8x16xf32>
    %1240 = vector.shape_cast %1239 : vector<1x1x1x8x16xf32> to vector<8x16xf32>
    %1241 = vector.broadcast %1238 : f32 to vector<8x16xf32>
    %1242 = arith.mulf %1241, %1240 : vector<8x16xf32>
    %1243 = arith.addf %1237, %1242 : vector<8x16xf32>
    %c35_1001 = arith.constant 35 : index
    %1244 = memref.load %arg3[%c35_1001] : memref<72xf32, #tpu.memory_space<smem>>
    %c0_1002 = arith.constant 0 : index
    %c1_1003 = arith.constant 1 : index
    %c1_1004 = arith.constant 1 : index
    %c1_1005 = arith.constant 1 : index
    %c2_1006 = arith.constant 2 : index
    %1245 = vector.load %arg13[%c0_1002, %c1_1003, %c1_1004, %c1_1005, %c2_1006] : memref<2x2x2x9x18xf32, #tpu.memory_space<vmem>>, vector<1x1x1x8x16xf32>
    %1246 = vector.shape_cast %1245 : vector<1x1x1x8x16xf32> to vector<8x16xf32>
    %1247 = vector.broadcast %1244 : f32 to vector<8x16xf32>
    %1248 = arith.mulf %1247, %1246 : vector<8x16xf32>
    %1249 = arith.addf %1243, %1248 : vector<8x16xf32>
    %cst_1007 = arith.constant 0.000000e+00 : f32
    %1250 = vector.broadcast %cst_1007 : f32 to vector<8x16xf32>
    %c18_1008 = arith.constant 18 : index
    %1251 = memref.load %arg3[%c18_1008] : memref<72xf32, #tpu.memory_space<smem>>
    %c1_1009 = arith.constant 1 : index
    %c0_1010 = arith.constant 0 : index
    %c0_1011 = arith.constant 0 : index
    %c0_1012 = arith.constant 0 : index
    %c0_1013 = arith.constant 0 : index
    %1252 = vector.load %arg13[%c1_1009, %c0_1010, %c0_1011, %c0_1012, %c0_1013] : memref<2x2x2x9x18xf32, #tpu.memory_space<vmem>>, vector<1x1x1x8x16xf32>
    %1253 = vector.shape_cast %1252 : vector<1x1x1x8x16xf32> to vector<8x16xf32>
    %1254 = vector.broadcast %1251 : f32 to vector<8x16xf32>
    %1255 = arith.mulf %1254, %1253 : vector<8x16xf32>
    %1256 = arith.addf %1250, %1255 : vector<8x16xf32>
    %c19_1014 = arith.constant 19 : index
    %1257 = memref.load %arg3[%c19_1014] : memref<72xf32, #tpu.memory_space<smem>>
    %c1_1015 = arith.constant 1 : index
    %c1_1016 = arith.constant 1 : index
    %c0_1017 = arith.constant 0 : index
    %c0_1018 = arith.constant 0 : index
    %c0_1019 = arith.constant 0 : index
    %1258 = vector.load %arg13[%c1_1015, %c1_1016, %c0_1017, %c0_1018, %c0_1019] : memref<2x2x2x9x18xf32, #tpu.memory_space<vmem>>, vector<1x1x1x8x16xf32>
    %1259 = vector.shape_cast %1258 : vector<1x1x1x8x16xf32> to vector<8x16xf32>
    %1260 = vector.broadcast %1257 : f32 to vector<8x16xf32>
    %1261 = arith.mulf %1260, %1259 : vector<8x16xf32>
    %1262 = arith.addf %1256, %1261 : vector<8x16xf32>
    %c20_1020 = arith.constant 20 : index
    %1263 = memref.load %arg3[%c20_1020] : memref<72xf32, #tpu.memory_space<smem>>
    %c1_1021 = arith.constant 1 : index
    %c0_1022 = arith.constant 0 : index
    %c0_1023 = arith.constant 0 : index
    %c0_1024 = arith.constant 0 : index
    %c2_1025 = arith.constant 2 : index
    %1264 = vector.load %arg13[%c1_1021, %c0_1022, %c0_1023, %c0_1024, %c2_1025] : memref<2x2x2x9x18xf32, #tpu.memory_space<vmem>>, vector<1x1x1x8x16xf32>
    %1265 = vector.shape_cast %1264 : vector<1x1x1x8x16xf32> to vector<8x16xf32>
    %1266 = vector.broadcast %1263 : f32 to vector<8x16xf32>
    %1267 = arith.mulf %1266, %1265 : vector<8x16xf32>
    %1268 = arith.addf %1262, %1267 : vector<8x16xf32>
    %c21_1026 = arith.constant 21 : index
    %1269 = memref.load %arg3[%c21_1026] : memref<72xf32, #tpu.memory_space<smem>>
    %c0_1027 = arith.constant 0 : index
    %c0_1028 = arith.constant 0 : index
    %c0_1029 = arith.constant 0 : index
    %c1_1030 = arith.constant 1 : index
    %c0_1031 = arith.constant 0 : index
    %1270 = vector.load %arg13[%c0_1027, %c0_1028, %c0_1029, %c1_1030, %c0_1031] : memref<2x2x2x9x18xf32, #tpu.memory_space<vmem>>, vector<1x1x1x8x16xf32>
    %1271 = vector.shape_cast %1270 : vector<1x1x1x8x16xf32> to vector<8x16xf32>
    %1272 = vector.broadcast %1269 : f32 to vector<8x16xf32>
    %1273 = arith.mulf %1272, %1271 : vector<8x16xf32>
    %1274 = arith.addf %1268, %1273 : vector<8x16xf32>
    %c22_1032 = arith.constant 22 : index
    %1275 = memref.load %arg3[%c22_1032] : memref<72xf32, #tpu.memory_space<smem>>
    %c0_1033 = arith.constant 0 : index
    %c1_1034 = arith.constant 1 : index
    %c0_1035 = arith.constant 0 : index
    %c1_1036 = arith.constant 1 : index
    %c0_1037 = arith.constant 0 : index
    %1276 = vector.load %arg13[%c0_1033, %c1_1034, %c0_1035, %c1_1036, %c0_1037] : memref<2x2x2x9x18xf32, #tpu.memory_space<vmem>>, vector<1x1x1x8x16xf32>
    %1277 = vector.shape_cast %1276 : vector<1x1x1x8x16xf32> to vector<8x16xf32>
    %1278 = vector.broadcast %1275 : f32 to vector<8x16xf32>
    %1279 = arith.mulf %1278, %1277 : vector<8x16xf32>
    %1280 = arith.addf %1274, %1279 : vector<8x16xf32>
    %c23_1038 = arith.constant 23 : index
    %1281 = memref.load %arg3[%c23_1038] : memref<72xf32, #tpu.memory_space<smem>>
    %c0_1039 = arith.constant 0 : index
    %c0_1040 = arith.constant 0 : index
    %c0_1041 = arith.constant 0 : index
    %c1_1042 = arith.constant 1 : index
    %c2_1043 = arith.constant 2 : index
    %1282 = vector.load %arg13[%c0_1039, %c0_1040, %c0_1041, %c1_1042, %c2_1043] : memref<2x2x2x9x18xf32, #tpu.memory_space<vmem>>, vector<1x1x1x8x16xf32>
    %1283 = vector.shape_cast %1282 : vector<1x1x1x8x16xf32> to vector<8x16xf32>
    %1284 = vector.broadcast %1281 : f32 to vector<8x16xf32>
    %1285 = arith.mulf %1284, %1283 : vector<8x16xf32>
    %1286 = arith.addf %1280, %1285 : vector<8x16xf32>
    %c24_1044 = arith.constant 24 : index
    %1287 = memref.load %arg3[%c24_1044] : memref<72xf32, #tpu.memory_space<smem>>
    %c1_1045 = arith.constant 1 : index
    %c0_1046 = arith.constant 0 : index
    %c0_1047 = arith.constant 0 : index
    %c1_1048 = arith.constant 1 : index
    %c0_1049 = arith.constant 0 : index
    %1288 = vector.load %arg13[%c1_1045, %c0_1046, %c0_1047, %c1_1048, %c0_1049] : memref<2x2x2x9x18xf32, #tpu.memory_space<vmem>>, vector<1x1x1x8x16xf32>
    %1289 = vector.shape_cast %1288 : vector<1x1x1x8x16xf32> to vector<8x16xf32>
    %1290 = vector.broadcast %1287 : f32 to vector<8x16xf32>
    %1291 = arith.mulf %1290, %1289 : vector<8x16xf32>
    %1292 = arith.addf %1286, %1291 : vector<8x16xf32>
    %c25_1050 = arith.constant 25 : index
    %1293 = memref.load %arg3[%c25_1050] : memref<72xf32, #tpu.memory_space<smem>>
    %c1_1051 = arith.constant 1 : index
    %c1_1052 = arith.constant 1 : index
    %c0_1053 = arith.constant 0 : index
    %c1_1054 = arith.constant 1 : index
    %c0_1055 = arith.constant 0 : index
    %1294 = vector.load %arg13[%c1_1051, %c1_1052, %c0_1053, %c1_1054, %c0_1055] : memref<2x2x2x9x18xf32, #tpu.memory_space<vmem>>, vector<1x1x1x8x16xf32>
    %1295 = vector.shape_cast %1294 : vector<1x1x1x8x16xf32> to vector<8x16xf32>
    %1296 = vector.broadcast %1293 : f32 to vector<8x16xf32>
    %1297 = arith.mulf %1296, %1295 : vector<8x16xf32>
    %1298 = arith.addf %1292, %1297 : vector<8x16xf32>
    %c26_1056 = arith.constant 26 : index
    %1299 = memref.load %arg3[%c26_1056] : memref<72xf32, #tpu.memory_space<smem>>
    %c1_1057 = arith.constant 1 : index
    %c0_1058 = arith.constant 0 : index
    %c0_1059 = arith.constant 0 : index
    %c1_1060 = arith.constant 1 : index
    %c2_1061 = arith.constant 2 : index
    %1300 = vector.load %arg13[%c1_1057, %c0_1058, %c0_1059, %c1_1060, %c2_1061] : memref<2x2x2x9x18xf32, #tpu.memory_space<vmem>>, vector<1x1x1x8x16xf32>
    %1301 = vector.shape_cast %1300 : vector<1x1x1x8x16xf32> to vector<8x16xf32>
    %1302 = vector.broadcast %1299 : f32 to vector<8x16xf32>
    %1303 = arith.mulf %1302, %1301 : vector<8x16xf32>
    %1304 = arith.addf %1298, %1303 : vector<8x16xf32>
    %c27_1062 = arith.constant 27 : index
    %1305 = memref.load %arg3[%c27_1062] : memref<72xf32, #tpu.memory_space<smem>>
    %c1_1063 = arith.constant 1 : index
    %c0_1064 = arith.constant 0 : index
    %c1_1065 = arith.constant 1 : index
    %c0_1066 = arith.constant 0 : index
    %c0_1067 = arith.constant 0 : index
    %1306 = vector.load %arg13[%c1_1063, %c0_1064, %c1_1065, %c0_1066, %c0_1067] : memref<2x2x2x9x18xf32, #tpu.memory_space<vmem>>, vector<1x1x1x8x16xf32>
    %1307 = vector.shape_cast %1306 : vector<1x1x1x8x16xf32> to vector<8x16xf32>
    %1308 = vector.broadcast %1305 : f32 to vector<8x16xf32>
    %1309 = arith.mulf %1308, %1307 : vector<8x16xf32>
    %1310 = arith.addf %1304, %1309 : vector<8x16xf32>
    %c28_1068 = arith.constant 28 : index
    %1311 = memref.load %arg3[%c28_1068] : memref<72xf32, #tpu.memory_space<smem>>
    %c1_1069 = arith.constant 1 : index
    %c1_1070 = arith.constant 1 : index
    %c1_1071 = arith.constant 1 : index
    %c0_1072 = arith.constant 0 : index
    %c0_1073 = arith.constant 0 : index
    %1312 = vector.load %arg13[%c1_1069, %c1_1070, %c1_1071, %c0_1072, %c0_1073] : memref<2x2x2x9x18xf32, #tpu.memory_space<vmem>>, vector<1x1x1x8x16xf32>
    %1313 = vector.shape_cast %1312 : vector<1x1x1x8x16xf32> to vector<8x16xf32>
    %1314 = vector.broadcast %1311 : f32 to vector<8x16xf32>
    %1315 = arith.mulf %1314, %1313 : vector<8x16xf32>
    %1316 = arith.addf %1310, %1315 : vector<8x16xf32>
    %c29_1074 = arith.constant 29 : index
    %1317 = memref.load %arg3[%c29_1074] : memref<72xf32, #tpu.memory_space<smem>>
    %c1_1075 = arith.constant 1 : index
    %c0_1076 = arith.constant 0 : index
    %c1_1077 = arith.constant 1 : index
    %c0_1078 = arith.constant 0 : index
    %c2_1079 = arith.constant 2 : index
    %1318 = vector.load %arg13[%c1_1075, %c0_1076, %c1_1077, %c0_1078, %c2_1079] : memref<2x2x2x9x18xf32, #tpu.memory_space<vmem>>, vector<1x1x1x8x16xf32>
    %1319 = vector.shape_cast %1318 : vector<1x1x1x8x16xf32> to vector<8x16xf32>
    %1320 = vector.broadcast %1317 : f32 to vector<8x16xf32>
    %1321 = arith.mulf %1320, %1319 : vector<8x16xf32>
    %1322 = arith.addf %1316, %1321 : vector<8x16xf32>
    %c30_1080 = arith.constant 30 : index
    %1323 = memref.load %arg3[%c30_1080] : memref<72xf32, #tpu.memory_space<smem>>
    %c0_1081 = arith.constant 0 : index
    %c0_1082 = arith.constant 0 : index
    %c1_1083 = arith.constant 1 : index
    %c1_1084 = arith.constant 1 : index
    %c0_1085 = arith.constant 0 : index
    %1324 = vector.load %arg13[%c0_1081, %c0_1082, %c1_1083, %c1_1084, %c0_1085] : memref<2x2x2x9x18xf32, #tpu.memory_space<vmem>>, vector<1x1x1x8x16xf32>
    %1325 = vector.shape_cast %1324 : vector<1x1x1x8x16xf32> to vector<8x16xf32>
    %1326 = vector.broadcast %1323 : f32 to vector<8x16xf32>
    %1327 = arith.mulf %1326, %1325 : vector<8x16xf32>
    %1328 = arith.addf %1322, %1327 : vector<8x16xf32>
    %c31_1086 = arith.constant 31 : index
    %1329 = memref.load %arg3[%c31_1086] : memref<72xf32, #tpu.memory_space<smem>>
    %c0_1087 = arith.constant 0 : index
    %c1_1088 = arith.constant 1 : index
    %c1_1089 = arith.constant 1 : index
    %c1_1090 = arith.constant 1 : index
    %c0_1091 = arith.constant 0 : index
    %1330 = vector.load %arg13[%c0_1087, %c1_1088, %c1_1089, %c1_1090, %c0_1091] : memref<2x2x2x9x18xf32, #tpu.memory_space<vmem>>, vector<1x1x1x8x16xf32>
    %1331 = vector.shape_cast %1330 : vector<1x1x1x8x16xf32> to vector<8x16xf32>
    %1332 = vector.broadcast %1329 : f32 to vector<8x16xf32>
    %1333 = arith.mulf %1332, %1331 : vector<8x16xf32>
    %1334 = arith.addf %1328, %1333 : vector<8x16xf32>
    %c32_1092 = arith.constant 32 : index
    %1335 = memref.load %arg3[%c32_1092] : memref<72xf32, #tpu.memory_space<smem>>
    %c0_1093 = arith.constant 0 : index
    %c0_1094 = arith.constant 0 : index
    %c1_1095 = arith.constant 1 : index
    %c1_1096 = arith.constant 1 : index
    %c2_1097 = arith.constant 2 : index
    %1336 = vector.load %arg13[%c0_1093, %c0_1094, %c1_1095, %c1_1096, %c2_1097] : memref<2x2x2x9x18xf32, #tpu.memory_space<vmem>>, vector<1x1x1x8x16xf32>
    %1337 = vector.shape_cast %1336 : vector<1x1x1x8x16xf32> to vector<8x16xf32>
    %1338 = vector.broadcast %1335 : f32 to vector<8x16xf32>
    %1339 = arith.mulf %1338, %1337 : vector<8x16xf32>
    %1340 = arith.addf %1334, %1339 : vector<8x16xf32>
    %c33_1098 = arith.constant 33 : index
    %1341 = memref.load %arg3[%c33_1098] : memref<72xf32, #tpu.memory_space<smem>>
    %c1_1099 = arith.constant 1 : index
    %c0_1100 = arith.constant 0 : index
    %c1_1101 = arith.constant 1 : index
    %c1_1102 = arith.constant 1 : index
    %c0_1103 = arith.constant 0 : index
    %1342 = vector.load %arg13[%c1_1099, %c0_1100, %c1_1101, %c1_1102, %c0_1103] : memref<2x2x2x9x18xf32, #tpu.memory_space<vmem>>, vector<1x1x1x8x16xf32>
    %1343 = vector.shape_cast %1342 : vector<1x1x1x8x16xf32> to vector<8x16xf32>
    %1344 = vector.broadcast %1341 : f32 to vector<8x16xf32>
    %1345 = arith.mulf %1344, %1343 : vector<8x16xf32>
    %1346 = arith.addf %1340, %1345 : vector<8x16xf32>
    %c34_1104 = arith.constant 34 : index
    %1347 = memref.load %arg3[%c34_1104] : memref<72xf32, #tpu.memory_space<smem>>
    %c1_1105 = arith.constant 1 : index
    %c1_1106 = arith.constant 1 : index
    %c1_1107 = arith.constant 1 : index
    %c1_1108 = arith.constant 1 : index
    %c0_1109 = arith.constant 0 : index
    %1348 = vector.load %arg13[%c1_1105, %c1_1106, %c1_1107, %c1_1108, %c0_1109] : memref<2x2x2x9x18xf32, #tpu.memory_space<vmem>>, vector<1x1x1x8x16xf32>
    %1349 = vector.shape_cast %1348 : vector<1x1x1x8x16xf32> to vector<8x16xf32>
    %1350 = vector.broadcast %1347 : f32 to vector<8x16xf32>
    %1351 = arith.mulf %1350, %1349 : vector<8x16xf32>
    %1352 = arith.addf %1346, %1351 : vector<8x16xf32>
    %c35_1110 = arith.constant 35 : index
    %1353 = memref.load %arg3[%c35_1110] : memref<72xf32, #tpu.memory_space<smem>>
    %c1_1111 = arith.constant 1 : index
    %c0_1112 = arith.constant 0 : index
    %c1_1113 = arith.constant 1 : index
    %c1_1114 = arith.constant 1 : index
    %c2_1115 = arith.constant 2 : index
    %1354 = vector.load %arg13[%c1_1111, %c0_1112, %c1_1113, %c1_1114, %c2_1115] : memref<2x2x2x9x18xf32, #tpu.memory_space<vmem>>, vector<1x1x1x8x16xf32>
    %1355 = vector.shape_cast %1354 : vector<1x1x1x8x16xf32> to vector<8x16xf32>
    %1356 = vector.broadcast %1353 : f32 to vector<8x16xf32>
    %1357 = arith.mulf %1356, %1355 : vector<8x16xf32>
    %1358 = arith.addf %1352, %1357 : vector<8x16xf32>
    %cst_1116 = arith.constant 0.000000e+00 : f32
    %1359 = vector.broadcast %cst_1116 : f32 to vector<8x16xf32>
    %c18_1117 = arith.constant 18 : index
    %1360 = memref.load %arg3[%c18_1117] : memref<72xf32, #tpu.memory_space<smem>>
    %c1_1118 = arith.constant 1 : index
    %c1_1119 = arith.constant 1 : index
    %c0_1120 = arith.constant 0 : index
    %c0_1121 = arith.constant 0 : index
    %c0_1122 = arith.constant 0 : index
    %1361 = vector.load %arg13[%c1_1118, %c1_1119, %c0_1120, %c0_1121, %c0_1122] : memref<2x2x2x9x18xf32, #tpu.memory_space<vmem>>, vector<1x1x1x8x16xf32>
    %1362 = vector.shape_cast %1361 : vector<1x1x1x8x16xf32> to vector<8x16xf32>
    %1363 = vector.broadcast %1360 : f32 to vector<8x16xf32>
    %1364 = arith.mulf %1363, %1362 : vector<8x16xf32>
    %1365 = arith.addf %1359, %1364 : vector<8x16xf32>
    %c19_1123 = arith.constant 19 : index
    %1366 = memref.load %arg3[%c19_1123] : memref<72xf32, #tpu.memory_space<smem>>
    %c1_1124 = arith.constant 1 : index
    %c0_1125 = arith.constant 0 : index
    %c0_1126 = arith.constant 0 : index
    %c0_1127 = arith.constant 0 : index
    %c2_1128 = arith.constant 2 : index
    %1367 = vector.load %arg13[%c1_1124, %c0_1125, %c0_1126, %c0_1127, %c2_1128] : memref<2x2x2x9x18xf32, #tpu.memory_space<vmem>>, vector<1x1x1x8x16xf32>
    %1368 = vector.shape_cast %1367 : vector<1x1x1x8x16xf32> to vector<8x16xf32>
    %1369 = vector.broadcast %1366 : f32 to vector<8x16xf32>
    %1370 = arith.mulf %1369, %1368 : vector<8x16xf32>
    %1371 = arith.addf %1365, %1370 : vector<8x16xf32>
    %c20_1129 = arith.constant 20 : index
    %1372 = memref.load %arg3[%c20_1129] : memref<72xf32, #tpu.memory_space<smem>>
    %c1_1130 = arith.constant 1 : index
    %c1_1131 = arith.constant 1 : index
    %c0_1132 = arith.constant 0 : index
    %c0_1133 = arith.constant 0 : index
    %c2_1134 = arith.constant 2 : index
    %1373 = vector.load %arg13[%c1_1130, %c1_1131, %c0_1132, %c0_1133, %c2_1134] : memref<2x2x2x9x18xf32, #tpu.memory_space<vmem>>, vector<1x1x1x8x16xf32>
    %1374 = vector.shape_cast %1373 : vector<1x1x1x8x16xf32> to vector<8x16xf32>
    %1375 = vector.broadcast %1372 : f32 to vector<8x16xf32>
    %1376 = arith.mulf %1375, %1374 : vector<8x16xf32>
    %1377 = arith.addf %1371, %1376 : vector<8x16xf32>
    %c21_1135 = arith.constant 21 : index
    %1378 = memref.load %arg3[%c21_1135] : memref<72xf32, #tpu.memory_space<smem>>
    %c0_1136 = arith.constant 0 : index
    %c1_1137 = arith.constant 1 : index
    %c0_1138 = arith.constant 0 : index
    %c1_1139 = arith.constant 1 : index
    %c0_1140 = arith.constant 0 : index
    %1379 = vector.load %arg13[%c0_1136, %c1_1137, %c0_1138, %c1_1139, %c0_1140] : memref<2x2x2x9x18xf32, #tpu.memory_space<vmem>>, vector<1x1x1x8x16xf32>
    %1380 = vector.shape_cast %1379 : vector<1x1x1x8x16xf32> to vector<8x16xf32>
    %1381 = vector.broadcast %1378 : f32 to vector<8x16xf32>
    %1382 = arith.mulf %1381, %1380 : vector<8x16xf32>
    %1383 = arith.addf %1377, %1382 : vector<8x16xf32>
    %c22_1141 = arith.constant 22 : index
    %1384 = memref.load %arg3[%c22_1141] : memref<72xf32, #tpu.memory_space<smem>>
    %c0_1142 = arith.constant 0 : index
    %c0_1143 = arith.constant 0 : index
    %c0_1144 = arith.constant 0 : index
    %c1_1145 = arith.constant 1 : index
    %c2_1146 = arith.constant 2 : index
    %1385 = vector.load %arg13[%c0_1142, %c0_1143, %c0_1144, %c1_1145, %c2_1146] : memref<2x2x2x9x18xf32, #tpu.memory_space<vmem>>, vector<1x1x1x8x16xf32>
    %1386 = vector.shape_cast %1385 : vector<1x1x1x8x16xf32> to vector<8x16xf32>
    %1387 = vector.broadcast %1384 : f32 to vector<8x16xf32>
    %1388 = arith.mulf %1387, %1386 : vector<8x16xf32>
    %1389 = arith.addf %1383, %1388 : vector<8x16xf32>
    %c23_1147 = arith.constant 23 : index
    %1390 = memref.load %arg3[%c23_1147] : memref<72xf32, #tpu.memory_space<smem>>
    %c0_1148 = arith.constant 0 : index
    %c1_1149 = arith.constant 1 : index
    %c0_1150 = arith.constant 0 : index
    %c1_1151 = arith.constant 1 : index
    %c2_1152 = arith.constant 2 : index
    %1391 = vector.load %arg13[%c0_1148, %c1_1149, %c0_1150, %c1_1151, %c2_1152] : memref<2x2x2x9x18xf32, #tpu.memory_space<vmem>>, vector<1x1x1x8x16xf32>
    %1392 = vector.shape_cast %1391 : vector<1x1x1x8x16xf32> to vector<8x16xf32>
    %1393 = vector.broadcast %1390 : f32 to vector<8x16xf32>
    %1394 = arith.mulf %1393, %1392 : vector<8x16xf32>
    %1395 = arith.addf %1389, %1394 : vector<8x16xf32>
    %c24_1153 = arith.constant 24 : index
    %1396 = memref.load %arg3[%c24_1153] : memref<72xf32, #tpu.memory_space<smem>>
    %c1_1154 = arith.constant 1 : index
    %c1_1155 = arith.constant 1 : index
    %c0_1156 = arith.constant 0 : index
    %c1_1157 = arith.constant 1 : index
    %c0_1158 = arith.constant 0 : index
    %1397 = vector.load %arg13[%c1_1154, %c1_1155, %c0_1156, %c1_1157, %c0_1158] : memref<2x2x2x9x18xf32, #tpu.memory_space<vmem>>, vector<1x1x1x8x16xf32>
    %1398 = vector.shape_cast %1397 : vector<1x1x1x8x16xf32> to vector<8x16xf32>
    %1399 = vector.broadcast %1396 : f32 to vector<8x16xf32>
    %1400 = arith.mulf %1399, %1398 : vector<8x16xf32>
    %1401 = arith.addf %1395, %1400 : vector<8x16xf32>
    %c25_1159 = arith.constant 25 : index
    %1402 = memref.load %arg3[%c25_1159] : memref<72xf32, #tpu.memory_space<smem>>
    %c1_1160 = arith.constant 1 : index
    %c0_1161 = arith.constant 0 : index
    %c0_1162 = arith.constant 0 : index
    %c1_1163 = arith.constant 1 : index
    %c2_1164 = arith.constant 2 : index
    %1403 = vector.load %arg13[%c1_1160, %c0_1161, %c0_1162, %c1_1163, %c2_1164] : memref<2x2x2x9x18xf32, #tpu.memory_space<vmem>>, vector<1x1x1x8x16xf32>
    %1404 = vector.shape_cast %1403 : vector<1x1x1x8x16xf32> to vector<8x16xf32>
    %1405 = vector.broadcast %1402 : f32 to vector<8x16xf32>
    %1406 = arith.mulf %1405, %1404 : vector<8x16xf32>
    %1407 = arith.addf %1401, %1406 : vector<8x16xf32>
    %c26_1165 = arith.constant 26 : index
    %1408 = memref.load %arg3[%c26_1165] : memref<72xf32, #tpu.memory_space<smem>>
    %c1_1166 = arith.constant 1 : index
    %c1_1167 = arith.constant 1 : index
    %c0_1168 = arith.constant 0 : index
    %c1_1169 = arith.constant 1 : index
    %c2_1170 = arith.constant 2 : index
    %1409 = vector.load %arg13[%c1_1166, %c1_1167, %c0_1168, %c1_1169, %c2_1170] : memref<2x2x2x9x18xf32, #tpu.memory_space<vmem>>, vector<1x1x1x8x16xf32>
    %1410 = vector.shape_cast %1409 : vector<1x1x1x8x16xf32> to vector<8x16xf32>
    %1411 = vector.broadcast %1408 : f32 to vector<8x16xf32>
    %1412 = arith.mulf %1411, %1410 : vector<8x16xf32>
    %1413 = arith.addf %1407, %1412 : vector<8x16xf32>
    %c27_1171 = arith.constant 27 : index
    %1414 = memref.load %arg3[%c27_1171] : memref<72xf32, #tpu.memory_space<smem>>
    %c1_1172 = arith.constant 1 : index
    %c1_1173 = arith.constant 1 : index
    %c1_1174 = arith.constant 1 : index
    %c0_1175 = arith.constant 0 : index
    %c0_1176 = arith.constant 0 : index
    %1415 = vector.load %arg13[%c1_1172, %c1_1173, %c1_1174, %c0_1175, %c0_1176] : memref<2x2x2x9x18xf32, #tpu.memory_space<vmem>>, vector<1x1x1x8x16xf32>
    %1416 = vector.shape_cast %1415 : vector<1x1x1x8x16xf32> to vector<8x16xf32>
    %1417 = vector.broadcast %1414 : f32 to vector<8x16xf32>
    %1418 = arith.mulf %1417, %1416 : vector<8x16xf32>
    %1419 = arith.addf %1413, %1418 : vector<8x16xf32>
    %c28_1177 = arith.constant 28 : index
    %1420 = memref.load %arg3[%c28_1177] : memref<72xf32, #tpu.memory_space<smem>>
    %c1_1178 = arith.constant 1 : index
    %c0_1179 = arith.constant 0 : index
    %c1_1180 = arith.constant 1 : index
    %c0_1181 = arith.constant 0 : index
    %c2_1182 = arith.constant 2 : index
    %1421 = vector.load %arg13[%c1_1178, %c0_1179, %c1_1180, %c0_1181, %c2_1182] : memref<2x2x2x9x18xf32, #tpu.memory_space<vmem>>, vector<1x1x1x8x16xf32>
    %1422 = vector.shape_cast %1421 : vector<1x1x1x8x16xf32> to vector<8x16xf32>
    %1423 = vector.broadcast %1420 : f32 to vector<8x16xf32>
    %1424 = arith.mulf %1423, %1422 : vector<8x16xf32>
    %1425 = arith.addf %1419, %1424 : vector<8x16xf32>
    %c29_1183 = arith.constant 29 : index
    %1426 = memref.load %arg3[%c29_1183] : memref<72xf32, #tpu.memory_space<smem>>
    %c1_1184 = arith.constant 1 : index
    %c1_1185 = arith.constant 1 : index
    %c1_1186 = arith.constant 1 : index
    %c0_1187 = arith.constant 0 : index
    %c2_1188 = arith.constant 2 : index
    %1427 = vector.load %arg13[%c1_1184, %c1_1185, %c1_1186, %c0_1187, %c2_1188] : memref<2x2x2x9x18xf32, #tpu.memory_space<vmem>>, vector<1x1x1x8x16xf32>
    %1428 = vector.shape_cast %1427 : vector<1x1x1x8x16xf32> to vector<8x16xf32>
    %1429 = vector.broadcast %1426 : f32 to vector<8x16xf32>
    %1430 = arith.mulf %1429, %1428 : vector<8x16xf32>
    %1431 = arith.addf %1425, %1430 : vector<8x16xf32>
    %c30_1189 = arith.constant 30 : index
    %1432 = memref.load %arg3[%c30_1189] : memref<72xf32, #tpu.memory_space<smem>>
    %c0_1190 = arith.constant 0 : index
    %c1_1191 = arith.constant 1 : index
    %c1_1192 = arith.constant 1 : index
    %c1_1193 = arith.constant 1 : index
    %c0_1194 = arith.constant 0 : index
    %1433 = vector.load %arg13[%c0_1190, %c1_1191, %c1_1192, %c1_1193, %c0_1194] : memref<2x2x2x9x18xf32, #tpu.memory_space<vmem>>, vector<1x1x1x8x16xf32>
    %1434 = vector.shape_cast %1433 : vector<1x1x1x8x16xf32> to vector<8x16xf32>
    %1435 = vector.broadcast %1432 : f32 to vector<8x16xf32>
    %1436 = arith.mulf %1435, %1434 : vector<8x16xf32>
    %1437 = arith.addf %1431, %1436 : vector<8x16xf32>
    %c31_1195 = arith.constant 31 : index
    %1438 = memref.load %arg3[%c31_1195] : memref<72xf32, #tpu.memory_space<smem>>
    %c0_1196 = arith.constant 0 : index
    %c0_1197 = arith.constant 0 : index
    %c1_1198 = arith.constant 1 : index
    %c1_1199 = arith.constant 1 : index
    %c2_1200 = arith.constant 2 : index
    %1439 = vector.load %arg13[%c0_1196, %c0_1197, %c1_1198, %c1_1199, %c2_1200] : memref<2x2x2x9x18xf32, #tpu.memory_space<vmem>>, vector<1x1x1x8x16xf32>
    %1440 = vector.shape_cast %1439 : vector<1x1x1x8x16xf32> to vector<8x16xf32>
    %1441 = vector.broadcast %1438 : f32 to vector<8x16xf32>
    %1442 = arith.mulf %1441, %1440 : vector<8x16xf32>
    %1443 = arith.addf %1437, %1442 : vector<8x16xf32>
    %c32_1201 = arith.constant 32 : index
    %1444 = memref.load %arg3[%c32_1201] : memref<72xf32, #tpu.memory_space<smem>>
    %c0_1202 = arith.constant 0 : index
    %c1_1203 = arith.constant 1 : index
    %c1_1204 = arith.constant 1 : index
    %c1_1205 = arith.constant 1 : index
    %c2_1206 = arith.constant 2 : index
    %1445 = vector.load %arg13[%c0_1202, %c1_1203, %c1_1204, %c1_1205, %c2_1206] : memref<2x2x2x9x18xf32, #tpu.memory_space<vmem>>, vector<1x1x1x8x16xf32>
    %1446 = vector.shape_cast %1445 : vector<1x1x1x8x16xf32> to vector<8x16xf32>
    %1447 = vector.broadcast %1444 : f32 to vector<8x16xf32>
    %1448 = arith.mulf %1447, %1446 : vector<8x16xf32>
    %1449 = arith.addf %1443, %1448 : vector<8x16xf32>
    %c33_1207 = arith.constant 33 : index
    %1450 = memref.load %arg3[%c33_1207] : memref<72xf32, #tpu.memory_space<smem>>
    %c1_1208 = arith.constant 1 : index
    %c1_1209 = arith.constant 1 : index
    %c1_1210 = arith.constant 1 : index
    %c1_1211 = arith.constant 1 : index
    %c0_1212 = arith.constant 0 : index
    %1451 = vector.load %arg13[%c1_1208, %c1_1209, %c1_1210, %c1_1211, %c0_1212] : memref<2x2x2x9x18xf32, #tpu.memory_space<vmem>>, vector<1x1x1x8x16xf32>
    %1452 = vector.shape_cast %1451 : vector<1x1x1x8x16xf32> to vector<8x16xf32>
    %1453 = vector.broadcast %1450 : f32 to vector<8x16xf32>
    %1454 = arith.mulf %1453, %1452 : vector<8x16xf32>
    %1455 = arith.addf %1449, %1454 : vector<8x16xf32>
    %c34_1213 = arith.constant 34 : index
    %1456 = memref.load %arg3[%c34_1213] : memref<72xf32, #tpu.memory_space<smem>>
    %c1_1214 = arith.constant 1 : index
    %c0_1215 = arith.constant 0 : index
    %c1_1216 = arith.constant 1 : index
    %c1_1217 = arith.constant 1 : index
    %c2_1218 = arith.constant 2 : index
    %1457 = vector.load %arg13[%c1_1214, %c0_1215, %c1_1216, %c1_1217, %c2_1218] : memref<2x2x2x9x18xf32, #tpu.memory_space<vmem>>, vector<1x1x1x8x16xf32>
    %1458 = vector.shape_cast %1457 : vector<1x1x1x8x16xf32> to vector<8x16xf32>
    %1459 = vector.broadcast %1456 : f32 to vector<8x16xf32>
    %1460 = arith.mulf %1459, %1458 : vector<8x16xf32>
    %1461 = arith.addf %1455, %1460 : vector<8x16xf32>
    %c35_1219 = arith.constant 35 : index
    %1462 = memref.load %arg3[%c35_1219] : memref<72xf32, #tpu.memory_space<smem>>
    %c1_1220 = arith.constant 1 : index
    %c1_1221 = arith.constant 1 : index
    %c1_1222 = arith.constant 1 : index
    %c1_1223 = arith.constant 1 : index
    %c2_1224 = arith.constant 2 : index
    %1463 = vector.load %arg13[%c1_1220, %c1_1221, %c1_1222, %c1_1223, %c2_1224] : memref<2x2x2x9x18xf32, #tpu.memory_space<vmem>>, vector<1x1x1x8x16xf32>
    %1464 = vector.shape_cast %1463 : vector<1x1x1x8x16xf32> to vector<8x16xf32>
    %1465 = vector.broadcast %1462 : f32 to vector<8x16xf32>
    %1466 = arith.mulf %1465, %1464 : vector<8x16xf32>
    %1467 = arith.addf %1461, %1466 : vector<8x16xf32>
    %1468 = arith.addf %1140, %1249 : vector<8x16xf32>
    %1469 = arith.addf %1468, %1358 : vector<8x16xf32>
    %1470 = arith.addf %1469, %1467 : vector<8x16xf32>
    %cst_1225 = arith.constant 2.500000e-01 : f32
    %1471 = vector.broadcast %cst_1225 : f32 to vector<8x16xf32>
    %1472 = arith.mulf %1471, %1470 : vector<8x16xf32>
    %1473 = arith.addf %1140, %523 : vector<8x16xf32>
    %1474 = arith.addf %1249, %523 : vector<8x16xf32>
    %1475 = arith.addf %1358, %523 : vector<8x16xf32>
    %1476 = arith.addf %1467, %523 : vector<8x16xf32>
    %1477 = tpu.concatenate %1473, %1474, %1475, %1476 in 1 : vector<8x16xf32>, vector<8x16xf32>, vector<8x16xf32>, vector<8x16xf32> -> vector<8x64xf32>
    %c1_1226 = arith.constant 1 : index
    %1478 = memref.load %arg7[%c1_1226] : memref<4xf32, #tpu.memory_space<smem>>
    %c1_1227 = arith.constant 1 : index
    %1479 = memref.load %arg8[%c1_1227] : memref<4xf32, #tpu.memory_space<smem>>
    %1480 = vector.shape_cast %1477 : vector<8x64xf32> to vector<1x8x64xf32>
    %cst_1228 = arith.constant dense<0.000000e+00> : vector<1xf32>
    %1481 = vector.multi_reduction <add>, %1480, %cst_1228 [1, 2] : vector<1x8x64xf32> to vector<1xf32>
    %1482 = vector.shape_cast %1481 : vector<1xf32> to vector<1x1x1xf32>
    %1483 = vector.extract %1482[0, 0, 0] : f32 from vector<1x1x1xf32>
    %cst_1229 = arith.constant 0.001953125 : f32
    %1484 = arith.mulf %1483, %cst_1229 : f32
    %1485 = vector.broadcast %1484 : f32 to vector<8x64xf32>
    %1486 = arith.subf %1477, %1485 : vector<8x64xf32>
    %1487 = arith.mulf %1486, %1486 : vector<8x64xf32>
    %1488 = vector.shape_cast %1487 : vector<8x64xf32> to vector<1x8x64xf32>
    %cst_1230 = arith.constant dense<0.000000e+00> : vector<1xf32>
    %1489 = vector.multi_reduction <add>, %1488, %cst_1230 [1, 2] : vector<1x8x64xf32> to vector<1xf32>
    %1490 = vector.shape_cast %1489 : vector<1xf32> to vector<1x1x1xf32>
    %1491 = vector.extract %1490[0, 0, 0] : f32 from vector<1x1x1xf32>
    %cst_1231 = arith.constant 0.001953125 : f32
    %1492 = arith.mulf %1491, %cst_1231 : f32
    %cst_1232 = arith.constant 9.99999974E-6 : f32
    %1493 = arith.addf %1492, %cst_1232 : f32
    %1494 = math.rsqrt %1493 : f32
    %1495 = vector.broadcast %1494 : f32 to vector<8x64xf32>
    %1496 = arith.mulf %1486, %1495 : vector<8x64xf32>
    %1497 = vector.broadcast %1478 : f32 to vector<8x64xf32>
    %1498 = arith.mulf %1496, %1497 : vector<8x64xf32>
    %1499 = vector.broadcast %1479 : f32 to vector<8x64xf32>
    %1500 = arith.addf %1498, %1499 : vector<8x64xf32>
    %cst_1233 = arith.constant 0.000000e+00 : f32
    %1501 = vector.broadcast %cst_1233 : f32 to vector<8x64xf32>
    %1502 = arith.maximumf %1500, %1501 : vector<8x64xf32>
    %c1_1234 = arith.constant 1 : index
    %c0_1235 = arith.constant 0 : index
    %c0_1236 = arith.constant 0 : index
    %1503 = vector.load %arg11[%c1_1234, %c0_1235, %c0_1236] : memref<4x8x64xf32, #tpu.memory_space<vmem>>, vector<1x8x64xf32>
    %1504 = vector.shape_cast %1503 : vector<1x8x64xf32> to vector<8x64xf32>
    %1505 = vector.shape_cast %1502 : vector<8x64xf32> to vector<1x8x64xf32>
    tpu.vector_store %arg11[%c1_1234, %c0_1235, %c0_1236], %1505 {strides = array<i32>} : memref<4x8x64xf32, #tpu.memory_space<vmem>>, vector<1x8x64xf32>,
    %cst_1237 = arith.constant 0.000000e+00 : f32
    %1506 = vector.broadcast %cst_1237 : f32 to vector<8x16xf32>
    %c36_1238 = arith.constant 36 : index
    %1507 = memref.load %arg3[%c36_1238] : memref<72xf32, #tpu.memory_space<smem>>
    %c0_1239 = arith.constant 0 : index
    %c0_1240 = arith.constant 0 : index
    %c0_1241 = arith.constant 0 : index
    %c0_1242 = arith.constant 0 : index
    %c0_1243 = arith.constant 0 : index
    %1508 = vector.load %arg13[%c0_1239, %c0_1240, %c0_1241, %c0_1242, %c0_1243] : memref<2x2x2x9x18xf32, #tpu.memory_space<vmem>>, vector<1x1x1x8x16xf32>
    %1509 = vector.shape_cast %1508 : vector<1x1x1x8x16xf32> to vector<8x16xf32>
    %1510 = vector.broadcast %1507 : f32 to vector<8x16xf32>
    %1511 = arith.mulf %1510, %1509 : vector<8x16xf32>
    %1512 = arith.addf %1506, %1511 : vector<8x16xf32>
    %c37_1244 = arith.constant 37 : index
    %1513 = memref.load %arg3[%c37_1244] : memref<72xf32, #tpu.memory_space<smem>>
    %c0_1245 = arith.constant 0 : index
    %c1_1246 = arith.constant 1 : index
    %c0_1247 = arith.constant 0 : index
    %c0_1248 = arith.constant 0 : index
    %c0_1249 = arith.constant 0 : index
    %1514 = vector.load %arg13[%c0_1245, %c1_1246, %c0_1247, %c0_1248, %c0_1249] : memref<2x2x2x9x18xf32, #tpu.memory_space<vmem>>, vector<1x1x1x8x16xf32>
    %1515 = vector.shape_cast %1514 : vector<1x1x1x8x16xf32> to vector<8x16xf32>
    %1516 = vector.broadcast %1513 : f32 to vector<8x16xf32>
    %1517 = arith.mulf %1516, %1515 : vector<8x16xf32>
    %1518 = arith.addf %1512, %1517 : vector<8x16xf32>
    %c38_1250 = arith.constant 38 : index
    %1519 = memref.load %arg3[%c38_1250] : memref<72xf32, #tpu.memory_space<smem>>
    %c0_1251 = arith.constant 0 : index
    %c0_1252 = arith.constant 0 : index
    %c0_1253 = arith.constant 0 : index
    %c0_1254 = arith.constant 0 : index
    %c2_1255 = arith.constant 2 : index
    %1520 = vector.load %arg13[%c0_1251, %c0_1252, %c0_1253, %c0_1254, %c2_1255] : memref<2x2x2x9x18xf32, #tpu.memory_space<vmem>>, vector<1x1x1x8x16xf32>
    %1521 = vector.shape_cast %1520 : vector<1x1x1x8x16xf32> to vector<8x16xf32>
    %1522 = vector.broadcast %1519 : f32 to vector<8x16xf32>
    %1523 = arith.mulf %1522, %1521 : vector<8x16xf32>
    %1524 = arith.addf %1518, %1523 : vector<8x16xf32>
    %c39_1256 = arith.constant 39 : index
    %1525 = memref.load %arg3[%c39_1256] : memref<72xf32, #tpu.memory_space<smem>>
    %c1_1257 = arith.constant 1 : index
    %c0_1258 = arith.constant 0 : index
    %c0_1259 = arith.constant 0 : index
    %c0_1260 = arith.constant 0 : index
    %c0_1261 = arith.constant 0 : index
    %1526 = vector.load %arg13[%c1_1257, %c0_1258, %c0_1259, %c0_1260, %c0_1261] : memref<2x2x2x9x18xf32, #tpu.memory_space<vmem>>, vector<1x1x1x8x16xf32>
    %1527 = vector.shape_cast %1526 : vector<1x1x1x8x16xf32> to vector<8x16xf32>
    %1528 = vector.broadcast %1525 : f32 to vector<8x16xf32>
    %1529 = arith.mulf %1528, %1527 : vector<8x16xf32>
    %1530 = arith.addf %1524, %1529 : vector<8x16xf32>
    %c40_1262 = arith.constant 40 : index
    %1531 = memref.load %arg3[%c40_1262] : memref<72xf32, #tpu.memory_space<smem>>
    %c1_1263 = arith.constant 1 : index
    %c1_1264 = arith.constant 1 : index
    %c0_1265 = arith.constant 0 : index
    %c0_1266 = arith.constant 0 : index
    %c0_1267 = arith.constant 0 : index
    %1532 = vector.load %arg13[%c1_1263, %c1_1264, %c0_1265, %c0_1266, %c0_1267] : memref<2x2x2x9x18xf32, #tpu.memory_space<vmem>>, vector<1x1x1x8x16xf32>
    %1533 = vector.shape_cast %1532 : vector<1x1x1x8x16xf32> to vector<8x16xf32>
    %1534 = vector.broadcast %1531 : f32 to vector<8x16xf32>
    %1535 = arith.mulf %1534, %1533 : vector<8x16xf32>
    %1536 = arith.addf %1530, %1535 : vector<8x16xf32>
    %c41_1268 = arith.constant 41 : index
    %1537 = memref.load %arg3[%c41_1268] : memref<72xf32, #tpu.memory_space<smem>>
    %c1_1269 = arith.constant 1 : index
    %c0_1270 = arith.constant 0 : index
    %c0_1271 = arith.constant 0 : index
    %c0_1272 = arith.constant 0 : index
    %c2_1273 = arith.constant 2 : index
    %1538 = vector.load %arg13[%c1_1269, %c0_1270, %c0_1271, %c0_1272, %c2_1273] : memref<2x2x2x9x18xf32, #tpu.memory_space<vmem>>, vector<1x1x1x8x16xf32>
    %1539 = vector.shape_cast %1538 : vector<1x1x1x8x16xf32> to vector<8x16xf32>
    %1540 = vector.broadcast %1537 : f32 to vector<8x16xf32>
    %1541 = arith.mulf %1540, %1539 : vector<8x16xf32>
    %1542 = arith.addf %1536, %1541 : vector<8x16xf32>
    %c42_1274 = arith.constant 42 : index
    %1543 = memref.load %arg3[%c42_1274] : memref<72xf32, #tpu.memory_space<smem>>
    %c0_1275 = arith.constant 0 : index
    %c0_1276 = arith.constant 0 : index
    %c0_1277 = arith.constant 0 : index
    %c1_1278 = arith.constant 1 : index
    %c0_1279 = arith.constant 0 : index
    %1544 = vector.load %arg13[%c0_1275, %c0_1276, %c0_1277, %c1_1278, %c0_1279] : memref<2x2x2x9x18xf32, #tpu.memory_space<vmem>>, vector<1x1x1x8x16xf32>
    %1545 = vector.shape_cast %1544 : vector<1x1x1x8x16xf32> to vector<8x16xf32>
    %1546 = vector.broadcast %1543 : f32 to vector<8x16xf32>
    %1547 = arith.mulf %1546, %1545 : vector<8x16xf32>
    %1548 = arith.addf %1542, %1547 : vector<8x16xf32>
    %c43_1280 = arith.constant 43 : index
    %1549 = memref.load %arg3[%c43_1280] : memref<72xf32, #tpu.memory_space<smem>>
    %c0_1281 = arith.constant 0 : index
    %c1_1282 = arith.constant 1 : index
    %c0_1283 = arith.constant 0 : index
    %c1_1284 = arith.constant 1 : index
    %c0_1285 = arith.constant 0 : index
    %1550 = vector.load %arg13[%c0_1281, %c1_1282, %c0_1283, %c1_1284, %c0_1285] : memref<2x2x2x9x18xf32, #tpu.memory_space<vmem>>, vector<1x1x1x8x16xf32>
    %1551 = vector.shape_cast %1550 : vector<1x1x1x8x16xf32> to vector<8x16xf32>
    %1552 = vector.broadcast %1549 : f32 to vector<8x16xf32>
    %1553 = arith.mulf %1552, %1551 : vector<8x16xf32>
    %1554 = arith.addf %1548, %1553 : vector<8x16xf32>
    %c44_1286 = arith.constant 44 : index
    %1555 = memref.load %arg3[%c44_1286] : memref<72xf32, #tpu.memory_space<smem>>
    %c0_1287 = arith.constant 0 : index
    %c0_1288 = arith.constant 0 : index
    %c0_1289 = arith.constant 0 : index
    %c1_1290 = arith.constant 1 : index
    %c2_1291 = arith.constant 2 : index
    %1556 = vector.load %arg13[%c0_1287, %c0_1288, %c0_1289, %c1_1290, %c2_1291] : memref<2x2x2x9x18xf32, #tpu.memory_space<vmem>>, vector<1x1x1x8x16xf32>
    %1557 = vector.shape_cast %1556 : vector<1x1x1x8x16xf32> to vector<8x16xf32>
    %1558 = vector.broadcast %1555 : f32 to vector<8x16xf32>
    %1559 = arith.mulf %1558, %1557 : vector<8x16xf32>
    %1560 = arith.addf %1554, %1559 : vector<8x16xf32>
    %c45_1292 = arith.constant 45 : index
    %1561 = memref.load %arg3[%c45_1292] : memref<72xf32, #tpu.memory_space<smem>>
    %c0_1293 = arith.constant 0 : index
    %c0_1294 = arith.constant 0 : index
    %c1_1295 = arith.constant 1 : index
    %c0_1296 = arith.constant 0 : index
    %c0_1297 = arith.constant 0 : index
    %1562 = vector.load %arg13[%c0_1293, %c0_1294, %c1_1295, %c0_1296, %c0_1297] : memref<2x2x2x9x18xf32, #tpu.memory_space<vmem>>, vector<1x1x1x8x16xf32>
    %1563 = vector.shape_cast %1562 : vector<1x1x1x8x16xf32> to vector<8x16xf32>
    %1564 = vector.broadcast %1561 : f32 to vector<8x16xf32>
    %1565 = arith.mulf %1564, %1563 : vector<8x16xf32>
    %1566 = arith.addf %1560, %1565 : vector<8x16xf32>
    %c46_1298 = arith.constant 46 : index
    %1567 = memref.load %arg3[%c46_1298] : memref<72xf32, #tpu.memory_space<smem>>
    %c0_1299 = arith.constant 0 : index
    %c1_1300 = arith.constant 1 : index
    %c1_1301 = arith.constant 1 : index
    %c0_1302 = arith.constant 0 : index
    %c0_1303 = arith.constant 0 : index
    %1568 = vector.load %arg13[%c0_1299, %c1_1300, %c1_1301, %c0_1302, %c0_1303] : memref<2x2x2x9x18xf32, #tpu.memory_space<vmem>>, vector<1x1x1x8x16xf32>
    %1569 = vector.shape_cast %1568 : vector<1x1x1x8x16xf32> to vector<8x16xf32>
    %1570 = vector.broadcast %1567 : f32 to vector<8x16xf32>
    %1571 = arith.mulf %1570, %1569 : vector<8x16xf32>
    %1572 = arith.addf %1566, %1571 : vector<8x16xf32>
    %c47_1304 = arith.constant 47 : index
    %1573 = memref.load %arg3[%c47_1304] : memref<72xf32, #tpu.memory_space<smem>>
    %c0_1305 = arith.constant 0 : index
    %c0_1306 = arith.constant 0 : index
    %c1_1307 = arith.constant 1 : index
    %c0_1308 = arith.constant 0 : index
    %c2_1309 = arith.constant 2 : index
    %1574 = vector.load %arg13[%c0_1305, %c0_1306, %c1_1307, %c0_1308, %c2_1309] : memref<2x2x2x9x18xf32, #tpu.memory_space<vmem>>, vector<1x1x1x8x16xf32>
    %1575 = vector.shape_cast %1574 : vector<1x1x1x8x16xf32> to vector<8x16xf32>
    %1576 = vector.broadcast %1573 : f32 to vector<8x16xf32>
    %1577 = arith.mulf %1576, %1575 : vector<8x16xf32>
    %1578 = arith.addf %1572, %1577 : vector<8x16xf32>
    %c48_1310 = arith.constant 48 : index
    %1579 = memref.load %arg3[%c48_1310] : memref<72xf32, #tpu.memory_space<smem>>
    %c1_1311 = arith.constant 1 : index
    %c0_1312 = arith.constant 0 : index
    %c1_1313 = arith.constant 1 : index
    %c0_1314 = arith.constant 0 : index
    %c0_1315 = arith.constant 0 : index
    %1580 = vector.load %arg13[%c1_1311, %c0_1312, %c1_1313, %c0_1314, %c0_1315] : memref<2x2x2x9x18xf32, #tpu.memory_space<vmem>>, vector<1x1x1x8x16xf32>
    %1581 = vector.shape_cast %1580 : vector<1x1x1x8x16xf32> to vector<8x16xf32>
    %1582 = vector.broadcast %1579 : f32 to vector<8x16xf32>
    %1583 = arith.mulf %1582, %1581 : vector<8x16xf32>
    %1584 = arith.addf %1578, %1583 : vector<8x16xf32>
    %c49_1316 = arith.constant 49 : index
    %1585 = memref.load %arg3[%c49_1316] : memref<72xf32, #tpu.memory_space<smem>>
    %c1_1317 = arith.constant 1 : index
    %c1_1318 = arith.constant 1 : index
    %c1_1319 = arith.constant 1 : index
    %c0_1320 = arith.constant 0 : index
    %c0_1321 = arith.constant 0 : index
    %1586 = vector.load %arg13[%c1_1317, %c1_1318, %c1_1319, %c0_1320, %c0_1321] : memref<2x2x2x9x18xf32, #tpu.memory_space<vmem>>, vector<1x1x1x8x16xf32>
    %1587 = vector.shape_cast %1586 : vector<1x1x1x8x16xf32> to vector<8x16xf32>
    %1588 = vector.broadcast %1585 : f32 to vector<8x16xf32>
    %1589 = arith.mulf %1588, %1587 : vector<8x16xf32>
    %1590 = arith.addf %1584, %1589 : vector<8x16xf32>
    %c50_1322 = arith.constant 50 : index
    %1591 = memref.load %arg3[%c50_1322] : memref<72xf32, #tpu.memory_space<smem>>
    %c1_1323 = arith.constant 1 : index
    %c0_1324 = arith.constant 0 : index
    %c1_1325 = arith.constant 1 : index
    %c0_1326 = arith.constant 0 : index
    %c2_1327 = arith.constant 2 : index
    %1592 = vector.load %arg13[%c1_1323, %c0_1324, %c1_1325, %c0_1326, %c2_1327] : memref<2x2x2x9x18xf32, #tpu.memory_space<vmem>>, vector<1x1x1x8x16xf32>
    %1593 = vector.shape_cast %1592 : vector<1x1x1x8x16xf32> to vector<8x16xf32>
    %1594 = vector.broadcast %1591 : f32 to vector<8x16xf32>
    %1595 = arith.mulf %1594, %1593 : vector<8x16xf32>
    %1596 = arith.addf %1590, %1595 : vector<8x16xf32>
    %c51_1328 = arith.constant 51 : index
    %1597 = memref.load %arg3[%c51_1328] : memref<72xf32, #tpu.memory_space<smem>>
    %c0_1329 = arith.constant 0 : index
    %c0_1330 = arith.constant 0 : index
    %c1_1331 = arith.constant 1 : index
    %c1_1332 = arith.constant 1 : index
    %c0_1333 = arith.constant 0 : index
    %1598 = vector.load %arg13[%c0_1329, %c0_1330, %c1_1331, %c1_1332, %c0_1333] : memref<2x2x2x9x18xf32, #tpu.memory_space<vmem>>, vector<1x1x1x8x16xf32>
    %1599 = vector.shape_cast %1598 : vector<1x1x1x8x16xf32> to vector<8x16xf32>
    %1600 = vector.broadcast %1597 : f32 to vector<8x16xf32>
    %1601 = arith.mulf %1600, %1599 : vector<8x16xf32>
    %1602 = arith.addf %1596, %1601 : vector<8x16xf32>
    %c52_1334 = arith.constant 52 : index
    %1603 = memref.load %arg3[%c52_1334] : memref<72xf32, #tpu.memory_space<smem>>
    %c0_1335 = arith.constant 0 : index
    %c1_1336 = arith.constant 1 : index
    %c1_1337 = arith.constant 1 : index
    %c1_1338 = arith.constant 1 : index
    %c0_1339 = arith.constant 0 : index
    %1604 = vector.load %arg13[%c0_1335, %c1_1336, %c1_1337, %c1_1338, %c0_1339] : memref<2x2x2x9x18xf32, #tpu.memory_space<vmem>>, vector<1x1x1x8x16xf32>
    %1605 = vector.shape_cast %1604 : vector<1x1x1x8x16xf32> to vector<8x16xf32>
    %1606 = vector.broadcast %1603 : f32 to vector<8x16xf32>
    %1607 = arith.mulf %1606, %1605 : vector<8x16xf32>
    %1608 = arith.addf %1602, %1607 : vector<8x16xf32>
    %c53_1340 = arith.constant 53 : index
    %1609 = memref.load %arg3[%c53_1340] : memref<72xf32, #tpu.memory_space<smem>>
    %c0_1341 = arith.constant 0 : index
    %c0_1342 = arith.constant 0 : index
    %c1_1343 = arith.constant 1 : index
    %c1_1344 = arith.constant 1 : index
    %c2_1345 = arith.constant 2 : index
    %1610 = vector.load %arg13[%c0_1341, %c0_1342, %c1_1343, %c1_1344, %c2_1345] : memref<2x2x2x9x18xf32, #tpu.memory_space<vmem>>, vector<1x1x1x8x16xf32>
    %1611 = vector.shape_cast %1610 : vector<1x1x1x8x16xf32> to vector<8x16xf32>
    %1612 = vector.broadcast %1609 : f32 to vector<8x16xf32>
    %1613 = arith.mulf %1612, %1611 : vector<8x16xf32>
    %1614 = arith.addf %1608, %1613 : vector<8x16xf32>
    %cst_1346 = arith.constant 0.000000e+00 : f32
    %1615 = vector.broadcast %cst_1346 : f32 to vector<8x16xf32>
    %c36_1347 = arith.constant 36 : index
    %1616 = memref.load %arg3[%c36_1347] : memref<72xf32, #tpu.memory_space<smem>>
    %c0_1348 = arith.constant 0 : index
    %c1_1349 = arith.constant 1 : index
    %c0_1350 = arith.constant 0 : index
    %c0_1351 = arith.constant 0 : index
    %c0_1352 = arith.constant 0 : index
    %1617 = vector.load %arg13[%c0_1348, %c1_1349, %c0_1350, %c0_1351, %c0_1352] : memref<2x2x2x9x18xf32, #tpu.memory_space<vmem>>, vector<1x1x1x8x16xf32>
    %1618 = vector.shape_cast %1617 : vector<1x1x1x8x16xf32> to vector<8x16xf32>
    %1619 = vector.broadcast %1616 : f32 to vector<8x16xf32>
    %1620 = arith.mulf %1619, %1618 : vector<8x16xf32>
    %1621 = arith.addf %1615, %1620 : vector<8x16xf32>
    %c37_1353 = arith.constant 37 : index
    %1622 = memref.load %arg3[%c37_1353] : memref<72xf32, #tpu.memory_space<smem>>
    %c0_1354 = arith.constant 0 : index
    %c0_1355 = arith.constant 0 : index
    %c0_1356 = arith.constant 0 : index
    %c0_1357 = arith.constant 0 : index
    %c2_1358 = arith.constant 2 : index
    %1623 = vector.load %arg13[%c0_1354, %c0_1355, %c0_1356, %c0_1357, %c2_1358] : memref<2x2x2x9x18xf32, #tpu.memory_space<vmem>>, vector<1x1x1x8x16xf32>
    %1624 = vector.shape_cast %1623 : vector<1x1x1x8x16xf32> to vector<8x16xf32>
    %1625 = vector.broadcast %1622 : f32 to vector<8x16xf32>
    %1626 = arith.mulf %1625, %1624 : vector<8x16xf32>
    %1627 = arith.addf %1621, %1626 : vector<8x16xf32>
    %c38_1359 = arith.constant 38 : index
    %1628 = memref.load %arg3[%c38_1359] : memref<72xf32, #tpu.memory_space<smem>>
    %c0_1360 = arith.constant 0 : index
    %c1_1361 = arith.constant 1 : index
    %c0_1362 = arith.constant 0 : index
    %c0_1363 = arith.constant 0 : index
    %c2_1364 = arith.constant 2 : index
    %1629 = vector.load %arg13[%c0_1360, %c1_1361, %c0_1362, %c0_1363, %c2_1364] : memref<2x2x2x9x18xf32, #tpu.memory_space<vmem>>, vector<1x1x1x8x16xf32>
    %1630 = vector.shape_cast %1629 : vector<1x1x1x8x16xf32> to vector<8x16xf32>
    %1631 = vector.broadcast %1628 : f32 to vector<8x16xf32>
    %1632 = arith.mulf %1631, %1630 : vector<8x16xf32>
    %1633 = arith.addf %1627, %1632 : vector<8x16xf32>
    %c39_1365 = arith.constant 39 : index
    %1634 = memref.load %arg3[%c39_1365] : memref<72xf32, #tpu.memory_space<smem>>
    %c1_1366 = arith.constant 1 : index
    %c1_1367 = arith.constant 1 : index
    %c0_1368 = arith.constant 0 : index
    %c0_1369 = arith.constant 0 : index
    %c0_1370 = arith.constant 0 : index
    %1635 = vector.load %arg13[%c1_1366, %c1_1367, %c0_1368, %c0_1369, %c0_1370] : memref<2x2x2x9x18xf32, #tpu.memory_space<vmem>>, vector<1x1x1x8x16xf32>
    %1636 = vector.shape_cast %1635 : vector<1x1x1x8x16xf32> to vector<8x16xf32>
    %1637 = vector.broadcast %1634 : f32 to vector<8x16xf32>
    %1638 = arith.mulf %1637, %1636 : vector<8x16xf32>
    %1639 = arith.addf %1633, %1638 : vector<8x16xf32>
    %c40_1371 = arith.constant 40 : index
    %1640 = memref.load %arg3[%c40_1371] : memref<72xf32, #tpu.memory_space<smem>>
    %c1_1372 = arith.constant 1 : index
    %c0_1373 = arith.constant 0 : index
    %c0_1374 = arith.constant 0 : index
    %c0_1375 = arith.constant 0 : index
    %c2_1376 = arith.constant 2 : index
    %1641 = vector.load %arg13[%c1_1372, %c0_1373, %c0_1374, %c0_1375, %c2_1376] : memref<2x2x2x9x18xf32, #tpu.memory_space<vmem>>, vector<1x1x1x8x16xf32>
    %1642 = vector.shape_cast %1641 : vector<1x1x1x8x16xf32> to vector<8x16xf32>
    %1643 = vector.broadcast %1640 : f32 to vector<8x16xf32>
    %1644 = arith.mulf %1643, %1642 : vector<8x16xf32>
    %1645 = arith.addf %1639, %1644 : vector<8x16xf32>
    %c41_1377 = arith.constant 41 : index
    %1646 = memref.load %arg3[%c41_1377] : memref<72xf32, #tpu.memory_space<smem>>
    %c1_1378 = arith.constant 1 : index
    %c1_1379 = arith.constant 1 : index
    %c0_1380 = arith.constant 0 : index
    %c0_1381 = arith.constant 0 : index
    %c2_1382 = arith.constant 2 : index
    %1647 = vector.load %arg13[%c1_1378, %c1_1379, %c0_1380, %c0_1381, %c2_1382] : memref<2x2x2x9x18xf32, #tpu.memory_space<vmem>>, vector<1x1x1x8x16xf32>
    %1648 = vector.shape_cast %1647 : vector<1x1x1x8x16xf32> to vector<8x16xf32>
    %1649 = vector.broadcast %1646 : f32 to vector<8x16xf32>
    %1650 = arith.mulf %1649, %1648 : vector<8x16xf32>
    %1651 = arith.addf %1645, %1650 : vector<8x16xf32>
    %c42_1383 = arith.constant 42 : index
    %1652 = memref.load %arg3[%c42_1383] : memref<72xf32, #tpu.memory_space<smem>>
    %c0_1384 = arith.constant 0 : index
    %c1_1385 = arith.constant 1 : index
    %c0_1386 = arith.constant 0 : index
    %c1_1387 = arith.constant 1 : index
    %c0_1388 = arith.constant 0 : index
    %1653 = vector.load %arg13[%c0_1384, %c1_1385, %c0_1386, %c1_1387, %c0_1388] : memref<2x2x2x9x18xf32, #tpu.memory_space<vmem>>, vector<1x1x1x8x16xf32>
    %1654 = vector.shape_cast %1653 : vector<1x1x1x8x16xf32> to vector<8x16xf32>
    %1655 = vector.broadcast %1652 : f32 to vector<8x16xf32>
    %1656 = arith.mulf %1655, %1654 : vector<8x16xf32>
    %1657 = arith.addf %1651, %1656 : vector<8x16xf32>
    %c43_1389 = arith.constant 43 : index
    %1658 = memref.load %arg3[%c43_1389] : memref<72xf32, #tpu.memory_space<smem>>
    %c0_1390 = arith.constant 0 : index
    %c0_1391 = arith.constant 0 : index
    %c0_1392 = arith.constant 0 : index
    %c1_1393 = arith.constant 1 : index
    %c2_1394 = arith.constant 2 : index
    %1659 = vector.load %arg13[%c0_1390, %c0_1391, %c0_1392, %c1_1393, %c2_1394] : memref<2x2x2x9x18xf32, #tpu.memory_space<vmem>>, vector<1x1x1x8x16xf32>
    %1660 = vector.shape_cast %1659 : vector<1x1x1x8x16xf32> to vector<8x16xf32>
    %1661 = vector.broadcast %1658 : f32 to vector<8x16xf32>
    %1662 = arith.mulf %1661, %1660 : vector<8x16xf32>
    %1663 = arith.addf %1657, %1662 : vector<8x16xf32>
    %c44_1395 = arith.constant 44 : index
    %1664 = memref.load %arg3[%c44_1395] : memref<72xf32, #tpu.memory_space<smem>>
    %c0_1396 = arith.constant 0 : index
    %c1_1397 = arith.constant 1 : index
    %c0_1398 = arith.constant 0 : index
    %c1_1399 = arith.constant 1 : index
    %c2_1400 = arith.constant 2 : index
    %1665 = vector.load %arg13[%c0_1396, %c1_1397, %c0_1398, %c1_1399, %c2_1400] : memref<2x2x2x9x18xf32, #tpu.memory_space<vmem>>, vector<1x1x1x8x16xf32>
    %1666 = vector.shape_cast %1665 : vector<1x1x1x8x16xf32> to vector<8x16xf32>
    %1667 = vector.broadcast %1664 : f32 to vector<8x16xf32>
    %1668 = arith.mulf %1667, %1666 : vector<8x16xf32>
    %1669 = arith.addf %1663, %1668 : vector<8x16xf32>
    %c45_1401 = arith.constant 45 : index
    %1670 = memref.load %arg3[%c45_1401] : memref<72xf32, #tpu.memory_space<smem>>
    %c0_1402 = arith.constant 0 : index
    %c1_1403 = arith.constant 1 : index
    %c1_1404 = arith.constant 1 : index
    %c0_1405 = arith.constant 0 : index
    %c0_1406 = arith.constant 0 : index
    %1671 = vector.load %arg13[%c0_1402, %c1_1403, %c1_1404, %c0_1405, %c0_1406] : memref<2x2x2x9x18xf32, #tpu.memory_space<vmem>>, vector<1x1x1x8x16xf32>
    %1672 = vector.shape_cast %1671 : vector<1x1x1x8x16xf32> to vector<8x16xf32>
    %1673 = vector.broadcast %1670 : f32 to vector<8x16xf32>
    %1674 = arith.mulf %1673, %1672 : vector<8x16xf32>
    %1675 = arith.addf %1669, %1674 : vector<8x16xf32>
    %c46_1407 = arith.constant 46 : index
    %1676 = memref.load %arg3[%c46_1407] : memref<72xf32, #tpu.memory_space<smem>>
    %c0_1408 = arith.constant 0 : index
    %c0_1409 = arith.constant 0 : index
    %c1_1410 = arith.constant 1 : index
    %c0_1411 = arith.constant 0 : index
    %c2_1412 = arith.constant 2 : index
    %1677 = vector.load %arg13[%c0_1408, %c0_1409, %c1_1410, %c0_1411, %c2_1412] : memref<2x2x2x9x18xf32, #tpu.memory_space<vmem>>, vector<1x1x1x8x16xf32>
    %1678 = vector.shape_cast %1677 : vector<1x1x1x8x16xf32> to vector<8x16xf32>
    %1679 = vector.broadcast %1676 : f32 to vector<8x16xf32>
    %1680 = arith.mulf %1679, %1678 : vector<8x16xf32>
    %1681 = arith.addf %1675, %1680 : vector<8x16xf32>
    %c47_1413 = arith.constant 47 : index
    %1682 = memref.load %arg3[%c47_1413] : memref<72xf32, #tpu.memory_space<smem>>
    %c0_1414 = arith.constant 0 : index
    %c1_1415 = arith.constant 1 : index
    %c1_1416 = arith.constant 1 : index
    %c0_1417 = arith.constant 0 : index
    %c2_1418 = arith.constant 2 : index
    %1683 = vector.load %arg13[%c0_1414, %c1_1415, %c1_1416, %c0_1417, %c2_1418] : memref<2x2x2x9x18xf32, #tpu.memory_space<vmem>>, vector<1x1x1x8x16xf32>
    %1684 = vector.shape_cast %1683 : vector<1x1x1x8x16xf32> to vector<8x16xf32>
    %1685 = vector.broadcast %1682 : f32 to vector<8x16xf32>
    %1686 = arith.mulf %1685, %1684 : vector<8x16xf32>
    %1687 = arith.addf %1681, %1686 : vector<8x16xf32>
    %c48_1419 = arith.constant 48 : index
    %1688 = memref.load %arg3[%c48_1419] : memref<72xf32, #tpu.memory_space<smem>>
    %c1_1420 = arith.constant 1 : index
    %c1_1421 = arith.constant 1 : index
    %c1_1422 = arith.constant 1 : index
    %c0_1423 = arith.constant 0 : index
    %c0_1424 = arith.constant 0 : index
    %1689 = vector.load %arg13[%c1_1420, %c1_1421, %c1_1422, %c0_1423, %c0_1424] : memref<2x2x2x9x18xf32, #tpu.memory_space<vmem>>, vector<1x1x1x8x16xf32>
    %1690 = vector.shape_cast %1689 : vector<1x1x1x8x16xf32> to vector<8x16xf32>
    %1691 = vector.broadcast %1688 : f32 to vector<8x16xf32>
    %1692 = arith.mulf %1691, %1690 : vector<8x16xf32>
    %1693 = arith.addf %1687, %1692 : vector<8x16xf32>
    %c49_1425 = arith.constant 49 : index
    %1694 = memref.load %arg3[%c49_1425] : memref<72xf32, #tpu.memory_space<smem>>
    %c1_1426 = arith.constant 1 : index
    %c0_1427 = arith.constant 0 : index
    %c1_1428 = arith.constant 1 : index
    %c0_1429 = arith.constant 0 : index
    %c2_1430 = arith.constant 2 : index
    %1695 = vector.load %arg13[%c1_1426, %c0_1427, %c1_1428, %c0_1429, %c2_1430] : memref<2x2x2x9x18xf32, #tpu.memory_space<vmem>>, vector<1x1x1x8x16xf32>
    %1696 = vector.shape_cast %1695 : vector<1x1x1x8x16xf32> to vector<8x16xf32>
    %1697 = vector.broadcast %1694 : f32 to vector<8x16xf32>
    %1698 = arith.mulf %1697, %1696 : vector<8x16xf32>
    %1699 = arith.addf %1693, %1698 : vector<8x16xf32>
    %c50_1431 = arith.constant 50 : index
    %1700 = memref.load %arg3[%c50_1431] : memref<72xf32, #tpu.memory_space<smem>>
    %c1_1432 = arith.constant 1 : index
    %c1_1433 = arith.constant 1 : index
    %c1_1434 = arith.constant 1 : index
    %c0_1435 = arith.constant 0 : index
    %c2_1436 = arith.constant 2 : index
    %1701 = vector.load %arg13[%c1_1432, %c1_1433, %c1_1434, %c0_1435, %c2_1436] : memref<2x2x2x9x18xf32, #tpu.memory_space<vmem>>, vector<1x1x1x8x16xf32>
    %1702 = vector.shape_cast %1701 : vector<1x1x1x8x16xf32> to vector<8x16xf32>
    %1703 = vector.broadcast %1700 : f32 to vector<8x16xf32>
    %1704 = arith.mulf %1703, %1702 : vector<8x16xf32>
    %1705 = arith.addf %1699, %1704 : vector<8x16xf32>
    %c51_1437 = arith.constant 51 : index
    %1706 = memref.load %arg3[%c51_1437] : memref<72xf32, #tpu.memory_space<smem>>
    %c0_1438 = arith.constant 0 : index
    %c1_1439 = arith.constant 1 : index
    %c1_1440 = arith.constant 1 : index
    %c1_1441 = arith.constant 1 : index
    %c0_1442 = arith.constant 0 : index
    %1707 = vector.load %arg13[%c0_1438, %c1_1439, %c1_1440, %c1_1441, %c0_1442] : memref<2x2x2x9x18xf32, #tpu.memory_space<vmem>>, vector<1x1x1x8x16xf32>
    %1708 = vector.shape_cast %1707 : vector<1x1x1x8x16xf32> to vector<8x16xf32>
    %1709 = vector.broadcast %1706 : f32 to vector<8x16xf32>
    %1710 = arith.mulf %1709, %1708 : vector<8x16xf32>
    %1711 = arith.addf %1705, %1710 : vector<8x16xf32>
    %c52_1443 = arith.constant 52 : index
    %1712 = memref.load %arg3[%c52_1443] : memref<72xf32, #tpu.memory_space<smem>>
    %c0_1444 = arith.constant 0 : index
    %c0_1445 = arith.constant 0 : index
    %c1_1446 = arith.constant 1 : index
    %c1_1447 = arith.constant 1 : index
    %c2_1448 = arith.constant 2 : index
    %1713 = vector.load %arg13[%c0_1444, %c0_1445, %c1_1446, %c1_1447, %c2_1448] : memref<2x2x2x9x18xf32, #tpu.memory_space<vmem>>, vector<1x1x1x8x16xf32>
    %1714 = vector.shape_cast %1713 : vector<1x1x1x8x16xf32> to vector<8x16xf32>
    %1715 = vector.broadcast %1712 : f32 to vector<8x16xf32>
    %1716 = arith.mulf %1715, %1714 : vector<8x16xf32>
    %1717 = arith.addf %1711, %1716 : vector<8x16xf32>
    %c53_1449 = arith.constant 53 : index
    %1718 = memref.load %arg3[%c53_1449] : memref<72xf32, #tpu.memory_space<smem>>
    %c0_1450 = arith.constant 0 : index
    %c1_1451 = arith.constant 1 : index
    %c1_1452 = arith.constant 1 : index
    %c1_1453 = arith.constant 1 : index
    %c2_1454 = arith.constant 2 : index
    %1719 = vector.load %arg13[%c0_1450, %c1_1451, %c1_1452, %c1_1453, %c2_1454] : memref<2x2x2x9x18xf32, #tpu.memory_space<vmem>>, vector<1x1x1x8x16xf32>
    %1720 = vector.shape_cast %1719 : vector<1x1x1x8x16xf32> to vector<8x16xf32>
    %1721 = vector.broadcast %1718 : f32 to vector<8x16xf32>
    %1722 = arith.mulf %1721, %1720 : vector<8x16xf32>
    %1723 = arith.addf %1717, %1722 : vector<8x16xf32>
    %cst_1455 = arith.constant 0.000000e+00 : f32
    %1724 = vector.broadcast %cst_1455 : f32 to vector<8x16xf32>
    %c36_1456 = arith.constant 36 : index
    %1725 = memref.load %arg3[%c36_1456] : memref<72xf32, #tpu.memory_space<smem>>
    %c1_1457 = arith.constant 1 : index
    %c0_1458 = arith.constant 0 : index
    %c0_1459 = arith.constant 0 : index
    %c0_1460 = arith.constant 0 : index
    %c0_1461 = arith.constant 0 : index
    %1726 = vector.load %arg13[%c1_1457, %c0_1458, %c0_1459, %c0_1460, %c0_1461] : memref<2x2x2x9x18xf32, #tpu.memory_space<vmem>>, vector<1x1x1x8x16xf32>
    %1727 = vector.shape_cast %1726 : vector<1x1x1x8x16xf32> to vector<8x16xf32>
    %1728 = vector.broadcast %1725 : f32 to vector<8x16xf32>
    %1729 = arith.mulf %1728, %1727 : vector<8x16xf32>
    %1730 = arith.addf %1724, %1729 : vector<8x16xf32>
    %c37_1462 = arith.constant 37 : index
    %1731 = memref.load %arg3[%c37_1462] : memref<72xf32, #tpu.memory_space<smem>>
    %c1_1463 = arith.constant 1 : index
    %c1_1464 = arith.constant 1 : index
    %c0_1465 = arith.constant 0 : index
    %c0_1466 = arith.constant 0 : index
    %c0_1467 = arith.constant 0 : index
    %1732 = vector.load %arg13[%c1_1463, %c1_1464, %c0_1465, %c0_1466, %c0_1467] : memref<2x2x2x9x18xf32, #tpu.memory_space<vmem>>, vector<1x1x1x8x16xf32>
    %1733 = vector.shape_cast %1732 : vector<1x1x1x8x16xf32> to vector<8x16xf32>
    %1734 = vector.broadcast %1731 : f32 to vector<8x16xf32>
    %1735 = arith.mulf %1734, %1733 : vector<8x16xf32>
    %1736 = arith.addf %1730, %1735 : vector<8x16xf32>
    %c38_1468 = arith.constant 38 : index
    %1737 = memref.load %arg3[%c38_1468] : memref<72xf32, #tpu.memory_space<smem>>
    %c1_1469 = arith.constant 1 : index
    %c0_1470 = arith.constant 0 : index
    %c0_1471 = arith.constant 0 : index
    %c0_1472 = arith.constant 0 : index
    %c2_1473 = arith.constant 2 : index
    %1738 = vector.load %arg13[%c1_1469, %c0_1470, %c0_1471, %c0_1472, %c2_1473] : memref<2x2x2x9x18xf32, #tpu.memory_space<vmem>>, vector<1x1x1x8x16xf32>
    %1739 = vector.shape_cast %1738 : vector<1x1x1x8x16xf32> to vector<8x16xf32>
    %1740 = vector.broadcast %1737 : f32 to vector<8x16xf32>
    %1741 = arith.mulf %1740, %1739 : vector<8x16xf32>
    %1742 = arith.addf %1736, %1741 : vector<8x16xf32>
    %c39_1474 = arith.constant 39 : index
    %1743 = memref.load %arg3[%c39_1474] : memref<72xf32, #tpu.memory_space<smem>>
    %c0_1475 = arith.constant 0 : index
    %c0_1476 = arith.constant 0 : index
    %c0_1477 = arith.constant 0 : index
    %c1_1478 = arith.constant 1 : index
    %c0_1479 = arith.constant 0 : index
    %1744 = vector.load %arg13[%c0_1475, %c0_1476, %c0_1477, %c1_1478, %c0_1479] : memref<2x2x2x9x18xf32, #tpu.memory_space<vmem>>, vector<1x1x1x8x16xf32>
    %1745 = vector.shape_cast %1744 : vector<1x1x1x8x16xf32> to vector<8x16xf32>
    %1746 = vector.broadcast %1743 : f32 to vector<8x16xf32>
    %1747 = arith.mulf %1746, %1745 : vector<8x16xf32>
    %1748 = arith.addf %1742, %1747 : vector<8x16xf32>
    %c40_1480 = arith.constant 40 : index
    %1749 = memref.load %arg3[%c40_1480] : memref<72xf32, #tpu.memory_space<smem>>
    %c0_1481 = arith.constant 0 : index
    %c1_1482 = arith.constant 1 : index
    %c0_1483 = arith.constant 0 : index
    %c1_1484 = arith.constant 1 : index
    %c0_1485 = arith.constant 0 : index
    %1750 = vector.load %arg13[%c0_1481, %c1_1482, %c0_1483, %c1_1484, %c0_1485] : memref<2x2x2x9x18xf32, #tpu.memory_space<vmem>>, vector<1x1x1x8x16xf32>
    %1751 = vector.shape_cast %1750 : vector<1x1x1x8x16xf32> to vector<8x16xf32>
    %1752 = vector.broadcast %1749 : f32 to vector<8x16xf32>
    %1753 = arith.mulf %1752, %1751 : vector<8x16xf32>
    %1754 = arith.addf %1748, %1753 : vector<8x16xf32>
    %c41_1486 = arith.constant 41 : index
    %1755 = memref.load %arg3[%c41_1486] : memref<72xf32, #tpu.memory_space<smem>>
    %c0_1487 = arith.constant 0 : index
    %c0_1488 = arith.constant 0 : index
    %c0_1489 = arith.constant 0 : index
    %c1_1490 = arith.constant 1 : index
    %c2_1491 = arith.constant 2 : index
    %1756 = vector.load %arg13[%c0_1487, %c0_1488, %c0_1489, %c1_1490, %c2_1491] : memref<2x2x2x9x18xf32, #tpu.memory_space<vmem>>, vector<1x1x1x8x16xf32>
    %1757 = vector.shape_cast %1756 : vector<1x1x1x8x16xf32> to vector<8x16xf32>
    %1758 = vector.broadcast %1755 : f32 to vector<8x16xf32>
    %1759 = arith.mulf %1758, %1757 : vector<8x16xf32>
    %1760 = arith.addf %1754, %1759 : vector<8x16xf32>
    %c42_1492 = arith.constant 42 : index
    %1761 = memref.load %arg3[%c42_1492] : memref<72xf32, #tpu.memory_space<smem>>
    %c1_1493 = arith.constant 1 : index
    %c0_1494 = arith.constant 0 : index
    %c0_1495 = arith.constant 0 : index
    %c1_1496 = arith.constant 1 : index
    %c0_1497 = arith.constant 0 : index
    %1762 = vector.load %arg13[%c1_1493, %c0_1494, %c0_1495, %c1_1496, %c0_1497] : memref<2x2x2x9x18xf32, #tpu.memory_space<vmem>>, vector<1x1x1x8x16xf32>
    %1763 = vector.shape_cast %1762 : vector<1x1x1x8x16xf32> to vector<8x16xf32>
    %1764 = vector.broadcast %1761 : f32 to vector<8x16xf32>
    %1765 = arith.mulf %1764, %1763 : vector<8x16xf32>
    %1766 = arith.addf %1760, %1765 : vector<8x16xf32>
    %c43_1498 = arith.constant 43 : index
    %1767 = memref.load %arg3[%c43_1498] : memref<72xf32, #tpu.memory_space<smem>>
    %c1_1499 = arith.constant 1 : index
    %c1_1500 = arith.constant 1 : index
    %c0_1501 = arith.constant 0 : index
    %c1_1502 = arith.constant 1 : index
    %c0_1503 = arith.constant 0 : index
    %1768 = vector.load %arg13[%c1_1499, %c1_1500, %c0_1501, %c1_1502, %c0_1503] : memref<2x2x2x9x18xf32, #tpu.memory_space<vmem>>, vector<1x1x1x8x16xf32>
    %1769 = vector.shape_cast %1768 : vector<1x1x1x8x16xf32> to vector<8x16xf32>
    %1770 = vector.broadcast %1767 : f32 to vector<8x16xf32>
    %1771 = arith.mulf %1770, %1769 : vector<8x16xf32>
    %1772 = arith.addf %1766, %1771 : vector<8x16xf32>
    %c44_1504 = arith.constant 44 : index
    %1773 = memref.load %arg3[%c44_1504] : memref<72xf32, #tpu.memory_space<smem>>
    %c1_1505 = arith.constant 1 : index
    %c0_1506 = arith.constant 0 : index
    %c0_1507 = arith.constant 0 : index
    %c1_1508 = arith.constant 1 : index
    %c2_1509 = arith.constant 2 : index
    %1774 = vector.load %arg13[%c1_1505, %c0_1506, %c0_1507, %c1_1508, %c2_1509] : memref<2x2x2x9x18xf32, #tpu.memory_space<vmem>>, vector<1x1x1x8x16xf32>
    %1775 = vector.shape_cast %1774 : vector<1x1x1x8x16xf32> to vector<8x16xf32>
    %1776 = vector.broadcast %1773 : f32 to vector<8x16xf32>
    %1777 = arith.mulf %1776, %1775 : vector<8x16xf32>
    %1778 = arith.addf %1772, %1777 : vector<8x16xf32>
    %c45_1510 = arith.constant 45 : index
    %1779 = memref.load %arg3[%c45_1510] : memref<72xf32, #tpu.memory_space<smem>>
    %c1_1511 = arith.constant 1 : index
    %c0_1512 = arith.constant 0 : index
    %c1_1513 = arith.constant 1 : index
    %c0_1514 = arith.constant 0 : index
    %c0_1515 = arith.constant 0 : index
    %1780 = vector.load %arg13[%c1_1511, %c0_1512, %c1_1513, %c0_1514, %c0_1515] : memref<2x2x2x9x18xf32, #tpu.memory_space<vmem>>, vector<1x1x1x8x16xf32>
    %1781 = vector.shape_cast %1780 : vector<1x1x1x8x16xf32> to vector<8x16xf32>
    %1782 = vector.broadcast %1779 : f32 to vector<8x16xf32>
    %1783 = arith.mulf %1782, %1781 : vector<8x16xf32>
    %1784 = arith.addf %1778, %1783 : vector<8x16xf32>
    %c46_1516 = arith.constant 46 : index
    %1785 = memref.load %arg3[%c46_1516] : memref<72xf32, #tpu.memory_space<smem>>
    %c1_1517 = arith.constant 1 : index
    %c1_1518 = arith.constant 1 : index
    %c1_1519 = arith.constant 1 : index
    %c0_1520 = arith.constant 0 : index
    %c0_1521 = arith.constant 0 : index
    %1786 = vector.load %arg13[%c1_1517, %c1_1518, %c1_1519, %c0_1520, %c0_1521] : memref<2x2x2x9x18xf32, #tpu.memory_space<vmem>>, vector<1x1x1x8x16xf32>
    %1787 = vector.shape_cast %1786 : vector<1x1x1x8x16xf32> to vector<8x16xf32>
    %1788 = vector.broadcast %1785 : f32 to vector<8x16xf32>
    %1789 = arith.mulf %1788, %1787 : vector<8x16xf32>
    %1790 = arith.addf %1784, %1789 : vector<8x16xf32>
    %c47_1522 = arith.constant 47 : index
    %1791 = memref.load %arg3[%c47_1522] : memref<72xf32, #tpu.memory_space<smem>>
    %c1_1523 = arith.constant 1 : index
    %c0_1524 = arith.constant 0 : index
    %c1_1525 = arith.constant 1 : index
    %c0_1526 = arith.constant 0 : index
    %c2_1527 = arith.constant 2 : index
    %1792 = vector.load %arg13[%c1_1523, %c0_1524, %c1_1525, %c0_1526, %c2_1527] : memref<2x2x2x9x18xf32, #tpu.memory_space<vmem>>, vector<1x1x1x8x16xf32>
    %1793 = vector.shape_cast %1792 : vector<1x1x1x8x16xf32> to vector<8x16xf32>
    %1794 = vector.broadcast %1791 : f32 to vector<8x16xf32>
    %1795 = arith.mulf %1794, %1793 : vector<8x16xf32>
    %1796 = arith.addf %1790, %1795 : vector<8x16xf32>
    %c48_1528 = arith.constant 48 : index
    %1797 = memref.load %arg3[%c48_1528] : memref<72xf32, #tpu.memory_space<smem>>
    %c0_1529 = arith.constant 0 : index
    %c0_1530 = arith.constant 0 : index
    %c1_1531 = arith.constant 1 : index
    %c1_1532 = arith.constant 1 : index
    %c0_1533 = arith.constant 0 : index
    %1798 = vector.load %arg13[%c0_1529, %c0_1530, %c1_1531, %c1_1532, %c0_1533] : memref<2x2x2x9x18xf32, #tpu.memory_space<vmem>>, vector<1x1x1x8x16xf32>
    %1799 = vector.shape_cast %1798 : vector<1x1x1x8x16xf32> to vector<8x16xf32>
    %1800 = vector.broadcast %1797 : f32 to vector<8x16xf32>
    %1801 = arith.mulf %1800, %1799 : vector<8x16xf32>
    %1802 = arith.addf %1796, %1801 : vector<8x16xf32>
    %c49_1534 = arith.constant 49 : index
    %1803 = memref.load %arg3[%c49_1534] : memref<72xf32, #tpu.memory_space<smem>>
    %c0_1535 = arith.constant 0 : index
    %c1_1536 = arith.constant 1 : index
    %c1_1537 = arith.constant 1 : index
    %c1_1538 = arith.constant 1 : index
    %c0_1539 = arith.constant 0 : index
    %1804 = vector.load %arg13[%c0_1535, %c1_1536, %c1_1537, %c1_1538, %c0_1539] : memref<2x2x2x9x18xf32, #tpu.memory_space<vmem>>, vector<1x1x1x8x16xf32>
    %1805 = vector.shape_cast %1804 : vector<1x1x1x8x16xf32> to vector<8x16xf32>
    %1806 = vector.broadcast %1803 : f32 to vector<8x16xf32>
    %1807 = arith.mulf %1806, %1805 : vector<8x16xf32>
    %1808 = arith.addf %1802, %1807 : vector<8x16xf32>
    %c50_1540 = arith.constant 50 : index
    %1809 = memref.load %arg3[%c50_1540] : memref<72xf32, #tpu.memory_space<smem>>
    %c0_1541 = arith.constant 0 : index
    %c0_1542 = arith.constant 0 : index
    %c1_1543 = arith.constant 1 : index
    %c1_1544 = arith.constant 1 : index
    %c2_1545 = arith.constant 2 : index
    %1810 = vector.load %arg13[%c0_1541, %c0_1542, %c1_1543, %c1_1544, %c2_1545] : memref<2x2x2x9x18xf32, #tpu.memory_space<vmem>>, vector<1x1x1x8x16xf32>
    %1811 = vector.shape_cast %1810 : vector<1x1x1x8x16xf32> to vector<8x16xf32>
    %1812 = vector.broadcast %1809 : f32 to vector<8x16xf32>
    %1813 = arith.mulf %1812, %1811 : vector<8x16xf32>
    %1814 = arith.addf %1808, %1813 : vector<8x16xf32>
    %c51_1546 = arith.constant 51 : index
    %1815 = memref.load %arg3[%c51_1546] : memref<72xf32, #tpu.memory_space<smem>>
    %c1_1547 = arith.constant 1 : index
    %c0_1548 = arith.constant 0 : index
    %c1_1549 = arith.constant 1 : index
    %c1_1550 = arith.constant 1 : index
    %c0_1551 = arith.constant 0 : index
    %1816 = vector.load %arg13[%c1_1547, %c0_1548, %c1_1549, %c1_1550, %c0_1551] : memref<2x2x2x9x18xf32, #tpu.memory_space<vmem>>, vector<1x1x1x8x16xf32>
    %1817 = vector.shape_cast %1816 : vector<1x1x1x8x16xf32> to vector<8x16xf32>
    %1818 = vector.broadcast %1815 : f32 to vector<8x16xf32>
    %1819 = arith.mulf %1818, %1817 : vector<8x16xf32>
    %1820 = arith.addf %1814, %1819 : vector<8x16xf32>
    %c52_1552 = arith.constant 52 : index
    %1821 = memref.load %arg3[%c52_1552] : memref<72xf32, #tpu.memory_space<smem>>
    %c1_1553 = arith.constant 1 : index
    %c1_1554 = arith.constant 1 : index
    %c1_1555 = arith.constant 1 : index
    %c1_1556 = arith.constant 1 : index
    %c0_1557 = arith.constant 0 : index
    %1822 = vector.load %arg13[%c1_1553, %c1_1554, %c1_1555, %c1_1556, %c0_1557] : memref<2x2x2x9x18xf32, #tpu.memory_space<vmem>>, vector<1x1x1x8x16xf32>
    %1823 = vector.shape_cast %1822 : vector<1x1x1x8x16xf32> to vector<8x16xf32>
    %1824 = vector.broadcast %1821 : f32 to vector<8x16xf32>
    %1825 = arith.mulf %1824, %1823 : vector<8x16xf32>
    %1826 = arith.addf %1820, %1825 : vector<8x16xf32>
    %c53_1558 = arith.constant 53 : index
    %1827 = memref.load %arg3[%c53_1558] : memref<72xf32, #tpu.memory_space<smem>>
    %c1_1559 = arith.constant 1 : index
    %c0_1560 = arith.constant 0 : index
    %c1_1561 = arith.constant 1 : index
    %c1_1562 = arith.constant 1 : index
    %c2_1563 = arith.constant 2 : index
    %1828 = vector.load %arg13[%c1_1559, %c0_1560, %c1_1561, %c1_1562, %c2_1563] : memref<2x2x2x9x18xf32, #tpu.memory_space<vmem>>, vector<1x1x1x8x16xf32>
    %1829 = vector.shape_cast %1828 : vector<1x1x1x8x16xf32> to vector<8x16xf32>
    %1830 = vector.broadcast %1827 : f32 to vector<8x16xf32>
    %1831 = arith.mulf %1830, %1829 : vector<8x16xf32>
    %1832 = arith.addf %1826, %1831 : vector<8x16xf32>
    %cst_1564 = arith.constant 0.000000e+00 : f32
    %1833 = vector.broadcast %cst_1564 : f32 to vector<8x16xf32>
    %c36_1565 = arith.constant 36 : index
    %1834 = memref.load %arg3[%c36_1565] : memref<72xf32, #tpu.memory_space<smem>>
    %c1_1566 = arith.constant 1 : index
    %c1_1567 = arith.constant 1 : index
    %c0_1568 = arith.constant 0 : index
    %c0_1569 = arith.constant 0 : index
    %c0_1570 = arith.constant 0 : index
    %1835 = vector.load %arg13[%c1_1566, %c1_1567, %c0_1568, %c0_1569, %c0_1570] : memref<2x2x2x9x18xf32, #tpu.memory_space<vmem>>, vector<1x1x1x8x16xf32>
    %1836 = vector.shape_cast %1835 : vector<1x1x1x8x16xf32> to vector<8x16xf32>
    %1837 = vector.broadcast %1834 : f32 to vector<8x16xf32>
    %1838 = arith.mulf %1837, %1836 : vector<8x16xf32>
    %1839 = arith.addf %1833, %1838 : vector<8x16xf32>
    %c37_1571 = arith.constant 37 : index
    %1840 = memref.load %arg3[%c37_1571] : memref<72xf32, #tpu.memory_space<smem>>
    %c1_1572 = arith.constant 1 : index
    %c0_1573 = arith.constant 0 : index
    %c0_1574 = arith.constant 0 : index
    %c0_1575 = arith.constant 0 : index
    %c2_1576 = arith.constant 2 : index
    %1841 = vector.load %arg13[%c1_1572, %c0_1573, %c0_1574, %c0_1575, %c2_1576] : memref<2x2x2x9x18xf32, #tpu.memory_space<vmem>>, vector<1x1x1x8x16xf32>
    %1842 = vector.shape_cast %1841 : vector<1x1x1x8x16xf32> to vector<8x16xf32>
    %1843 = vector.broadcast %1840 : f32 to vector<8x16xf32>
    %1844 = arith.mulf %1843, %1842 : vector<8x16xf32>
    %1845 = arith.addf %1839, %1844 : vector<8x16xf32>
    %c38_1577 = arith.constant 38 : index
    %1846 = memref.load %arg3[%c38_1577] : memref<72xf32, #tpu.memory_space<smem>>
    %c1_1578 = arith.constant 1 : index
    %c1_1579 = arith.constant 1 : index
    %c0_1580 = arith.constant 0 : index
    %c0_1581 = arith.constant 0 : index
    %c2_1582 = arith.constant 2 : index
    %1847 = vector.load %arg13[%c1_1578, %c1_1579, %c0_1580, %c0_1581, %c2_1582] : memref<2x2x2x9x18xf32, #tpu.memory_space<vmem>>, vector<1x1x1x8x16xf32>
    %1848 = vector.shape_cast %1847 : vector<1x1x1x8x16xf32> to vector<8x16xf32>
    %1849 = vector.broadcast %1846 : f32 to vector<8x16xf32>
    %1850 = arith.mulf %1849, %1848 : vector<8x16xf32>
    %1851 = arith.addf %1845, %1850 : vector<8x16xf32>
    %c39_1583 = arith.constant 39 : index
    %1852 = memref.load %arg3[%c39_1583] : memref<72xf32, #tpu.memory_space<smem>>
    %c0_1584 = arith.constant 0 : index
    %c1_1585 = arith.constant 1 : index
    %c0_1586 = arith.constant 0 : index
    %c1_1587 = arith.constant 1 : index
    %c0_1588 = arith.constant 0 : index
    %1853 = vector.load %arg13[%c0_1584, %c1_1585, %c0_1586, %c1_1587, %c0_1588] : memref<2x2x2x9x18xf32, #tpu.memory_space<vmem>>, vector<1x1x1x8x16xf32>
    %1854 = vector.shape_cast %1853 : vector<1x1x1x8x16xf32> to vector<8x16xf32>
    %1855 = vector.broadcast %1852 : f32 to vector<8x16xf32>
    %1856 = arith.mulf %1855, %1854 : vector<8x16xf32>
    %1857 = arith.addf %1851, %1856 : vector<8x16xf32>
    %c40_1589 = arith.constant 40 : index
    %1858 = memref.load %arg3[%c40_1589] : memref<72xf32, #tpu.memory_space<smem>>
    %c0_1590 = arith.constant 0 : index
    %c0_1591 = arith.constant 0 : index
    %c0_1592 = arith.constant 0 : index
    %c1_1593 = arith.constant 1 : index
    %c2_1594 = arith.constant 2 : index
    %1859 = vector.load %arg13[%c0_1590, %c0_1591, %c0_1592, %c1_1593, %c2_1594] : memref<2x2x2x9x18xf32, #tpu.memory_space<vmem>>, vector<1x1x1x8x16xf32>
    %1860 = vector.shape_cast %1859 : vector<1x1x1x8x16xf32> to vector<8x16xf32>
    %1861 = vector.broadcast %1858 : f32 to vector<8x16xf32>
    %1862 = arith.mulf %1861, %1860 : vector<8x16xf32>
    %1863 = arith.addf %1857, %1862 : vector<8x16xf32>
    %c41_1595 = arith.constant 41 : index
    %1864 = memref.load %arg3[%c41_1595] : memref<72xf32, #tpu.memory_space<smem>>
    %c0_1596 = arith.constant 0 : index
    %c1_1597 = arith.constant 1 : index
    %c0_1598 = arith.constant 0 : index
    %c1_1599 = arith.constant 1 : index
    %c2_1600 = arith.constant 2 : index
    %1865 = vector.load %arg13[%c0_1596, %c1_1597, %c0_1598, %c1_1599, %c2_1600] : memref<2x2x2x9x18xf32, #tpu.memory_space<vmem>>, vector<1x1x1x8x16xf32>
    %1866 = vector.shape_cast %1865 : vector<1x1x1x8x16xf32> to vector<8x16xf32>
    %1867 = vector.broadcast %1864 : f32 to vector<8x16xf32>
    %1868 = arith.mulf %1867, %1866 : vector<8x16xf32>
    %1869 = arith.addf %1863, %1868 : vector<8x16xf32>
    %c42_1601 = arith.constant 42 : index
    %1870 = memref.load %arg3[%c42_1601] : memref<72xf32, #tpu.memory_space<smem>>
    %c1_1602 = arith.constant 1 : index
    %c1_1603 = arith.constant 1 : index
    %c0_1604 = arith.constant 0 : index
    %c1_1605 = arith.constant 1 : index
    %c0_1606 = arith.constant 0 : index
    %1871 = vector.load %arg13[%c1_1602, %c1_1603, %c0_1604, %c1_1605, %c0_1606] : memref<2x2x2x9x18xf32, #tpu.memory_space<vmem>>, vector<1x1x1x8x16xf32>
    %1872 = vector.shape_cast %1871 : vector<1x1x1x8x16xf32> to vector<8x16xf32>
    %1873 = vector.broadcast %1870 : f32 to vector<8x16xf32>
    %1874 = arith.mulf %1873, %1872 : vector<8x16xf32>
    %1875 = arith.addf %1869, %1874 : vector<8x16xf32>
    %c43_1607 = arith.constant 43 : index
    %1876 = memref.load %arg3[%c43_1607] : memref<72xf32, #tpu.memory_space<smem>>
    %c1_1608 = arith.constant 1 : index
    %c0_1609 = arith.constant 0 : index
    %c0_1610 = arith.constant 0 : index
    %c1_1611 = arith.constant 1 : index
    %c2_1612 = arith.constant 2 : index
    %1877 = vector.load %arg13[%c1_1608, %c0_1609, %c0_1610, %c1_1611, %c2_1612] : memref<2x2x2x9x18xf32, #tpu.memory_space<vmem>>, vector<1x1x1x8x16xf32>
    %1878 = vector.shape_cast %1877 : vector<1x1x1x8x16xf32> to vector<8x16xf32>
    %1879 = vector.broadcast %1876 : f32 to vector<8x16xf32>
    %1880 = arith.mulf %1879, %1878 : vector<8x16xf32>
    %1881 = arith.addf %1875, %1880 : vector<8x16xf32>
    %c44_1613 = arith.constant 44 : index
    %1882 = memref.load %arg3[%c44_1613] : memref<72xf32, #tpu.memory_space<smem>>
    %c1_1614 = arith.constant 1 : index
    %c1_1615 = arith.constant 1 : index
    %c0_1616 = arith.constant 0 : index
    %c1_1617 = arith.constant 1 : index
    %c2_1618 = arith.constant 2 : index
    %1883 = vector.load %arg13[%c1_1614, %c1_1615, %c0_1616, %c1_1617, %c2_1618] : memref<2x2x2x9x18xf32, #tpu.memory_space<vmem>>, vector<1x1x1x8x16xf32>
    %1884 = vector.shape_cast %1883 : vector<1x1x1x8x16xf32> to vector<8x16xf32>
    %1885 = vector.broadcast %1882 : f32 to vector<8x16xf32>
    %1886 = arith.mulf %1885, %1884 : vector<8x16xf32>
    %1887 = arith.addf %1881, %1886 : vector<8x16xf32>
    %c45_1619 = arith.constant 45 : index
    %1888 = memref.load %arg3[%c45_1619] : memref<72xf32, #tpu.memory_space<smem>>
    %c1_1620 = arith.constant 1 : index
    %c1_1621 = arith.constant 1 : index
    %c1_1622 = arith.constant 1 : index
    %c0_1623 = arith.constant 0 : index
    %c0_1624 = arith.constant 0 : index
    %1889 = vector.load %arg13[%c1_1620, %c1_1621, %c1_1622, %c0_1623, %c0_1624] : memref<2x2x2x9x18xf32, #tpu.memory_space<vmem>>, vector<1x1x1x8x16xf32>
    %1890 = vector.shape_cast %1889 : vector<1x1x1x8x16xf32> to vector<8x16xf32>
    %1891 = vector.broadcast %1888 : f32 to vector<8x16xf32>
    %1892 = arith.mulf %1891, %1890 : vector<8x16xf32>
    %1893 = arith.addf %1887, %1892 : vector<8x16xf32>
    %c46_1625 = arith.constant 46 : index
    %1894 = memref.load %arg3[%c46_1625] : memref<72xf32, #tpu.memory_space<smem>>
    %c1_1626 = arith.constant 1 : index
    %c0_1627 = arith.constant 0 : index
    %c1_1628 = arith.constant 1 : index
    %c0_1629 = arith.constant 0 : index
    %c2_1630 = arith.constant 2 : index
    %1895 = vector.load %arg13[%c1_1626, %c0_1627, %c1_1628, %c0_1629, %c2_1630] : memref<2x2x2x9x18xf32, #tpu.memory_space<vmem>>, vector<1x1x1x8x16xf32>
    %1896 = vector.shape_cast %1895 : vector<1x1x1x8x16xf32> to vector<8x16xf32>
    %1897 = vector.broadcast %1894 : f32 to vector<8x16xf32>
    %1898 = arith.mulf %1897, %1896 : vector<8x16xf32>
    %1899 = arith.addf %1893, %1898 : vector<8x16xf32>
    %c47_1631 = arith.constant 47 : index
    %1900 = memref.load %arg3[%c47_1631] : memref<72xf32, #tpu.memory_space<smem>>
    %c1_1632 = arith.constant 1 : index
    %c1_1633 = arith.constant 1 : index
    %c1_1634 = arith.constant 1 : index
    %c0_1635 = arith.constant 0 : index
    %c2_1636 = arith.constant 2 : index
    %1901 = vector.load %arg13[%c1_1632, %c1_1633, %c1_1634, %c0_1635, %c2_1636] : memref<2x2x2x9x18xf32, #tpu.memory_space<vmem>>, vector<1x1x1x8x16xf32>
    %1902 = vector.shape_cast %1901 : vector<1x1x1x8x16xf32> to vector<8x16xf32>
    %1903 = vector.broadcast %1900 : f32 to vector<8x16xf32>
    %1904 = arith.mulf %1903, %1902 : vector<8x16xf32>
    %1905 = arith.addf %1899, %1904 : vector<8x16xf32>
    %c48_1637 = arith.constant 48 : index
    %1906 = memref.load %arg3[%c48_1637] : memref<72xf32, #tpu.memory_space<smem>>
    %c0_1638 = arith.constant 0 : index
    %c1_1639 = arith.constant 1 : index
    %c1_1640 = arith.constant 1 : index
    %c1_1641 = arith.constant 1 : index
    %c0_1642 = arith.constant 0 : index
    %1907 = vector.load %arg13[%c0_1638, %c1_1639, %c1_1640, %c1_1641, %c0_1642] : memref<2x2x2x9x18xf32, #tpu.memory_space<vmem>>, vector<1x1x1x8x16xf32>
    %1908 = vector.shape_cast %1907 : vector<1x1x1x8x16xf32> to vector<8x16xf32>
    %1909 = vector.broadcast %1906 : f32 to vector<8x16xf32>
    %1910 = arith.mulf %1909, %1908 : vector<8x16xf32>
    %1911 = arith.addf %1905, %1910 : vector<8x16xf32>
    %c49_1643 = arith.constant 49 : index
    %1912 = memref.load %arg3[%c49_1643] : memref<72xf32, #tpu.memory_space<smem>>
    %c0_1644 = arith.constant 0 : index
    %c0_1645 = arith.constant 0 : index
    %c1_1646 = arith.constant 1 : index
    %c1_1647 = arith.constant 1 : index
    %c2_1648 = arith.constant 2 : index
    %1913 = vector.load %arg13[%c0_1644, %c0_1645, %c1_1646, %c1_1647, %c2_1648] : memref<2x2x2x9x18xf32, #tpu.memory_space<vmem>>, vector<1x1x1x8x16xf32>
    %1914 = vector.shape_cast %1913 : vector<1x1x1x8x16xf32> to vector<8x16xf32>
    %1915 = vector.broadcast %1912 : f32 to vector<8x16xf32>
    %1916 = arith.mulf %1915, %1914 : vector<8x16xf32>
    %1917 = arith.addf %1911, %1916 : vector<8x16xf32>
    %c50_1649 = arith.constant 50 : index
    %1918 = memref.load %arg3[%c50_1649] : memref<72xf32, #tpu.memory_space<smem>>
    %c0_1650 = arith.constant 0 : index
    %c1_1651 = arith.constant 1 : index
    %c1_1652 = arith.constant 1 : index
    %c1_1653 = arith.constant 1 : index
    %c2_1654 = arith.constant 2 : index
    %1919 = vector.load %arg13[%c0_1650, %c1_1651, %c1_1652, %c1_1653, %c2_1654] : memref<2x2x2x9x18xf32, #tpu.memory_space<vmem>>, vector<1x1x1x8x16xf32>
    %1920 = vector.shape_cast %1919 : vector<1x1x1x8x16xf32> to vector<8x16xf32>
    %1921 = vector.broadcast %1918 : f32 to vector<8x16xf32>
    %1922 = arith.mulf %1921, %1920 : vector<8x16xf32>
    %1923 = arith.addf %1917, %1922 : vector<8x16xf32>
    %c51_1655 = arith.constant 51 : index
    %1924 = memref.load %arg3[%c51_1655] : memref<72xf32, #tpu.memory_space<smem>>
    %c1_1656 = arith.constant 1 : index
    %c1_1657 = arith.constant 1 : index
    %c1_1658 = arith.constant 1 : index
    %c1_1659 = arith.constant 1 : index
    %c0_1660 = arith.constant 0 : index
    %1925 = vector.load %arg13[%c1_1656, %c1_1657, %c1_1658, %c1_1659, %c0_1660] : memref<2x2x2x9x18xf32, #tpu.memory_space<vmem>>, vector<1x1x1x8x16xf32>
    %1926 = vector.shape_cast %1925 : vector<1x1x1x8x16xf32> to vector<8x16xf32>
    %1927 = vector.broadcast %1924 : f32 to vector<8x16xf32>
    %1928 = arith.mulf %1927, %1926 : vector<8x16xf32>
    %1929 = arith.addf %1923, %1928 : vector<8x16xf32>
    %c52_1661 = arith.constant 52 : index
    %1930 = memref.load %arg3[%c52_1661] : memref<72xf32, #tpu.memory_space<smem>>
    %c1_1662 = arith.constant 1 : index
    %c0_1663 = arith.constant 0 : index
    %c1_1664 = arith.constant 1 : index
    %c1_1665 = arith.constant 1 : index
    %c2_1666 = arith.constant 2 : index
    %1931 = vector.load %arg13[%c1_1662, %c0_1663, %c1_1664, %c1_1665, %c2_1666] : memref<2x2x2x9x18xf32, #tpu.memory_space<vmem>>, vector<1x1x1x8x16xf32>
    %1932 = vector.shape_cast %1931 : vector<1x1x1x8x16xf32> to vector<8x16xf32>
    %1933 = vector.broadcast %1930 : f32 to vector<8x16xf32>
    %1934 = arith.mulf %1933, %1932 : vector<8x16xf32>
    %1935 = arith.addf %1929, %1934 : vector<8x16xf32>
    %c53_1667 = arith.constant 53 : index
    %1936 = memref.load %arg3[%c53_1667] : memref<72xf32, #tpu.memory_space<smem>>
    %c1_1668 = arith.constant 1 : index
    %c1_1669 = arith.constant 1 : index
    %c1_1670 = arith.constant 1 : index
    %c1_1671 = arith.constant 1 : index
    %c2_1672 = arith.constant 2 : index
    %1937 = vector.load %arg13[%c1_1668, %c1_1669, %c1_1670, %c1_1671, %c2_1672] : memref<2x2x2x9x18xf32, #tpu.memory_space<vmem>>, vector<1x1x1x8x16xf32>
    %1938 = vector.shape_cast %1937 : vector<1x1x1x8x16xf32> to vector<8x16xf32>
    %1939 = vector.broadcast %1936 : f32 to vector<8x16xf32>
    %1940 = arith.mulf %1939, %1938 : vector<8x16xf32>
    %1941 = arith.addf %1935, %1940 : vector<8x16xf32>
    %1942 = arith.addf %1614, %1723 : vector<8x16xf32>
    %1943 = arith.addf %1942, %1832 : vector<8x16xf32>
    %1944 = arith.addf %1943, %1941 : vector<8x16xf32>
    %cst_1673 = arith.constant 2.500000e-01 : f32
    %1945 = vector.broadcast %cst_1673 : f32 to vector<8x16xf32>
    %1946 = arith.mulf %1945, %1944 : vector<8x16xf32>
    %1947 = arith.addf %1614, %540 : vector<8x16xf32>
    %1948 = arith.addf %1723, %540 : vector<8x16xf32>
    %1949 = arith.addf %1832, %540 : vector<8x16xf32>
    %1950 = arith.addf %1941, %540 : vector<8x16xf32>
    %1951 = tpu.concatenate %1947, %1948, %1949, %1950 in 1 : vector<8x16xf32>, vector<8x16xf32>, vector<8x16xf32>, vector<8x16xf32> -> vector<8x64xf32>
    %c2_1674 = arith.constant 2 : index
    %1952 = memref.load %arg7[%c2_1674] : memref<4xf32, #tpu.memory_space<smem>>
    %c2_1675 = arith.constant 2 : index
    %1953 = memref.load %arg8[%c2_1675] : memref<4xf32, #tpu.memory_space<smem>>
    %1954 = vector.shape_cast %1951 : vector<8x64xf32> to vector<1x8x64xf32>
    %cst_1676 = arith.constant dense<0.000000e+00> : vector<1xf32>
    %1955 = vector.multi_reduction <add>, %1954, %cst_1676 [1, 2] : vector<1x8x64xf32> to vector<1xf32>
    %1956 = vector.shape_cast %1955 : vector<1xf32> to vector<1x1x1xf32>
    %1957 = vector.extract %1956[0, 0, 0] : f32 from vector<1x1x1xf32>
    %cst_1677 = arith.constant 0.001953125 : f32
    %1958 = arith.mulf %1957, %cst_1677 : f32
    %1959 = vector.broadcast %1958 : f32 to vector<8x64xf32>
    %1960 = arith.subf %1951, %1959 : vector<8x64xf32>
    %1961 = arith.mulf %1960, %1960 : vector<8x64xf32>
    %1962 = vector.shape_cast %1961 : vector<8x64xf32> to vector<1x8x64xf32>
    %cst_1678 = arith.constant dense<0.000000e+00> : vector<1xf32>
    %1963 = vector.multi_reduction <add>, %1962, %cst_1678 [1, 2] : vector<1x8x64xf32> to vector<1xf32>
    %1964 = vector.shape_cast %1963 : vector<1xf32> to vector<1x1x1xf32>
    %1965 = vector.extract %1964[0, 0, 0] : f32 from vector<1x1x1xf32>
    %cst_1679 = arith.constant 0.001953125 : f32
    %1966 = arith.mulf %1965, %cst_1679 : f32
    %cst_1680 = arith.constant 9.99999974E-6 : f32
    %1967 = arith.addf %1966, %cst_1680 : f32
    %1968 = math.rsqrt %1967 : f32
    %1969 = vector.broadcast %1968 : f32 to vector<8x64xf32>
    %1970 = arith.mulf %1960, %1969 : vector<8x64xf32>
    %1971 = vector.broadcast %1952 : f32 to vector<8x64xf32>
    %1972 = arith.mulf %1970, %1971 : vector<8x64xf32>
    %1973 = vector.broadcast %1953 : f32 to vector<8x64xf32>
    %1974 = arith.addf %1972, %1973 : vector<8x64xf32>
    %cst_1681 = arith.constant 0.000000e+00 : f32
    %1975 = vector.broadcast %cst_1681 : f32 to vector<8x64xf32>
    %1976 = arith.maximumf %1974, %1975 : vector<8x64xf32>
    %c2_1682 = arith.constant 2 : index
    %c0_1683 = arith.constant 0 : index
    %c0_1684 = arith.constant 0 : index
    %1977 = vector.load %arg11[%c2_1682, %c0_1683, %c0_1684] : memref<4x8x64xf32, #tpu.memory_space<vmem>>, vector<1x8x64xf32>
    %1978 = vector.shape_cast %1977 : vector<1x8x64xf32> to vector<8x64xf32>
    %1979 = vector.shape_cast %1976 : vector<8x64xf32> to vector<1x8x64xf32>
    tpu.vector_store %arg11[%c2_1682, %c0_1683, %c0_1684], %1979 {strides = array<i32>} : memref<4x8x64xf32, #tpu.memory_space<vmem>>, vector<1x8x64xf32>,
    %cst_1685 = arith.constant 0.000000e+00 : f32
    %1980 = vector.broadcast %cst_1685 : f32 to vector<8x16xf32>
    %c54_1686 = arith.constant 54 : index
    %1981 = memref.load %arg3[%c54_1686] : memref<72xf32, #tpu.memory_space<smem>>
    %c0_1687 = arith.constant 0 : index
    %c0_1688 = arith.constant 0 : index
    %c0_1689 = arith.constant 0 : index
    %c0_1690 = arith.constant 0 : index
    %c0_1691 = arith.constant 0 : index
    %1982 = vector.load %arg13[%c0_1687, %c0_1688, %c0_1689, %c0_1690, %c0_1691] : memref<2x2x2x9x18xf32, #tpu.memory_space<vmem>>, vector<1x1x1x8x16xf32>
    %1983 = vector.shape_cast %1982 : vector<1x1x1x8x16xf32> to vector<8x16xf32>
    %1984 = vector.broadcast %1981 : f32 to vector<8x16xf32>
    %1985 = arith.mulf %1984, %1983 : vector<8x16xf32>
    %1986 = arith.addf %1980, %1985 : vector<8x16xf32>
    %c55_1692 = arith.constant 55 : index
    %1987 = memref.load %arg3[%c55_1692] : memref<72xf32, #tpu.memory_space<smem>>
    %c0_1693 = arith.constant 0 : index
    %c1_1694 = arith.constant 1 : index
    %c0_1695 = arith.constant 0 : index
    %c0_1696 = arith.constant 0 : index
    %c0_1697 = arith.constant 0 : index
    %1988 = vector.load %arg13[%c0_1693, %c1_1694, %c0_1695, %c0_1696, %c0_1697] : memref<2x2x2x9x18xf32, #tpu.memory_space<vmem>>, vector<1x1x1x8x16xf32>
    %1989 = vector.shape_cast %1988 : vector<1x1x1x8x16xf32> to vector<8x16xf32>
    %1990 = vector.broadcast %1987 : f32 to vector<8x16xf32>
    %1991 = arith.mulf %1990, %1989 : vector<8x16xf32>
    %1992 = arith.addf %1986, %1991 : vector<8x16xf32>
    %c56_1698 = arith.constant 56 : index
    %1993 = memref.load %arg3[%c56_1698] : memref<72xf32, #tpu.memory_space<smem>>
    %c0_1699 = arith.constant 0 : index
    %c0_1700 = arith.constant 0 : index
    %c0_1701 = arith.constant 0 : index
    %c0_1702 = arith.constant 0 : index
    %c2_1703 = arith.constant 2 : index
    %1994 = vector.load %arg13[%c0_1699, %c0_1700, %c0_1701, %c0_1702, %c2_1703] : memref<2x2x2x9x18xf32, #tpu.memory_space<vmem>>, vector<1x1x1x8x16xf32>
    %1995 = vector.shape_cast %1994 : vector<1x1x1x8x16xf32> to vector<8x16xf32>
    %1996 = vector.broadcast %1993 : f32 to vector<8x16xf32>
    %1997 = arith.mulf %1996, %1995 : vector<8x16xf32>
    %1998 = arith.addf %1992, %1997 : vector<8x16xf32>
    %c57_1704 = arith.constant 57 : index
    %1999 = memref.load %arg3[%c57_1704] : memref<72xf32, #tpu.memory_space<smem>>
    %c1_1705 = arith.constant 1 : index
    %c0_1706 = arith.constant 0 : index
    %c0_1707 = arith.constant 0 : index
    %c0_1708 = arith.constant 0 : index
    %c0_1709 = arith.constant 0 : index
    %2000 = vector.load %arg13[%c1_1705, %c0_1706, %c0_1707, %c0_1708, %c0_1709] : memref<2x2x2x9x18xf32, #tpu.memory_space<vmem>>, vector<1x1x1x8x16xf32>
    %2001 = vector.shape_cast %2000 : vector<1x1x1x8x16xf32> to vector<8x16xf32>
    %2002 = vector.broadcast %1999 : f32 to vector<8x16xf32>
    %2003 = arith.mulf %2002, %2001 : vector<8x16xf32>
    %2004 = arith.addf %1998, %2003 : vector<8x16xf32>
    %c58_1710 = arith.constant 58 : index
    %2005 = memref.load %arg3[%c58_1710] : memref<72xf32, #tpu.memory_space<smem>>
    %c1_1711 = arith.constant 1 : index
    %c1_1712 = arith.constant 1 : index
    %c0_1713 = arith.constant 0 : index
    %c0_1714 = arith.constant 0 : index
    %c0_1715 = arith.constant 0 : index
    %2006 = vector.load %arg13[%c1_1711, %c1_1712, %c0_1713, %c0_1714, %c0_1715] : memref<2x2x2x9x18xf32, #tpu.memory_space<vmem>>, vector<1x1x1x8x16xf32>
    %2007 = vector.shape_cast %2006 : vector<1x1x1x8x16xf32> to vector<8x16xf32>
    %2008 = vector.broadcast %2005 : f32 to vector<8x16xf32>
    %2009 = arith.mulf %2008, %2007 : vector<8x16xf32>
    %2010 = arith.addf %2004, %2009 : vector<8x16xf32>
    %c59_1716 = arith.constant 59 : index
    %2011 = memref.load %arg3[%c59_1716] : memref<72xf32, #tpu.memory_space<smem>>
    %c1_1717 = arith.constant 1 : index
    %c0_1718 = arith.constant 0 : index
    %c0_1719 = arith.constant 0 : index
    %c0_1720 = arith.constant 0 : index
    %c2_1721 = arith.constant 2 : index
    %2012 = vector.load %arg13[%c1_1717, %c0_1718, %c0_1719, %c0_1720, %c2_1721] : memref<2x2x2x9x18xf32, #tpu.memory_space<vmem>>, vector<1x1x1x8x16xf32>
    %2013 = vector.shape_cast %2012 : vector<1x1x1x8x16xf32> to vector<8x16xf32>
    %2014 = vector.broadcast %2011 : f32 to vector<8x16xf32>
    %2015 = arith.mulf %2014, %2013 : vector<8x16xf32>
    %2016 = arith.addf %2010, %2015 : vector<8x16xf32>
    %c60_1722 = arith.constant 60 : index
    %2017 = memref.load %arg3[%c60_1722] : memref<72xf32, #tpu.memory_space<smem>>
    %c0_1723 = arith.constant 0 : index
    %c0_1724 = arith.constant 0 : index
    %c0_1725 = arith.constant 0 : index
    %c1_1726 = arith.constant 1 : index
    %c0_1727 = arith.constant 0 : index
    %2018 = vector.load %arg13[%c0_1723, %c0_1724, %c0_1725, %c1_1726, %c0_1727] : memref<2x2x2x9x18xf32, #tpu.memory_space<vmem>>, vector<1x1x1x8x16xf32>
    %2019 = vector.shape_cast %2018 : vector<1x1x1x8x16xf32> to vector<8x16xf32>
    %2020 = vector.broadcast %2017 : f32 to vector<8x16xf32>
    %2021 = arith.mulf %2020, %2019 : vector<8x16xf32>
    %2022 = arith.addf %2016, %2021 : vector<8x16xf32>
    %c61_1728 = arith.constant 61 : index
    %2023 = memref.load %arg3[%c61_1728] : memref<72xf32, #tpu.memory_space<smem>>
    %c0_1729 = arith.constant 0 : index
    %c1_1730 = arith.constant 1 : index
    %c0_1731 = arith.constant 0 : index
    %c1_1732 = arith.constant 1 : index
    %c0_1733 = arith.constant 0 : index
    %2024 = vector.load %arg13[%c0_1729, %c1_1730, %c0_1731, %c1_1732, %c0_1733] : memref<2x2x2x9x18xf32, #tpu.memory_space<vmem>>, vector<1x1x1x8x16xf32>
    %2025 = vector.shape_cast %2024 : vector<1x1x1x8x16xf32> to vector<8x16xf32>
    %2026 = vector.broadcast %2023 : f32 to vector<8x16xf32>
    %2027 = arith.mulf %2026, %2025 : vector<8x16xf32>
    %2028 = arith.addf %2022, %2027 : vector<8x16xf32>
    %c62_1734 = arith.constant 62 : index
    %2029 = memref.load %arg3[%c62_1734] : memref<72xf32, #tpu.memory_space<smem>>
    %c0_1735 = arith.constant 0 : index
    %c0_1736 = arith.constant 0 : index
    %c0_1737 = arith.constant 0 : index
    %c1_1738 = arith.constant 1 : index
    %c2_1739 = arith.constant 2 : index
    %2030 = vector.load %arg13[%c0_1735, %c0_1736, %c0_1737, %c1_1738, %c2_1739] : memref<2x2x2x9x18xf32, #tpu.memory_space<vmem>>, vector<1x1x1x8x16xf32>
    %2031 = vector.shape_cast %2030 : vector<1x1x1x8x16xf32> to vector<8x16xf32>
    %2032 = vector.broadcast %2029 : f32 to vector<8x16xf32>
    %2033 = arith.mulf %2032, %2031 : vector<8x16xf32>
    %2034 = arith.addf %2028, %2033 : vector<8x16xf32>
    %c63_1740 = arith.constant 63 : index
    %2035 = memref.load %arg3[%c63_1740] : memref<72xf32, #tpu.memory_space<smem>>
    %c0_1741 = arith.constant 0 : index
    %c0_1742 = arith.constant 0 : index
    %c1_1743 = arith.constant 1 : index
    %c0_1744 = arith.constant 0 : index
    %c0_1745 = arith.constant 0 : index
    %2036 = vector.load %arg13[%c0_1741, %c0_1742, %c1_1743, %c0_1744, %c0_1745] : memref<2x2x2x9x18xf32, #tpu.memory_space<vmem>>, vector<1x1x1x8x16xf32>
    %2037 = vector.shape_cast %2036 : vector<1x1x1x8x16xf32> to vector<8x16xf32>
    %2038 = vector.broadcast %2035 : f32 to vector<8x16xf32>
    %2039 = arith.mulf %2038, %2037 : vector<8x16xf32>
    %2040 = arith.addf %2034, %2039 : vector<8x16xf32>
    %c64_1746 = arith.constant 64 : index
    %2041 = memref.load %arg3[%c64_1746] : memref<72xf32, #tpu.memory_space<smem>>
    %c0_1747 = arith.constant 0 : index
    %c1_1748 = arith.constant 1 : index
    %c1_1749 = arith.constant 1 : index
    %c0_1750 = arith.constant 0 : index
    %c0_1751 = arith.constant 0 : index
    %2042 = vector.load %arg13[%c0_1747, %c1_1748, %c1_1749, %c0_1750, %c0_1751] : memref<2x2x2x9x18xf32, #tpu.memory_space<vmem>>, vector<1x1x1x8x16xf32>
    %2043 = vector.shape_cast %2042 : vector<1x1x1x8x16xf32> to vector<8x16xf32>
    %2044 = vector.broadcast %2041 : f32 to vector<8x16xf32>
    %2045 = arith.mulf %2044, %2043 : vector<8x16xf32>
    %2046 = arith.addf %2040, %2045 : vector<8x16xf32>
    %c65_1752 = arith.constant 65 : index
    %2047 = memref.load %arg3[%c65_1752] : memref<72xf32, #tpu.memory_space<smem>>
    %c0_1753 = arith.constant 0 : index
    %c0_1754 = arith.constant 0 : index
    %c1_1755 = arith.constant 1 : index
    %c0_1756 = arith.constant 0 : index
    %c2_1757 = arith.constant 2 : index
    %2048 = vector.load %arg13[%c0_1753, %c0_1754, %c1_1755, %c0_1756, %c2_1757] : memref<2x2x2x9x18xf32, #tpu.memory_space<vmem>>, vector<1x1x1x8x16xf32>
    %2049 = vector.shape_cast %2048 : vector<1x1x1x8x16xf32> to vector<8x16xf32>
    %2050 = vector.broadcast %2047 : f32 to vector<8x16xf32>
    %2051 = arith.mulf %2050, %2049 : vector<8x16xf32>
    %2052 = arith.addf %2046, %2051 : vector<8x16xf32>
    %c66_1758 = arith.constant 66 : index
    %2053 = memref.load %arg3[%c66_1758] : memref<72xf32, #tpu.memory_space<smem>>
    %c1_1759 = arith.constant 1 : index
    %c0_1760 = arith.constant 0 : index
    %c1_1761 = arith.constant 1 : index
    %c0_1762 = arith.constant 0 : index
    %c0_1763 = arith.constant 0 : index
    %2054 = vector.load %arg13[%c1_1759, %c0_1760, %c1_1761, %c0_1762, %c0_1763] : memref<2x2x2x9x18xf32, #tpu.memory_space<vmem>>, vector<1x1x1x8x16xf32>
    %2055 = vector.shape_cast %2054 : vector<1x1x1x8x16xf32> to vector<8x16xf32>
    %2056 = vector.broadcast %2053 : f32 to vector<8x16xf32>
    %2057 = arith.mulf %2056, %2055 : vector<8x16xf32>
    %2058 = arith.addf %2052, %2057 : vector<8x16xf32>
    %c67_1764 = arith.constant 67 : index
    %2059 = memref.load %arg3[%c67_1764] : memref<72xf32, #tpu.memory_space<smem>>
    %c1_1765 = arith.constant 1 : index
    %c1_1766 = arith.constant 1 : index
    %c1_1767 = arith.constant 1 : index
    %c0_1768 = arith.constant 0 : index
    %c0_1769 = arith.constant 0 : index
    %2060 = vector.load %arg13[%c1_1765, %c1_1766, %c1_1767, %c0_1768, %c0_1769] : memref<2x2x2x9x18xf32, #tpu.memory_space<vmem>>, vector<1x1x1x8x16xf32>
    %2061 = vector.shape_cast %2060 : vector<1x1x1x8x16xf32> to vector<8x16xf32>
    %2062 = vector.broadcast %2059 : f32 to vector<8x16xf32>
    %2063 = arith.mulf %2062, %2061 : vector<8x16xf32>
    %2064 = arith.addf %2058, %2063 : vector<8x16xf32>
    %c68_1770 = arith.constant 68 : index
    %2065 = memref.load %arg3[%c68_1770] : memref<72xf32, #tpu.memory_space<smem>>
    %c1_1771 = arith.constant 1 : index
    %c0_1772 = arith.constant 0 : index
    %c1_1773 = arith.constant 1 : index
    %c0_1774 = arith.constant 0 : index
    %c2_1775 = arith.constant 2 : index
    %2066 = vector.load %arg13[%c1_1771, %c0_1772, %c1_1773, %c0_1774, %c2_1775] : memref<2x2x2x9x18xf32, #tpu.memory_space<vmem>>, vector<1x1x1x8x16xf32>
    %2067 = vector.shape_cast %2066 : vector<1x1x1x8x16xf32> to vector<8x16xf32>
    %2068 = vector.broadcast %2065 : f32 to vector<8x16xf32>
    %2069 = arith.mulf %2068, %2067 : vector<8x16xf32>
    %2070 = arith.addf %2064, %2069 : vector<8x16xf32>
    %c69_1776 = arith.constant 69 : index
    %2071 = memref.load %arg3[%c69_1776] : memref<72xf32, #tpu.memory_space<smem>>
    %c0_1777 = arith.constant 0 : index
    %c0_1778 = arith.constant 0 : index
    %c1_1779 = arith.constant 1 : index
    %c1_1780 = arith.constant 1 : index
    %c0_1781 = arith.constant 0 : index
    %2072 = vector.load %arg13[%c0_1777, %c0_1778, %c1_1779, %c1_1780, %c0_1781] : memref<2x2x2x9x18xf32, #tpu.memory_space<vmem>>, vector<1x1x1x8x16xf32>
    %2073 = vector.shape_cast %2072 : vector<1x1x1x8x16xf32> to vector<8x16xf32>
    %2074 = vector.broadcast %2071 : f32 to vector<8x16xf32>
    %2075 = arith.mulf %2074, %2073 : vector<8x16xf32>
    %2076 = arith.addf %2070, %2075 : vector<8x16xf32>
    %c70_1782 = arith.constant 70 : index
    %2077 = memref.load %arg3[%c70_1782] : memref<72xf32, #tpu.memory_space<smem>>
    %c0_1783 = arith.constant 0 : index
    %c1_1784 = arith.constant 1 : index
    %c1_1785 = arith.constant 1 : index
    %c1_1786 = arith.constant 1 : index
    %c0_1787 = arith.constant 0 : index
    %2078 = vector.load %arg13[%c0_1783, %c1_1784, %c1_1785, %c1_1786, %c0_1787] : memref<2x2x2x9x18xf32, #tpu.memory_space<vmem>>, vector<1x1x1x8x16xf32>
    %2079 = vector.shape_cast %2078 : vector<1x1x1x8x16xf32> to vector<8x16xf32>
    %2080 = vector.broadcast %2077 : f32 to vector<8x16xf32>
    %2081 = arith.mulf %2080, %2079 : vector<8x16xf32>
    %2082 = arith.addf %2076, %2081 : vector<8x16xf32>
    %c71_1788 = arith.constant 71 : index
    %2083 = memref.load %arg3[%c71_1788] : memref<72xf32, #tpu.memory_space<smem>>
    %c0_1789 = arith.constant 0 : index
    %c0_1790 = arith.constant 0 : index
    %c1_1791 = arith.constant 1 : index
    %c1_1792 = arith.constant 1 : index
    %c2_1793 = arith.constant 2 : index
    %2084 = vector.load %arg13[%c0_1789, %c0_1790, %c1_1791, %c1_1792, %c2_1793] : memref<2x2x2x9x18xf32, #tpu.memory_space<vmem>>, vector<1x1x1x8x16xf32>
    %2085 = vector.shape_cast %2084 : vector<1x1x1x8x16xf32> to vector<8x16xf32>
    %2086 = vector.broadcast %2083 : f32 to vector<8x16xf32>
    %2087 = arith.mulf %2086, %2085 : vector<8x16xf32>
    %2088 = arith.addf %2082, %2087 : vector<8x16xf32>
    %cst_1794 = arith.constant 0.000000e+00 : f32
    %2089 = vector.broadcast %cst_1794 : f32 to vector<8x16xf32>
    %c54_1795 = arith.constant 54 : index
    %2090 = memref.load %arg3[%c54_1795] : memref<72xf32, #tpu.memory_space<smem>>
    %c0_1796 = arith.constant 0 : index
    %c1_1797 = arith.constant 1 : index
    %c0_1798 = arith.constant 0 : index
    %c0_1799 = arith.constant 0 : index
    %c0_1800 = arith.constant 0 : index
    %2091 = vector.load %arg13[%c0_1796, %c1_1797, %c0_1798, %c0_1799, %c0_1800] : memref<2x2x2x9x18xf32, #tpu.memory_space<vmem>>, vector<1x1x1x8x16xf32>
    %2092 = vector.shape_cast %2091 : vector<1x1x1x8x16xf32> to vector<8x16xf32>
    %2093 = vector.broadcast %2090 : f32 to vector<8x16xf32>
    %2094 = arith.mulf %2093, %2092 : vector<8x16xf32>
    %2095 = arith.addf %2089, %2094 : vector<8x16xf32>
    %c55_1801 = arith.constant 55 : index
    %2096 = memref.load %arg3[%c55_1801] : memref<72xf32, #tpu.memory_space<smem>>
    %c0_1802 = arith.constant 0 : index
    %c0_1803 = arith.constant 0 : index
    %c0_1804 = arith.constant 0 : index
    %c0_1805 = arith.constant 0 : index
    %c2_1806 = arith.constant 2 : index
    %2097 = vector.load %arg13[%c0_1802, %c0_1803, %c0_1804, %c0_1805, %c2_1806] : memref<2x2x2x9x18xf32, #tpu.memory_space<vmem>>, vector<1x1x1x8x16xf32>
    %2098 = vector.shape_cast %2097 : vector<1x1x1x8x16xf32> to vector<8x16xf32>
    %2099 = vector.broadcast %2096 : f32 to vector<8x16xf32>
    %2100 = arith.mulf %2099, %2098 : vector<8x16xf32>
    %2101 = arith.addf %2095, %2100 : vector<8x16xf32>
    %c56_1807 = arith.constant 56 : index
    %2102 = memref.load %arg3[%c56_1807] : memref<72xf32, #tpu.memory_space<smem>>
    %c0_1808 = arith.constant 0 : index
    %c1_1809 = arith.constant 1 : index
    %c0_1810 = arith.constant 0 : index
    %c0_1811 = arith.constant 0 : index
    %c2_1812 = arith.constant 2 : index
    %2103 = vector.load %arg13[%c0_1808, %c1_1809, %c0_1810, %c0_1811, %c2_1812] : memref<2x2x2x9x18xf32, #tpu.memory_space<vmem>>, vector<1x1x1x8x16xf32>
    %2104 = vector.shape_cast %2103 : vector<1x1x1x8x16xf32> to vector<8x16xf32>
    %2105 = vector.broadcast %2102 : f32 to vector<8x16xf32>
    %2106 = arith.mulf %2105, %2104 : vector<8x16xf32>
    %2107 = arith.addf %2101, %2106 : vector<8x16xf32>
    %c57_1813 = arith.constant 57 : index
    %2108 = memref.load %arg3[%c57_1813] : memref<72xf32, #tpu.memory_space<smem>>
    %c1_1814 = arith.constant 1 : index
    %c1_1815 = arith.constant 1 : index
    %c0_1816 = arith.constant 0 : index
    %c0_1817 = arith.constant 0 : index
    %c0_1818 = arith.constant 0 : index
    %2109 = vector.load %arg13[%c1_1814, %c1_1815, %c0_1816, %c0_1817, %c0_1818] : memref<2x2x2x9x18xf32, #tpu.memory_space<vmem>>, vector<1x1x1x8x16xf32>
    %2110 = vector.shape_cast %2109 : vector<1x1x1x8x16xf32> to vector<8x16xf32>
    %2111 = vector.broadcast %2108 : f32 to vector<8x16xf32>
    %2112 = arith.mulf %2111, %2110 : vector<8x16xf32>
    %2113 = arith.addf %2107, %2112 : vector<8x16xf32>
    %c58_1819 = arith.constant 58 : index
    %2114 = memref.load %arg3[%c58_1819] : memref<72xf32, #tpu.memory_space<smem>>
    %c1_1820 = arith.constant 1 : index
    %c0_1821 = arith.constant 0 : index
    %c0_1822 = arith.constant 0 : index
    %c0_1823 = arith.constant 0 : index
    %c2_1824 = arith.constant 2 : index
    %2115 = vector.load %arg13[%c1_1820, %c0_1821, %c0_1822, %c0_1823, %c2_1824] : memref<2x2x2x9x18xf32, #tpu.memory_space<vmem>>, vector<1x1x1x8x16xf32>
    %2116 = vector.shape_cast %2115 : vector<1x1x1x8x16xf32> to vector<8x16xf32>
    %2117 = vector.broadcast %2114 : f32 to vector<8x16xf32>
    %2118 = arith.mulf %2117, %2116 : vector<8x16xf32>
    %2119 = arith.addf %2113, %2118 : vector<8x16xf32>
    %c59_1825 = arith.constant 59 : index
    %2120 = memref.load %arg3[%c59_1825] : memref<72xf32, #tpu.memory_space<smem>>
    %c1_1826 = arith.constant 1 : index
    %c1_1827 = arith.constant 1 : index
    %c0_1828 = arith.constant 0 : index
    %c0_1829 = arith.constant 0 : index
    %c2_1830 = arith.constant 2 : index
    %2121 = vector.load %arg13[%c1_1826, %c1_1827, %c0_1828, %c0_1829, %c2_1830] : memref<2x2x2x9x18xf32, #tpu.memory_space<vmem>>, vector<1x1x1x8x16xf32>
    %2122 = vector.shape_cast %2121 : vector<1x1x1x8x16xf32> to vector<8x16xf32>
    %2123 = vector.broadcast %2120 : f32 to vector<8x16xf32>
    %2124 = arith.mulf %2123, %2122 : vector<8x16xf32>
    %2125 = arith.addf %2119, %2124 : vector<8x16xf32>
    %c60_1831 = arith.constant 60 : index
    %2126 = memref.load %arg3[%c60_1831] : memref<72xf32, #tpu.memory_space<smem>>
    %c0_1832 = arith.constant 0 : index
    %c1_1833 = arith.constant 1 : index
    %c0_1834 = arith.constant 0 : index
    %c1_1835 = arith.constant 1 : index
    %c0_1836 = arith.constant 0 : index
    %2127 = vector.load %arg13[%c0_1832, %c1_1833, %c0_1834, %c1_1835, %c0_1836] : memref<2x2x2x9x18xf32, #tpu.memory_space<vmem>>, vector<1x1x1x8x16xf32>
    %2128 = vector.shape_cast %2127 : vector<1x1x1x8x16xf32> to vector<8x16xf32>
    %2129 = vector.broadcast %2126 : f32 to vector<8x16xf32>
    %2130 = arith.mulf %2129, %2128 : vector<8x16xf32>
    %2131 = arith.addf %2125, %2130 : vector<8x16xf32>
    %c61_1837 = arith.constant 61 : index
    %2132 = memref.load %arg3[%c61_1837] : memref<72xf32, #tpu.memory_space<smem>>
    %c0_1838 = arith.constant 0 : index
    %c0_1839 = arith.constant 0 : index
    %c0_1840 = arith.constant 0 : index
    %c1_1841 = arith.constant 1 : index
    %c2_1842 = arith.constant 2 : index
    %2133 = vector.load %arg13[%c0_1838, %c0_1839, %c0_1840, %c1_1841, %c2_1842] : memref<2x2x2x9x18xf32, #tpu.memory_space<vmem>>, vector<1x1x1x8x16xf32>
    %2134 = vector.shape_cast %2133 : vector<1x1x1x8x16xf32> to vector<8x16xf32>
    %2135 = vector.broadcast %2132 : f32 to vector<8x16xf32>
    %2136 = arith.mulf %2135, %2134 : vector<8x16xf32>
    %2137 = arith.addf %2131, %2136 : vector<8x16xf32>
    %c62_1843 = arith.constant 62 : index
    %2138 = memref.load %arg3[%c62_1843] : memref<72xf32, #tpu.memory_space<smem>>
    %c0_1844 = arith.constant 0 : index
    %c1_1845 = arith.constant 1 : index
    %c0_1846 = arith.constant 0 : index
    %c1_1847 = arith.constant 1 : index
    %c2_1848 = arith.constant 2 : index
    %2139 = vector.load %arg13[%c0_1844, %c1_1845, %c0_1846, %c1_1847, %c2_1848] : memref<2x2x2x9x18xf32, #tpu.memory_space<vmem>>, vector<1x1x1x8x16xf32>
    %2140 = vector.shape_cast %2139 : vector<1x1x1x8x16xf32> to vector<8x16xf32>
    %2141 = vector.broadcast %2138 : f32 to vector<8x16xf32>
    %2142 = arith.mulf %2141, %2140 : vector<8x16xf32>
    %2143 = arith.addf %2137, %2142 : vector<8x16xf32>
    %c63_1849 = arith.constant 63 : index
    %2144 = memref.load %arg3[%c63_1849] : memref<72xf32, #tpu.memory_space<smem>>
    %c0_1850 = arith.constant 0 : index
    %c1_1851 = arith.constant 1 : index
    %c1_1852 = arith.constant 1 : index
    %c0_1853 = arith.constant 0 : index
    %c0_1854 = arith.constant 0 : index
    %2145 = vector.load %arg13[%c0_1850, %c1_1851, %c1_1852, %c0_1853, %c0_1854] : memref<2x2x2x9x18xf32, #tpu.memory_space<vmem>>, vector<1x1x1x8x16xf32>
    %2146 = vector.shape_cast %2145 : vector<1x1x1x8x16xf32> to vector<8x16xf32>
    %2147 = vector.broadcast %2144 : f32 to vector<8x16xf32>
    %2148 = arith.mulf %2147, %2146 : vector<8x16xf32>
    %2149 = arith.addf %2143, %2148 : vector<8x16xf32>
    %c64_1855 = arith.constant 64 : index
    %2150 = memref.load %arg3[%c64_1855] : memref<72xf32, #tpu.memory_space<smem>>
    %c0_1856 = arith.constant 0 : index
    %c0_1857 = arith.constant 0 : index
    %c1_1858 = arith.constant 1 : index
    %c0_1859 = arith.constant 0 : index
    %c2_1860 = arith.constant 2 : index
    %2151 = vector.load %arg13[%c0_1856, %c0_1857, %c1_1858, %c0_1859, %c2_1860] : memref<2x2x2x9x18xf32, #tpu.memory_space<vmem>>, vector<1x1x1x8x16xf32>
    %2152 = vector.shape_cast %2151 : vector<1x1x1x8x16xf32> to vector<8x16xf32>
    %2153 = vector.broadcast %2150 : f32 to vector<8x16xf32>
    %2154 = arith.mulf %2153, %2152 : vector<8x16xf32>
    %2155 = arith.addf %2149, %2154 : vector<8x16xf32>
    %c65_1861 = arith.constant 65 : index
    %2156 = memref.load %arg3[%c65_1861] : memref<72xf32, #tpu.memory_space<smem>>
    %c0_1862 = arith.constant 0 : index
    %c1_1863 = arith.constant 1 : index
    %c1_1864 = arith.constant 1 : index
    %c0_1865 = arith.constant 0 : index
    %c2_1866 = arith.constant 2 : index
    %2157 = vector.load %arg13[%c0_1862, %c1_1863, %c1_1864, %c0_1865, %c2_1866] : memref<2x2x2x9x18xf32, #tpu.memory_space<vmem>>, vector<1x1x1x8x16xf32>
    %2158 = vector.shape_cast %2157 : vector<1x1x1x8x16xf32> to vector<8x16xf32>
    %2159 = vector.broadcast %2156 : f32 to vector<8x16xf32>
    %2160 = arith.mulf %2159, %2158 : vector<8x16xf32>
    %2161 = arith.addf %2155, %2160 : vector<8x16xf32>
    %c66_1867 = arith.constant 66 : index
    %2162 = memref.load %arg3[%c66_1867] : memref<72xf32, #tpu.memory_space<smem>>
    %c1_1868 = arith.constant 1 : index
    %c1_1869 = arith.constant 1 : index
    %c1_1870 = arith.constant 1 : index
    %c0_1871 = arith.constant 0 : index
    %c0_1872 = arith.constant 0 : index
    %2163 = vector.load %arg13[%c1_1868, %c1_1869, %c1_1870, %c0_1871, %c0_1872] : memref<2x2x2x9x18xf32, #tpu.memory_space<vmem>>, vector<1x1x1x8x16xf32>
    %2164 = vector.shape_cast %2163 : vector<1x1x1x8x16xf32> to vector<8x16xf32>
    %2165 = vector.broadcast %2162 : f32 to vector<8x16xf32>
    %2166 = arith.mulf %2165, %2164 : vector<8x16xf32>
    %2167 = arith.addf %2161, %2166 : vector<8x16xf32>
    %c67_1873 = arith.constant 67 : index
    %2168 = memref.load %arg3[%c67_1873] : memref<72xf32, #tpu.memory_space<smem>>
    %c1_1874 = arith.constant 1 : index
    %c0_1875 = arith.constant 0 : index
    %c1_1876 = arith.constant 1 : index
    %c0_1877 = arith.constant 0 : index
    %c2_1878 = arith.constant 2 : index
    %2169 = vector.load %arg13[%c1_1874, %c0_1875, %c1_1876, %c0_1877, %c2_1878] : memref<2x2x2x9x18xf32, #tpu.memory_space<vmem>>, vector<1x1x1x8x16xf32>
    %2170 = vector.shape_cast %2169 : vector<1x1x1x8x16xf32> to vector<8x16xf32>
    %2171 = vector.broadcast %2168 : f32 to vector<8x16xf32>
    %2172 = arith.mulf %2171, %2170 : vector<8x16xf32>
    %2173 = arith.addf %2167, %2172 : vector<8x16xf32>
    %c68_1879 = arith.constant 68 : index
    %2174 = memref.load %arg3[%c68_1879] : memref<72xf32, #tpu.memory_space<smem>>
    %c1_1880 = arith.constant 1 : index
    %c1_1881 = arith.constant 1 : index
    %c1_1882 = arith.constant 1 : index
    %c0_1883 = arith.constant 0 : index
    %c2_1884 = arith.constant 2 : index
    %2175 = vector.load %arg13[%c1_1880, %c1_1881, %c1_1882, %c0_1883, %c2_1884] : memref<2x2x2x9x18xf32, #tpu.memory_space<vmem>>, vector<1x1x1x8x16xf32>
    %2176 = vector.shape_cast %2175 : vector<1x1x1x8x16xf32> to vector<8x16xf32>
    %2177 = vector.broadcast %2174 : f32 to vector<8x16xf32>
    %2178 = arith.mulf %2177, %2176 : vector<8x16xf32>
    %2179 = arith.addf %2173, %2178 : vector<8x16xf32>
    %c69_1885 = arith.constant 69 : index
    %2180 = memref.load %arg3[%c69_1885] : memref<72xf32, #tpu.memory_space<smem>>
    %c0_1886 = arith.constant 0 : index
    %c1_1887 = arith.constant 1 : index
    %c1_1888 = arith.constant 1 : index
    %c1_1889 = arith.constant 1 : index
    %c0_1890 = arith.constant 0 : index
    %2181 = vector.load %arg13[%c0_1886, %c1_1887, %c1_1888, %c1_1889, %c0_1890] : memref<2x2x2x9x18xf32, #tpu.memory_space<vmem>>, vector<1x1x1x8x16xf32>
    %2182 = vector.shape_cast %2181 : vector<1x1x1x8x16xf32> to vector<8x16xf32>
    %2183 = vector.broadcast %2180 : f32 to vector<8x16xf32>
    %2184 = arith.mulf %2183, %2182 : vector<8x16xf32>
    %2185 = arith.addf %2179, %2184 : vector<8x16xf32>
    %c70_1891 = arith.constant 70 : index
    %2186 = memref.load %arg3[%c70_1891] : memref<72xf32, #tpu.memory_space<smem>>
    %c0_1892 = arith.constant 0 : index
    %c0_1893 = arith.constant 0 : index
    %c1_1894 = arith.constant 1 : index
    %c1_1895 = arith.constant 1 : index
    %c2_1896 = arith.constant 2 : index
    %2187 = vector.load %arg13[%c0_1892, %c0_1893, %c1_1894, %c1_1895, %c2_1896] : memref<2x2x2x9x18xf32, #tpu.memory_space<vmem>>, vector<1x1x1x8x16xf32>
    %2188 = vector.shape_cast %2187 : vector<1x1x1x8x16xf32> to vector<8x16xf32>
    %2189 = vector.broadcast %2186 : f32 to vector<8x16xf32>
    %2190 = arith.mulf %2189, %2188 : vector<8x16xf32>
    %2191 = arith.addf %2185, %2190 : vector<8x16xf32>
    %c71_1897 = arith.constant 71 : index
    %2192 = memref.load %arg3[%c71_1897] : memref<72xf32, #tpu.memory_space<smem>>
    %c0_1898 = arith.constant 0 : index
    %c1_1899 = arith.constant 1 : index
    %c1_1900 = arith.constant 1 : index
    %c1_1901 = arith.constant 1 : index
    %c2_1902 = arith.constant 2 : index
    %2193 = vector.load %arg13[%c0_1898, %c1_1899, %c1_1900, %c1_1901, %c2_1902] : memref<2x2x2x9x18xf32, #tpu.memory_space<vmem>>, vector<1x1x1x8x16xf32>
    %2194 = vector.shape_cast %2193 : vector<1x1x1x8x16xf32> to vector<8x16xf32>
    %2195 = vector.broadcast %2192 : f32 to vector<8x16xf32>
    %2196 = arith.mulf %2195, %2194 : vector<8x16xf32>
    %2197 = arith.addf %2191, %2196 : vector<8x16xf32>
    %cst_1903 = arith.constant 0.000000e+00 : f32
    %2198 = vector.broadcast %cst_1903 : f32 to vector<8x16xf32>
    %c54_1904 = arith.constant 54 : index
    %2199 = memref.load %arg3[%c54_1904] : memref<72xf32, #tpu.memory_space<smem>>
    %c1_1905 = arith.constant 1 : index
    %c0_1906 = arith.constant 0 : index
    %c0_1907 = arith.constant 0 : index
    %c0_1908 = arith.constant 0 : index
    %c0_1909 = arith.constant 0 : index
    %2200 = vector.load %arg13[%c1_1905, %c0_1906, %c0_1907, %c0_1908, %c0_1909] : memref<2x2x2x9x18xf32, #tpu.memory_space<vmem>>, vector<1x1x1x8x16xf32>
    %2201 = vector.shape_cast %2200 : vector<1x1x1x8x16xf32> to vector<8x16xf32>
    %2202 = vector.broadcast %2199 : f32 to vector<8x16xf32>
    %2203 = arith.mulf %2202, %2201 : vector<8x16xf32>
    %2204 = arith.addf %2198, %2203 : vector<8x16xf32>
    %c55_1910 = arith.constant 55 : index
    %2205 = memref.load %arg3[%c55_1910] : memref<72xf32, #tpu.memory_space<smem>>
    %c1_1911 = arith.constant 1 : index
    %c1_1912 = arith.constant 1 : index
    %c0_1913 = arith.constant 0 : index
    %c0_1914 = arith.constant 0 : index
    %c0_1915 = arith.constant 0 : index
    %2206 = vector.load %arg13[%c1_1911, %c1_1912, %c0_1913, %c0_1914, %c0_1915] : memref<2x2x2x9x18xf32, #tpu.memory_space<vmem>>, vector<1x1x1x8x16xf32>
    %2207 = vector.shape_cast %2206 : vector<1x1x1x8x16xf32> to vector<8x16xf32>
    %2208 = vector.broadcast %2205 : f32 to vector<8x16xf32>
    %2209 = arith.mulf %2208, %2207 : vector<8x16xf32>
    %2210 = arith.addf %2204, %2209 : vector<8x16xf32>
    %c56_1916 = arith.constant 56 : index
    %2211 = memref.load %arg3[%c56_1916] : memref<72xf32, #tpu.memory_space<smem>>
    %c1_1917 = arith.constant 1 : index
    %c0_1918 = arith.constant 0 : index
    %c0_1919 = arith.constant 0 : index
    %c0_1920 = arith.constant 0 : index
    %c2_1921 = arith.constant 2 : index
    %2212 = vector.load %arg13[%c1_1917, %c0_1918, %c0_1919, %c0_1920, %c2_1921] : memref<2x2x2x9x18xf32, #tpu.memory_space<vmem>>, vector<1x1x1x8x16xf32>
    %2213 = vector.shape_cast %2212 : vector<1x1x1x8x16xf32> to vector<8x16xf32>
    %2214 = vector.broadcast %2211 : f32 to vector<8x16xf32>
    %2215 = arith.mulf %2214, %2213 : vector<8x16xf32>
    %2216 = arith.addf %2210, %2215 : vector<8x16xf32>
    %c57_1922 = arith.constant 57 : index
    %2217 = memref.load %arg3[%c57_1922] : memref<72xf32, #tpu.memory_space<smem>>
    %c0_1923 = arith.constant 0 : index
    %c0_1924 = arith.constant 0 : index
    %c0_1925 = arith.constant 0 : index
    %c1_1926 = arith.constant 1 : index
    %c0_1927 = arith.constant 0 : index
    %2218 = vector.load %arg13[%c0_1923, %c0_1924, %c0_1925, %c1_1926, %c0_1927] : memref<2x2x2x9x18xf32, #tpu.memory_space<vmem>>, vector<1x1x1x8x16xf32>
    %2219 = vector.shape_cast %2218 : vector<1x1x1x8x16xf32> to vector<8x16xf32>
    %2220 = vector.broadcast %2217 : f32 to vector<8x16xf32>
    %2221 = arith.mulf %2220, %2219 : vector<8x16xf32>
    %2222 = arith.addf %2216, %2221 : vector<8x16xf32>
    %c58_1928 = arith.constant 58 : index
    %2223 = memref.load %arg3[%c58_1928] : memref<72xf32, #tpu.memory_space<smem>>
    %c0_1929 = arith.constant 0 : index
    %c1_1930 = arith.constant 1 : index
    %c0_1931 = arith.constant 0 : index
    %c1_1932 = arith.constant 1 : index
    %c0_1933 = arith.constant 0 : index
    %2224 = vector.load %arg13[%c0_1929, %c1_1930, %c0_1931, %c1_1932, %c0_1933] : memref<2x2x2x9x18xf32, #tpu.memory_space<vmem>>, vector<1x1x1x8x16xf32>
    %2225 = vector.shape_cast %2224 : vector<1x1x1x8x16xf32> to vector<8x16xf32>
    %2226 = vector.broadcast %2223 : f32 to vector<8x16xf32>
    %2227 = arith.mulf %2226, %2225 : vector<8x16xf32>
    %2228 = arith.addf %2222, %2227 : vector<8x16xf32>
    %c59_1934 = arith.constant 59 : index
    %2229 = memref.load %arg3[%c59_1934] : memref<72xf32, #tpu.memory_space<smem>>
    %c0_1935 = arith.constant 0 : index
    %c0_1936 = arith.constant 0 : index
    %c0_1937 = arith.constant 0 : index
    %c1_1938 = arith.constant 1 : index
    %c2_1939 = arith.constant 2 : index
    %2230 = vector.load %arg13[%c0_1935, %c0_1936, %c0_1937, %c1_1938, %c2_1939] : memref<2x2x2x9x18xf32, #tpu.memory_space<vmem>>, vector<1x1x1x8x16xf32>
    %2231 = vector.shape_cast %2230 : vector<1x1x1x8x16xf32> to vector<8x16xf32>
    %2232 = vector.broadcast %2229 : f32 to vector<8x16xf32>
    %2233 = arith.mulf %2232, %2231 : vector<8x16xf32>
    %2234 = arith.addf %2228, %2233 : vector<8x16xf32>
    %c60_1940 = arith.constant 60 : index
    %2235 = memref.load %arg3[%c60_1940] : memref<72xf32, #tpu.memory_space<smem>>
    %c1_1941 = arith.constant 1 : index
    %c0_1942 = arith.constant 0 : index
    %c0_1943 = arith.constant 0 : index
    %c1_1944 = arith.constant 1 : index
    %c0_1945 = arith.constant 0 : index
    %2236 = vector.load %arg13[%c1_1941, %c0_1942, %c0_1943, %c1_1944, %c0_1945] : memref<2x2x2x9x18xf32, #tpu.memory_space<vmem>>, vector<1x1x1x8x16xf32>
    %2237 = vector.shape_cast %2236 : vector<1x1x1x8x16xf32> to vector<8x16xf32>
    %2238 = vector.broadcast %2235 : f32 to vector<8x16xf32>
    %2239 = arith.mulf %2238, %2237 : vector<8x16xf32>
    %2240 = arith.addf %2234, %2239 : vector<8x16xf32>
    %c61_1946 = arith.constant 61 : index
    %2241 = memref.load %arg3[%c61_1946] : memref<72xf32, #tpu.memory_space<smem>>
    %c1_1947 = arith.constant 1 : index
    %c1_1948 = arith.constant 1 : index
    %c0_1949 = arith.constant 0 : index
    %c1_1950 = arith.constant 1 : index
    %c0_1951 = arith.constant 0 : index
    %2242 = vector.load %arg13[%c1_1947, %c1_1948, %c0_1949, %c1_1950, %c0_1951] : memref<2x2x2x9x18xf32, #tpu.memory_space<vmem>>, vector<1x1x1x8x16xf32>
    %2243 = vector.shape_cast %2242 : vector<1x1x1x8x16xf32> to vector<8x16xf32>
    %2244 = vector.broadcast %2241 : f32 to vector<8x16xf32>
    %2245 = arith.mulf %2244, %2243 : vector<8x16xf32>
    %2246 = arith.addf %2240, %2245 : vector<8x16xf32>
    %c62_1952 = arith.constant 62 : index
    %2247 = memref.load %arg3[%c62_1952] : memref<72xf32, #tpu.memory_space<smem>>
    %c1_1953 = arith.constant 1 : index
    %c0_1954 = arith.constant 0 : index
    %c0_1955 = arith.constant 0 : index
    %c1_1956 = arith.constant 1 : index
    %c2_1957 = arith.constant 2 : index
    %2248 = vector.load %arg13[%c1_1953, %c0_1954, %c0_1955, %c1_1956, %c2_1957] : memref<2x2x2x9x18xf32, #tpu.memory_space<vmem>>, vector<1x1x1x8x16xf32>
    %2249 = vector.shape_cast %2248 : vector<1x1x1x8x16xf32> to vector<8x16xf32>
    %2250 = vector.broadcast %2247 : f32 to vector<8x16xf32>
    %2251 = arith.mulf %2250, %2249 : vector<8x16xf32>
    %2252 = arith.addf %2246, %2251 : vector<8x16xf32>
    %c63_1958 = arith.constant 63 : index
    %2253 = memref.load %arg3[%c63_1958] : memref<72xf32, #tpu.memory_space<smem>>
    %c1_1959 = arith.constant 1 : index
    %c0_1960 = arith.constant 0 : index
    %c1_1961 = arith.constant 1 : index
    %c0_1962 = arith.constant 0 : index
    %c0_1963 = arith.constant 0 : index
    %2254 = vector.load %arg13[%c1_1959, %c0_1960, %c1_1961, %c0_1962, %c0_1963] : memref<2x2x2x9x18xf32, #tpu.memory_space<vmem>>, vector<1x1x1x8x16xf32>
    %2255 = vector.shape_cast %2254 : vector<1x1x1x8x16xf32> to vector<8x16xf32>
    %2256 = vector.broadcast %2253 : f32 to vector<8x16xf32>
    %2257 = arith.mulf %2256, %2255 : vector<8x16xf32>
    %2258 = arith.addf %2252, %2257 : vector<8x16xf32>
    %c64_1964 = arith.constant 64 : index
    %2259 = memref.load %arg3[%c64_1964] : memref<72xf32, #tpu.memory_space<smem>>
    %c1_1965 = arith.constant 1 : index
    %c1_1966 = arith.constant 1 : index
    %c1_1967 = arith.constant 1 : index
    %c0_1968 = arith.constant 0 : index
    %c0_1969 = arith.constant 0 : index
    %2260 = vector.load %arg13[%c1_1965, %c1_1966, %c1_1967, %c0_1968, %c0_1969] : memref<2x2x2x9x18xf32, #tpu.memory_space<vmem>>, vector<1x1x1x8x16xf32>
    %2261 = vector.shape_cast %2260 : vector<1x1x1x8x16xf32> to vector<8x16xf32>
    %2262 = vector.broadcast %2259 : f32 to vector<8x16xf32>
    %2263 = arith.mulf %2262, %2261 : vector<8x16xf32>
    %2264 = arith.addf %2258, %2263 : vector<8x16xf32>
    %c65_1970 = arith.constant 65 : index
    %2265 = memref.load %arg3[%c65_1970] : memref<72xf32, #tpu.memory_space<smem>>
    %c1_1971 = arith.constant 1 : index
    %c0_1972 = arith.constant 0 : index
    %c1_1973 = arith.constant 1 : index
    %c0_1974 = arith.constant 0 : index
    %c2_1975 = arith.constant 2 : index
    %2266 = vector.load %arg13[%c1_1971, %c0_1972, %c1_1973, %c0_1974, %c2_1975] : memref<2x2x2x9x18xf32, #tpu.memory_space<vmem>>, vector<1x1x1x8x16xf32>
    %2267 = vector.shape_cast %2266 : vector<1x1x1x8x16xf32> to vector<8x16xf32>
    %2268 = vector.broadcast %2265 : f32 to vector<8x16xf32>
    %2269 = arith.mulf %2268, %2267 : vector<8x16xf32>
    %2270 = arith.addf %2264, %2269 : vector<8x16xf32>
    %c66_1976 = arith.constant 66 : index
    %2271 = memref.load %arg3[%c66_1976] : memref<72xf32, #tpu.memory_space<smem>>
    %c0_1977 = arith.constant 0 : index
    %c0_1978 = arith.constant 0 : index
    %c1_1979 = arith.constant 1 : index
    %c1_1980 = arith.constant 1 : index
    %c0_1981 = arith.constant 0 : index
    %2272 = vector.load %arg13[%c0_1977, %c0_1978, %c1_1979, %c1_1980, %c0_1981] : memref<2x2x2x9x18xf32, #tpu.memory_space<vmem>>, vector<1x1x1x8x16xf32>
    %2273 = vector.shape_cast %2272 : vector<1x1x1x8x16xf32> to vector<8x16xf32>
    %2274 = vector.broadcast %2271 : f32 to vector<8x16xf32>
    %2275 = arith.mulf %2274, %2273 : vector<8x16xf32>
    %2276 = arith.addf %2270, %2275 : vector<8x16xf32>
    %c67_1982 = arith.constant 67 : index
    %2277 = memref.load %arg3[%c67_1982] : memref<72xf32, #tpu.memory_space<smem>>
    %c0_1983 = arith.constant 0 : index
    %c1_1984 = arith.constant 1 : index
    %c1_1985 = arith.constant 1 : index
    %c1_1986 = arith.constant 1 : index
    %c0_1987 = arith.constant 0 : index
    %2278 = vector.load %arg13[%c0_1983, %c1_1984, %c1_1985, %c1_1986, %c0_1987] : memref<2x2x2x9x18xf32, #tpu.memory_space<vmem>>, vector<1x1x1x8x16xf32>
    %2279 = vector.shape_cast %2278 : vector<1x1x1x8x16xf32> to vector<8x16xf32>
    %2280 = vector.broadcast %2277 : f32 to vector<8x16xf32>
    %2281 = arith.mulf %2280, %2279 : vector<8x16xf32>
    %2282 = arith.addf %2276, %2281 : vector<8x16xf32>
    %c68_1988 = arith.constant 68 : index
    %2283 = memref.load %arg3[%c68_1988] : memref<72xf32, #tpu.memory_space<smem>>
    %c0_1989 = arith.constant 0 : index
    %c0_1990 = arith.constant 0 : index
    %c1_1991 = arith.constant 1 : index
    %c1_1992 = arith.constant 1 : index
    %c2_1993 = arith.constant 2 : index
    %2284 = vector.load %arg13[%c0_1989, %c0_1990, %c1_1991, %c1_1992, %c2_1993] : memref<2x2x2x9x18xf32, #tpu.memory_space<vmem>>, vector<1x1x1x8x16xf32>
    %2285 = vector.shape_cast %2284 : vector<1x1x1x8x16xf32> to vector<8x16xf32>
    %2286 = vector.broadcast %2283 : f32 to vector<8x16xf32>
    %2287 = arith.mulf %2286, %2285 : vector<8x16xf32>
    %2288 = arith.addf %2282, %2287 : vector<8x16xf32>
    %c69_1994 = arith.constant 69 : index
    %2289 = memref.load %arg3[%c69_1994] : memref<72xf32, #tpu.memory_space<smem>>
    %c1_1995 = arith.constant 1 : index
    %c0_1996 = arith.constant 0 : index
    %c1_1997 = arith.constant 1 : index
    %c1_1998 = arith.constant 1 : index
    %c0_1999 = arith.constant 0 : index
    %2290 = vector.load %arg13[%c1_1995, %c0_1996, %c1_1997, %c1_1998, %c0_1999] : memref<2x2x2x9x18xf32, #tpu.memory_space<vmem>>, vector<1x1x1x8x16xf32>
    %2291 = vector.shape_cast %2290 : vector<1x1x1x8x16xf32> to vector<8x16xf32>
    %2292 = vector.broadcast %2289 : f32 to vector<8x16xf32>
    %2293 = arith.mulf %2292, %2291 : vector<8x16xf32>
    %2294 = arith.addf %2288, %2293 : vector<8x16xf32>
    %c70_2000 = arith.constant 70 : index
    %2295 = memref.load %arg3[%c70_2000] : memref<72xf32, #tpu.memory_space<smem>>
    %c1_2001 = arith.constant 1 : index
    %c1_2002 = arith.constant 1 : index
    %c1_2003 = arith.constant 1 : index
    %c1_2004 = arith.constant 1 : index
    %c0_2005 = arith.constant 0 : index
    %2296 = vector.load %arg13[%c1_2001, %c1_2002, %c1_2003, %c1_2004, %c0_2005] : memref<2x2x2x9x18xf32, #tpu.memory_space<vmem>>, vector<1x1x1x8x16xf32>
    %2297 = vector.shape_cast %2296 : vector<1x1x1x8x16xf32> to vector<8x16xf32>
    %2298 = vector.broadcast %2295 : f32 to vector<8x16xf32>
    %2299 = arith.mulf %2298, %2297 : vector<8x16xf32>
    %2300 = arith.addf %2294, %2299 : vector<8x16xf32>
    %c71_2006 = arith.constant 71 : index
    %2301 = memref.load %arg3[%c71_2006] : memref<72xf32, #tpu.memory_space<smem>>
    %c1_2007 = arith.constant 1 : index
    %c0_2008 = arith.constant 0 : index
    %c1_2009 = arith.constant 1 : index
    %c1_2010 = arith.constant 1 : index
    %c2_2011 = arith.constant 2 : index
    %2302 = vector.load %arg13[%c1_2007, %c0_2008, %c1_2009, %c1_2010, %c2_2011] : memref<2x2x2x9x18xf32, #tpu.memory_space<vmem>>, vector<1x1x1x8x16xf32>
    %2303 = vector.shape_cast %2302 : vector<1x1x1x8x16xf32> to vector<8x16xf32>
    %2304 = vector.broadcast %2301 : f32 to vector<8x16xf32>
    %2305 = arith.mulf %2304, %2303 : vector<8x16xf32>
    %2306 = arith.addf %2300, %2305 : vector<8x16xf32>
    %cst_2012 = arith.constant 0.000000e+00 : f32
    %2307 = vector.broadcast %cst_2012 : f32 to vector<8x16xf32>
    %c54_2013 = arith.constant 54 : index
    %2308 = memref.load %arg3[%c54_2013] : memref<72xf32, #tpu.memory_space<smem>>
    %c1_2014 = arith.constant 1 : index
    %c1_2015 = arith.constant 1 : index
    %c0_2016 = arith.constant 0 : index
    %c0_2017 = arith.constant 0 : index
    %c0_2018 = arith.constant 0 : index
    %2309 = vector.load %arg13[%c1_2014, %c1_2015, %c0_2016, %c0_2017, %c0_2018] : memref<2x2x2x9x18xf32, #tpu.memory_space<vmem>>, vector<1x1x1x8x16xf32>
    %2310 = vector.shape_cast %2309 : vector<1x1x1x8x16xf32> to vector<8x16xf32>
    %2311 = vector.broadcast %2308 : f32 to vector<8x16xf32>
    %2312 = arith.mulf %2311, %2310 : vector<8x16xf32>
    %2313 = arith.addf %2307, %2312 : vector<8x16xf32>
    %c55_2019 = arith.constant 55 : index
    %2314 = memref.load %arg3[%c55_2019] : memref<72xf32, #tpu.memory_space<smem>>
    %c1_2020 = arith.constant 1 : index
    %c0_2021 = arith.constant 0 : index
    %c0_2022 = arith.constant 0 : index
    %c0_2023 = arith.constant 0 : index
    %c2_2024 = arith.constant 2 : index
    %2315 = vector.load %arg13[%c1_2020, %c0_2021, %c0_2022, %c0_2023, %c2_2024] : memref<2x2x2x9x18xf32, #tpu.memory_space<vmem>>, vector<1x1x1x8x16xf32>
    %2316 = vector.shape_cast %2315 : vector<1x1x1x8x16xf32> to vector<8x16xf32>
    %2317 = vector.broadcast %2314 : f32 to vector<8x16xf32>
    %2318 = arith.mulf %2317, %2316 : vector<8x16xf32>
    %2319 = arith.addf %2313, %2318 : vector<8x16xf32>
    %c56_2025 = arith.constant 56 : index
    %2320 = memref.load %arg3[%c56_2025] : memref<72xf32, #tpu.memory_space<smem>>
    %c1_2026 = arith.constant 1 : index
    %c1_2027 = arith.constant 1 : index
    %c0_2028 = arith.constant 0 : index
    %c0_2029 = arith.constant 0 : index
    %c2_2030 = arith.constant 2 : index
    %2321 = vector.load %arg13[%c1_2026, %c1_2027, %c0_2028, %c0_2029, %c2_2030] : memref<2x2x2x9x18xf32, #tpu.memory_space<vmem>>, vector<1x1x1x8x16xf32>
    %2322 = vector.shape_cast %2321 : vector<1x1x1x8x16xf32> to vector<8x16xf32>
    %2323 = vector.broadcast %2320 : f32 to vector<8x16xf32>
    %2324 = arith.mulf %2323, %2322 : vector<8x16xf32>
    %2325 = arith.addf %2319, %2324 : vector<8x16xf32>
    %c57_2031 = arith.constant 57 : index
    %2326 = memref.load %arg3[%c57_2031] : memref<72xf32, #tpu.memory_space<smem>>
    %c0_2032 = arith.constant 0 : index
    %c1_2033 = arith.constant 1 : index
    %c0_2034 = arith.constant 0 : index
    %c1_2035 = arith.constant 1 : index
    %c0_2036 = arith.constant 0 : index
    %2327 = vector.load %arg13[%c0_2032, %c1_2033, %c0_2034, %c1_2035, %c0_2036] : memref<2x2x2x9x18xf32, #tpu.memory_space<vmem>>, vector<1x1x1x8x16xf32>
    %2328 = vector.shape_cast %2327 : vector<1x1x1x8x16xf32> to vector<8x16xf32>
    %2329 = vector.broadcast %2326 : f32 to vector<8x16xf32>
    %2330 = arith.mulf %2329, %2328 : vector<8x16xf32>
    %2331 = arith.addf %2325, %2330 : vector<8x16xf32>
    %c58_2037 = arith.constant 58 : index
    %2332 = memref.load %arg3[%c58_2037] : memref<72xf32, #tpu.memory_space<smem>>
    %c0_2038 = arith.constant 0 : index
    %c0_2039 = arith.constant 0 : index
    %c0_2040 = arith.constant 0 : index
    %c1_2041 = arith.constant 1 : index
    %c2_2042 = arith.constant 2 : index
    %2333 = vector.load %arg13[%c0_2038, %c0_2039, %c0_2040, %c1_2041, %c2_2042] : memref<2x2x2x9x18xf32, #tpu.memory_space<vmem>>, vector<1x1x1x8x16xf32>
    %2334 = vector.shape_cast %2333 : vector<1x1x1x8x16xf32> to vector<8x16xf32>
    %2335 = vector.broadcast %2332 : f32 to vector<8x16xf32>
    %2336 = arith.mulf %2335, %2334 : vector<8x16xf32>
    %2337 = arith.addf %2331, %2336 : vector<8x16xf32>
    %c59_2043 = arith.constant 59 : index
    %2338 = memref.load %arg3[%c59_2043] : memref<72xf32, #tpu.memory_space<smem>>
    %c0_2044 = arith.constant 0 : index
    %c1_2045 = arith.constant 1 : index
    %c0_2046 = arith.constant 0 : index
    %c1_2047 = arith.constant 1 : index
    %c2_2048 = arith.constant 2 : index
    %2339 = vector.load %arg13[%c0_2044, %c1_2045, %c0_2046, %c1_2047, %c2_2048] : memref<2x2x2x9x18xf32, #tpu.memory_space<vmem>>, vector<1x1x1x8x16xf32>
    %2340 = vector.shape_cast %2339 : vector<1x1x1x8x16xf32> to vector<8x16xf32>
    %2341 = vector.broadcast %2338 : f32 to vector<8x16xf32>
    %2342 = arith.mulf %2341, %2340 : vector<8x16xf32>
    %2343 = arith.addf %2337, %2342 : vector<8x16xf32>
    %c60_2049 = arith.constant 60 : index
    %2344 = memref.load %arg3[%c60_2049] : memref<72xf32, #tpu.memory_space<smem>>
    %c1_2050 = arith.constant 1 : index
    %c1_2051 = arith.constant 1 : index
    %c0_2052 = arith.constant 0 : index
    %c1_2053 = arith.constant 1 : index
    %c0_2054 = arith.constant 0 : index
    %2345 = vector.load %arg13[%c1_2050, %c1_2051, %c0_2052, %c1_2053, %c0_2054] : memref<2x2x2x9x18xf32, #tpu.memory_space<vmem>>, vector<1x1x1x8x16xf32>
    %2346 = vector.shape_cast %2345 : vector<1x1x1x8x16xf32> to vector<8x16xf32>
    %2347 = vector.broadcast %2344 : f32 to vector<8x16xf32>
    %2348 = arith.mulf %2347, %2346 : vector<8x16xf32>
    %2349 = arith.addf %2343, %2348 : vector<8x16xf32>
    %c61_2055 = arith.constant 61 : index
    %2350 = memref.load %arg3[%c61_2055] : memref<72xf32, #tpu.memory_space<smem>>
    %c1_2056 = arith.constant 1 : index
    %c0_2057 = arith.constant 0 : index
    %c0_2058 = arith.constant 0 : index
    %c1_2059 = arith.constant 1 : index
    %c2_2060 = arith.constant 2 : index
    %2351 = vector.load %arg13[%c1_2056, %c0_2057, %c0_2058, %c1_2059, %c2_2060] : memref<2x2x2x9x18xf32, #tpu.memory_space<vmem>>, vector<1x1x1x8x16xf32>
    %2352 = vector.shape_cast %2351 : vector<1x1x1x8x16xf32> to vector<8x16xf32>
    %2353 = vector.broadcast %2350 : f32 to vector<8x16xf32>
    %2354 = arith.mulf %2353, %2352 : vector<8x16xf32>
    %2355 = arith.addf %2349, %2354 : vector<8x16xf32>
    %c62_2061 = arith.constant 62 : index
    %2356 = memref.load %arg3[%c62_2061] : memref<72xf32, #tpu.memory_space<smem>>
    %c1_2062 = arith.constant 1 : index
    %c1_2063 = arith.constant 1 : index
    %c0_2064 = arith.constant 0 : index
    %c1_2065 = arith.constant 1 : index
    %c2_2066 = arith.constant 2 : index
    %2357 = vector.load %arg13[%c1_2062, %c1_2063, %c0_2064, %c1_2065, %c2_2066] : memref<2x2x2x9x18xf32, #tpu.memory_space<vmem>>, vector<1x1x1x8x16xf32>
    %2358 = vector.shape_cast %2357 : vector<1x1x1x8x16xf32> to vector<8x16xf32>
    %2359 = vector.broadcast %2356 : f32 to vector<8x16xf32>
    %2360 = arith.mulf %2359, %2358 : vector<8x16xf32>
    %2361 = arith.addf %2355, %2360 : vector<8x16xf32>
    %c63_2067 = arith.constant 63 : index
    %2362 = memref.load %arg3[%c63_2067] : memref<72xf32, #tpu.memory_space<smem>>
    %c1_2068 = arith.constant 1 : index
    %c1_2069 = arith.constant 1 : index
    %c1_2070 = arith.constant 1 : index
    %c0_2071 = arith.constant 0 : index
    %c0_2072 = arith.constant 0 : index
    %2363 = vector.load %arg13[%c1_2068, %c1_2069, %c1_2070, %c0_2071, %c0_2072] : memref<2x2x2x9x18xf32, #tpu.memory_space<vmem>>, vector<1x1x1x8x16xf32>
    %2364 = vector.shape_cast %2363 : vector<1x1x1x8x16xf32> to vector<8x16xf32>
    %2365 = vector.broadcast %2362 : f32 to vector<8x16xf32>
    %2366 = arith.mulf %2365, %2364 : vector<8x16xf32>
    %2367 = arith.addf %2361, %2366 : vector<8x16xf32>
    %c64_2073 = arith.constant 64 : index
    %2368 = memref.load %arg3[%c64_2073] : memref<72xf32, #tpu.memory_space<smem>>
    %c1_2074 = arith.constant 1 : index
    %c0_2075 = arith.constant 0 : index
    %c1_2076 = arith.constant 1 : index
    %c0_2077 = arith.constant 0 : index
    %c2_2078 = arith.constant 2 : index
    %2369 = vector.load %arg13[%c1_2074, %c0_2075, %c1_2076, %c0_2077, %c2_2078] : memref<2x2x2x9x18xf32, #tpu.memory_space<vmem>>, vector<1x1x1x8x16xf32>
    %2370 = vector.shape_cast %2369 : vector<1x1x1x8x16xf32> to vector<8x16xf32>
    %2371 = vector.broadcast %2368 : f32 to vector<8x16xf32>
    %2372 = arith.mulf %2371, %2370 : vector<8x16xf32>
    %2373 = arith.addf %2367, %2372 : vector<8x16xf32>
    %c65_2079 = arith.constant 65 : index
    %2374 = memref.load %arg3[%c65_2079] : memref<72xf32, #tpu.memory_space<smem>>
    %c1_2080 = arith.constant 1 : index
    %c1_2081 = arith.constant 1 : index
    %c1_2082 = arith.constant 1 : index
    %c0_2083 = arith.constant 0 : index
    %c2_2084 = arith.constant 2 : index
    %2375 = vector.load %arg13[%c1_2080, %c1_2081, %c1_2082, %c0_2083, %c2_2084] : memref<2x2x2x9x18xf32, #tpu.memory_space<vmem>>, vector<1x1x1x8x16xf32>
    %2376 = vector.shape_cast %2375 : vector<1x1x1x8x16xf32> to vector<8x16xf32>
    %2377 = vector.broadcast %2374 : f32 to vector<8x16xf32>
    %2378 = arith.mulf %2377, %2376 : vector<8x16xf32>
    %2379 = arith.addf %2373, %2378 : vector<8x16xf32>
    %c66_2085 = arith.constant 66 : index
    %2380 = memref.load %arg3[%c66_2085] : memref<72xf32, #tpu.memory_space<smem>>
    %c0_2086 = arith.constant 0 : index
    %c1_2087 = arith.constant 1 : index
    %c1_2088 = arith.constant 1 : index
    %c1_2089 = arith.constant 1 : index
    %c0_2090 = arith.constant 0 : index
    %2381 = vector.load %arg13[%c0_2086, %c1_2087, %c1_2088, %c1_2089, %c0_2090] : memref<2x2x2x9x18xf32, #tpu.memory_space<vmem>>, vector<1x1x1x8x16xf32>
    %2382 = vector.shape_cast %2381 : vector<1x1x1x8x16xf32> to vector<8x16xf32>
    %2383 = vector.broadcast %2380 : f32 to vector<8x16xf32>
    %2384 = arith.mulf %2383, %2382 : vector<8x16xf32>
    %2385 = arith.addf %2379, %2384 : vector<8x16xf32>
    %c67_2091 = arith.constant 67 : index
    %2386 = memref.load %arg3[%c67_2091] : memref<72xf32, #tpu.memory_space<smem>>
    %c0_2092 = arith.constant 0 : index
    %c0_2093 = arith.constant 0 : index
    %c1_2094 = arith.constant 1 : index
    %c1_2095 = arith.constant 1 : index
    %c2_2096 = arith.constant 2 : index
    %2387 = vector.load %arg13[%c0_2092, %c0_2093, %c1_2094, %c1_2095, %c2_2096] : memref<2x2x2x9x18xf32, #tpu.memory_space<vmem>>, vector<1x1x1x8x16xf32>
    %2388 = vector.shape_cast %2387 : vector<1x1x1x8x16xf32> to vector<8x16xf32>
    %2389 = vector.broadcast %2386 : f32 to vector<8x16xf32>
    %2390 = arith.mulf %2389, %2388 : vector<8x16xf32>
    %2391 = arith.addf %2385, %2390 : vector<8x16xf32>
    %c68_2097 = arith.constant 68 : index
    %2392 = memref.load %arg3[%c68_2097] : memref<72xf32, #tpu.memory_space<smem>>
    %c0_2098 = arith.constant 0 : index
    %c1_2099 = arith.constant 1 : index
    %c1_2100 = arith.constant 1 : index
    %c1_2101 = arith.constant 1 : index
    %c2_2102 = arith.constant 2 : index
    %2393 = vector.load %arg13[%c0_2098, %c1_2099, %c1_2100, %c1_2101, %c2_2102] : memref<2x2x2x9x18xf32, #tpu.memory_space<vmem>>, vector<1x1x1x8x16xf32>
    %2394 = vector.shape_cast %2393 : vector<1x1x1x8x16xf32> to vector<8x16xf32>
    %2395 = vector.broadcast %2392 : f32 to vector<8x16xf32>
    %2396 = arith.mulf %2395, %2394 : vector<8x16xf32>
    %2397 = arith.addf %2391, %2396 : vector<8x16xf32>
    %c69_2103 = arith.constant 69 : index
    %2398 = memref.load %arg3[%c69_2103] : memref<72xf32, #tpu.memory_space<smem>>
    %c1_2104 = arith.constant 1 : index
    %c1_2105 = arith.constant 1 : index
    %c1_2106 = arith.constant 1 : index
    %c1_2107 = arith.constant 1 : index
    %c0_2108 = arith.constant 0 : index
    %2399 = vector.load %arg13[%c1_2104, %c1_2105, %c1_2106, %c1_2107, %c0_2108] : memref<2x2x2x9x18xf32, #tpu.memory_space<vmem>>, vector<1x1x1x8x16xf32>
    %2400 = vector.shape_cast %2399 : vector<1x1x1x8x16xf32> to vector<8x16xf32>
    %2401 = vector.broadcast %2398 : f32 to vector<8x16xf32>
    %2402 = arith.mulf %2401, %2400 : vector<8x16xf32>
    %2403 = arith.addf %2397, %2402 : vector<8x16xf32>
    %c70_2109 = arith.constant 70 : index
    %2404 = memref.load %arg3[%c70_2109] : memref<72xf32, #tpu.memory_space<smem>>
    %c1_2110 = arith.constant 1 : index
    %c0_2111 = arith.constant 0 : index
    %c1_2112 = arith.constant 1 : index
    %c1_2113 = arith.constant 1 : index
    %c2_2114 = arith.constant 2 : index
    %2405 = vector.load %arg13[%c1_2110, %c0_2111, %c1_2112, %c1_2113, %c2_2114] : memref<2x2x2x9x18xf32, #tpu.memory_space<vmem>>, vector<1x1x1x8x16xf32>
    %2406 = vector.shape_cast %2405 : vector<1x1x1x8x16xf32> to vector<8x16xf32>
    %2407 = vector.broadcast %2404 : f32 to vector<8x16xf32>
    %2408 = arith.mulf %2407, %2406 : vector<8x16xf32>
    %2409 = arith.addf %2403, %2408 : vector<8x16xf32>
    %c71_2115 = arith.constant 71 : index
    %2410 = memref.load %arg3[%c71_2115] : memref<72xf32, #tpu.memory_space<smem>>
    %c1_2116 = arith.constant 1 : index
    %c1_2117 = arith.constant 1 : index
    %c1_2118 = arith.constant 1 : index
    %c1_2119 = arith.constant 1 : index
    %c2_2120 = arith.constant 2 : index
    %2411 = vector.load %arg13[%c1_2116, %c1_2117, %c1_2118, %c1_2119, %c2_2120] : memref<2x2x2x9x18xf32, #tpu.memory_space<vmem>>, vector<1x1x1x8x16xf32>
    %2412 = vector.shape_cast %2411 : vector<1x1x1x8x16xf32> to vector<8x16xf32>
    %2413 = vector.broadcast %2410 : f32 to vector<8x16xf32>
    %2414 = arith.mulf %2413, %2412 : vector<8x16xf32>
    %2415 = arith.addf %2409, %2414 : vector<8x16xf32>
    %2416 = arith.addf %2088, %2197 : vector<8x16xf32>
    %2417 = arith.addf %2416, %2306 : vector<8x16xf32>
    %2418 = arith.addf %2417, %2415 : vector<8x16xf32>
    %cst_2121 = arith.constant 2.500000e-01 : f32
    %2419 = vector.broadcast %cst_2121 : f32 to vector<8x16xf32>
    %2420 = arith.mulf %2419, %2418 : vector<8x16xf32>
    %2421 = arith.addf %2088, %557 : vector<8x16xf32>
    %2422 = arith.addf %2197, %557 : vector<8x16xf32>
    %2423 = arith.addf %2306, %557 : vector<8x16xf32>
    %2424 = arith.addf %2415, %557 : vector<8x16xf32>
    %2425 = tpu.concatenate %2421, %2422, %2423, %2424 in 1 : vector<8x16xf32>, vector<8x16xf32>, vector<8x16xf32>, vector<8x16xf32> -> vector<8x64xf32>
    %c3_2122 = arith.constant 3 : index
    %2426 = memref.load %arg7[%c3_2122] : memref<4xf32, #tpu.memory_space<smem>>
    %c3_2123 = arith.constant 3 : index
    %2427 = memref.load %arg8[%c3_2123] : memref<4xf32, #tpu.memory_space<smem>>
    %2428 = vector.shape_cast %2425 : vector<8x64xf32> to vector<1x8x64xf32>
    %cst_2124 = arith.constant dense<0.000000e+00> : vector<1xf32>
    %2429 = vector.multi_reduction <add>, %2428, %cst_2124 [1, 2] : vector<1x8x64xf32> to vector<1xf32>
    %2430 = vector.shape_cast %2429 : vector<1xf32> to vector<1x1x1xf32>
    %2431 = vector.extract %2430[0, 0, 0] : f32 from vector<1x1x1xf32>
    %cst_2125 = arith.constant 0.001953125 : f32
    %2432 = arith.mulf %2431, %cst_2125 : f32
    %2433 = vector.broadcast %2432 : f32 to vector<8x64xf32>
    %2434 = arith.subf %2425, %2433 : vector<8x64xf32>
    %2435 = arith.mulf %2434, %2434 : vector<8x64xf32>
    %2436 = vector.shape_cast %2435 : vector<8x64xf32> to vector<1x8x64xf32>
    %cst_2126 = arith.constant dense<0.000000e+00> : vector<1xf32>
    %2437 = vector.multi_reduction <add>, %2436, %cst_2126 [1, 2] : vector<1x8x64xf32> to vector<1xf32>
    %2438 = vector.shape_cast %2437 : vector<1xf32> to vector<1x1x1xf32>
    %2439 = vector.extract %2438[0, 0, 0] : f32 from vector<1x1x1xf32>
    %cst_2127 = arith.constant 0.001953125 : f32
    %2440 = arith.mulf %2439, %cst_2127 : f32
    %cst_2128 = arith.constant 9.99999974E-6 : f32
    %2441 = arith.addf %2440, %cst_2128 : f32
    %2442 = math.rsqrt %2441 : f32
    %2443 = vector.broadcast %2442 : f32 to vector<8x64xf32>
    %2444 = arith.mulf %2434, %2443 : vector<8x64xf32>
    %2445 = vector.broadcast %2426 : f32 to vector<8x64xf32>
    %2446 = arith.mulf %2444, %2445 : vector<8x64xf32>
    %2447 = vector.broadcast %2427 : f32 to vector<8x64xf32>
    %2448 = arith.addf %2446, %2447 : vector<8x64xf32>
    %cst_2129 = arith.constant 0.000000e+00 : f32
    %2449 = vector.broadcast %cst_2129 : f32 to vector<8x64xf32>
    %2450 = arith.maximumf %2448, %2449 : vector<8x64xf32>
    %c3_2130 = arith.constant 3 : index
    %c0_2131 = arith.constant 0 : index
    %c0_2132 = arith.constant 0 : index
    %2451 = vector.load %arg11[%c3_2130, %c0_2131, %c0_2132] : memref<4x8x64xf32, #tpu.memory_space<vmem>>, vector<1x8x64xf32>
    %2452 = vector.shape_cast %2451 : vector<1x8x64xf32> to vector<8x64xf32>
    %2453 = vector.shape_cast %2450 : vector<8x64xf32> to vector<1x8x64xf32>
    tpu.vector_store %arg11[%c3_2130, %c0_2131, %c0_2132], %2453 {strides = array<i32>} : memref<4x8x64xf32, #tpu.memory_space<vmem>>, vector<1x8x64xf32>,
    %cst_2133 = arith.constant 0.000000e+00 : f32
    %2454 = vector.broadcast %cst_2133 : f32 to vector<8x16xf32>
    %c0_2134 = arith.constant 0 : index
    %2455 = memref.load %arg5[%c0_2134] : memref<16xf32, #tpu.memory_space<smem>>
    %2456 = vector.broadcast %2455 : f32 to vector<8x16xf32>
    %2457 = arith.mulf %2456, %998 : vector<8x16xf32>
    %2458 = arith.addf %2454, %2457 : vector<8x16xf32>
    %c1_2135 = arith.constant 1 : index
    %2459 = memref.load %arg5[%c1_2135] : memref<16xf32, #tpu.memory_space<smem>>
    %2460 = vector.broadcast %2459 : f32 to vector<8x16xf32>
    %2461 = arith.mulf %2460, %1472 : vector<8x16xf32>
    %2462 = arith.addf %2458, %2461 : vector<8x16xf32>
    %c2_2136 = arith.constant 2 : index
    %2463 = memref.load %arg5[%c2_2136] : memref<16xf32, #tpu.memory_space<smem>>
    %2464 = vector.broadcast %2463 : f32 to vector<8x16xf32>
    %2465 = arith.mulf %2464, %1946 : vector<8x16xf32>
    %2466 = arith.addf %2462, %2465 : vector<8x16xf32>
    %c3_2137 = arith.constant 3 : index
    %2467 = memref.load %arg5[%c3_2137] : memref<16xf32, #tpu.memory_space<smem>>
    %2468 = vector.broadcast %2467 : f32 to vector<8x16xf32>
    %2469 = arith.mulf %2468, %2420 : vector<8x16xf32>
    %2470 = arith.addf %2466, %2469 : vector<8x16xf32>
    %2471 = arith.addf %162, %2470 : vector<8x16xf32>
    %c0_2138 = arith.constant 0 : index
    %2472 = memref.load %arg9[%c0_2138] : memref<4xf32, #tpu.memory_space<smem>>
    %c0_2139 = arith.constant 0 : index
    %2473 = memref.load %arg10[%c0_2139] : memref<4xf32, #tpu.memory_space<smem>>
    %2474 = vector.shape_cast %2471 : vector<8x16xf32> to vector<1x8x16xf32>
    %cst_2140 = arith.constant dense<0.000000e+00> : vector<1xf32>
    %2475 = vector.multi_reduction <add>, %2474, %cst_2140 [1, 2] : vector<1x8x16xf32> to vector<1xf32>
    %2476 = vector.shape_cast %2475 : vector<1xf32> to vector<1x1x1xf32>
    %2477 = vector.extract %2476[0, 0, 0] : f32 from vector<1x1x1xf32>
    %cst_2141 = arith.constant 7.812500e-03 : f32
    %2478 = arith.mulf %2477, %cst_2141 : f32
    %2479 = vector.broadcast %2478 : f32 to vector<8x16xf32>
    %2480 = arith.subf %2471, %2479 : vector<8x16xf32>
    %2481 = arith.mulf %2480, %2480 : vector<8x16xf32>
    %2482 = vector.shape_cast %2481 : vector<8x16xf32> to vector<1x8x16xf32>
    %cst_2142 = arith.constant dense<0.000000e+00> : vector<1xf32>
    %2483 = vector.multi_reduction <add>, %2482, %cst_2142 [1, 2] : vector<1x8x16xf32> to vector<1xf32>
    %2484 = vector.shape_cast %2483 : vector<1xf32> to vector<1x1x1xf32>
    %2485 = vector.extract %2484[0, 0, 0] : f32 from vector<1x1x1xf32>
    %cst_2143 = arith.constant 7.812500e-03 : f32
    %2486 = arith.mulf %2485, %cst_2143 : f32
    %cst_2144 = arith.constant 9.99999974E-6 : f32
    %2487 = arith.addf %2486, %cst_2144 : f32
    %2488 = math.rsqrt %2487 : f32
    %2489 = vector.broadcast %2488 : f32 to vector<8x16xf32>
    %2490 = arith.mulf %2480, %2489 : vector<8x16xf32>
    %2491 = vector.broadcast %2472 : f32 to vector<8x16xf32>
    %2492 = arith.mulf %2490, %2491 : vector<8x16xf32>
    %2493 = vector.broadcast %2473 : f32 to vector<8x16xf32>
    %2494 = arith.addf %2492, %2493 : vector<8x16xf32>
    %cst_2145 = arith.constant 0.000000e+00 : f32
    %2495 = vector.broadcast %cst_2145 : f32 to vector<8x16xf32>
    %2496 = arith.maximumf %2494, %2495 : vector<8x16xf32>
    %c0_2146 = arith.constant 0 : index
    %c0_2147 = arith.constant 0 : index
    %c0_2148 = arith.constant 0 : index
    %2497 = vector.load %arg12[%c0_2146, %c0_2147, %c0_2148] : memref<4x8x16xf32, #tpu.memory_space<vmem>>, vector<1x8x16xf32>
    %2498 = vector.shape_cast %2497 : vector<1x8x16xf32> to vector<8x16xf32>
    %2499 = vector.shape_cast %2496 : vector<8x16xf32> to vector<1x8x16xf32>
    tpu.vector_store %arg12[%c0_2146, %c0_2147, %c0_2148], %2499 {strides = array<i32>} : memref<4x8x16xf32, #tpu.memory_space<vmem>>, vector<1x8x16xf32>,
    %cst_2149 = arith.constant 0.000000e+00 : f32
    %2500 = vector.broadcast %cst_2149 : f32 to vector<8x16xf32>
    %c4_2150 = arith.constant 4 : index
    %2501 = memref.load %arg5[%c4_2150] : memref<16xf32, #tpu.memory_space<smem>>
    %2502 = vector.broadcast %2501 : f32 to vector<8x16xf32>
    %2503 = arith.mulf %2502, %998 : vector<8x16xf32>
    %2504 = arith.addf %2500, %2503 : vector<8x16xf32>
    %c5_2151 = arith.constant 5 : index
    %2505 = memref.load %arg5[%c5_2151] : memref<16xf32, #tpu.memory_space<smem>>
    %2506 = vector.broadcast %2505 : f32 to vector<8x16xf32>
    %2507 = arith.mulf %2506, %1472 : vector<8x16xf32>
    %2508 = arith.addf %2504, %2507 : vector<8x16xf32>
    %c6_2152 = arith.constant 6 : index
    %2509 = memref.load %arg5[%c6_2152] : memref<16xf32, #tpu.memory_space<smem>>
    %2510 = vector.broadcast %2509 : f32 to vector<8x16xf32>
    %2511 = arith.mulf %2510, %1946 : vector<8x16xf32>
    %2512 = arith.addf %2508, %2511 : vector<8x16xf32>
    %c7_2153 = arith.constant 7 : index
    %2513 = memref.load %arg5[%c7_2153] : memref<16xf32, #tpu.memory_space<smem>>
    %2514 = vector.broadcast %2513 : f32 to vector<8x16xf32>
    %2515 = arith.mulf %2514, %2420 : vector<8x16xf32>
    %2516 = arith.addf %2512, %2515 : vector<8x16xf32>
    %2517 = arith.addf %271, %2516 : vector<8x16xf32>
    %c1_2154 = arith.constant 1 : index
    %2518 = memref.load %arg9[%c1_2154] : memref<4xf32, #tpu.memory_space<smem>>
    %c1_2155 = arith.constant 1 : index
    %2519 = memref.load %arg10[%c1_2155] : memref<4xf32, #tpu.memory_space<smem>>
    %2520 = vector.shape_cast %2517 : vector<8x16xf32> to vector<1x8x16xf32>
    %cst_2156 = arith.constant dense<0.000000e+00> : vector<1xf32>
    %2521 = vector.multi_reduction <add>, %2520, %cst_2156 [1, 2] : vector<1x8x16xf32> to vector<1xf32>
    %2522 = vector.shape_cast %2521 : vector<1xf32> to vector<1x1x1xf32>
    %2523 = vector.extract %2522[0, 0, 0] : f32 from vector<1x1x1xf32>
    %cst_2157 = arith.constant 7.812500e-03 : f32
    %2524 = arith.mulf %2523, %cst_2157 : f32
    %2525 = vector.broadcast %2524 : f32 to vector<8x16xf32>
    %2526 = arith.subf %2517, %2525 : vector<8x16xf32>
    %2527 = arith.mulf %2526, %2526 : vector<8x16xf32>
    %2528 = vector.shape_cast %2527 : vector<8x16xf32> to vector<1x8x16xf32>
    %cst_2158 = arith.constant dense<0.000000e+00> : vector<1xf32>
    %2529 = vector.multi_reduction <add>, %2528, %cst_2158 [1, 2] : vector<1x8x16xf32> to vector<1xf32>
    %2530 = vector.shape_cast %2529 : vector<1xf32> to vector<1x1x1xf32>
    %2531 = vector.extract %2530[0, 0, 0] : f32 from vector<1x1x1xf32>
    %cst_2159 = arith.constant 7.812500e-03 : f32
    %2532 = arith.mulf %2531, %cst_2159 : f32
    %cst_2160 = arith.constant 9.99999974E-6 : f32
    %2533 = arith.addf %2532, %cst_2160 : f32
    %2534 = math.rsqrt %2533 : f32
    %2535 = vector.broadcast %2534 : f32 to vector<8x16xf32>
    %2536 = arith.mulf %2526, %2535 : vector<8x16xf32>
    %2537 = vector.broadcast %2518 : f32 to vector<8x16xf32>
    %2538 = arith.mulf %2536, %2537 : vector<8x16xf32>
    %2539 = vector.broadcast %2519 : f32 to vector<8x16xf32>
    %2540 = arith.addf %2538, %2539 : vector<8x16xf32>
    %cst_2161 = arith.constant 0.000000e+00 : f32
    %2541 = vector.broadcast %cst_2161 : f32 to vector<8x16xf32>
    %2542 = arith.maximumf %2540, %2541 : vector<8x16xf32>
    %c1_2162 = arith.constant 1 : index
    %c0_2163 = arith.constant 0 : index
    %c0_2164 = arith.constant 0 : index
    %2543 = vector.load %arg12[%c1_2162, %c0_2163, %c0_2164] : memref<4x8x16xf32, #tpu.memory_space<vmem>>, vector<1x8x16xf32>
    %2544 = vector.shape_cast %2543 : vector<1x8x16xf32> to vector<8x16xf32>
    %2545 = vector.shape_cast %2542 : vector<8x16xf32> to vector<1x8x16xf32>
    tpu.vector_store %arg12[%c1_2162, %c0_2163, %c0_2164], %2545 {strides = array<i32>} : memref<4x8x16xf32, #tpu.memory_space<vmem>>, vector<1x8x16xf32>,
    %cst_2165 = arith.constant 0.000000e+00 : f32
    %2546 = vector.broadcast %cst_2165 : f32 to vector<8x16xf32>
    %c8_2166 = arith.constant 8 : index
    %2547 = memref.load %arg5[%c8_2166] : memref<16xf32, #tpu.memory_space<smem>>
    %2548 = vector.broadcast %2547 : f32 to vector<8x16xf32>
    %2549 = arith.mulf %2548, %998 : vector<8x16xf32>
    %2550 = arith.addf %2546, %2549 : vector<8x16xf32>
    %c9_2167 = arith.constant 9 : index
    %2551 = memref.load %arg5[%c9_2167] : memref<16xf32, #tpu.memory_space<smem>>
    %2552 = vector.broadcast %2551 : f32 to vector<8x16xf32>
    %2553 = arith.mulf %2552, %1472 : vector<8x16xf32>
    %2554 = arith.addf %2550, %2553 : vector<8x16xf32>
    %c10_2168 = arith.constant 10 : index
    %2555 = memref.load %arg5[%c10_2168] : memref<16xf32, #tpu.memory_space<smem>>
    %2556 = vector.broadcast %2555 : f32 to vector<8x16xf32>
    %2557 = arith.mulf %2556, %1946 : vector<8x16xf32>
    %2558 = arith.addf %2554, %2557 : vector<8x16xf32>
    %c11_2169 = arith.constant 11 : index
    %2559 = memref.load %arg5[%c11_2169] : memref<16xf32, #tpu.memory_space<smem>>
    %2560 = vector.broadcast %2559 : f32 to vector<8x16xf32>
    %2561 = arith.mulf %2560, %2420 : vector<8x16xf32>
    %2562 = arith.addf %2558, %2561 : vector<8x16xf32>
    %2563 = arith.addf %380, %2562 : vector<8x16xf32>
    %c2_2170 = arith.constant 2 : index
    %2564 = memref.load %arg9[%c2_2170] : memref<4xf32, #tpu.memory_space<smem>>
    %c2_2171 = arith.constant 2 : index
    %2565 = memref.load %arg10[%c2_2171] : memref<4xf32, #tpu.memory_space<smem>>
    %2566 = vector.shape_cast %2563 : vector<8x16xf32> to vector<1x8x16xf32>
    %cst_2172 = arith.constant dense<0.000000e+00> : vector<1xf32>
    %2567 = vector.multi_reduction <add>, %2566, %cst_2172 [1, 2] : vector<1x8x16xf32> to vector<1xf32>
    %2568 = vector.shape_cast %2567 : vector<1xf32> to vector<1x1x1xf32>
    %2569 = vector.extract %2568[0, 0, 0] : f32 from vector<1x1x1xf32>
    %cst_2173 = arith.constant 7.812500e-03 : f32
    %2570 = arith.mulf %2569, %cst_2173 : f32
    %2571 = vector.broadcast %2570 : f32 to vector<8x16xf32>
    %2572 = arith.subf %2563, %2571 : vector<8x16xf32>
    %2573 = arith.mulf %2572, %2572 : vector<8x16xf32>
    %2574 = vector.shape_cast %2573 : vector<8x16xf32> to vector<1x8x16xf32>
    %cst_2174 = arith.constant dense<0.000000e+00> : vector<1xf32>
    %2575 = vector.multi_reduction <add>, %2574, %cst_2174 [1, 2] : vector<1x8x16xf32> to vector<1xf32>
    %2576 = vector.shape_cast %2575 : vector<1xf32> to vector<1x1x1xf32>
    %2577 = vector.extract %2576[0, 0, 0] : f32 from vector<1x1x1xf32>
    %cst_2175 = arith.constant 7.812500e-03 : f32
    %2578 = arith.mulf %2577, %cst_2175 : f32
    %cst_2176 = arith.constant 9.99999974E-6 : f32
    %2579 = arith.addf %2578, %cst_2176 : f32
    %2580 = math.rsqrt %2579 : f32
    %2581 = vector.broadcast %2580 : f32 to vector<8x16xf32>
    %2582 = arith.mulf %2572, %2581 : vector<8x16xf32>
    %2583 = vector.broadcast %2564 : f32 to vector<8x16xf32>
    %2584 = arith.mulf %2582, %2583 : vector<8x16xf32>
    %2585 = vector.broadcast %2565 : f32 to vector<8x16xf32>
    %2586 = arith.addf %2584, %2585 : vector<8x16xf32>
    %cst_2177 = arith.constant 0.000000e+00 : f32
    %2587 = vector.broadcast %cst_2177 : f32 to vector<8x16xf32>
    %2588 = arith.maximumf %2586, %2587 : vector<8x16xf32>
    %c2_2178 = arith.constant 2 : index
    %c0_2179 = arith.constant 0 : index
    %c0_2180 = arith.constant 0 : index
    %2589 = vector.load %arg12[%c2_2178, %c0_2179, %c0_2180] : memref<4x8x16xf32, #tpu.memory_space<vmem>>, vector<1x8x16xf32>
    %2590 = vector.shape_cast %2589 : vector<1x8x16xf32> to vector<8x16xf32>
    %2591 = vector.shape_cast %2588 : vector<8x16xf32> to vector<1x8x16xf32>
    tpu.vector_store %arg12[%c2_2178, %c0_2179, %c0_2180], %2591 {strides = array<i32>} : memref<4x8x16xf32, #tpu.memory_space<vmem>>, vector<1x8x16xf32>,
    %cst_2181 = arith.constant 0.000000e+00 : f32
    %2592 = vector.broadcast %cst_2181 : f32 to vector<8x16xf32>
    %c12_2182 = arith.constant 12 : index
    %2593 = memref.load %arg5[%c12_2182] : memref<16xf32, #tpu.memory_space<smem>>
    %2594 = vector.broadcast %2593 : f32 to vector<8x16xf32>
    %2595 = arith.mulf %2594, %998 : vector<8x16xf32>
    %2596 = arith.addf %2592, %2595 : vector<8x16xf32>
    %c13_2183 = arith.constant 13 : index
    %2597 = memref.load %arg5[%c13_2183] : memref<16xf32, #tpu.memory_space<smem>>
    %2598 = vector.broadcast %2597 : f32 to vector<8x16xf32>
    %2599 = arith.mulf %2598, %1472 : vector<8x16xf32>
    %2600 = arith.addf %2596, %2599 : vector<8x16xf32>
    %c14_2184 = arith.constant 14 : index
    %2601 = memref.load %arg5[%c14_2184] : memref<16xf32, #tpu.memory_space<smem>>
    %2602 = vector.broadcast %2601 : f32 to vector<8x16xf32>
    %2603 = arith.mulf %2602, %1946 : vector<8x16xf32>
    %2604 = arith.addf %2600, %2603 : vector<8x16xf32>
    %c15_2185 = arith.constant 15 : index
    %2605 = memref.load %arg5[%c15_2185] : memref<16xf32, #tpu.memory_space<smem>>
    %2606 = vector.broadcast %2605 : f32 to vector<8x16xf32>
    %2607 = arith.mulf %2606, %2420 : vector<8x16xf32>
    %2608 = arith.addf %2604, %2607 : vector<8x16xf32>
    %2609 = arith.addf %489, %2608 : vector<8x16xf32>
    %c3_2186 = arith.constant 3 : index
    %2610 = memref.load %arg9[%c3_2186] : memref<4xf32, #tpu.memory_space<smem>>
    %c3_2187 = arith.constant 3 : index
    %2611 = memref.load %arg10[%c3_2187] : memref<4xf32, #tpu.memory_space<smem>>
    %2612 = vector.shape_cast %2609 : vector<8x16xf32> to vector<1x8x16xf32>
    %cst_2188 = arith.constant dense<0.000000e+00> : vector<1xf32>
    %2613 = vector.multi_reduction <add>, %2612, %cst_2188 [1, 2] : vector<1x8x16xf32> to vector<1xf32>
    %2614 = vector.shape_cast %2613 : vector<1xf32> to vector<1x1x1xf32>
    %2615 = vector.extract %2614[0, 0, 0] : f32 from vector<1x1x1xf32>
    %cst_2189 = arith.constant 7.812500e-03 : f32
    %2616 = arith.mulf %2615, %cst_2189 : f32
    %2617 = vector.broadcast %2616 : f32 to vector<8x16xf32>
    %2618 = arith.subf %2609, %2617 : vector<8x16xf32>
    %2619 = arith.mulf %2618, %2618 : vector<8x16xf32>
    %2620 = vector.shape_cast %2619 : vector<8x16xf32> to vector<1x8x16xf32>
    %cst_2190 = arith.constant dense<0.000000e+00> : vector<1xf32>
    %2621 = vector.multi_reduction <add>, %2620, %cst_2190 [1, 2] : vector<1x8x16xf32> to vector<1xf32>
    %2622 = vector.shape_cast %2621 : vector<1xf32> to vector<1x1x1xf32>
    %2623 = vector.extract %2622[0, 0, 0] : f32 from vector<1x1x1xf32>
    %cst_2191 = arith.constant 7.812500e-03 : f32
    %2624 = arith.mulf %2623, %cst_2191 : f32
    %cst_2192 = arith.constant 9.99999974E-6 : f32
    %2625 = arith.addf %2624, %cst_2192 : f32
    %2626 = math.rsqrt %2625 : f32
    %2627 = vector.broadcast %2626 : f32 to vector<8x16xf32>
    %2628 = arith.mulf %2618, %2627 : vector<8x16xf32>
    %2629 = vector.broadcast %2610 : f32 to vector<8x16xf32>
    %2630 = arith.mulf %2628, %2629 : vector<8x16xf32>
    %2631 = vector.broadcast %2611 : f32 to vector<8x16xf32>
    %2632 = arith.addf %2630, %2631 : vector<8x16xf32>
    %cst_2193 = arith.constant 0.000000e+00 : f32
    %2633 = vector.broadcast %cst_2193 : f32 to vector<8x16xf32>
    %2634 = arith.maximumf %2632, %2633 : vector<8x16xf32>
    %c3_2194 = arith.constant 3 : index
    %c0_2195 = arith.constant 0 : index
    %c0_2196 = arith.constant 0 : index
    %2635 = vector.load %arg12[%c3_2194, %c0_2195, %c0_2196] : memref<4x8x16xf32, #tpu.memory_space<vmem>>, vector<1x8x16xf32>
    %2636 = vector.shape_cast %2635 : vector<1x8x16xf32> to vector<8x16xf32>
    %2637 = vector.shape_cast %2634 : vector<8x16xf32> to vector<1x8x16xf32>
    tpu.vector_store %arg12[%c3_2194, %c0_2195, %c0_2196], %2637 {strides = array<i32>} : memref<4x8x16xf32, #tpu.memory_space<vmem>>, vector<1x8x16xf32>,
    return
  }
  func.func @transform_0(%arg0: i32) -> (i32, i32, i32, i32, i32) {
    %c0_i32 = arith.constant 0 : i32
    %c0_i32_0 = arith.constant 0 : i32
    %c0_i32_1 = arith.constant 0 : i32
    %c0_i32_2 = arith.constant 0 : i32
    %c0_i32_3 = arith.constant 0 : i32
    %c0_i32_4 = arith.constant 0 : i32
    return %c0_i32, %c0_i32_0, %c0_i32_1, %c0_i32_2, %c0_i32_3 : i32, i32, i32, i32, i32
  }
  func.func @transform_1(%arg0: i32) -> (i32, i32, i32) {
    %c0_i32 = arith.constant 0 : i32
    %c0_i32_0 = arith.constant 0 : i32
    %c0_i32_1 = arith.constant 0 : i32
    %c0_i32_2 = arith.constant 0 : i32
    return %c0_i32, %c0_i32_0, %c0_i32_1 : i32, i32, i32
  }
  func.func @transform_2(%arg0: i32) -> i32 {
    %c0_i32 = arith.constant 0 : i32
    %c0_i32_0 = arith.constant 0 : i32
    return %c0_i32 : i32
  }
  func.func @transform_3(%arg0: i32) -> i32 {
    %c0_i32 = arith.constant 0 : i32
    %c0_i32_0 = arith.constant 0 : i32
    return %c0_i32 : i32
  }
  func.func @transform_4(%arg0: i32) -> i32 {
    %c0_i32 = arith.constant 0 : i32
    %c0_i32_0 = arith.constant 0 : i32
    return %c0_i32 : i32
  }
  func.func @transform_5(%arg0: i32) -> i32 {
    %c0_i32 = arith.constant 0 : i32
    %c0_i32_0 = arith.constant 0 : i32
    return %c0_i32 : i32
  }
  func.func @transform_6(%arg0: i32) -> i32 {
    %c0_i32 = arith.constant 0 : i32
    %c0_i32_0 = arith.constant 0 : i32
    return %c0_i32 : i32
  }
  func.func @transform_7(%arg0: i32) -> i32 {
    %c0_i32 = arith.constant 0 : i32
    %c0_i32_0 = arith.constant 0 : i32
    return %c0_i32 : i32
  }
  func.func @transform_8(%arg0: i32) -> i32 {
    %c0_i32 = arith.constant 0 : i32
    %c0_i32_0 = arith.constant 0 : i32
    return %c0_i32 : i32
  }
  func.func @transform_9(%arg0: i32) -> i32 {
    %c0_i32 = arith.constant 0 : i32
    %c0_i32_0 = arith.constant 0 : i32
    return %c0_i32 : i32
  }
  func.func @transform_10(%arg0: i32) -> (i32, i32, i32) {
    %c0_i32 = arith.constant 0 : i32
    %c0_i32_0 = arith.constant 0 : i32
    %c0_i32_1 = arith.constant 0 : i32
    %c0_i32_2 = arith.constant 0 : i32
    return %c0_i32, %c0_i32_0, %c0_i32_1 : i32, i32, i32
  }
  func.func @transform_11(%arg0: i32) -> (i32, i32, i32) {
    %c0_i32 = arith.constant 0 : i32
    %c0_i32_0 = arith.constant 0 : i32
    %c0_i32_1 = arith.constant 0 : i32
    %c0_i32_2 = arith.constant 0 : i32
    return %c0_i32, %c0_i32_0, %c0_i32_1 : i32, i32, i32
  }
}

</mosaic_0001>

<llo_original>
// kernel: oct_bn_relu_forward.1
$region0: #{oct_bn_relu_forward.1}
  #allocation0 [shape = 'u32[]', space=smem, size = 0x4, offset = 0x4, fixed_abs, tag = 'smem constant byte address 0x4 - core index']
  #allocation1 [shape = 'u32[144,128]{1,0:T(1,128)}', space=vmem, size = 0x12000, scoped, tag = 'internal scratch']
  #allocation2 [shape = 'f32[2,2,2,9,18]{4,3,2,1,0:T(8,128)}', space=vmem, size = 0x10000, scoped, tag = 'scratch operand']
  #allocation3 [shape = 'f32[2,10,20]{2,1,0:T(8,128)}', space=vmem, size = 0x4000, scoped, tag = 'scratch operand']
  %s0 = inlined_call_operand.vmem [shape: f32[2,2,2,8,16], index: 0, kind: input, shape index: {}]
  %s1 = inlined_call_operand.vmem [shape: f32[2,8,16], index: 1, kind: input, shape index: {}]
  %s2 = inlined_call_operand.vmem [shape: f32[72], index: 2, kind: input, shape index: {}]
  %s3 = inlined_call_operand.vmem [shape: f32[72], index: 3, kind: input, shape index: {}]
  %s4 = inlined_call_operand.vmem [shape: f32[16], index: 4, kind: input, shape index: {}]
  %s5 = inlined_call_operand.vmem [shape: f32[16], index: 5, kind: input, shape index: {}]
  %s6 = inlined_call_operand.vmem [shape: f32[4], index: 6, kind: input, shape index: {}]
  %s7 = inlined_call_operand.vmem [shape: f32[4], index: 7, kind: input, shape index: {}]
  %s8 = inlined_call_operand.vmem [shape: f32[4], index: 8, kind: input, shape index: {}]
  %s9 = inlined_call_operand.vmem [shape: f32[4], index: 9, kind: input, shape index: {}]
  %s10 = inlined_call_operand.vmem [shape: f32[4,8,64], index: 10, kind: output, shape index: {0}]
  %s11 = inlined_call_operand.vmem [shape: f32[4,8,16], index: 11, kind: output, shape index: {1}]
  %12 = xla_tuple %s10, %s11
  %s13 = sld [smem:[#allocation0]]
  $region90: #{oct_bn_relu_forward.1} parent=0
    _
  %s15 = ssub.s32 1, %s13
  %s16 = scalar_select 0, %s15, %s13
  $region1: #{oct_bn_relu_forward.1} parent=0
    #allocation4 [shape = 'u8[512]{0}', space=smem, size = 0x200, scoped, tag = 'input window, operand 2, single buffered']
    #allocation5 [shape = 's32[1]{0}', space=sflag, size = 0x4, scoped, tag = 'scoped memory for oct_bn_relu_forward.1']
    #allocation6 [shape = 'u8[512]{0}', space=smem, size = 0x200, scoped, tag = 'input window, operand 3, single buffered']
    #allocation7 [shape = 's32[1]{0}', space=sflag, size = 0x4, scoped, tag = 'scoped memory for oct_bn_relu_forward.1']
    #allocation8 [shape = 'u8[512]{0}', space=smem, size = 0x200, scoped, tag = 'input window, operand 4, single buffered']
    #allocation9 [shape = 'u8[512]{0}', space=smem, size = 0x200, scoped, tag = 'input window, operand 5, single buffered']
    #allocation10 [shape = 's32[1]{0}', space=sflag, size = 0x4, scoped, tag = 'scoped memory for oct_bn_relu_forward.1']
    #allocation11 [shape = 'u8[512]{0}', space=smem, size = 0x200, scoped, tag = 'input window, operand 6, single buffered']
    #allocation12 [shape = 'u8[512]{0}', space=smem, size = 0x200, scoped, tag = 'input window, operand 7, single buffered']
    #allocation13 [shape = 's32[1]{0}', space=sflag, size = 0x4, scoped, tag = 'scoped memory for oct_bn_relu_forward.1']
    #allocation14 [shape = 'u8[512]{0}', space=smem, size = 0x200, scoped, tag = 'input window, operand 8, single buffered']
    #allocation15 [shape = 'u8[512]{0}', space=smem, size = 0x200, scoped, tag = 'input window, operand 9, single buffered']
    #allocation16 [shape = 's32[1]{0}', space=sflag, size = 0x4, scoped, tag = 'scoped memory for oct_bn_relu_forward.1']
    %17 = vsyncpa [#allocation5], 0
    %18 = vsyncpa [#allocation7], 0
    %19 = vsyncpa [#allocation10], 0
    %20 = vsyncpa [#allocation13], 0
    %21 = vsyncpa [#allocation16], 0
    // Predicated region
    $region2: #{oct_bn_relu_forward.1} parent=1 // pred_check
      _
    $region3: #{oct_bn_relu_forward.1} parent=1 // pred_check_branch
      %23 = sbr.rel (0) target = $region5
    $region4: #{oct_bn_relu_forward.1} parent=1 // pred_region
      _
    $region5: #{oct_bn_relu_forward.1} parent=1 // pred_fallthru
      _
    // Predicated region
    $region6: #{oct_bn_relu_forward.1} parent=1 // pred_check
      _
    $region7: #{oct_bn_relu_forward.1} parent=1 // pred_check_branch
      %25 = sbr.rel (0) target = $region9
    $region8: #{oct_bn_relu_forward.1} parent=1 // pred_region
      _
    $region9: #{oct_bn_relu_forward.1} parent=1 // pred_fallthru
      _
    // Predicated region
    $region10: #{oct_bn_relu_forward.1} parent=1 // pred_check
      _
    $region11: #{oct_bn_relu_forward.1} parent=1 // pred_check_branch
      %27 = sbr.rel (0) target = $region13
    $region12: #{oct_bn_relu_forward.1} parent=1 // pred_region
      %s29 = ssub.s32 16, 16
      %30 = vsyncadd [#allocation5], %s29
      %s32 = sshll.u32 %s2, 4
      %s33 = int_to_ptr.vmem [resolvable:$true] %s32
      %35 = dma.vmem_to_smem %s33, 16, [#allocation4], [#allocation5]
    $region13: #{oct_bn_relu_forward.1} parent=1 // pred_fallthru
      _
    // Predicated region
    $region14: #{oct_bn_relu_forward.1} parent=1 // pred_check
      _
    $region15: #{oct_bn_relu_forward.1} parent=1 // pred_check_branch
      %37 = sbr.rel (0) target = $region17
    $region16: #{oct_bn_relu_forward.1} parent=1 // pred_region
      %s39 = ssub.s32 16, 16
      %40 = vsyncadd [#allocation7], %s39
      %s42 = sshll.u32 %s3, 4
      %s43 = int_to_ptr.vmem [resolvable:$true] %s42
      %45 = dma.vmem_to_smem %s43, 16, [#allocation6], [#allocation7]
    $region17: #{oct_bn_relu_forward.1} parent=1 // pred_fallthru
      _
    // Predicated region
    $region18: #{oct_bn_relu_forward.1} parent=1 // pred_check
      _
    $region19: #{oct_bn_relu_forward.1} parent=1 // pred_check_branch
      %47 = sbr.rel (0) target = $region21
    $region20: #{oct_bn_relu_forward.1} parent=1 // pred_region
      %s49 = ssub.s32 16, 16
      %50 = vsyncadd [#allocation7], %s49
      %s52 = sshll.u32 %s4, 4
      %s53 = int_to_ptr.vmem [resolvable:$true] %s52
      %55 = dma.vmem_to_smem %s53, 16, [#allocation8], [#allocation7]
    $region21: #{oct_bn_relu_forward.1} parent=1 // pred_fallthru
      _
    // Predicated region
    $region22: #{oct_bn_relu_forward.1} parent=1 // pred_check
      _
    $region23: #{oct_bn_relu_forward.1} parent=1 // pred_check_branch
      %57 = sbr.rel (0) target = $region25
    $region24: #{oct_bn_relu_forward.1} parent=1 // pred_region
      %s59 = ssub.s32 16, 16
      %60 = vsyncadd [#allocation10], %s59
      %s62 = sshll.u32 %s5, 4
      %s63 = int_to_ptr.vmem [resolvable:$true] %s62
      %65 = dma.vmem_to_smem %s63, 16, [#allocation9], [#allocation10]
    $region25: #{oct_bn_relu_forward.1} parent=1 // pred_fallthru
      _
    // Predicated region
    $region26: #{oct_bn_relu_forward.1} parent=1 // pred_check
      _
    $region27: #{oct_bn_relu_forward.1} parent=1 // pred_check_branch
      %67 = sbr.rel (0) target = $region29
    $region28: #{oct_bn_relu_forward.1} parent=1 // pred_region
      %s69 = ssub.s32 16, 16
      %70 = vsyncadd [#allocation10], %s69
      %s72 = sshll.u32 %s6, 4
      %s73 = int_to_ptr.vmem [resolvable:$true] %s72
      %75 = dma.vmem_to_smem %s73, 16, [#allocation11], [#allocation10]
    $region29: #{oct_bn_relu_forward.1} parent=1 // pred_fallthru
      _
    // Predicated region
    $region30: #{oct_bn_relu_forward.1} parent=1 // pred_check
      _
    $region31: #{oct_bn_relu_forward.1} parent=1 // pred_check_branch
      %77 = sbr.rel (0) target = $region33
    $region32: #{oct_bn_relu_forward.1} parent=1 // pred_region
      %s79 = ssub.s32 16, 16
      %80 = vsyncadd [#allocation13], %s79
      %s82 = sshll.u32 %s7, 4
      %s83 = int_to_ptr.vmem [resolvable:$true] %s82
      %85 = dma.vmem_to_smem %s83, 16, [#allocation12], [#allocation13]
    $region33: #{oct_bn_relu_forward.1} parent=1 // pred_fallthru
      _
    // Predicated region
    $region34: #{oct_bn_relu_forward.1} parent=1 // pred_check
      _
    $region35: #{oct_bn_relu_forward.1} parent=1 // pred_check_branch
      %87 = sbr.rel (0) target = $region37
    $region36: #{oct_bn_relu_forward.1} parent=1 // pred_region
      %s89 = ssub.s32 16, 16
      %90 = vsyncadd [#allocation13], %s89
      %s92 = sshll.u32 %s8, 4
      %s93 = int_to_ptr.vmem [resolvable:$true] %s92
      %95 = dma.vmem_to_smem %s93, 16, [#allocation14], [#allocation13]
    $region37: #{oct_bn_relu_forward.1} parent=1 // pred_fallthru
      _
    // Predicated region
    $region38: #{oct_bn_relu_forward.1} parent=1 // pred_check
      _
    $region39: #{oct_bn_relu_forward.1} parent=1 // pred_check_branch
      %97 = sbr.rel (0) target = $region41
    $region40: #{oct_bn_relu_forward.1} parent=1 // pred_region
      %s99 = ssub.s32 16, 16
      %100 = vsyncadd [#allocation16], %s99
      %s102 = sshll.u32 %s9, 4
      %s103 = int_to_ptr.vmem [resolvable:$true] %s102
      %105 = dma.vmem_to_smem %s103, 16, [#allocation15], [#allocation16]
    $region41: #{oct_bn_relu_forward.1} parent=1 // pred_fallthru
      _
    // Predicated region
    $region42: #{oct_bn_relu_forward.1} parent=1 // pred_check
      _
    $region43: #{oct_bn_relu_forward.1} parent=1 // pred_check_branch
      %107 = sbr.rel (0) target = $region45
    $region44: #{oct_bn_relu_forward.1} parent=1 // pred_region
      %108 = dma.done [#allocation5], 16
    $region45: #{oct_bn_relu_forward.1} parent=1 // pred_fallthru
      _
    // Predicated region
    $region46: #{oct_bn_relu_forward.1} parent=1 // pred_check
      _
    $region47: #{oct_bn_relu_forward.1} parent=1 // pred_check_branch
      %110 = sbr.rel (0) target = $region49
    $region48: #{oct_bn_relu_forward.1} parent=1 // pred_region
      %111 = dma.done [#allocation7], 16
    $region49: #{oct_bn_relu_forward.1} parent=1 // pred_fallthru
      _
    // Predicated region
    $region50: #{oct_bn_relu_forward.1} parent=1 // pred_check
      _
    $region51: #{oct_bn_relu_forward.1} parent=1 // pred_check_branch
      %113 = sbr.rel (0) target = $region53
    $region52: #{oct_bn_relu_forward.1} parent=1 // pred_region
      %114 = dma.done [#allocation7], 16
    $region53: #{oct_bn_relu_forward.1} parent=1 // pred_fallthru
      _
    // Predicated region
    $region54: #{oct_bn_relu_forward.1} parent=1 // pred_check
      _
    $region55: #{oct_bn_relu_forward.1} parent=1 // pred_check_branch
      %116 = sbr.rel (0) target = $region57
    $region56: #{oct_bn_relu_forward.1} parent=1 // pred_region
      %117 = dma.done [#allocation10], 16
    $region57: #{oct_bn_relu_forward.1} parent=1 // pred_fallthru
      _
    // Predicated region
    $region58: #{oct_bn_relu_forward.1} parent=1 // pred_check
      _
    $region59: #{oct_bn_relu_forward.1} parent=1 // pred_check_branch
      %119 = sbr.rel (0) target = $region61
    $region60: #{oct_bn_relu_forward.1} parent=1 // pred_region
      %120 = dma.done [#allocation10], 16
    $region61: #{oct_bn_relu_forward.1} parent=1 // pred_fallthru
      _
    // Predicated region
    $region62: #{oct_bn_relu_forward.1} parent=1 // pred_check
      _
    $region63: #{oct_bn_relu_forward.1} parent=1 // pred_check_branch
      %122 = sbr.rel (0) target = $region65
    $region64: #{oct_bn_relu_forward.1} parent=1 // pred_region
      %123 = dma.done [#allocation13], 16
    $region65: #{oct_bn_relu_forward.1} parent=1 // pred_fallthru
      _
    // Predicated region
    $region66: #{oct_bn_relu_forward.1} parent=1 // pred_check
      _
    $region67: #{oct_bn_relu_forward.1} parent=1 // pred_check_branch
      %125 = sbr.rel (0) target = $region69
    $region68: #{oct_bn_relu_forward.1} parent=1 // pred_region
      %126 = dma.done [#allocation13], 16
    $region69: #{oct_bn_relu_forward.1} parent=1 // pred_fallthru
      _
    // Predicated region
    $region70: #{oct_bn_relu_forward.1} parent=1 // pred_check
      _
    $region71: #{oct_bn_relu_forward.1} parent=1 // pred_check_branch
      %128 = sbr.rel (0) target = $region73
    $region72: #{oct_bn_relu_forward.1} parent=1 // pred_region
      %129 = dma.done [#allocation16], 16
    $region73: #{oct_bn_relu_forward.1} parent=1 // pred_fallthru
      _
    %130 = sfence
    %vm131 = vcmask 146432
    %132 = vst.msk [vmem:[#allocation2] sm:$0xff] %vm131, 0.0
    %vm133 = vcmask 139264
    %134 = vst.msk [vmem:[#allocation2 + $0x8] sm:$0x1] %vm133, 0.0
    %135 = vst.msk [vmem:[#allocation2 + $0x10] sm:$0xff] %vm131, 0.0
    %136 = vst.msk [vmem:[#allocation2 + $0x18] sm:$0x1] %vm133, 0.0
    %137 = vst.msk [vmem:[#allocation2 + $0x20] sm:$0xff] %vm131, 0.0
    %138 = vst.msk [vmem:[#allocation2 + $0x28] sm:$0x1] %vm133, 0.0
    %139 = vst.msk [vmem:[#allocation2 + $0x30] sm:$0xff] %vm131, 0.0
    %140 = vst.msk [vmem:[#allocation2 + $0x38] sm:$0x1] %vm133, 0.0
    %141 = vst.msk [vmem:[#allocation2 + $0x40] sm:$0xff] %vm131, 0.0
    %142 = vst.msk [vmem:[#allocation2 + $0x48] sm:$0x1] %vm133, 0.0
    %143 = vst.msk [vmem:[#allocation2 + $0x50] sm:$0xff] %vm131, 0.0
    %144 = vst.msk [vmem:[#allocation2 + $0x58] sm:$0x1] %vm133, 0.0
    %145 = vst.msk [vmem:[#allocation2 + $0x60] sm:$0xff] %vm131, 0.0
    %146 = vst.msk [vmem:[#allocation2 + $0x68] sm:$0x1] %vm133, 0.0
    %147 = vst.msk [vmem:[#allocation2 + $0x70] sm:$0xff] %vm131, 0.0
    %148 = vst.msk [vmem:[#allocation2 + $0x78] sm:$0x1] %vm133, 0.0
    %vm149 = vcmask 162816
    %150 = vst.msk [vmem:[#allocation3] sm:$0xff] %vm149, 0.0
    %vm151 = vcmask 156672
    %152 = vst.msk [vmem:[#allocation3 + $0x8] sm:$0x3] %vm151, 0.0
    %153 = vst.msk [vmem:[#allocation3 + $0x10] sm:$0xff] %vm149, 0.0
    %154 = vst.msk [vmem:[#allocation3 + $0x18] sm:$0x3] %vm151, 0.0
    %s155 = scalar_lea.vmem %s0, 48
    %v156 = vld [vmem:[%s155] sm:$0xff]
    %158 = vrot.lane.b32.xlu0 %v156, 2
    %v159 = vpop.permute.xlu0 %158
    %vm161 = vcmask 146448
    %162 = vst.msk [vmem:[#allocation2 + $0x1] sm:$0xff] %vm161, %v159
    %s163 = scalar_lea.vmem %s0, 56
    %v164 = vld [vmem:[%s163] sm:$0xff]
    %166 = vrot.lane.b32.xlu0 %v164, 2
    %v167 = vpop.permute.xlu0 %166
    %s169 = scalar_lea.vmem [#allocation2], 16
    %170 = vst.msk [vmem:[%s169 + $0x1] sm:$0xff] %vm161, %v167
    %s171 = scalar_lea.vmem %s0, 32
    %v172 = vld [vmem:[%s171] sm:$0xff]
    %s173 = scalar_lea.vmem [#allocation2], 32
    %vm174 = vcmask 130048
    %175 = vst.msk [vmem:[%s173 + $0x1] sm:$0xff] %vm174, %v172
    %s176 = scalar_lea.vmem %s0, 40
    %v177 = vld [vmem:[%s176] sm:$0xff]
    %s178 = scalar_lea.vmem [#allocation2], 48
    %179 = vst.msk [vmem:[%s178 + $0x1] sm:$0xff] %vm174, %v177
    %s180 = scalar_lea.vmem %s0, 16
    %v181 = vld [vmem:[%s180] sm:$0xff]
    %183 = vrot.lane.b32.xlu0 %v181, 2
    %v184 = vpop.permute.xlu0 %183
    %s186 = scalar_lea.vmem [#allocation2], 64
    %187 = vst.msk [vmem:[%s186] sm:$0xff] %vm161, %v184
    %s188 = scalar_lea.vmem %s0, 24
    %v189 = vld [vmem:[%s188] sm:$0xff]
    %191 = vrot.lane.b32.xlu0 %v189, 2
    %v192 = vpop.permute.xlu0 %191
    %s194 = scalar_lea.vmem [#allocation2], 80
    %195 = vst.msk [vmem:[%s194] sm:$0xff] %vm161, %v192
    %v196 = vld [vmem:[%s0] sm:$0xff]
    %s197 = scalar_lea.vmem [#allocation2], 96
    %198 = vst.msk [vmem:[%s197] sm:$0xff] %vm174, %v196
    %s199 = scalar_lea.vmem %s0, 8
    %v200 = vld [vmem:[%s199] sm:$0xff]
    %s201 = scalar_lea.vmem [#allocation2], 112
    %202 = vst.msk [vmem:[%s201] sm:$0xff] %vm174, %v200
    %v203 = vld [vmem:[%s1] sm:$0xff]
    %205 = vrot.lane.b32.xlu0 %v203, 2
    %v206 = vpop.permute.xlu0 %205
    %208 = vst.msk [vmem:[#allocation3 + $0x1] sm:$0xff] %vm161, %v206
    %s209 = scalar_lea.vmem %s1, 8
    %v210 = vld [vmem:[%s209] sm:$0xff]
    %212 = vrot.lane.b32.xlu0 %v210, 2
    %v213 = vpop.permute.xlu0 %212
    %s215 = scalar_lea.vmem [#allocation3], 16
    %216 = vst.msk [vmem:[%s215 + $0x1] sm:$0xff] %vm161, %v213
    %s217 = sld [smem:[#allocation6]]
    %v218 = vld [vmem:[#allocation3] sm:$0xff]
    %v219 = vstv %s217
    %v220 = vmul.f32 %v219, %v218
    %v221 = vadd.f32 %v220, 0.0
    %s222 = sld [smem:[#allocation6 + $0x1]]
    %v223 = vstv %s222
    %v224 = vmul.f32 %v223, %v218
    %226 = vrot.lane.b32.xlu0 %v224, 126
    %v227 = vpop.permute.xlu0 %226
    %v229 = vadd.f32 %v221, %v227
    %s230 = sld [smem:[#allocation6 + $0x2]]
    %v231 = vstv %s230
    %v232 = vmul.f32 %v231, %v218
    %234 = vrot.lane.b32.xlu0 %v232, 124
    %v235 = vpop.permute.xlu0 %234
    %v237 = vadd.f32 %v229, %v235
    %s238 = sld [smem:[#allocation6 + $0x3]]
    %v239 = vld [vmem:[#allocation3 + $0x1] sm:$0xff]
    %v240 = vstv %s238
    %v241 = vmul.f32 %v240, %v239
    %v242 = vadd.f32 %v237, %v241
    %s243 = sld [smem:[#allocation6 + $0x4]]
    %v244 = vstv %s243
    %v245 = vmul.f32 %v244, %v239
    %247 = vrot.lane.b32.xlu0 %v245, 126
    %v248 = vpop.permute.xlu0 %247
    %v250 = vadd.f32 %v242, %v248
    %s251 = sld [smem:[#allocation6 + $0x5]]
    %v252 = vstv %s251
    %v253 = vmul.f32 %v252, %v239
    %255 = vrot.lane.b32.xlu0 %v253, 124
    %v256 = vpop.permute.xlu0 %255
    %v258 = vadd.f32 %v250, %v256
    %s259 = sld [smem:[#allocation6 + $0x6]]
    %v260 = vld [vmem:[#allocation3 + $0x2] sm:$0xff]
    %v261 = vstv %s259
    %v262 = vmul.f32 %v261, %v260
    %v263 = vadd.f32 %v258, %v262
    %s264 = sld [smem:[#allocation6 + $0x7]]
    %v265 = vstv %s264
    %v266 = vmul.f32 %v265, %v260
    %268 = vrot.lane.b32.xlu0 %v266, 126
    %v269 = vpop.permute.xlu0 %268
    %v271 = vadd.f32 %v263, %v269
    %s272 = sld [smem:[#allocation6 + $0x8]]
    %v273 = vstv %s272
    %v274 = vmul.f32 %v273, %v260
    %276 = vrot.lane.b32.xlu0 %v274, 124
    %v277 = vpop.permute.xlu0 %276
    %v279 = vadd.f32 %v271, %v277
    %s280 = sld [smem:[#allocation6 + $0x9]]
    %v281 = vld [vmem:[%s215] sm:$0xff]
    %v282 = vstv %s280
    %v283 = vmul.f32 %v282, %v281
    %v284 = vadd.f32 %v279, %v283
    %s285 = sld [smem:[#allocation6 + $0xa]]
    %v286 = vstv %s285
    %v287 = vmul.f32 %v286, %v281
    %289 = vrot.lane.b32.xlu0 %v287, 126
    %v290 = vpop.permute.xlu0 %289
    %v292 = vadd.f32 %v284, %v290
    %s293 = sld [smem:[#allocation6 + $0xb]]
    %v294 = vstv %s293
    %v295 = vmul.f32 %v294, %v281
    %297 = vrot.lane.b32.xlu0 %v295, 124
    %v298 = vpop.permute.xlu0 %297
    %v300 = vadd.f32 %v292, %v298
    %s301 = sld [smem:[#allocation6 + $0xc]]
    %v302 = vld [vmem:[%s215 + $0x1] sm:$0xff]
    %v303 = vstv %s301
    %v304 = vmul.f32 %v303, %v302
    %v305 = vadd.f32 %v300, %v304
    %s306 = sld [smem:[#allocation6 + $0xd]]
    %v307 = vstv %s306
    %v308 = vmul.f32 %v307, %v302
    %310 = vrot.lane.b32.xlu0 %v308, 126
    %v311 = vpop.permute.xlu0 %310
    %v313 = vadd.f32 %v305, %v311
    %s314 = sld [smem:[#allocation6 + $0xe]]
    %v315 = vstv %s314
    %v316 = vmul.f32 %v315, %v302
    %318 = vrot.lane.b32.xlu0 %v316, 124
    %v319 = vpop.permute.xlu0 %318
    %v321 = vadd.f32 %v313, %v319
    %s322 = sld [smem:[#allocation6 + $0xf]]
    %v323 = vld [vmem:[%s215 + $0x2] sm:$0xff]
    %v324 = vstv %s322
    %v325 = vmul.f32 %v324, %v323
    %v326 = vadd.f32 %v321, %v325
    %s327 = sld [smem:[#allocation6 + $0x10]]
    %v328 = vstv %s327
    %v329 = vmul.f32 %v328, %v323
    %331 = vrot.lane.b32.xlu0 %v329, 126
    %v332 = vpop.permute.xlu0 %331
    %v334 = vadd.f32 %v326, %v332
    %s335 = sld [smem:[#allocation6 + $0x11]]
    %v336 = vstv %s335
    %v337 = vmul.f32 %v336, %v323
    %339 = vrot.lane.b32.xlu0 %v337, 124
    %v340 = vpop.permute.xlu0 %339
    %v342 = vadd.f32 %v334, %v340
    %s343 = sld [smem:[#allocation6 + $0x12]]
    %v344 = vstv %s343
    %v345 = vmul.f32 %v344, %v218
    %v346 = vadd.f32 %v345, 0.0
    %s347 = sld [smem:[#allocation6 + $0x13]]
    %v348 = vstv %s347
    %v349 = vmul.f32 %v348, %v218
    %351 = vrot.lane.b32.xlu0 %v349, 126
    %v352 = vpop.permute.xlu0 %351
    %v354 = vadd.f32 %v346, %v352
    %s355 = sld [smem:[#allocation6 + $0x14]]
    %v356 = vstv %s355
    %v357 = vmul.f32 %v356, %v218
    %359 = vrot.lane.b32.xlu0 %v357, 124
    %v360 = vpop.permute.xlu0 %359
    %v362 = vadd.f32 %v354, %v360
    %s363 = sld [smem:[#allocation6 + $0x15]]
    %v364 = vstv %s363
    %v365 = vmul.f32 %v364, %v239
    %v366 = vadd.f32 %v362, %v365
    %s367 = sld [smem:[#allocation6 + $0x16]]
    %v368 = vstv %s367
    %v369 = vmul.f32 %v368, %v239
    %371 = vrot.lane.b32.xlu0 %v369, 126
    %v372 = vpop.permute.xlu0 %371
    %v374 = vadd.f32 %v366, %v372
    %s375 = sld [smem:[#allocation6 + $0x17]]
    %v376 = vstv %s375
    %v377 = vmul.f32 %v376, %v239
    %379 = vrot.lane.b32.xlu0 %v377, 124
    %v380 = vpop.permute.xlu0 %379
    %v382 = vadd.f32 %v374, %v380
    %s383 = sld [smem:[#allocation6 + $0x18]]
    %v384 = vstv %s383
    %v385 = vmul.f32 %v384, %v260
    %v386 = vadd.f32 %v382, %v385
    %s387 = sld [smem:[#allocation6 + $0x19]]
    %v388 = vstv %s387
    %v389 = vmul.f32 %v388, %v260
    %391 = vrot.lane.b32.xlu0 %v389, 126
    %v392 = vpop.permute.xlu0 %391
    %v394 = vadd.f32 %v386, %v392
    %s395 = sld [smem:[#allocation6 + $0x1a]]
    %v396 = vstv %s395
    %v397 = vmul.f32 %v396, %v260
    %399 = vrot.lane.b32.xlu0 %v397, 124
    %v400 = vpop.permute.xlu0 %399
    %v402 = vadd.f32 %v394, %v400
    %s403 = sld [smem:[#allocation6 + $0x1b]]
    %v404 = vstv %s403
    %v405 = vmul.f32 %v404, %v281
    %v406 = vadd.f32 %v402, %v405
    %s407 = sld [smem:[#allocation6 + $0x1c]]
    %v408 = vstv %s407
    %v409 = vmul.f32 %v408, %v281
    %411 = vrot.lane.b32.xlu0 %v409, 126
    %v412 = vpop.permute.xlu0 %411
    %v414 = vadd.f32 %v406, %v412
    %s415 = sld [smem:[#allocation6 + $0x1d]]
    %v416 = vstv %s415
    %v417 = vmul.f32 %v416, %v281
    %419 = vrot.lane.b32.xlu0 %v417, 124
    %v420 = vpop.permute.xlu0 %419
    %v422 = vadd.f32 %v414, %v420
    %s423 = sld [smem:[#allocation6 + $0x1e]]
    %v424 = vstv %s423
    %v425 = vmul.f32 %v424, %v302
    %v426 = vadd.f32 %v422, %v425
    %s427 = sld [smem:[#allocation6 + $0x1f]]
    %v428 = vstv %s427
    %v429 = vmul.f32 %v428, %v302
    %431 = vrot.lane.b32.xlu0 %v429, 126
    %v432 = vpop.permute.xlu0 %431
    %v434 = vadd.f32 %v426, %v432
    %s435 = sld [smem:[#allocation6 + $0x20]]
    %v436 = vstv %s435
    %v437 = vmul.f32 %v436, %v302
    %439 = vrot.lane.b32.xlu0 %v437, 124
    %v440 = vpop.permute.xlu0 %439
    %v442 = vadd.f32 %v434, %v440
    %s443 = sld [smem:[#allocation6 + $0x21]]
    %v444 = vstv %s443
    %v445 = vmul.f32 %v444, %v323
    %v446 = vadd.f32 %v442, %v445
    %s447 = sld [smem:[#allocation6 + $0x22]]
    %v448 = vstv %s447
    %v449 = vmul.f32 %v448, %v323
    %451 = vrot.lane.b32.xlu0 %v449, 126
    %v452 = vpop.permute.xlu0 %451
    %v454 = vadd.f32 %v446, %v452
    %s455 = sld [smem:[#allocation6 + $0x23]]
    %v456 = vstv %s455
    %v457 = vmul.f32 %v456, %v323
    %459 = vrot.lane.b32.xlu0 %v457, 124
    %v460 = vpop.permute.xlu0 %459
    %v462 = vadd.f32 %v454, %v460
    %s463 = sld [smem:[#allocation6 + $0x24]]
    %v464 = vstv %s463
    %v465 = vmul.f32 %v464, %v218
    %v466 = vadd.f32 %v465, 0.0
    %s467 = sld [smem:[#allocation6 + $0x25]]
    %v468 = vstv %s467
    %v469 = vmul.f32 %v468, %v218
    %471 = vrot.lane.b32.xlu0 %v469, 126
    %v472 = vpop.permute.xlu0 %471
    %v474 = vadd.f32 %v466, %v472
    %s475 = sld [smem:[#allocation6 + $0x26]]
    %v476 = vstv %s475
    %v477 = vmul.f32 %v476, %v218
    %479 = vrot.lane.b32.xlu0 %v477, 124
    %v480 = vpop.permute.xlu0 %479
    %v482 = vadd.f32 %v474, %v480
    %s483 = sld [smem:[#allocation6 + $0x27]]
    %v484 = vstv %s483
    %v485 = vmul.f32 %v484, %v239
    %v486 = vadd.f32 %v482, %v485
    %s487 = sld [smem:[#allocation6 + $0x28]]
    %v488 = vstv %s487
    %v489 = vmul.f32 %v488, %v239
    %491 = vrot.lane.b32.xlu0 %v489, 126
    %v492 = vpop.permute.xlu0 %491
    %v494 = vadd.f32 %v486, %v492
    %s495 = sld [smem:[#allocation6 + $0x29]]
    %v496 = vstv %s495
    %v497 = vmul.f32 %v496, %v239
    %499 = vrot.lane.b32.xlu0 %v497, 124
    %v500 = vpop.permute.xlu0 %499
    %v502 = vadd.f32 %v494, %v500
    %s503 = sld [smem:[#allocation6 + $0x2a]]
    %v504 = vstv %s503
    %v505 = vmul.f32 %v504, %v260
    %v506 = vadd.f32 %v502, %v505
    %s507 = sld [smem:[#allocation6 + $0x2b]]
    %v508 = vstv %s507
    %v509 = vmul.f32 %v508, %v260
    %511 = vrot.lane.b32.xlu0 %v509, 126
    %v512 = vpop.permute.xlu0 %511
    %v514 = vadd.f32 %v506, %v512
    %s515 = sld [smem:[#allocation6 + $0x2c]]
    %v516 = vstv %s515
    %v517 = vmul.f32 %v516, %v260
    %519 = vrot.lane.b32.xlu0 %v517, 124
    %v520 = vpop.permute.xlu0 %519
    %v522 = vadd.f32 %v514, %v520
    %s523 = sld [smem:[#allocation6 + $0x2d]]
    %v524 = vstv %s523
    %v525 = vmul.f32 %v524, %v281
    %v526 = vadd.f32 %v522, %v525
    %s527 = sld [smem:[#allocation6 + $0x2e]]
    %v528 = vstv %s527
    %v529 = vmul.f32 %v528, %v281
    %531 = vrot.lane.b32.xlu0 %v529, 126
    %v532 = vpop.permute.xlu0 %531
    %v534 = vadd.f32 %v526, %v532
    %s535 = sld [smem:[#allocation6 + $0x2f]]
    %v536 = vstv %s535
    %v537 = vmul.f32 %v536, %v281
    %539 = vrot.lane.b32.xlu0 %v537, 124
    %v540 = vpop.permute.xlu0 %539
    %v542 = vadd.f32 %v534, %v540
    %s543 = sld [smem:[#allocation6 + $0x30]]
    %v544 = vstv %s543
    %v545 = vmul.f32 %v544, %v302
    %v546 = vadd.f32 %v542, %v545
    %s547 = sld [smem:[#allocation6 + $0x31]]
    %v548 = vstv %s547
    %v549 = vmul.f32 %v548, %v302
    %551 = vrot.lane.b32.xlu0 %v549, 126
    %v552 = vpop.permute.xlu0 %551
    %v554 = vadd.f32 %v546, %v552
    %s555 = sld [smem:[#allocation6 + $0x32]]
    %v556 = vstv %s555
    %v557 = vmul.f32 %v556, %v302
    %559 = vrot.lane.b32.xlu0 %v557, 124
    %v560 = vpop.permute.xlu0 %559
    %v562 = vadd.f32 %v554, %v560
    %s563 = sld [smem:[#allocation6 + $0x33]]
    %v564 = vstv %s563
    %v565 = vmul.f32 %v564, %v323
    %v566 = vadd.f32 %v562, %v565
    %s567 = sld [smem:[#allocation6 + $0x34]]
    %v568 = vstv %s567
    %v569 = vmul.f32 %v568, %v323
    %571 = vrot.lane.b32.xlu0 %v569, 126
    %v572 = vpop.permute.xlu0 %571
    %v574 = vadd.f32 %v566, %v572
    %s575 = sld [smem:[#allocation6 + $0x35]]
    %v576 = vstv %s575
    %v577 = vmul.f32 %v576, %v323
    %579 = vrot.lane.b32.xlu0 %v577, 124
    %v580 = vpop.permute.xlu0 %579
    %v582 = vadd.f32 %v574, %v580
    %s583 = sld [smem:[#allocation6 + $0x36]]
    %v584 = vstv %s583
    %v585 = vmul.f32 %v584, %v218
    %v586 = vadd.f32 %v585, 0.0
    %s587 = sld [smem:[#allocation6 + $0x37]]
    %v588 = vstv %s587
    %v589 = vmul.f32 %v588, %v218
    %591 = vrot.lane.b32.xlu0 %v589, 126
    %v592 = vpop.permute.xlu0 %591
    %v594 = vadd.f32 %v586, %v592
    %s595 = sld [smem:[#allocation6 + $0x38]]
    %v596 = vstv %s595
    %v597 = vmul.f32 %v596, %v218
    %599 = vrot.lane.b32.xlu0 %v597, 124
    %v600 = vpop.permute.xlu0 %599
    %v602 = vadd.f32 %v594, %v600
    %s603 = sld [smem:[#allocation6 + $0x39]]
    %v604 = vstv %s603
    %v605 = vmul.f32 %v604, %v239
    %v606 = vadd.f32 %v602, %v605
    %s607 = sld [smem:[#allocation6 + $0x3a]]
    %v608 = vstv %s607
    %v609 = vmul.f32 %v608, %v239
    %611 = vrot.lane.b32.xlu0 %v609, 126
    %v612 = vpop.permute.xlu0 %611
    %v614 = vadd.f32 %v606, %v612
    %s615 = sld [smem:[#allocation6 + $0x3b]]
    %v616 = vstv %s615
    %v617 = vmul.f32 %v616, %v239
    %619 = vrot.lane.b32.xlu0 %v617, 124
    %v620 = vpop.permute.xlu0 %619
    %v622 = vadd.f32 %v614, %v620
    %s623 = sld [smem:[#allocation6 + $0x3c]]
    %v624 = vstv %s623
    %v625 = vmul.f32 %v624, %v260
    %v626 = vadd.f32 %v622, %v625
    %s627 = sld [smem:[#allocation6 + $0x3d]]
    %v628 = vstv %s627
    %v629 = vmul.f32 %v628, %v260
    %631 = vrot.lane.b32.xlu0 %v629, 126
    %v632 = vpop.permute.xlu0 %631
    %v634 = vadd.f32 %v626, %v632
    %s635 = sld [smem:[#allocation6 + $0x3e]]
    %v636 = vstv %s635
    %v637 = vmul.f32 %v636, %v260
    %639 = vrot.lane.b32.xlu0 %v637, 124
    %v640 = vpop.permute.xlu0 %639
    %v642 = vadd.f32 %v634, %v640
    %s643 = sld [smem:[#allocation6 + $0x3f]]
    %v644 = vstv %s643
    %v645 = vmul.f32 %v644, %v281
    %v646 = vadd.f32 %v642, %v645
    %s647 = sld [smem:[#allocation6 + $0x40]]
    %v648 = vstv %s647
    %v649 = vmul.f32 %v648, %v281
    %651 = vrot.lane.b32.xlu0 %v649, 126
    %v652 = vpop.permute.xlu0 %651
    %v654 = vadd.f32 %v646, %v652
    %s655 = sld [smem:[#allocation6 + $0x41]]
    %v656 = vstv %s655
    %v657 = vmul.f32 %v656, %v281
    %659 = vrot.lane.b32.xlu0 %v657, 124
    %v660 = vpop.permute.xlu0 %659
    %v662 = vadd.f32 %v654, %v660
    %s663 = sld [smem:[#allocation6 + $0x42]]
    %v664 = vstv %s663
    %v665 = vmul.f32 %v664, %v302
    %v666 = vadd.f32 %v662, %v665
    %s667 = sld [smem:[#allocation6 + $0x43]]
    %v668 = vstv %s667
    %v669 = vmul.f32 %v668, %v302
    %671 = vrot.lane.b32.xlu0 %v669, 126
    %v672 = vpop.permute.xlu0 %671
    %v674 = vadd.f32 %v666, %v672
    %s675 = sld [smem:[#allocation6 + $0x44]]
    %v676 = vstv %s675
    %v677 = vmul.f32 %v676, %v302
    %679 = vrot.lane.b32.xlu0 %v677, 124
    %v680 = vpop.permute.xlu0 %679
    %v682 = vadd.f32 %v674, %v680
    %s683 = sld [smem:[#allocation6 + $0x45]]
    %v684 = vstv %s683
    %v685 = vmul.f32 %v684, %v323
    %v686 = vadd.f32 %v682, %v685
    %s687 = sld [smem:[#allocation6 + $0x46]]
    %v688 = vstv %s687
    %v689 = vmul.f32 %v688, %v323
    %691 = vrot.lane.b32.xlu0 %v689, 126
    %v692 = vpop.permute.xlu0 %691
    %v694 = vadd.f32 %v686, %v692
    %s695 = sld [smem:[#allocation6 + $0x47]]
    %v696 = vstv %s695
    %v697 = vmul.f32 %v696, %v323
    %699 = vrot.lane.b32.xlu0 %v697, 124
    %v700 = vpop.permute.xlu0 %699
    %v702 = vadd.f32 %v694, %v700
    %s703 = sld [smem:[#allocation9]]
    %v704 = vstv %s703
    %v705 = vmul.f32 %v704, %v342
    %v706 = vadd.f32 %v705, 0.0
    %s707 = sld [smem:[#allocation9 + $0x1]]
    %v708 = vstv %s707
    %v709 = vmul.f32 %v708, %v462
    %v710 = vadd.f32 %v706, %v709
    %s711 = sld [smem:[#allocation9 + $0x2]]
    %v712 = vstv %s711
    %v713 = vmul.f32 %v712, %v582
    %v714 = vadd.f32 %v710, %v713
    %s715 = sld [smem:[#allocation9 + $0x3]]
    %v716 = vstv %s715
    %v717 = vmul.f32 %v716, %v702
    %v718 = vadd.f32 %v714, %v717
    %s719 = sld [smem:[#allocation9 + $0x4]]
    %v720 = vstv %s719
    %v721 = vmul.f32 %v720, %v342
    %v722 = vadd.f32 %v721, 0.0
    %s723 = sld [smem:[#allocation9 + $0x5]]
    %v724 = vstv %s723
    %v725 = vmul.f32 %v724, %v462
    %v726 = vadd.f32 %v722, %v725
    %s727 = sld [smem:[#allocation9 + $0x6]]
    %v728 = vstv %s727
    %v729 = vmul.f32 %v728, %v582
    %v730 = vadd.f32 %v726, %v729
    %s731 = sld [smem:[#allocation9 + $0x7]]
    %v732 = vstv %s731
    %v733 = vmul.f32 %v732, %v702
    %v734 = vadd.f32 %v730, %v733
    %s735 = sld [smem:[#allocation9 + $0x8]]
    %v736 = vstv %s735
    %v737 = vmul.f32 %v736, %v342
    %v738 = vadd.f32 %v737, 0.0
    %s739 = sld [smem:[#allocation9 + $0x9]]
    %v740 = vstv %s739
    %v741 = vmul.f32 %v740, %v462
    %v742 = vadd.f32 %v738, %v741
    %s743 = sld [smem:[#allocation9 + $0xa]]
    %v744 = vstv %s743
    %v745 = vmul.f32 %v744, %v582
    %v746 = vadd.f32 %v742, %v745
    %s747 = sld [smem:[#allocation9 + $0xb]]
    %v748 = vstv %s747
    %v749 = vmul.f32 %v748, %v702
    %v750 = vadd.f32 %v746, %v749
    %s751 = sld [smem:[#allocation9 + $0xc]]
    %v752 = vstv %s751
    %v753 = vmul.f32 %v752, %v342
    %v754 = vadd.f32 %v753, 0.0
    %s755 = sld [smem:[#allocation9 + $0xd]]
    %v756 = vstv %s755
    %v757 = vmul.f32 %v756, %v462
    %v758 = vadd.f32 %v754, %v757
    %s759 = sld [smem:[#allocation9 + $0xe]]
    %v760 = vstv %s759
    %v761 = vmul.f32 %v760, %v582
    %v762 = vadd.f32 %v758, %v761
    %s763 = sld [smem:[#allocation9 + $0xf]]
    %v764 = vstv %s763
    %v765 = vmul.f32 %v764, %v702
    %v766 = vadd.f32 %v762, %v765
    %s767 = sld [smem:[#allocation4]]
    %v768 = vld [vmem:[#allocation2] sm:$0xff]
    %v769 = vstv %s767
    %v770 = vmul.f32 %v769, %v768
    %v771 = vadd.f32 %v770, 0.0
    %s772 = sld [smem:[#allocation4 + $0x1]]
    %v773 = vld [vmem:[%s173] sm:$0xff]
    %v774 = vstv %s772
    %v775 = vmul.f32 %v774, %v773
    %v776 = vadd.f32 %v771, %v775
    %s777 = sld [smem:[#allocation4 + $0x2]]
    %v778 = vstv %s777
    %v779 = vmul.f32 %v778, %v768
    %781 = vrot.lane.b32.xlu0 %v779, 126
    %v782 = vpop.permute.xlu0 %781
    %v784 = vadd.f32 %v776, %v782
    %s785 = sld [smem:[#allocation4 + $0x3]]
    %v786 = vld [vmem:[%s186] sm:$0xff]
    %v787 = vstv %s785
    %v788 = vmul.f32 %v787, %v786
    %v789 = vadd.f32 %v784, %v788
    %s790 = sld [smem:[#allocation4 + $0x4]]
    %v791 = vld [vmem:[%s197] sm:$0xff]
    %v792 = vstv %s790
    %v793 = vmul.f32 %v792, %v791
    %v794 = vadd.f32 %v789, %v793
    %s795 = sld [smem:[#allocation4 + $0x5]]
    %v796 = vstv %s795
    %v797 = vmul.f32 %v796, %v786
    %799 = vrot.lane.b32.xlu0 %v797, 126
    %v800 = vpop.permute.xlu0 %799
    %v802 = vadd.f32 %v794, %v800
    %s803 = sld [smem:[#allocation4 + $0x6]]
    %v804 = vld [vmem:[#allocation2 + $0x1] sm:$0xff]
    %v805 = vstv %s803
    %v806 = vmul.f32 %v805, %v804
    %v807 = vadd.f32 %v802, %v806
    %s808 = sld [smem:[#allocation4 + $0x7]]
    %v809 = vld [vmem:[%s173 + $0x1] sm:$0xff]
    %v810 = vstv %s808
    %v811 = vmul.f32 %v810, %v809
    %v812 = vadd.f32 %v807, %v811
    %s813 = sld [smem:[#allocation4 + $0x8]]
    %v814 = vstv %s813
    %v815 = vmul.f32 %v814, %v804
    %817 = vrot.lane.b32.xlu0 %v815, 126
    %v818 = vpop.permute.xlu0 %817
    %v820 = vadd.f32 %v812, %v818
    %s821 = sld [smem:[#allocation4 + $0x9]]
    %v822 = vld [vmem:[%s169] sm:$0xff]
    %v823 = vstv %s821
    %v824 = vmul.f32 %v823, %v822
    %v825 = vadd.f32 %v820, %v824
    %s826 = sld [smem:[#allocation4 + $0xa]]
    %v827 = vld [vmem:[%s178] sm:$0xff]
    %v828 = vstv %s826
    %v829 = vmul.f32 %v828, %v827
    %v830 = vadd.f32 %v825, %v829
    %s831 = sld [smem:[#allocation4 + $0xb]]
    %v832 = vstv %s831
    %v833 = vmul.f32 %v832, %v822
    %835 = vrot.lane.b32.xlu0 %v833, 126
    %v836 = vpop.permute.xlu0 %835
    %v838 = vadd.f32 %v830, %v836
    %s839 = sld [smem:[#allocation4 + $0xc]]
    %v840 = vld [vmem:[%s194] sm:$0xff]
    %v841 = vstv %s839
    %v842 = vmul.f32 %v841, %v840
    %v843 = vadd.f32 %v838, %v842
    %s844 = sld [smem:[#allocation4 + $0xd]]
    %v845 = vld [vmem:[%s201] sm:$0xff]
    %v846 = vstv %s844
    %v847 = vmul.f32 %v846, %v845
    %v848 = vadd.f32 %v843, %v847
    %s849 = sld [smem:[#allocation4 + $0xe]]
    %v850 = vstv %s849
    %v851 = vmul.f32 %v850, %v840
    %853 = vrot.lane.b32.xlu0 %v851, 126
    %v854 = vpop.permute.xlu0 %853
    %v856 = vadd.f32 %v848, %v854
    %s857 = sld [smem:[#allocation4 + $0xf]]
    %v858 = vld [vmem:[%s169 + $0x1] sm:$0xff]
    %v859 = vstv %s857
    %v860 = vmul.f32 %v859, %v858
    %v861 = vadd.f32 %v856, %v860
    %s862 = sld [smem:[#allocation4 + $0x10]]
    %v863 = vld [vmem:[%s178 + $0x1] sm:$0xff]
    %v864 = vstv %s862
    %v865 = vmul.f32 %v864, %v863
    %v866 = vadd.f32 %v861, %v865
    %s867 = sld [smem:[#allocation4 + $0x11]]
    %v868 = vstv %s867
    %v869 = vmul.f32 %v868, %v858
    %871 = vrot.lane.b32.xlu0 %v869, 126
    %v872 = vpop.permute.xlu0 %871
    %v874 = vadd.f32 %v866, %v872
    %v875 = vmul.f32 %v769, %v773
    %v876 = vadd.f32 %v875, 0.0
    %v877 = vmul.f32 %v774, %v768
    %879 = vrot.lane.b32.xlu0 %v877, 126
    %v880 = vpop.permute.xlu0 %879
    %v882 = vadd.f32 %v876, %v880
    %v883 = vmul.f32 %v778, %v773
    %885 = vrot.lane.b32.xlu0 %v883, 126
    %v886 = vpop.permute.xlu0 %885
    %v888 = vadd.f32 %v882, %v886
    %v889 = vmul.f32 %v787, %v791
    %v890 = vadd.f32 %v888, %v889
    %v891 = vmul.f32 %v792, %v786
    %893 = vrot.lane.b32.xlu0 %v891, 126
    %v894 = vpop.permute.xlu0 %893
    %v896 = vadd.f32 %v890, %v894
    %v897 = vmul.f32 %v796, %v791
    %899 = vrot.lane.b32.xlu0 %v897, 126
    %v900 = vpop.permute.xlu0 %899
    %v902 = vadd.f32 %v896, %v900
    %v903 = vmul.f32 %v805, %v809
    %v904 = vadd.f32 %v902, %v903
    %v905 = vmul.f32 %v810, %v804
    %907 = vrot.lane.b32.xlu0 %v905, 126
    %v908 = vpop.permute.xlu0 %907
    %v910 = vadd.f32 %v904, %v908
    %v911 = vmul.f32 %v814, %v809
    %913 = vrot.lane.b32.xlu0 %v911, 126
    %v914 = vpop.permute.xlu0 %913
    %v916 = vadd.f32 %v910, %v914
    %v917 = vmul.f32 %v823, %v827
    %v918 = vadd.f32 %v916, %v917
    %v919 = vmul.f32 %v828, %v822
    %921 = vrot.lane.b32.xlu0 %v919, 126
    %v922 = vpop.permute.xlu0 %921
    %v924 = vadd.f32 %v918, %v922
    %v925 = vmul.f32 %v832, %v827
    %927 = vrot.lane.b32.xlu0 %v925, 126
    %v928 = vpop.permute.xlu0 %927
    %v930 = vadd.f32 %v924, %v928
    %v931 = vmul.f32 %v841, %v845
    %v932 = vadd.f32 %v930, %v931
    %v933 = vmul.f32 %v846, %v840
    %935 = vrot.lane.b32.xlu0 %v933, 126
    %v936 = vpop.permute.xlu0 %935
    %v938 = vadd.f32 %v932, %v936
    %v939 = vmul.f32 %v850, %v845
    %941 = vrot.lane.b32.xlu0 %v939, 126
    %v942 = vpop.permute.xlu0 %941
    %v944 = vadd.f32 %v938, %v942
    %v945 = vmul.f32 %v859, %v863
    %v946 = vadd.f32 %v944, %v945
    %v947 = vmul.f32 %v864, %v858
    %949 = vrot.lane.b32.xlu0 %v947, 126
    %v950 = vpop.permute.xlu0 %949
    %v952 = vadd.f32 %v946, %v950
    %v953 = vmul.f32 %v868, %v863
    %955 = vrot.lane.b32.xlu0 %v953, 126
    %v956 = vpop.permute.xlu0 %955
    %v958 = vadd.f32 %v952, %v956
    %v959 = vmul.f32 %v769, %v786
    %v960 = vadd.f32 %v959, 0.0
    %v961 = vmul.f32 %v774, %v791
    %v962 = vadd.f32 %v960, %v961
    %v963 = vmul.f32 %v778, %v786
    %965 = vrot.lane.b32.xlu0 %v963, 126
    %v966 = vpop.permute.xlu0 %965
    %v968 = vadd.f32 %v962, %v966
    %v969 = vmul.f32 %v787, %v804
    %v970 = vadd.f32 %v968, %v969
    %v971 = vmul.f32 %v792, %v809
    %v972 = vadd.f32 %v970, %v971
    %v973 = vmul.f32 %v796, %v804
    %975 = vrot.lane.b32.xlu0 %v973, 126
    %v976 = vpop.permute.xlu0 %975
    %v978 = vadd.f32 %v972, %v976
    %v979 = vld [vmem:[%s186 + $0x1] sm:$0xff]
    %v980 = vmul.f32 %v805, %v979
    %v981 = vadd.f32 %v978, %v980
    %v982 = vld [vmem:[%s197 + $0x1] sm:$0xff]
    %v983 = vmul.f32 %v810, %v982
    %v984 = vadd.f32 %v981, %v983
    %v985 = vmul.f32 %v814, %v979
    %987 = vrot.lane.b32.xlu0 %v985, 126
    %v988 = vpop.permute.xlu0 %987
    %v990 = vadd.f32 %v984, %v988
    %v991 = vmul.f32 %v823, %v840
    %v992 = vadd.f32 %v990, %v991
    %v993 = vmul.f32 %v828, %v845
    %v994 = vadd.f32 %v992, %v993
    %v995 = vmul.f32 %v832, %v840
    %997 = vrot.lane.b32.xlu0 %v995, 126
    %v998 = vpop.permute.xlu0 %997
    %v1000 = vadd.f32 %v994, %v998
    %v1001 = vmul.f32 %v841, %v858
    %v1002 = vadd.f32 %v1000, %v1001
    %v1003 = vmul.f32 %v846, %v863
    %v1004 = vadd.f32 %v1002, %v1003
    %v1005 = vmul.f32 %v850, %v858
    %1007 = vrot.lane.b32.xlu0 %v1005, 126
    %v1008 = vpop.permute.xlu0 %1007
    %v1010 = vadd.f32 %v1004, %v1008
    %v1011 = vld [vmem:[%s194 + $0x1] sm:$0xff]
    %v1012 = vmul.f32 %v859, %v1011
    %v1013 = vadd.f32 %v1010, %v1012
    %v1014 = vld [vmem:[%s201 + $0x1] sm:$0xff]
    %v1015 = vmul.f32 %v864, %v1014
    %v1016 = vadd.f32 %v1013, %v1015
    %v1017 = vmul.f32 %v868, %v1011
    %1019 = vrot.lane.b32.xlu0 %v1017, 126
    %v1020 = vpop.permute.xlu0 %1019
    %v1022 = vadd.f32 %v1016, %v1020
    %v1023 = vmul.f32 %v769, %v791
    %v1024 = vadd.f32 %v1023, 0.0
    %v1025 = vmul.f32 %v774, %v786
    %1027 = vrot.lane.b32.xlu0 %v1025, 126
    %v1028 = vpop.permute.xlu0 %1027
    %v1030 = vadd.f32 %v1024, %v1028
    %v1031 = vmul.f32 %v778, %v791
    %1033 = vrot.lane.b32.xlu0 %v1031, 126
    %v1034 = vpop.permute.xlu0 %1033
    %v1036 = vadd.f32 %v1030, %v1034
    %v1037 = vmul.f32 %v787, %v809
    %v1038 = vadd.f32 %v1036, %v1037
    %v1039 = vmul.f32 %v792, %v804
    %1041 = vrot.lane.b32.xlu0 %v1039, 126
    %v1042 = vpop.permute.xlu0 %1041
    %v1044 = vadd.f32 %v1038, %v1042
    %v1045 = vmul.f32 %v796, %v809
    %1047 = vrot.lane.b32.xlu0 %v1045, 126
    %v1048 = vpop.permute.xlu0 %1047
    %v1050 = vadd.f32 %v1044, %v1048
    %v1051 = vmul.f32 %v805, %v982
    %v1052 = vadd.f32 %v1050, %v1051
    %v1053 = vmul.f32 %v810, %v979
    %1055 = vrot.lane.b32.xlu0 %v1053, 126
    %v1056 = vpop.permute.xlu0 %1055
    %v1058 = vadd.f32 %v1052, %v1056
    %v1059 = vmul.f32 %v814, %v982
    %1061 = vrot.lane.b32.xlu0 %v1059, 126
    %v1062 = vpop.permute.xlu0 %1061
    %v1064 = vadd.f32 %v1058, %v1062
    %v1065 = vmul.f32 %v823, %v845
    %v1066 = vadd.f32 %v1064, %v1065
    %v1067 = vmul.f32 %v828, %v840
    %1069 = vrot.lane.b32.xlu0 %v1067, 126
    %v1070 = vpop.permute.xlu0 %1069
    %v1072 = vadd.f32 %v1066, %v1070
    %v1073 = vmul.f32 %v832, %v845
    %1075 = vrot.lane.b32.xlu0 %v1073, 126
    %v1076 = vpop.permute.xlu0 %1075
    %v1078 = vadd.f32 %v1072, %v1076
    %v1079 = vmul.f32 %v841, %v863
    %v1080 = vadd.f32 %v1078, %v1079
    %v1081 = vmul.f32 %v846, %v858
    %1083 = vrot.lane.b32.xlu0 %v1081, 126
    %v1084 = vpop.permute.xlu0 %1083
    %v1086 = vadd.f32 %v1080, %v1084
    %v1087 = vmul.f32 %v850, %v863
    %1089 = vrot.lane.b32.xlu0 %v1087, 126
    %v1090 = vpop.permute.xlu0 %1089
    %v1092 = vadd.f32 %v1086, %v1090
    %v1093 = vmul.f32 %v859, %v1014
    %v1094 = vadd.f32 %v1092, %v1093
    %v1095 = vmul.f32 %v864, %v1011
    %1097 = vrot.lane.b32.xlu0 %v1095, 126
    %v1098 = vpop.permute.xlu0 %1097
    %v1100 = vadd.f32 %v1094, %v1098
    %v1101 = vmul.f32 %v868, %v1014
    %1103 = vrot.lane.b32.xlu0 %v1101, 126
    %v1104 = vpop.permute.xlu0 %1103
    %v1106 = vadd.f32 %v1100, %v1104
    %v1107 = vadd.f32 %v874, %v958
    %v1108 = vadd.f32 %v1107, %v1022
    %v1109 = vadd.f32 %v1108, %v1106
    %v1110 = vmul.f32 %v1109, 0.25
    %v1111 = vadd.f32 %v874, %v718
    %v1112 = vadd.f32 %v958, %v718
    %v1113 = vadd.f32 %v1022, %v718
    %v1114 = vadd.f32 %v1106, %v718
    %1116 = vrot.lane.b32.xlu0 %v1112, 16
    %v1117 = vpop.permute.xlu0 %1116
    %1120 = vrot.lane.b32.xlu0 %v1113, 32
    %v1121 = vpop.permute.xlu0 %1120
    %1124 = vrot.lane.b32.xlu0 %v1114, 48
    %v1125 = vpop.permute.xlu0 %1124
    %v1127 = vsel %vm174, %v1111, %v1117
    %vm1128 = vcmask 261120
    %v1129 = vsel %vm1128, %v1127, %v1121
    %vm1130 = vcmask 392192
    %v1131 = vsel %vm1130, %v1129, %v1125
    %s1132 = sld [smem:[#allocation11]]
    %s1133 = sld [smem:[#allocation12]]
    %vm1134 = vcmask 523264
    %v1135 = vsel %vm1134, %v1131, 0.0
    %1136 = vadd.xlane.f32.xlu0 %v1135
    %v1137 = vpop.xlane.xlu0 %1136
    %v1138 = vrot.slane %v1137, 4
    %v1139 = vadd.f32 %v1137, %v1138
    %v1140 = vrot.slane %v1139, 2
    %v1141 = vadd.f32 %v1139, %v1140
    %v1142 = vrot.slane %v1141, 1
    %v1143 = vadd.f32 %v1141, %v1142
    %s1144 = vtos %v1143
    %s1145 = smul.f32 %s1144, 0.001953125
    %v1146 = vstv %s1145
    %v1147 = vsub.f32 %v1131, %v1146
    %v1148 = vmul.f32 %v1147, %v1147
    %v1149 = vsel %vm1134, %v1148, 0.0
    %1150 = vadd.xlane.f32.xlu0 %v1149
    %v1151 = vpop.xlane.xlu0 %1150
    %v1152 = vrot.slane %v1151, 4
    %v1153 = vadd.f32 %v1151, %v1152
    %v1154 = vrot.slane %v1153, 2
    %v1155 = vadd.f32 %v1153, %v1154
    %v1156 = vrot.slane %v1155, 1
    %v1157 = vadd.f32 %v1155, %v1156
    %s1158 = vtos %v1157
    %s1159 = smul.f32 %s1158, 0.001953125
    %s1160 = sadd.f32 %s1159, 1e-05
    %v1161 = vstv %s1160
    %v1162 = vrsqrt.pop %v1161
    %s1163 = vtos %v1162
    %v1164 = vstv %s1163
    %v1165 = vmul.f32 %v1147, %v1164
    %v1166 = vstv %s1132
    %v1167 = vmul.f32 %v1165, %v1166
    %v1168 = vstv %s1133
    %v1169 = vadd.f32 %v1167, %v1168
    %v1170 = vmax.f32 %v1169, 0.0
    %1171 = vst.msk [vmem:[%s10] sm:$0xff] %vm1134, %v1170
    %s1172 = sld [smem:[#allocation4 + $0x12]]
    %v1173 = vld [vmem:[#allocation2] sm:$0xff]
    %v1174 = vstv %s1172
    %v1175 = vmul.f32 %v1174, %v1173
    %v1176 = vadd.f32 %v1175, 0.0
    %s1177 = sld [smem:[#allocation4 + $0x13]]
    %v1178 = vld [vmem:[%s173] sm:$0xff]
    %v1179 = vstv %s1177
    %v1180 = vmul.f32 %v1179, %v1178
    %v1181 = vadd.f32 %v1176, %v1180
    %s1182 = sld [smem:[#allocation4 + $0x14]]
    %v1183 = vstv %s1182
    %v1184 = vmul.f32 %v1183, %v1173
    %1186 = vrot.lane.b32.xlu0 %v1184, 126
    %v1187 = vpop.permute.xlu0 %1186
    %v1189 = vadd.f32 %v1181, %v1187
    %s1190 = sld [smem:[#allocation4 + $0x15]]
    %v1191 = vld [vmem:[%s186] sm:$0xff]
    %v1192 = vstv %s1190
    %v1193 = vmul.f32 %v1192, %v1191
    %v1194 = vadd.f32 %v1189, %v1193
    %s1195 = sld [smem:[#allocation4 + $0x16]]
    %v1196 = vld [vmem:[%s197] sm:$0xff]
    %v1197 = vstv %s1195
    %v1198 = vmul.f32 %v1197, %v1196
    %v1199 = vadd.f32 %v1194, %v1198
    %s1200 = sld [smem:[#allocation4 + $0x17]]
    %v1201 = vstv %s1200
    %v1202 = vmul.f32 %v1201, %v1191
    %1204 = vrot.lane.b32.xlu0 %v1202, 126
    %v1205 = vpop.permute.xlu0 %1204
    %v1207 = vadd.f32 %v1199, %v1205
    %s1208 = sld [smem:[#allocation4 + $0x18]]
    %v1209 = vld [vmem:[#allocation2 + $0x1] sm:$0xff]
    %v1210 = vstv %s1208
    %v1211 = vmul.f32 %v1210, %v1209
    %v1212 = vadd.f32 %v1207, %v1211
    %s1213 = sld [smem:[#allocation4 + $0x19]]
    %v1214 = vld [vmem:[%s173 + $0x1] sm:$0xff]
    %v1215 = vstv %s1213
    %v1216 = vmul.f32 %v1215, %v1214
    %v1217 = vadd.f32 %v1212, %v1216
    %s1218 = sld [smem:[#allocation4 + $0x1a]]
    %v1219 = vstv %s1218
    %v1220 = vmul.f32 %v1219, %v1209
    %1222 = vrot.lane.b32.xlu0 %v1220, 126
    %v1223 = vpop.permute.xlu0 %1222
    %v1225 = vadd.f32 %v1217, %v1223
    %s1226 = sld [smem:[#allocation4 + $0x1b]]
    %v1227 = vld [vmem:[%s169] sm:$0xff]
    %v1228 = vstv %s1226
    %v1229 = vmul.f32 %v1228, %v1227
    %v1230 = vadd.f32 %v1225, %v1229
    %s1231 = sld [smem:[#allocation4 + $0x1c]]
    %v1232 = vld [vmem:[%s178] sm:$0xff]
    %v1233 = vstv %s1231
    %v1234 = vmul.f32 %v1233, %v1232
    %v1235 = vadd.f32 %v1230, %v1234
    %s1236 = sld [smem:[#allocation4 + $0x1d]]
    %v1237 = vstv %s1236
    %v1238 = vmul.f32 %v1237, %v1227
    %1240 = vrot.lane.b32.xlu0 %v1238, 126
    %v1241 = vpop.permute.xlu0 %1240
    %v1243 = vadd.f32 %v1235, %v1241
    %s1244 = sld [smem:[#allocation4 + $0x1e]]
    %v1245 = vld [vmem:[%s194] sm:$0xff]
    %v1246 = vstv %s1244
    %v1247 = vmul.f32 %v1246, %v1245
    %v1248 = vadd.f32 %v1243, %v1247
    %s1249 = sld [smem:[#allocation4 + $0x1f]]
    %v1250 = vld [vmem:[%s201] sm:$0xff]
    %v1251 = vstv %s1249
    %v1252 = vmul.f32 %v1251, %v1250
    %v1253 = vadd.f32 %v1248, %v1252
    %s1254 = sld [smem:[#allocation4 + $0x20]]
    %v1255 = vstv %s1254
    %v1256 = vmul.f32 %v1255, %v1245
    %1258 = vrot.lane.b32.xlu0 %v1256, 126
    %v1259 = vpop.permute.xlu0 %1258
    %v1261 = vadd.f32 %v1253, %v1259
    %s1262 = sld [smem:[#allocation4 + $0x21]]
    %v1263 = vld [vmem:[%s169 + $0x1] sm:$0xff]
    %v1264 = vstv %s1262
    %v1265 = vmul.f32 %v1264, %v1263
    %v1266 = vadd.f32 %v1261, %v1265
    %s1267 = sld [smem:[#allocation4 + $0x22]]
    %v1268 = vld [vmem:[%s178 + $0x1] sm:$0xff]
    %v1269 = vstv %s1267
    %v1270 = vmul.f32 %v1269, %v1268
    %v1271 = vadd.f32 %v1266, %v1270
    %s1272 = sld [smem:[#allocation4 + $0x23]]
    %v1273 = vstv %s1272
    %v1274 = vmul.f32 %v1273, %v1263
    %1276 = vrot.lane.b32.xlu0 %v1274, 126
    %v1277 = vpop.permute.xlu0 %1276
    %v1279 = vadd.f32 %v1271, %v1277
    %v1280 = vmul.f32 %v1174, %v1178
    %v1281 = vadd.f32 %v1280, 0.0
    %v1282 = vmul.f32 %v1179, %v1173
    %1284 = vrot.lane.b32.xlu0 %v1282, 126
    %v1285 = vpop.permute.xlu0 %1284
    %v1287 = vadd.f32 %v1281, %v1285
    %v1288 = vmul.f32 %v1183, %v1178
    %1290 = vrot.lane.b32.xlu0 %v1288, 126
    %v1291 = vpop.permute.xlu0 %1290
    %v1293 = vadd.f32 %v1287, %v1291
    %v1294 = vmul.f32 %v1192, %v1196
    %v1295 = vadd.f32 %v1293, %v1294
    %v1296 = vmul.f32 %v1197, %v1191
    %1298 = vrot.lane.b32.xlu0 %v1296, 126
    %v1299 = vpop.permute.xlu0 %1298
    %v1301 = vadd.f32 %v1295, %v1299
    %v1302 = vmul.f32 %v1201, %v1196
    %1304 = vrot.lane.b32.xlu0 %v1302, 126
    %v1305 = vpop.permute.xlu0 %1304
    %v1307 = vadd.f32 %v1301, %v1305
    %v1308 = vmul.f32 %v1210, %v1214
    %v1309 = vadd.f32 %v1307, %v1308
    %v1310 = vmul.f32 %v1215, %v1209
    %1312 = vrot.lane.b32.xlu0 %v1310, 126
    %v1313 = vpop.permute.xlu0 %1312
    %v1315 = vadd.f32 %v1309, %v1313
    %v1316 = vmul.f32 %v1219, %v1214
    %1318 = vrot.lane.b32.xlu0 %v1316, 126
    %v1319 = vpop.permute.xlu0 %1318
    %v1321 = vadd.f32 %v1315, %v1319
    %v1322 = vmul.f32 %v1228, %v1232
    %v1323 = vadd.f32 %v1321, %v1322
    %v1324 = vmul.f32 %v1233, %v1227
    %1326 = vrot.lane.b32.xlu0 %v1324, 126
    %v1327 = vpop.permute.xlu0 %1326
    %v1329 = vadd.f32 %v1323, %v1327
    %v1330 = vmul.f32 %v1237, %v1232
    %1332 = vrot.lane.b32.xlu0 %v1330, 126
    %v1333 = vpop.permute.xlu0 %1332
    %v1335 = vadd.f32 %v1329, %v1333
    %v1336 = vmul.f32 %v1246, %v1250
    %v1337 = vadd.f32 %v1335, %v1336
    %v1338 = vmul.f32 %v1251, %v1245
    %1340 = vrot.lane.b32.xlu0 %v1338, 126
    %v1341 = vpop.permute.xlu0 %1340
    %v1343 = vadd.f32 %v1337, %v1341
    %v1344 = vmul.f32 %v1255, %v1250
    %1346 = vrot.lane.b32.xlu0 %v1344, 126
    %v1347 = vpop.permute.xlu0 %1346
    %v1349 = vadd.f32 %v1343, %v1347
    %v1350 = vmul.f32 %v1264, %v1268
    %v1351 = vadd.f32 %v1349, %v1350
    %v1352 = vmul.f32 %v1269, %v1263
    %1354 = vrot.lane.b32.xlu0 %v1352, 126
    %v1355 = vpop.permute.xlu0 %1354
    %v1357 = vadd.f32 %v1351, %v1355
    %v1358 = vmul.f32 %v1273, %v1268
    %1360 = vrot.lane.b32.xlu0 %v1358, 126
    %v1361 = vpop.permute.xlu0 %1360
    %v1363 = vadd.f32 %v1357, %v1361
    %v1364 = vmul.f32 %v1174, %v1191
    %v1365 = vadd.f32 %v1364, 0.0
    %v1366 = vmul.f32 %v1179, %v1196
    %v1367 = vadd.f32 %v1365, %v1366
    %v1368 = vmul.f32 %v1183, %v1191
    %1370 = vrot.lane.b32.xlu0 %v1368, 126
    %v1371 = vpop.permute.xlu0 %1370
    %v1373 = vadd.f32 %v1367, %v1371
    %v1374 = vmul.f32 %v1192, %v1209
    %v1375 = vadd.f32 %v1373, %v1374
    %v1376 = vmul.f32 %v1197, %v1214
    %v1377 = vadd.f32 %v1375, %v1376
    %v1378 = vmul.f32 %v1201, %v1209
    %1380 = vrot.lane.b32.xlu0 %v1378, 126
    %v1381 = vpop.permute.xlu0 %1380
    %v1383 = vadd.f32 %v1377, %v1381
    %v1384 = vld [vmem:[%s186 + $0x1] sm:$0xff]
    %v1385 = vmul.f32 %v1210, %v1384
    %v1386 = vadd.f32 %v1383, %v1385
    %v1387 = vld [vmem:[%s197 + $0x1] sm:$0xff]
    %v1388 = vmul.f32 %v1215, %v1387
    %v1389 = vadd.f32 %v1386, %v1388
    %v1390 = vmul.f32 %v1219, %v1384
    %1392 = vrot.lane.b32.xlu0 %v1390, 126
    %v1393 = vpop.permute.xlu0 %1392
    %v1395 = vadd.f32 %v1389, %v1393
    %v1396 = vmul.f32 %v1228, %v1245
    %v1397 = vadd.f32 %v1395, %v1396
    %v1398 = vmul.f32 %v1233, %v1250
    %v1399 = vadd.f32 %v1397, %v1398
    %v1400 = vmul.f32 %v1237, %v1245
    %1402 = vrot.lane.b32.xlu0 %v1400, 126
    %v1403 = vpop.permute.xlu0 %1402
    %v1405 = vadd.f32 %v1399, %v1403
    %v1406 = vmul.f32 %v1246, %v1263
    %v1407 = vadd.f32 %v1405, %v1406
    %v1408 = vmul.f32 %v1251, %v1268
    %v1409 = vadd.f32 %v1407, %v1408
    %v1410 = vmul.f32 %v1255, %v1263
    %1412 = vrot.lane.b32.xlu0 %v1410, 126
    %v1413 = vpop.permute.xlu0 %1412
    %v1415 = vadd.f32 %v1409, %v1413
    %v1416 = vld [vmem:[%s194 + $0x1] sm:$0xff]
    %v1417 = vmul.f32 %v1264, %v1416
    %v1418 = vadd.f32 %v1415, %v1417
    %v1419 = vld [vmem:[%s201 + $0x1] sm:$0xff]
    %v1420 = vmul.f32 %v1269, %v1419
    %v1421 = vadd.f32 %v1418, %v1420
    %v1422 = vmul.f32 %v1273, %v1416
    %1424 = vrot.lane.b32.xlu0 %v1422, 126
    %v1425 = vpop.permute.xlu0 %1424
    %v1427 = vadd.f32 %v1421, %v1425
    %v1428 = vmul.f32 %v1174, %v1196
    %v1429 = vadd.f32 %v1428, 0.0
    %v1430 = vmul.f32 %v1179, %v1191
    %1432 = vrot.lane.b32.xlu0 %v1430, 126
    %v1433 = vpop.permute.xlu0 %1432
    %v1435 = vadd.f32 %v1429, %v1433
    %v1436 = vmul.f32 %v1183, %v1196
    %1438 = vrot.lane.b32.xlu0 %v1436, 126
    %v1439 = vpop.permute.xlu0 %1438
    %v1441 = vadd.f32 %v1435, %v1439
    %v1442 = vmul.f32 %v1192, %v1214
    %v1443 = vadd.f32 %v1441, %v1442
    %v1444 = vmul.f32 %v1197, %v1209
    %1446 = vrot.lane.b32.xlu0 %v1444, 126
    %v1447 = vpop.permute.xlu0 %1446
    %v1449 = vadd.f32 %v1443, %v1447
    %v1450 = vmul.f32 %v1201, %v1214
    %1452 = vrot.lane.b32.xlu0 %v1450, 126
    %v1453 = vpop.permute.xlu0 %1452
    %v1455 = vadd.f32 %v1449, %v1453
    %v1456 = vmul.f32 %v1210, %v1387
    %v1457 = vadd.f32 %v1455, %v1456
    %v1458 = vmul.f32 %v1215, %v1384
    %1460 = vrot.lane.b32.xlu0 %v1458, 126
    %v1461 = vpop.permute.xlu0 %1460
    %v1463 = vadd.f32 %v1457, %v1461
    %v1464 = vmul.f32 %v1219, %v1387
    %1466 = vrot.lane.b32.xlu0 %v1464, 126
    %v1467 = vpop.permute.xlu0 %1466
    %v1469 = vadd.f32 %v1463, %v1467
    %v1470 = vmul.f32 %v1228, %v1250
    %v1471 = vadd.f32 %v1469, %v1470
    %v1472 = vmul.f32 %v1233, %v1245
    %1474 = vrot.lane.b32.xlu0 %v1472, 126
    %v1475 = vpop.permute.xlu0 %1474
    %v1477 = vadd.f32 %v1471, %v1475
    %v1478 = vmul.f32 %v1237, %v1250
    %1480 = vrot.lane.b32.xlu0 %v1478, 126
    %v1481 = vpop.permute.xlu0 %1480
    %v1483 = vadd.f32 %v1477, %v1481
    %v1484 = vmul.f32 %v1246, %v1268
    %v1485 = vadd.f32 %v1483, %v1484
    %v1486 = vmul.f32 %v1251, %v1263
    %1488 = vrot.lane.b32.xlu0 %v1486, 126
    %v1489 = vpop.permute.xlu0 %1488
    %v1491 = vadd.f32 %v1485, %v1489
    %v1492 = vmul.f32 %v1255, %v1268
    %1494 = vrot.lane.b32.xlu0 %v1492, 126
    %v1495 = vpop.permute.xlu0 %1494
    %v1497 = vadd.f32 %v1491, %v1495
    %v1498 = vmul.f32 %v1264, %v1419
    %v1499 = vadd.f32 %v1497, %v1498
    %v1500 = vmul.f32 %v1269, %v1416
    %1502 = vrot.lane.b32.xlu0 %v1500, 126
    %v1503 = vpop.permute.xlu0 %1502
    %v1505 = vadd.f32 %v1499, %v1503
    %v1506 = vmul.f32 %v1273, %v1419
    %1508 = vrot.lane.b32.xlu0 %v1506, 126
    %v1509 = vpop.permute.xlu0 %1508
    %v1511 = vadd.f32 %v1505, %v1509
    %v1512 = vadd.f32 %v1279, %v1363
    %v1513 = vadd.f32 %v1512, %v1427
    %v1514 = vadd.f32 %v1513, %v1511
    %v1515 = vmul.f32 %v1514, 0.25
    %v1516 = vadd.f32 %v1279, %v734
    %v1517 = vadd.f32 %v1363, %v734
    %v1518 = vadd.f32 %v1427, %v734
    %v1519 = vadd.f32 %v1511, %v734
    %1521 = vrot.lane.b32.xlu0 %v1517, 16
    %v1522 = vpop.permute.xlu0 %1521
    %1525 = vrot.lane.b32.xlu0 %v1518, 32
    %v1526 = vpop.permute.xlu0 %1525
    %1529 = vrot.lane.b32.xlu0 %v1519, 48
    %v1530 = vpop.permute.xlu0 %1529
    %v1532 = vsel %vm174, %v1516, %v1522
    %v1533 = vsel %vm1128, %v1532, %v1526
    %v1534 = vsel %vm1130, %v1533, %v1530
    %s1535 = sld [smem:[#allocation11 + $0x1]]
    %s1536 = sld [smem:[#allocation12 + $0x1]]
    %v1537 = vsel %vm1134, %v1534, 0.0
    %1538 = vadd.xlane.f32.xlu0 %v1537
    %v1539 = vpop.xlane.xlu0 %1538
    %v1540 = vrot.slane %v1539, 4
    %v1541 = vadd.f32 %v1539, %v1540
    %v1542 = vrot.slane %v1541, 2
    %v1543 = vadd.f32 %v1541, %v1542
    %v1544 = vrot.slane %v1543, 1
    %v1545 = vadd.f32 %v1543, %v1544
    %s1546 = vtos %v1545
    %s1547 = smul.f32 %s1546, 0.001953125
    %v1548 = vstv %s1547
    %v1549 = vsub.f32 %v1534, %v1548
    %v1550 = vmul.f32 %v1549, %v1549
    %v1551 = vsel %vm1134, %v1550, 0.0
    %1552 = vadd.xlane.f32.xlu0 %v1551
    %v1553 = vpop.xlane.xlu0 %1552
    %v1554 = vrot.slane %v1553, 4
    %v1555 = vadd.f32 %v1553, %v1554
    %v1556 = vrot.slane %v1555, 2
    %v1557 = vadd.f32 %v1555, %v1556
    %v1558 = vrot.slane %v1557, 1
    %v1559 = vadd.f32 %v1557, %v1558
    %s1560 = vtos %v1559
    %s1561 = smul.f32 %s1560, 0.001953125
    %s1562 = sadd.f32 %s1561, 1e-05
    %v1563 = vstv %s1562
    %v1564 = vrsqrt.pop %v1563
    %s1565 = vtos %v1564
    %v1566 = vstv %s1565
    %v1567 = vmul.f32 %v1549, %v1566
    %v1568 = vstv %s1535
    %v1569 = vmul.f32 %v1567, %v1568
    %v1570 = vstv %s1536
    %v1571 = vadd.f32 %v1569, %v1570
    %v1572 = vmax.f32 %v1571, 0.0
    %s1573 = scalar_lea.vmem %s10, 8
    %1574 = vst.msk [vmem:[%s1573] sm:$0xff] %vm1134, %v1572
    %s1575 = sld [smem:[#allocation4 + $0x24]]
    %v1576 = vld [vmem:[#allocation2] sm:$0xff]
    %v1577 = vstv %s1575
    %v1578 = vmul.f32 %v1577, %v1576
    %v1579 = vadd.f32 %v1578, 0.0
    %s1580 = sld [smem:[#allocation4 + $0x25]]
    %v1581 = vld [vmem:[%s173] sm:$0xff]
    %v1582 = vstv %s1580
    %v1583 = vmul.f32 %v1582, %v1581
    %v1584 = vadd.f32 %v1579, %v1583
    %s1585 = sld [smem:[#allocation4 + $0x26]]
    %v1586 = vstv %s1585
    %v1587 = vmul.f32 %v1586, %v1576
    %1589 = vrot.lane.b32.xlu0 %v1587, 126
    %v1590 = vpop.permute.xlu0 %1589
    %v1592 = vadd.f32 %v1584, %v1590
    %s1593 = sld [smem:[#allocation4 + $0x27]]
    %v1594 = vld [vmem:[%s186] sm:$0xff]
    %v1595 = vstv %s1593
    %v1596 = vmul.f32 %v1595, %v1594
    %v1597 = vadd.f32 %v1592, %v1596
    %s1598 = sld [smem:[#allocation4 + $0x28]]
    %v1599 = vld [vmem:[%s197] sm:$0xff]
    %v1600 = vstv %s1598
    %v1601 = vmul.f32 %v1600, %v1599
    %v1602 = vadd.f32 %v1597, %v1601
    %s1603 = sld [smem:[#allocation4 + $0x29]]
    %v1604 = vstv %s1603
    %v1605 = vmul.f32 %v1604, %v1594
    %1607 = vrot.lane.b32.xlu0 %v1605, 126
    %v1608 = vpop.permute.xlu0 %1607
    %v1610 = vadd.f32 %v1602, %v1608
    %s1611 = sld [smem:[#allocation4 + $0x2a]]
    %v1612 = vld [vmem:[#allocation2 + $0x1] sm:$0xff]
    %v1613 = vstv %s1611
    %v1614 = vmul.f32 %v1613, %v1612
    %v1615 = vadd.f32 %v1610, %v1614
    %s1616 = sld [smem:[#allocation4 + $0x2b]]
    %v1617 = vld [vmem:[%s173 + $0x1] sm:$0xff]
    %v1618 = vstv %s1616
    %v1619 = vmul.f32 %v1618, %v1617
    %v1620 = vadd.f32 %v1615, %v1619
    %s1621 = sld [smem:[#allocation4 + $0x2c]]
    %v1622 = vstv %s1621
    %v1623 = vmul.f32 %v1622, %v1612
    %1625 = vrot.lane.b32.xlu0 %v1623, 126
    %v1626 = vpop.permute.xlu0 %1625
    %v1628 = vadd.f32 %v1620, %v1626
    %s1629 = sld [smem:[#allocation4 + $0x2d]]
    %v1630 = vld [vmem:[%s169] sm:$0xff]
    %v1631 = vstv %s1629
    %v1632 = vmul.f32 %v1631, %v1630
    %v1633 = vadd.f32 %v1628, %v1632
    %s1634 = sld [smem:[#allocation4 + $0x2e]]
    %v1635 = vld [vmem:[%s178] sm:$0xff]
    %v1636 = vstv %s1634
    %v1637 = vmul.f32 %v1636, %v1635
    %v1638 = vadd.f32 %v1633, %v1637
    %s1639 = sld [smem:[#allocation4 + $0x2f]]
    %v1640 = vstv %s1639
    %v1641 = vmul.f32 %v1640, %v1630
    %1643 = vrot.lane.b32.xlu0 %v1641, 126
    %v1644 = vpop.permute.xlu0 %1643
    %v1646 = vadd.f32 %v1638, %v1644
    %s1647 = sld [smem:[#allocation4 + $0x30]]
    %v1648 = vld [vmem:[%s194] sm:$0xff]
    %v1649 = vstv %s1647
    %v1650 = vmul.f32 %v1649, %v1648
    %v1651 = vadd.f32 %v1646, %v1650
    %s1652 = sld [smem:[#allocation4 + $0x31]]
    %v1653 = vld [vmem:[%s201] sm:$0xff]
    %v1654 = vstv %s1652
    %v1655 = vmul.f32 %v1654, %v1653
    %v1656 = vadd.f32 %v1651, %v1655
    %s1657 = sld [smem:[#allocation4 + $0x32]]
    %v1658 = vstv %s1657
    %v1659 = vmul.f32 %v1658, %v1648
    %1661 = vrot.lane.b32.xlu0 %v1659, 126
    %v1662 = vpop.permute.xlu0 %1661
    %v1664 = vadd.f32 %v1656, %v1662
    %s1665 = sld [smem:[#allocation4 + $0x33]]
    %v1666 = vld [vmem:[%s169 + $0x1] sm:$0xff]
    %v1667 = vstv %s1665
    %v1668 = vmul.f32 %v1667, %v1666
    %v1669 = vadd.f32 %v1664, %v1668
    %s1670 = sld [smem:[#allocation4 + $0x34]]
    %v1671 = vld [vmem:[%s178 + $0x1] sm:$0xff]
    %v1672 = vstv %s1670
    %v1673 = vmul.f32 %v1672, %v1671
    %v1674 = vadd.f32 %v1669, %v1673
    %s1675 = sld [smem:[#allocation4 + $0x35]]
    %v1676 = vstv %s1675
    %v1677 = vmul.f32 %v1676, %v1666
    %1679 = vrot.lane.b32.xlu0 %v1677, 126
    %v1680 = vpop.permute.xlu0 %1679
    %v1682 = vadd.f32 %v1674, %v1680
    %v1683 = vmul.f32 %v1577, %v1581
    %v1684 = vadd.f32 %v1683, 0.0
    %v1685 = vmul.f32 %v1582, %v1576
    %1687 = vrot.lane.b32.xlu0 %v1685, 126
    %v1688 = vpop.permute.xlu0 %1687
    %v1690 = vadd.f32 %v1684, %v1688
    %v1691 = vmul.f32 %v1586, %v1581
    %1693 = vrot.lane.b32.xlu0 %v1691, 126
    %v1694 = vpop.permute.xlu0 %1693
    %v1696 = vadd.f32 %v1690, %v1694
    %v1697 = vmul.f32 %v1595, %v1599
    %v1698 = vadd.f32 %v1696, %v1697
    %v1699 = vmul.f32 %v1600, %v1594
    %1701 = vrot.lane.b32.xlu0 %v1699, 126
    %v1702 = vpop.permute.xlu0 %1701
    %v1704 = vadd.f32 %v1698, %v1702
    %v1705 = vmul.f32 %v1604, %v1599
    %1707 = vrot.lane.b32.xlu0 %v1705, 126
    %v1708 = vpop.permute.xlu0 %1707
    %v1710 = vadd.f32 %v1704, %v1708
    %v1711 = vmul.f32 %v1613, %v1617
    %v1712 = vadd.f32 %v1710, %v1711
    %v1713 = vmul.f32 %v1618, %v1612
    %1715 = vrot.lane.b32.xlu0 %v1713, 126
    %v1716 = vpop.permute.xlu0 %1715
    %v1718 = vadd.f32 %v1712, %v1716
    %v1719 = vmul.f32 %v1622, %v1617
    %1721 = vrot.lane.b32.xlu0 %v1719, 126
    %v1722 = vpop.permute.xlu0 %1721
    %v1724 = vadd.f32 %v1718, %v1722
    %v1725 = vmul.f32 %v1631, %v1635
    %v1726 = vadd.f32 %v1724, %v1725
    %v1727 = vmul.f32 %v1636, %v1630
    %1729 = vrot.lane.b32.xlu0 %v1727, 126
    %v1730 = vpop.permute.xlu0 %1729
    %v1732 = vadd.f32 %v1726, %v1730
    %v1733 = vmul.f32 %v1640, %v1635
    %1735 = vrot.lane.b32.xlu0 %v1733, 126
    %v1736 = vpop.permute.xlu0 %1735
    %v1738 = vadd.f32 %v1732, %v1736
    %v1739 = vmul.f32 %v1649, %v1653
    %v1740 = vadd.f32 %v1738, %v1739
    %v1741 = vmul.f32 %v1654, %v1648
    %1743 = vrot.lane.b32.xlu0 %v1741, 126
    %v1744 = vpop.permute.xlu0 %1743
    %v1746 = vadd.f32 %v1740, %v1744
    %v1747 = vmul.f32 %v1658, %v1653
    %1749 = vrot.lane.b32.xlu0 %v1747, 126
    %v1750 = vpop.permute.xlu0 %1749
    %v1752 = vadd.f32 %v1746, %v1750
    %v1753 = vmul.f32 %v1667, %v1671
    %v1754 = vadd.f32 %v1752, %v1753
    %v1755 = vmul.f32 %v1672, %v1666
    %1757 = vrot.lane.b32.xlu0 %v1755, 126
    %v1758 = vpop.permute.xlu0 %1757
    %v1760 = vadd.f32 %v1754, %v1758
    %v1761 = vmul.f32 %v1676, %v1671
    %1763 = vrot.lane.b32.xlu0 %v1761, 126
    %v1764 = vpop.permute.xlu0 %1763
    %v1766 = vadd.f32 %v1760, %v1764
    %v1767 = vmul.f32 %v1577, %v1594
    %v1768 = vadd.f32 %v1767, 0.0
    %v1769 = vmul.f32 %v1582, %v1599
    %v1770 = vadd.f32 %v1768, %v1769
    %v1771 = vmul.f32 %v1586, %v1594
    %1773 = vrot.lane.b32.xlu0 %v1771, 126
    %v1774 = vpop.permute.xlu0 %1773
    %v1776 = vadd.f32 %v1770, %v1774
    %v1777 = vmul.f32 %v1595, %v1612
    %v1778 = vadd.f32 %v1776, %v1777
    %v1779 = vmul.f32 %v1600, %v1617
    %v1780 = vadd.f32 %v1778, %v1779
    %v1781 = vmul.f32 %v1604, %v1612
    %1783 = vrot.lane.b32.xlu0 %v1781, 126
    %v1784 = vpop.permute.xlu0 %1783
    %v1786 = vadd.f32 %v1780, %v1784
    %v1787 = vld [vmem:[%s186 + $0x1] sm:$0xff]
    %v1788 = vmul.f32 %v1613, %v1787
    %v1789 = vadd.f32 %v1786, %v1788
    %v1790 = vld [vmem:[%s197 + $0x1] sm:$0xff]
    %v1791 = vmul.f32 %v1618, %v1790
    %v1792 = vadd.f32 %v1789, %v1791
    %v1793 = vmul.f32 %v1622, %v1787
    %1795 = vrot.lane.b32.xlu0 %v1793, 126
    %v1796 = vpop.permute.xlu0 %1795
    %v1798 = vadd.f32 %v1792, %v1796
    %v1799 = vmul.f32 %v1631, %v1648
    %v1800 = vadd.f32 %v1798, %v1799
    %v1801 = vmul.f32 %v1636, %v1653
    %v1802 = vadd.f32 %v1800, %v1801
    %v1803 = vmul.f32 %v1640, %v1648
    %1805 = vrot.lane.b32.xlu0 %v1803, 126
    %v1806 = vpop.permute.xlu0 %1805
    %v1808 = vadd.f32 %v1802, %v1806
    %v1809 = vmul.f32 %v1649, %v1666
    %v1810 = vadd.f32 %v1808, %v1809
    %v1811 = vmul.f32 %v1654, %v1671
    %v1812 = vadd.f32 %v1810, %v1811
    %v1813 = vmul.f32 %v1658, %v1666
    %1815 = vrot.lane.b32.xlu0 %v1813, 126
    %v1816 = vpop.permute.xlu0 %1815
    %v1818 = vadd.f32 %v1812, %v1816
    %v1819 = vld [vmem:[%s194 + $0x1] sm:$0xff]
    %v1820 = vmul.f32 %v1667, %v1819
    %v1821 = vadd.f32 %v1818, %v1820
    %v1822 = vld [vmem:[%s201 + $0x1] sm:$0xff]
    %v1823 = vmul.f32 %v1672, %v1822
    %v1824 = vadd.f32 %v1821, %v1823
    %v1825 = vmul.f32 %v1676, %v1819
    %1827 = vrot.lane.b32.xlu0 %v1825, 126
    %v1828 = vpop.permute.xlu0 %1827
    %v1830 = vadd.f32 %v1824, %v1828
    %v1831 = vmul.f32 %v1577, %v1599
    %v1832 = vadd.f32 %v1831, 0.0
    %v1833 = vmul.f32 %v1582, %v1594
    %1835 = vrot.lane.b32.xlu0 %v1833, 126
    %v1836 = vpop.permute.xlu0 %1835
    %v1838 = vadd.f32 %v1832, %v1836
    %v1839 = vmul.f32 %v1586, %v1599
    %1841 = vrot.lane.b32.xlu0 %v1839, 126
    %v1842 = vpop.permute.xlu0 %1841
    %v1844 = vadd.f32 %v1838, %v1842
    %v1845 = vmul.f32 %v1595, %v1617
    %v1846 = vadd.f32 %v1844, %v1845
    %v1847 = vmul.f32 %v1600, %v1612
    %1849 = vrot.lane.b32.xlu0 %v1847, 126
    %v1850 = vpop.permute.xlu0 %1849
    %v1852 = vadd.f32 %v1846, %v1850
    %v1853 = vmul.f32 %v1604, %v1617
    %1855 = vrot.lane.b32.xlu0 %v1853, 126
    %v1856 = vpop.permute.xlu0 %1855
    %v1858 = vadd.f32 %v1852, %v1856
    %v1859 = vmul.f32 %v1613, %v1790
    %v1860 = vadd.f32 %v1858, %v1859
    %v1861 = vmul.f32 %v1618, %v1787
    %1863 = vrot.lane.b32.xlu0 %v1861, 126
    %v1864 = vpop.permute.xlu0 %1863
    %v1866 = vadd.f32 %v1860, %v1864
    %v1867 = vmul.f32 %v1622, %v1790
    %1869 = vrot.lane.b32.xlu0 %v1867, 126
    %v1870 = vpop.permute.xlu0 %1869
    %v1872 = vadd.f32 %v1866, %v1870
    %v1873 = vmul.f32 %v1631, %v1653
    %v1874 = vadd.f32 %v1872, %v1873
    %v1875 = vmul.f32 %v1636, %v1648
    %1877 = vrot.lane.b32.xlu0 %v1875, 126
    %v1878 = vpop.permute.xlu0 %1877
    %v1880 = vadd.f32 %v1874, %v1878
    %v1881 = vmul.f32 %v1640, %v1653
    %1883 = vrot.lane.b32.xlu0 %v1881, 126
    %v1884 = vpop.permute.xlu0 %1883
    %v1886 = vadd.f32 %v1880, %v1884
    %v1887 = vmul.f32 %v1649, %v1671
    %v1888 = vadd.f32 %v1886, %v1887
    %v1889 = vmul.f32 %v1654, %v1666
    %1891 = vrot.lane.b32.xlu0 %v1889, 126
    %v1892 = vpop.permute.xlu0 %1891
    %v1894 = vadd.f32 %v1888, %v1892
    %v1895 = vmul.f32 %v1658, %v1671
    %1897 = vrot.lane.b32.xlu0 %v1895, 126
    %v1898 = vpop.permute.xlu0 %1897
    %v1900 = vadd.f32 %v1894, %v1898
    %v1901 = vmul.f32 %v1667, %v1822
    %v1902 = vadd.f32 %v1900, %v1901
    %v1903 = vmul.f32 %v1672, %v1819
    %1905 = vrot.lane.b32.xlu0 %v1903, 126
    %v1906 = vpop.permute.xlu0 %1905
    %v1908 = vadd.f32 %v1902, %v1906
    %v1909 = vmul.f32 %v1676, %v1822
    %1911 = vrot.lane.b32.xlu0 %v1909, 126
    %v1912 = vpop.permute.xlu0 %1911
    %v1914 = vadd.f32 %v1908, %v1912
    %v1915 = vadd.f32 %v1682, %v1766
    %v1916 = vadd.f32 %v1915, %v1830
    %v1917 = vadd.f32 %v1916, %v1914
    %v1918 = vmul.f32 %v1917, 0.25
    %v1919 = vadd.f32 %v1682, %v750
    %v1920 = vadd.f32 %v1766, %v750
    %v1921 = vadd.f32 %v1830, %v750
    %v1922 = vadd.f32 %v1914, %v750
    %1924 = vrot.lane.b32.xlu0 %v1920, 16
    %v1925 = vpop.permute.xlu0 %1924
    %1928 = vrot.lane.b32.xlu0 %v1921, 32
    %v1929 = vpop.permute.xlu0 %1928
    %1932 = vrot.lane.b32.xlu0 %v1922, 48
    %v1933 = vpop.permute.xlu0 %1932
    %v1935 = vsel %vm174, %v1919, %v1925
    %v1936 = vsel %vm1128, %v1935, %v1929
    %v1937 = vsel %vm1130, %v1936, %v1933
    %s1938 = sld [smem:[#allocation11 + $0x2]]
    %s1939 = sld [smem:[#allocation12 + $0x2]]
    %v1940 = vsel %vm1134, %v1937, 0.0
    %1941 = vadd.xlane.f32.xlu0 %v1940
    %v1942 = vpop.xlane.xlu0 %1941
    %v1943 = vrot.slane %v1942, 4
    %v1944 = vadd.f32 %v1942, %v1943
    %v1945 = vrot.slane %v1944, 2
    %v1946 = vadd.f32 %v1944, %v1945
    %v1947 = vrot.slane %v1946, 1
    %v1948 = vadd.f32 %v1946, %v1947
    %s1949 = vtos %v1948
    %s1950 = smul.f32 %s1949, 0.001953125
    %v1951 = vstv %s1950
    %v1952 = vsub.f32 %v1937, %v1951
    %v1953 = vmul.f32 %v1952, %v1952
    %v1954 = vsel %vm1134, %v1953, 0.0
    %1955 = vadd.xlane.f32.xlu0 %v1954
    %v1956 = vpop.xlane.xlu0 %1955
    %v1957 = vrot.slane %v1956, 4
    %v1958 = vadd.f32 %v1956, %v1957
    %v1959 = vrot.slane %v1958, 2
    %v1960 = vadd.f32 %v1958, %v1959
    %v1961 = vrot.slane %v1960, 1
    %v1962 = vadd.f32 %v1960, %v1961
    %s1963 = vtos %v1962
    %s1964 = smul.f32 %s1963, 0.001953125
    %s1965 = sadd.f32 %s1964, 1e-05
    %v1966 = vstv %s1965
    %v1967 = vrsqrt.pop %v1966
    %s1968 = vtos %v1967
    %v1969 = vstv %s1968
    %v1970 = vmul.f32 %v1952, %v1969
    %v1971 = vstv %s1938
    %v1972 = vmul.f32 %v1970, %v1971
    %v1973 = vstv %s1939
    %v1974 = vadd.f32 %v1972, %v1973
    %v1975 = vmax.f32 %v1974, 0.0
    %s1976 = scalar_lea.vmem %s10, 16
    %1977 = vst.msk [vmem:[%s1976] sm:$0xff] %vm1134, %v1975
    %s1978 = sld [smem:[#allocation4 + $0x36]]
    %v1979 = vld [vmem:[#allocation2] sm:$0xff]
    %v1980 = vstv %s1978
    %v1981 = vmul.f32 %v1980, %v1979
    %v1982 = vadd.f32 %v1981, 0.0
    %s1983 = sld [smem:[#allocation4 + $0x37]]
    %v1984 = vld [vmem:[%s173] sm:$0xff]
    %v1985 = vstv %s1983
    %v1986 = vmul.f32 %v1985, %v1984
    %v1987 = vadd.f32 %v1982, %v1986
    %s1988 = sld [smem:[#allocation4 + $0x38]]
    %v1989 = vstv %s1988
    %v1990 = vmul.f32 %v1989, %v1979
    %1992 = vrot.lane.b32.xlu0 %v1990, 126
    %v1993 = vpop.permute.xlu0 %1992
    %v1995 = vadd.f32 %v1987, %v1993
    %s1996 = sld [smem:[#allocation4 + $0x39]]
    %v1997 = vld [vmem:[%s186] sm:$0xff]
    %v1998 = vstv %s1996
    %v1999 = vmul.f32 %v1998, %v1997
    %v2000 = vadd.f32 %v1995, %v1999
    %s2001 = sld [smem:[#allocation4 + $0x3a]]
    %v2002 = vld [vmem:[%s197] sm:$0xff]
    %v2003 = vstv %s2001
    %v2004 = vmul.f32 %v2003, %v2002
    %v2005 = vadd.f32 %v2000, %v2004
    %s2006 = sld [smem:[#allocation4 + $0x3b]]
    %v2007 = vstv %s2006
    %v2008 = vmul.f32 %v2007, %v1997
    %2010 = vrot.lane.b32.xlu0 %v2008, 126
    %v2011 = vpop.permute.xlu0 %2010
    %v2013 = vadd.f32 %v2005, %v2011
    %s2014 = sld [smem:[#allocation4 + $0x3c]]
    %v2015 = vld [vmem:[#allocation2 + $0x1] sm:$0xff]
    %v2016 = vstv %s2014
    %v2017 = vmul.f32 %v2016, %v2015
    %v2018 = vadd.f32 %v2013, %v2017
    %s2019 = sld [smem:[#allocation4 + $0x3d]]
    %v2020 = vld [vmem:[%s173 + $0x1] sm:$0xff]
    %v2021 = vstv %s2019
    %v2022 = vmul.f32 %v2021, %v2020
    %v2023 = vadd.f32 %v2018, %v2022
    %s2024 = sld [smem:[#allocation4 + $0x3e]]
    %v2025 = vstv %s2024
    %v2026 = vmul.f32 %v2025, %v2015
    %2028 = vrot.lane.b32.xlu0 %v2026, 126
    %v2029 = vpop.permute.xlu0 %2028
    %v2031 = vadd.f32 %v2023, %v2029
    %s2032 = sld [smem:[#allocation4 + $0x3f]]
    %v2033 = vld [vmem:[%s169] sm:$0xff]
    %v2034 = vstv %s2032
    %v2035 = vmul.f32 %v2034, %v2033
    %v2036 = vadd.f32 %v2031, %v2035
    %s2037 = sld [smem:[#allocation4 + $0x40]]
    %v2038 = vld [vmem:[%s178] sm:$0xff]
    %v2039 = vstv %s2037
    %v2040 = vmul.f32 %v2039, %v2038
    %v2041 = vadd.f32 %v2036, %v2040
    %s2042 = sld [smem:[#allocation4 + $0x41]]
    %v2043 = vstv %s2042
    %v2044 = vmul.f32 %v2043, %v2033
    %2046 = vrot.lane.b32.xlu0 %v2044, 126
    %v2047 = vpop.permute.xlu0 %2046
    %v2049 = vadd.f32 %v2041, %v2047
    %s2050 = sld [smem:[#allocation4 + $0x42]]
    %v2051 = vld [vmem:[%s194] sm:$0xff]
    %v2052 = vstv %s2050
    %v2053 = vmul.f32 %v2052, %v2051
    %v2054 = vadd.f32 %v2049, %v2053
    %s2055 = sld [smem:[#allocation4 + $0x43]]
    %v2056 = vld [vmem:[%s201] sm:$0xff]
    %v2057 = vstv %s2055
    %v2058 = vmul.f32 %v2057, %v2056
    %v2059 = vadd.f32 %v2054, %v2058
    %s2060 = sld [smem:[#allocation4 + $0x44]]
    %v2061 = vstv %s2060
    %v2062 = vmul.f32 %v2061, %v2051
    %2064 = vrot.lane.b32.xlu0 %v2062, 126
    %v2065 = vpop.permute.xlu0 %2064
    %v2067 = vadd.f32 %v2059, %v2065
    %s2068 = sld [smem:[#allocation4 + $0x45]]
    %v2069 = vld [vmem:[%s169 + $0x1] sm:$0xff]
    %v2070 = vstv %s2068
    %v2071 = vmul.f32 %v2070, %v2069
    %v2072 = vadd.f32 %v2067, %v2071
    %s2073 = sld [smem:[#allocation4 + $0x46]]
    %v2074 = vld [vmem:[%s178 + $0x1] sm:$0xff]
    %v2075 = vstv %s2073
    %v2076 = vmul.f32 %v2075, %v2074
    %v2077 = vadd.f32 %v2072, %v2076
    %s2078 = sld [smem:[#allocation4 + $0x47]]
    %v2079 = vstv %s2078
    %v2080 = vmul.f32 %v2079, %v2069
    %2082 = vrot.lane.b32.xlu0 %v2080, 126
    %v2083 = vpop.permute.xlu0 %2082
    %v2085 = vadd.f32 %v2077, %v2083
    %v2086 = vmul.f32 %v1980, %v1984
    %v2087 = vadd.f32 %v2086, 0.0
    %v2088 = vmul.f32 %v1985, %v1979
    %2090 = vrot.lane.b32.xlu0 %v2088, 126
    %v2091 = vpop.permute.xlu0 %2090
    %v2093 = vadd.f32 %v2087, %v2091
    %v2094 = vmul.f32 %v1989, %v1984
    %2096 = vrot.lane.b32.xlu0 %v2094, 126
    %v2097 = vpop.permute.xlu0 %2096
    %v2099 = vadd.f32 %v2093, %v2097
    %v2100 = vmul.f32 %v1998, %v2002
    %v2101 = vadd.f32 %v2099, %v2100
    %v2102 = vmul.f32 %v2003, %v1997
    %2104 = vrot.lane.b32.xlu0 %v2102, 126
    %v2105 = vpop.permute.xlu0 %2104
    %v2107 = vadd.f32 %v2101, %v2105
    %v2108 = vmul.f32 %v2007, %v2002
    %2110 = vrot.lane.b32.xlu0 %v2108, 126
    %v2111 = vpop.permute.xlu0 %2110
    %v2113 = vadd.f32 %v2107, %v2111
    %v2114 = vmul.f32 %v2016, %v2020
    %v2115 = vadd.f32 %v2113, %v2114
    %v2116 = vmul.f32 %v2021, %v2015
    %2118 = vrot.lane.b32.xlu0 %v2116, 126
    %v2119 = vpop.permute.xlu0 %2118
    %v2121 = vadd.f32 %v2115, %v2119
    %v2122 = vmul.f32 %v2025, %v2020
    %2124 = vrot.lane.b32.xlu0 %v2122, 126
    %v2125 = vpop.permute.xlu0 %2124
    %v2127 = vadd.f32 %v2121, %v2125
    %v2128 = vmul.f32 %v2034, %v2038
    %v2129 = vadd.f32 %v2127, %v2128
    %v2130 = vmul.f32 %v2039, %v2033
    %2132 = vrot.lane.b32.xlu0 %v2130, 126
    %v2133 = vpop.permute.xlu0 %2132
    %v2135 = vadd.f32 %v2129, %v2133
    %v2136 = vmul.f32 %v2043, %v2038
    %2138 = vrot.lane.b32.xlu0 %v2136, 126
    %v2139 = vpop.permute.xlu0 %2138
    %v2141 = vadd.f32 %v2135, %v2139
    %v2142 = vmul.f32 %v2052, %v2056
    %v2143 = vadd.f32 %v2141, %v2142
    %v2144 = vmul.f32 %v2057, %v2051
    %2146 = vrot.lane.b32.xlu0 %v2144, 126
    %v2147 = vpop.permute.xlu0 %2146
    %v2149 = vadd.f32 %v2143, %v2147
    %v2150 = vmul.f32 %v2061, %v2056
    %2152 = vrot.lane.b32.xlu0 %v2150, 126
    %v2153 = vpop.permute.xlu0 %2152
    %v2155 = vadd.f32 %v2149, %v2153
    %v2156 = vmul.f32 %v2070, %v2074
    %v2157 = vadd.f32 %v2155, %v2156
    %v2158 = vmul.f32 %v2075, %v2069
    %2160 = vrot.lane.b32.xlu0 %v2158, 126
    %v2161 = vpop.permute.xlu0 %2160
    %v2163 = vadd.f32 %v2157, %v2161
    %v2164 = vmul.f32 %v2079, %v2074
    %2166 = vrot.lane.b32.xlu0 %v2164, 126
    %v2167 = vpop.permute.xlu0 %2166
    %v2169 = vadd.f32 %v2163, %v2167
    %v2170 = vmul.f32 %v1980, %v1997
    %v2171 = vadd.f32 %v2170, 0.0
    %v2172 = vmul.f32 %v1985, %v2002
    %v2173 = vadd.f32 %v2171, %v2172
    %v2174 = vmul.f32 %v1989, %v1997
    %2176 = vrot.lane.b32.xlu0 %v2174, 126
    %v2177 = vpop.permute.xlu0 %2176
    %v2179 = vadd.f32 %v2173, %v2177
    %v2180 = vmul.f32 %v1998, %v2015
    %v2181 = vadd.f32 %v2179, %v2180
    %v2182 = vmul.f32 %v2003, %v2020
    %v2183 = vadd.f32 %v2181, %v2182
    %v2184 = vmul.f32 %v2007, %v2015
    %2186 = vrot.lane.b32.xlu0 %v2184, 126
    %v2187 = vpop.permute.xlu0 %2186
    %v2189 = vadd.f32 %v2183, %v2187
    %v2190 = vld [vmem:[%s186 + $0x1] sm:$0xff]
    %v2191 = vmul.f32 %v2016, %v2190
    %v2192 = vadd.f32 %v2189, %v2191
    %v2193 = vld [vmem:[%s197 + $0x1] sm:$0xff]
    %v2194 = vmul.f32 %v2021, %v2193
    %v2195 = vadd.f32 %v2192, %v2194
    %v2196 = vmul.f32 %v2025, %v2190
    %2198 = vrot.lane.b32.xlu0 %v2196, 126
    %v2199 = vpop.permute.xlu0 %2198
    %v2201 = vadd.f32 %v2195, %v2199
    %v2202 = vmul.f32 %v2034, %v2051
    %v2203 = vadd.f32 %v2201, %v2202
    %v2204 = vmul.f32 %v2039, %v2056
    %v2205 = vadd.f32 %v2203, %v2204
    %v2206 = vmul.f32 %v2043, %v2051
    %2208 = vrot.lane.b32.xlu0 %v2206, 126
    %v2209 = vpop.permute.xlu0 %2208
    %v2211 = vadd.f32 %v2205, %v2209
    %v2212 = vmul.f32 %v2052, %v2069
    %v2213 = vadd.f32 %v2211, %v2212
    %v2214 = vmul.f32 %v2057, %v2074
    %v2215 = vadd.f32 %v2213, %v2214
    %v2216 = vmul.f32 %v2061, %v2069
    %2218 = vrot.lane.b32.xlu0 %v2216, 126
    %v2219 = vpop.permute.xlu0 %2218
    %v2221 = vadd.f32 %v2215, %v2219
    %v2222 = vld [vmem:[%s194 + $0x1] sm:$0xff]
    %v2223 = vmul.f32 %v2070, %v2222
    %v2224 = vadd.f32 %v2221, %v2223
    %v2225 = vld [vmem:[%s201 + $0x1] sm:$0xff]
    %v2226 = vmul.f32 %v2075, %v2225
    %v2227 = vadd.f32 %v2224, %v2226
    %v2228 = vmul.f32 %v2079, %v2222
    %2230 = vrot.lane.b32.xlu0 %v2228, 126
    %v2231 = vpop.permute.xlu0 %2230
    %v2233 = vadd.f32 %v2227, %v2231
    %v2234 = vmul.f32 %v1980, %v2002
    %v2235 = vadd.f32 %v2234, 0.0
    %v2236 = vmul.f32 %v1985, %v1997
    %2238 = vrot.lane.b32.xlu0 %v2236, 126
    %v2239 = vpop.permute.xlu0 %2238
    %v2241 = vadd.f32 %v2235, %v2239
    %v2242 = vmul.f32 %v1989, %v2002
    %2244 = vrot.lane.b32.xlu0 %v2242, 126
    %v2245 = vpop.permute.xlu0 %2244
    %v2247 = vadd.f32 %v2241, %v2245
    %v2248 = vmul.f32 %v1998, %v2020
    %v2249 = vadd.f32 %v2247, %v2248
    %v2250 = vmul.f32 %v2003, %v2015
    %2252 = vrot.lane.b32.xlu0 %v2250, 126
    %v2253 = vpop.permute.xlu0 %2252
    %v2255 = vadd.f32 %v2249, %v2253
    %v2256 = vmul.f32 %v2007, %v2020
    %2258 = vrot.lane.b32.xlu0 %v2256, 126
    %v2259 = vpop.permute.xlu0 %2258
    %v2261 = vadd.f32 %v2255, %v2259
    %v2262 = vmul.f32 %v2016, %v2193
    %v2263 = vadd.f32 %v2261, %v2262
    %v2264 = vmul.f32 %v2021, %v2190
    %2266 = vrot.lane.b32.xlu0 %v2264, 126
    %v2267 = vpop.permute.xlu0 %2266
    %v2269 = vadd.f32 %v2263, %v2267
    %v2270 = vmul.f32 %v2025, %v2193
    %2272 = vrot.lane.b32.xlu0 %v2270, 126
    %v2273 = vpop.permute.xlu0 %2272
    %v2275 = vadd.f32 %v2269, %v2273
    %v2276 = vmul.f32 %v2034, %v2056
    %v2277 = vadd.f32 %v2275, %v2276
    %v2278 = vmul.f32 %v2039, %v2051
    %2280 = vrot.lane.b32.xlu0 %v2278, 126
    %v2281 = vpop.permute.xlu0 %2280
    %v2283 = vadd.f32 %v2277, %v2281
    %v2284 = vmul.f32 %v2043, %v2056
    %2286 = vrot.lane.b32.xlu0 %v2284, 126
    %v2287 = vpop.permute.xlu0 %2286
    %v2289 = vadd.f32 %v2283, %v2287
    %v2290 = vmul.f32 %v2052, %v2074
    %v2291 = vadd.f32 %v2289, %v2290
    %v2292 = vmul.f32 %v2057, %v2069
    %2294 = vrot.lane.b32.xlu0 %v2292, 126
    %v2295 = vpop.permute.xlu0 %2294
    %v2297 = vadd.f32 %v2291, %v2295
    %v2298 = vmul.f32 %v2061, %v2074
    %2300 = vrot.lane.b32.xlu0 %v2298, 126
    %v2301 = vpop.permute.xlu0 %2300
    %v2303 = vadd.f32 %v2297, %v2301
    %v2304 = vmul.f32 %v2070, %v2225
    %v2305 = vadd.f32 %v2303, %v2304
    %v2306 = vmul.f32 %v2075, %v2222
    %2308 = vrot.lane.b32.xlu0 %v2306, 126
    %v2309 = vpop.permute.xlu0 %2308
    %v2311 = vadd.f32 %v2305, %v2309
    %v2312 = vmul.f32 %v2079, %v2225
    %2314 = vrot.lane.b32.xlu0 %v2312, 126
    %v2315 = vpop.permute.xlu0 %2314
    %v2317 = vadd.f32 %v2311, %v2315
    %v2318 = vadd.f32 %v2085, %v2169
    %v2319 = vadd.f32 %v2318, %v2233
    %v2320 = vadd.f32 %v2319, %v2317
    %v2321 = vmul.f32 %v2320, 0.25
    %v2322 = vadd.f32 %v2085, %v766
    %v2323 = vadd.f32 %v2169, %v766
    %v2324 = vadd.f32 %v2233, %v766
    %v2325 = vadd.f32 %v2317, %v766
    %2327 = vrot.lane.b32.xlu0 %v2323, 16
    %v2328 = vpop.permute.xlu0 %2327
    %2331 = vrot.lane.b32.xlu0 %v2324, 32
    %v2332 = vpop.permute.xlu0 %2331
    %2335 = vrot.lane.b32.xlu0 %v2325, 48
    %v2336 = vpop.permute.xlu0 %2335
    %v2338 = vsel %vm174, %v2322, %v2328
    %v2339 = vsel %vm1128, %v2338, %v2332
    %v2340 = vsel %vm1130, %v2339, %v2336
    %s2341 = sld [smem:[#allocation11 + $0x3]]
    %s2342 = sld [smem:[#allocation12 + $0x3]]
    %v2343 = vsel %vm1134, %v2340, 0.0
    %2344 = vadd.xlane.f32.xlu0 %v2343
    %v2345 = vpop.xlane.xlu0 %2344
    %v2346 = vrot.slane %v2345, 4
    %v2347 = vadd.f32 %v2345, %v2346
    %v2348 = vrot.slane %v2347, 2
    %v2349 = vadd.f32 %v2347, %v2348
    %v2350 = vrot.slane %v2349, 1
    %v2351 = vadd.f32 %v2349, %v2350
    %s2352 = vtos %v2351
    %s2353 = smul.f32 %s2352, 0.001953125
    %v2354 = vstv %s2353
    %v2355 = vsub.f32 %v2340, %v2354
    %v2356 = vmul.f32 %v2355, %v2355
    %v2357 = vsel %vm1134, %v2356, 0.0
    %2358 = vadd.xlane.f32.xlu0 %v2357
    %v2359 = vpop.xlane.xlu0 %2358
    %v2360 = vrot.slane %v2359, 4
    %v2361 = vadd.f32 %v2359, %v2360
    %v2362 = vrot.slane %v2361, 2
    %v2363 = vadd.f32 %v2361, %v2362
    %v2364 = vrot.slane %v2363, 1
    %v2365 = vadd.f32 %v2363, %v2364
    %s2366 = vtos %v2365
    %s2367 = smul.f32 %s2366, 0.001953125
    %s2368 = sadd.f32 %s2367, 1e-05
    %v2369 = vstv %s2368
    %v2370 = vrsqrt.pop %v2369
    %s2371 = vtos %v2370
    %v2372 = vstv %s2371
    %v2373 = vmul.f32 %v2355, %v2372
    %v2374 = vstv %s2341
    %v2375 = vmul.f32 %v2373, %v2374
    %v2376 = vstv %s2342
    %v2377 = vadd.f32 %v2375, %v2376
    %v2378 = vmax.f32 %v2377, 0.0
    %s2379 = scalar_lea.vmem %s10, 24
    %2380 = vst.msk [vmem:[%s2379] sm:$0xff] %vm1134, %v2378
    %s2381 = sld [smem:[#allocation8]]
    %v2382 = vstv %s2381
    %v2383 = vmul.f32 %v2382, %v1110
    %v2384 = vadd.f32 %v2383, 0.0
    %s2385 = sld [smem:[#allocation8 + $0x1]]
    %v2386 = vstv %s2385
    %v2387 = vmul.f32 %v2386, %v1515
    %v2388 = vadd.f32 %v2384, %v2387
    %s2389 = sld [smem:[#allocation8 + $0x2]]
    %v2390 = vstv %s2389
    %v2391 = vmul.f32 %v2390, %v1918
    %v2392 = vadd.f32 %v2388, %v2391
    %s2393 = sld [smem:[#allocation8 + $0x3]]
    %v2394 = vstv %s2393
    %v2395 = vmul.f32 %v2394, %v2321
    %v2396 = vadd.f32 %v2392, %v2395
    %v2397 = vadd.f32 %v342, %v2396
    %s2398 = sld [smem:[#allocation14]]
    %s2399 = sld [smem:[#allocation15]]
    %v2400 = vsel %vm174, %v2397, 0.0
    %2401 = vadd.xlane.f32.xlu0 %v2400
    %v2402 = vpop.xlane.xlu0 %2401
    %v2403 = vrot.slane %v2402, 4
    %v2404 = vadd.f32 %v2402, %v2403
    %v2405 = vrot.slane %v2404, 2
    %v2406 = vadd.f32 %v2404, %v2405
    %v2407 = vrot.slane %v2406, 1
    %v2408 = vadd.f32 %v2406, %v2407
    %s2409 = vtos %v2408
    %s2410 = smul.f32 %s2409, 0.0078125
    %v2411 = vstv %s2410
    %v2412 = vsub.f32 %v2397, %v2411
    %v2413 = vmul.f32 %v2412, %v2412
    %v2414 = vsel %vm174, %v2413, 0.0
    %2415 = vadd.xlane.f32.xlu0 %v2414
    %v2416 = vpop.xlane.xlu0 %2415
    %v2417 = vrot.slane %v2416, 4
    %v2418 = vadd.f32 %v2416, %v2417
    %v2419 = vrot.slane %v2418, 2
    %v2420 = vadd.f32 %v2418, %v2419
    %v2421 = vrot.slane %v2420, 1
    %v2422 = vadd.f32 %v2420, %v2421
    %s2423 = vtos %v2422
    %s2424 = smul.f32 %s2423, 0.0078125
    %s2425 = sadd.f32 %s2424, 1e-05
    %v2426 = vstv %s2425
    %v2427 = vrsqrt.pop %v2426
    %s2428 = vtos %v2427
    %v2429 = vstv %s2428
    %v2430 = vmul.f32 %v2412, %v2429
    %v2431 = vstv %s2398
    %v2432 = vmul.f32 %v2430, %v2431
    %v2433 = vstv %s2399
    %v2434 = vadd.f32 %v2432, %v2433
    %v2435 = vmax.f32 %v2434, 0.0
    %2436 = vst.msk [vmem:[%s11] sm:$0xff] %vm174, %v2435
    %s2437 = sld [smem:[#allocation8 + $0x4]]
    %v2438 = vstv %s2437
    %v2439 = vmul.f32 %v2438, %v1110
    %v2440 = vadd.f32 %v2439, 0.0
    %s2441 = sld [smem:[#allocation8 + $0x5]]
    %v2442 = vstv %s2441
    %v2443 = vmul.f32 %v2442, %v1515
    %v2444 = vadd.f32 %v2440, %v2443
    %s2445 = sld [smem:[#allocation8 + $0x6]]
    %v2446 = vstv %s2445
    %v2447 = vmul.f32 %v2446, %v1918
    %v2448 = vadd.f32 %v2444, %v2447
    %s2449 = sld [smem:[#allocation8 + $0x7]]
    %v2450 = vstv %s2449
    %v2451 = vmul.f32 %v2450, %v2321
    %v2452 = vadd.f32 %v2448, %v2451
    %v2453 = vadd.f32 %v462, %v2452
    %s2454 = sld [smem:[#allocation14 + $0x1]]
    %s2455 = sld [smem:[#allocation15 + $0x1]]
    %v2456 = vsel %vm174, %v2453, 0.0
    %2457 = vadd.xlane.f32.xlu0 %v2456
    %v2458 = vpop.xlane.xlu0 %2457
    %v2459 = vrot.slane %v2458, 4
    %v2460 = vadd.f32 %v2458, %v2459
    %v2461 = vrot.slane %v2460, 2
    %v2462 = vadd.f32 %v2460, %v2461
    %v2463 = vrot.slane %v2462, 1
    %v2464 = vadd.f32 %v2462, %v2463
    %s2465 = vtos %v2464
    %s2466 = smul.f32 %s2465, 0.0078125
    %v2467 = vstv %s2466
    %v2468 = vsub.f32 %v2453, %v2467
    %v2469 = vmul.f32 %v2468, %v2468
    %v2470 = vsel %vm174, %v2469, 0.0
    %2471 = vadd.xlane.f32.xlu0 %v2470
    %v2472 = vpop.xlane.xlu0 %2471
    %v2473 = vrot.slane %v2472, 4
    %v2474 = vadd.f32 %v2472, %v2473
    %v2475 = vrot.slane %v2474, 2
    %v2476 = vadd.f32 %v2474, %v2475
    %v2477 = vrot.slane %v2476, 1
    %v2478 = vadd.f32 %v2476, %v2477
    %s2479 = vtos %v2478
    %s2480 = smul.f32 %s2479, 0.0078125
    %s2481 = sadd.f32 %s2480, 1e-05
    %v2482 = vstv %s2481
    %v2483 = vrsqrt.pop %v2482
    %s2484 = vtos %v2483
    %v2485 = vstv %s2484
    %v2486 = vmul.f32 %v2468, %v2485
    %v2487 = vstv %s2454
    %v2488 = vmul.f32 %v2486, %v2487
    %v2489 = vstv %s2455
    %v2490 = vadd.f32 %v2488, %v2489
    %v2491 = vmax.f32 %v2490, 0.0
    %s2492 = scalar_lea.vmem %s11, 8
    %2493 = vst.msk [vmem:[%s2492] sm:$0xff] %vm174, %v2491
    %s2494 = sld [smem:[#allocation8 + $0x8]]
    %v2495 = vstv %s2494
    %v2496 = vmul.f32 %v2495, %v1110
    %v2497 = vadd.f32 %v2496, 0.0
    %s2498 = sld [smem:[#allocation8 + $0x9]]
    %v2499 = vstv %s2498
    %v2500 = vmul.f32 %v2499, %v1515
    %v2501 = vadd.f32 %v2497, %v2500
    %s2502 = sld [smem:[#allocation8 + $0xa]]
    %v2503 = vstv %s2502
    %v2504 = vmul.f32 %v2503, %v1918
    %v2505 = vadd.f32 %v2501, %v2504
    %s2506 = sld [smem:[#allocation8 + $0xb]]
    %v2507 = vstv %s2506
    %v2508 = vmul.f32 %v2507, %v2321
    %v2509 = vadd.f32 %v2505, %v2508
    %v2510 = vadd.f32 %v582, %v2509
    %s2511 = sld [smem:[#allocation14 + $0x2]]
    %s2512 = sld [smem:[#allocation15 + $0x2]]
    %v2513 = vsel %vm174, %v2510, 0.0
    %2514 = vadd.xlane.f32.xlu0 %v2513
    %v2515 = vpop.xlane.xlu0 %2514
    %v2516 = vrot.slane %v2515, 4
    %v2517 = vadd.f32 %v2515, %v2516
    %v2518 = vrot.slane %v2517, 2
    %v2519 = vadd.f32 %v2517, %v2518
    %v2520 = vrot.slane %v2519, 1
    %v2521 = vadd.f32 %v2519, %v2520
    %s2522 = vtos %v2521
    %s2523 = smul.f32 %s2522, 0.0078125
    %v2524 = vstv %s2523
    %v2525 = vsub.f32 %v2510, %v2524
    %v2526 = vmul.f32 %v2525, %v2525
    %v2527 = vsel %vm174, %v2526, 0.0
    %2528 = vadd.xlane.f32.xlu0 %v2527
    %v2529 = vpop.xlane.xlu0 %2528
    %v2530 = vrot.slane %v2529, 4
    %v2531 = vadd.f32 %v2529, %v2530
    %v2532 = vrot.slane %v2531, 2
    %v2533 = vadd.f32 %v2531, %v2532
    %v2534 = vrot.slane %v2533, 1
    %v2535 = vadd.f32 %v2533, %v2534
    %s2536 = vtos %v2535
    %s2537 = smul.f32 %s2536, 0.0078125
    %s2538 = sadd.f32 %s2537, 1e-05
    %v2539 = vstv %s2538
    %v2540 = vrsqrt.pop %v2539
    %s2541 = vtos %v2540
    %v2542 = vstv %s2541
    %v2543 = vmul.f32 %v2525, %v2542
    %v2544 = vstv %s2511
    %v2545 = vmul.f32 %v2543, %v2544
    %v2546 = vstv %s2512
    %v2547 = vadd.f32 %v2545, %v2546
    %v2548 = vmax.f32 %v2547, 0.0
    %s2549 = scalar_lea.vmem %s11, 16
    %2550 = vst.msk [vmem:[%s2549] sm:$0xff] %vm174, %v2548
    %s2551 = sld [smem:[#allocation8 + $0xc]]
    %v2552 = vstv %s2551
    %v2553 = vmul.f32 %v2552, %v1110
    %v2554 = vadd.f32 %v2553, 0.0
    %s2555 = sld [smem:[#allocation8 + $0xd]]
    %v2556 = vstv %s2555
    %v2557 = vmul.f32 %v2556, %v1515
    %v2558 = vadd.f32 %v2554, %v2557
    %s2559 = sld [smem:[#allocation8 + $0xe]]
    %v2560 = vstv %s2559
    %v2561 = vmul.f32 %v2560, %v1918
    %v2562 = vadd.f32 %v2558, %v2561
    %s2563 = sld [smem:[#allocation8 + $0xf]]
    %v2564 = vstv %s2563
    %v2565 = vmul.f32 %v2564, %v2321
    %v2566 = vadd.f32 %v2562, %v2565
    %v2567 = vadd.f32 %v702, %v2566
    %s2568 = sld [smem:[#allocation14 + $0x3]]
    %s2569 = sld [smem:[#allocation15 + $0x3]]
    %v2570 = vsel %vm174, %v2567, 0.0
    %2571 = vadd.xlane.f32.xlu0 %v2570
    %v2572 = vpop.xlane.xlu0 %2571
    %v2573 = vrot.slane %v2572, 4
    %v2574 = vadd.f32 %v2572, %v2573
    %v2575 = vrot.slane %v2574, 2
    %v2576 = vadd.f32 %v2574, %v2575
    %v2577 = vrot.slane %v2576, 1
    %v2578 = vadd.f32 %v2576, %v2577
    %s2579 = vtos %v2578
    %s2580 = smul.f32 %s2579, 0.0078125
    %v2581 = vstv %s2580
    %v2582 = vsub.f32 %v2567, %v2581
    %v2583 = vmul.f32 %v2582, %v2582
    %v2584 = vsel %vm174, %v2583, 0.0
    %2585 = vadd.xlane.f32.xlu0 %v2584
    %v2586 = vpop.xlane.xlu0 %2585
    %v2587 = vrot.slane %v2586, 4
    %v2588 = vadd.f32 %v2586, %v2587
    %v2589 = vrot.slane %v2588, 2
    %v2590 = vadd.f32 %v2588, %v2589
    %v2591 = vrot.slane %v2590, 1
    %v2592 = vadd.f32 %v2590, %v2591
    %s2593 = vtos %v2592
    %s2594 = smul.f32 %s2593, 0.0078125
    %s2595 = sadd.f32 %s2594, 1e-05
    %v2596 = vstv %s2595
    %v2597 = vrsqrt.pop %v2596
    %s2598 = vtos %v2597
    %v2599 = vstv %s2598
    %v2600 = vmul.f32 %v2582, %v2599
    %v2601 = vstv %s2568
    %v2602 = vmul.f32 %v2600, %v2601
    %v2603 = vstv %s2569
    %v2604 = vadd.f32 %v2602, %v2603
    %v2605 = vmax.f32 %v2604, 0.0
    %s2606 = scalar_lea.vmem %s11, 24
    %2607 = vst.msk [vmem:[%s2606] sm:$0xff] %vm174, %v2605
    // Predicated region
    $region74: #{oct_bn_relu_forward.1} parent=1 // pred_check
      _
    $region75: #{oct_bn_relu_forward.1} parent=1 // pred_check_branch
      %2609 = sbr.rel (0) target = $region77
    $region76: #{oct_bn_relu_forward.1} parent=1 // pred_region
      _
    $region77: #{oct_bn_relu_forward.1} parent=1 // pred_fallthru
      _
    // Predicated region
    $region78: #{oct_bn_relu_forward.1} parent=1 // pred_check
      _
    $region79: #{oct_bn_relu_forward.1} parent=1 // pred_check_branch
      %2611 = sbr.rel (0) target = $region81
    $region80: #{oct_bn_relu_forward.1} parent=1 // pred_region
      _
    $region81: #{oct_bn_relu_forward.1} parent=1 // pred_fallthru
      _
    // Predicated region
    $region82: #{oct_bn_relu_forward.1} parent=1 // pred_check
      _
    $region83: #{oct_bn_relu_forward.1} parent=1 // pred_check_branch
      %2613 = sbr.rel (0) target = $region85
    $region84: #{oct_bn_relu_forward.1} parent=1 // pred_region
      _
    $region85: #{oct_bn_relu_forward.1} parent=1 // pred_fallthru
      _
    // Predicated region
    $region86: #{oct_bn_relu_forward.1} parent=1 // pred_check
      _
    $region87: #{oct_bn_relu_forward.1} parent=1 // pred_check_branch
      %2615 = sbr.rel (0) target = $region89
    $region88: #{oct_bn_relu_forward.1} parent=1 // pred_region
      _
    $region89: #{oct_bn_relu_forward.1} parent=1 // pred_fallthru
      _
    %2616 = vsyncpa [#allocation5], 1
    %2617 = vsyncpa [#allocation7], 1
    %2618 = vsyncpa [#allocation10], 1
    %2619 = vsyncpa [#allocation13], 1
    %2620 = vsyncpa [#allocation16], 1

</llo_original>
